<compile_context>
chip_gen: v5e
topology: v5e:2x2
jax: 0.10.0
libtpu: 0.0.40
codegen_flags: <defaults>
</compile_context>

<pallas_src>
import functools
import math

import jax
import jax.numpy as jnp
from jax import lax
from jax.experimental import pallas as pl
from jax.experimental.pallas import tpu as pltpu


# --------------------------------------------------------------------------
# Fused whole-module kernel: conv1+relu -> conv2+relu -> conv3+relu -> attn
# (one batch element x one H-tile per grid step)
# --------------------------------------------------------------------------
def _tsdm_fused_kernel(xcol_ref, w1_ref, b1_ref, w2_ref, b2_ref,
                       w3_ref, b3_ref, wa_ref, ba_ref, out_ref, *, H, W, TH):
    bf = jnp.bfloat16
    row0 = pl.program_id(1) * TH               # first output row of this tile

    ph1, pw1 = TH + 4, W + 4                   # layer-1 output extent (halo 2)
    ph2, pw2 = TH + 2, W + 2                   # layer-2 output extent (halo 1)
    kcol = xcol_ref.shape[-1]

    # ---- layer 1: im2col'd 3x3 conv, both branches, one bf16 MXU matmul ----
    xcol = xcol_ref[...].astype(bf).reshape(ph1 * pw1, kcol)
    a1 = jnp.dot(xcol, w1_ref[...], preferred_element_type=jnp.float32)
    a1 = jnp.maximum(a1 + b1_ref[...], 0.0).reshape(ph1, pw1, 128)

    # zero halo positions outside the image (= the per-conv zero padding)
    ri = lax.broadcasted_iota(jnp.int32, (ph1, pw1, 1), 0) + (row0 - 2)
    ci = lax.broadcasted_iota(jnp.int32, (ph1, pw1, 1), 1) - 2
    a1 = jnp.where((ri >= 0) & (ri < H) & (ci >= 0) & (ci < W), a1, 0.0)
    a1 = a1.astype(bf)

    # ---- layer 2: 3x3 conv, 128 -> 256 (block-diagonal fused branches) ----
    acc2 = jnp.zeros((ph2 * pw2, 256), jnp.float32)
    for dy in range(3):                        # 9 static taps -> 9 MXU matmuls
        for dx in range(3):
            patch = a1[dy:dy + ph2, dx:dx + pw2, :].reshape(ph2 * pw2, 128)
            acc2 = acc2 + jnp.dot(patch, w2_ref[dy * 3 + dx],
                                  preferred_element_type=jnp.float32)
    a2 = jnp.maximum(acc2 + b2_ref[...], 0.0).reshape(ph2, pw2, 256)

    ri = lax.broadcasted_iota(jnp.int32, (ph2, pw2, 1), 0) + (row0 - 1)
    ci = lax.broadcasted_iota(jnp.int32, (ph2, pw2, 1), 1) - 1
    a2 = jnp.where((ri >= 0) & (ri < H) & (ci >= 0) & (ci < W), a2, 0.0)
    a2 = a2.astype(bf)

    # ---- layer 3: 3x3 conv, 256 -> 128 (block-diagonal fused branches) ----
    acc3 = jnp.zeros((TH * W, 128), jnp.float32)
    for dy in range(3):
        for dx in range(3):
            patch = a2[dy:dy + TH, dx:dx + W, :].reshape(TH * W, 256)
            acc3 = acc3 + jnp.dot(patch, w3_ref[dy * 3 + dx],
                                  preferred_element_type=jnp.float32)
    feat = jnp.maximum(acc3 + b3_ref[...], 0.0)          # (TH*W, 128), f32

    # ---- fused 1x1 attention conv + sigmoid + multiply (both branches) ----
    logits = jnp.dot(feat.astype(bf), wa_ref[...],
                     preferred_element_type=jnp.float32) + ba_ref[...]
    att = jax.nn.sigmoid(logits)                          # (TH*W, 2), f32
    ch = lax.broadcasted_iota(jnp.int32, (1, 128), 1)
    att_full = jnp.where(ch < 64, att[:, 0:1], att[:, 1:2])   # (TH*W, 128)
    out_ref[...] = (feat * att_full).reshape(TH, W, 128)


# --------------------------------------------------------------------------
# Parameter init (deterministic, PyTorch-conv-like uniform fan-in bound)
# --------------------------------------------------------------------------
def _init_conv(key, cin, cout, k):
    fan_in = cin * k * k
    bound = 1.0 / math.sqrt(fan_in)
    kw, kb = jax.random.split(key)
    w = jax.random.uniform(kw, (k, k, cin, cout), jnp.float32, -bound, bound)
    b = jax.random.uniform(kb, (cout,), jnp.float32, -bound, bound)
    return w, b


def init_params(key, in_channels=3):
    keys = jax.random.split(key, 8)
    p = {}
    for prefix, off in (("s", 0), ("t", 4)):
        p[prefix + "1"] = _init_conv(keys[off + 0], in_channels, 64, 3)
        p[prefix + "2"] = _init_conv(keys[off + 1], 64, 128, 3)
        p[prefix + "3"] = _init_conv(keys[off + 2], 128, 64, 3)
        p[prefix + "a"] = _init_conv(keys[off + 3], 64, 1, 1)
    return p


# --------------------------------------------------------------------------
# Branch fusion: concat / block-diagonal weights so the kernel does one pass
# --------------------------------------------------------------------------
def fuse_params(params, in_channels=3):
    cin = in_channels
    k1 = 9 * cin
    kp = max(8, ((k1 + 7) // 8) * 8)            # pad layer-1 K (27 -> 32)
    bf = jnp.bfloat16

    w_s1, b_s1 = params["s1"]; w_t1, b_t1 = params["t1"]
    w_s2, b_s2 = params["s2"]; w_t2, b_t2 = params["t2"]
    w_s3, b_s3 = params["s3"]; w_t3, b_t3 = params["t3"]
    w_sa, b_sa = params["sa"]; w_ta, b_ta = params["ta"]

    w1 = jnp.zeros((kp, 128), jnp.float32)
    w1 = w1.at[:k1, :64].set(w_s1.reshape(k1, 64))
    w1 = w1.at[:k1, 64:].set(w_t1.reshape(k1, 64))
    b1 = jnp.concatenate([b_s1, b_t1]).reshape(1, 128)

    w2 = jnp.zeros((9, 128, 256), jnp.float32)
    w2 = w2.at[:, :64, :128].set(w_s2.reshape(9, 64, 128))
    w2 = w2.at[:, 64:, 128:].set(w_t2.reshape(9, 64, 128))
    b2 = jnp.concatenate([b_s2, b_t2]).reshape(1, 256)

    w3 = jnp.zeros((9, 256, 128), jnp.float32)
    w3 = w3.at[:, :128, :64].set(w_s3.reshape(9, 128, 64))
    w3 = w3.at[:, 128:, 64:].set(w_t3.reshape(9, 128, 64))
    b3 = jnp.concatenate([b_s3, b_t3]).reshape(1, 128)

    wa = jnp.zeros((128, 2), jnp.float32)
    wa = wa.at[:64, 0].set(w_sa.reshape(64))
    wa = wa.at[64:, 1].set(w_ta.reshape(64))
    ba = jnp.concatenate([b_sa, b_ta]).reshape(1, 2)

    return dict(kp=kp,
                w1=w1.astype(bf), b1=b1, w2=w2.astype(bf), b2=b2,
                w3=w3.astype(bf), b3=b3, wa=wa.astype(bf), ba=ba)


# --------------------------------------------------------------------------
# Full module forward (NCHW in / NCHW out, like the PyTorch module)
# --------------------------------------------------------------------------
def tsdm_forward(x_nchw, params, tile_h=8):
    x = jnp.transpose(x_nchw, (0, 2, 3, 1)).astype(jnp.float32)   # NHWC
    B, H, W, cin = x.shape
    fused = fuse_params(params, cin)
    kp = fused["kp"]

    TH = min(tile_h, H)
    nT = pl.cdiv(H, TH)
    Hp = nT * TH

    # Single zero pad of the thin Cin-channel input (halo = 3 for 3 stacked 3x3
    # convs); replaces the six per-conv jnp.pad passes over wide activations.
    xp = jnp.pad(x, ((0, 0), (3, 3 + Hp - H), (3, 3), (0, 0)))
    # im2col: fold the 9 conv-1 taps into the contraction dim (K = 9*Cin -> kp)
    cols = [xp[:, dy:dy + Hp + 4, dx:dx + W + 4, :]
            for dy in range(3) for dx in range(3)]
    xcol = jnp.concatenate(cols, axis=-1)                  # (B, Hp+4, W+4, 9*Cin)
    if kp > 9 * cin:
        xcol = jnp.pad(xcol, ((0, 0), (0, 0), (0, 0), (0, kp - 9 * cin)))
    # Explicit overlapping H-tiles (+/-2 halo) of the thin im2col input, so the
    # kernel stays pure-BlockSpec / auto-pipelined and intermediate 128/256-ch
    # activations never touch HBM.
    tiles = jnp.stack([xcol[:, t * TH: t * TH + TH + 4] for t in range(nT)],
                      axis=1)                              # (B, nT, TH+4, W+4, kp)

    kernel = functools.partial(_tsdm_fused_kernel, H=H, W=W, TH=TH)
    out = pl.pallas_call(
        kernel,
        out_shape=jax.ShapeDtypeStruct((B, Hp, W, 128), jnp.float32),
        grid=(B, nT),
        in_specs=[
            pl.BlockSpec((None, None, TH + 4, W + 4, kp),
                         lambda b, t: (b, t, 0, 0, 0)),
            pl.BlockSpec((kp, 128), lambda b, t: (0, 0)),
            pl.BlockSpec((1, 128), lambda b, t: (0, 0)),
            pl.BlockSpec((9, 128, 256), lambda b, t: (0, 0, 0)),
            pl.BlockSpec((1, 256), lambda b, t: (0, 0)),
            pl.BlockSpec((9, 256, 128), lambda b, t: (0, 0, 0)),
            pl.BlockSpec((1, 128), lambda b, t: (0, 0)),
            pl.BlockSpec((128, 2), lambda b, t: (0, 0)),
            pl.BlockSpec((1, 2), lambda b, t: (0, 0)),
        ],
        out_specs=pl.BlockSpec((None, TH, W, 128), lambda b, t: (b, t, 0, 0)),
        compiler_params=pltpu.CompilerParams(
            dimension_semantics=("parallel", "parallel"),
            vmem_limit_bytes=64 * 1024 * 1024),
    )(tiles, fused["w1"], fused["b1"], fused["w2"], fused["b2"],
      fused["w3"], fused["b3"], fused["wa"], fused["ba"])

    out = out[:, :H]                                       # drop H padding
    structure_out = jnp.transpose(out[..., :64], (0, 3, 1, 2))
    texture_out = jnp.transpose(out[..., 64:], (0, 3, 1, 2))
    return structure_out, texture_out


# --------------------------------------------------------------------------
# Pure-JAX f32 reference (for the correctness spot-check)
# --------------------------------------------------------------------------
def _ref_conv3x3_relu(x, w, b):
    y = lax.conv_general_dilated(
        x, w, (1, 1), "SAME",
        dimension_numbers=("NHWC", "HWIO", "NHWC"),
        precision=lax.Precision.HIGHEST)
    return jax.nn.relu(y + b)


def ref_forward(x_nchw, params):
    x = jnp.transpose(x_nchw, (0, 2, 3, 1))

    def branch(p):
        h = _ref_conv3x3_relu(x, *params[p + "1"])
        h = _ref_conv3x3_relu(h, *params[p + "2"])
        feat = _ref_conv3x3_relu(h, *params[p + "3"])
        wa, ba = params[p + "a"]
        att = jax.nn.sigmoid(
            jnp.einsum("bhwc,cf->bhwf", feat, wa.reshape(64, 1),
                       precision=lax.Precision.HIGHEST) + ba)
        return feat * att

    return (jnp.transpose(branch("s"), (0, 3, 1, 2)),
            jnp.transpose(branch("t"), (0, 3, 1, 2)))


if __name__ == "__main__":
    key = jax.random.PRNGKey(0)
    kx, kp_ = jax.random.split(key)
    x = jax.random.normal(kx, (2, 3, 16, 16), jnp.float32)   # NCHW, like PyTorch
    params = init_params(kp_, in_channels=3)

    fwd = jax.jit(tsdm_forward)
    s_out, t_out = jax.block_until_ready(fwd(x, params))
    s_ref, t_ref = ref_forward(x, params)

    assert s_out.shape == (2, 64, 16, 16) and t_out.shape == (2, 64, 16, 16)

    # bf16-MXU / f32-accumulate tolerance vs. the f32 reference
    def _excess(a, b):
        return float(jnp.max(jnp.abs(a - b) - (5e-2 + 3e-2 * jnp.abs(b))))

    worst = max(_excess(s_out, s_ref), _excess(t_out, t_ref))
    if worst > 0.0:
        raise AssertionError(f"kernel mismatch vs reference (excess={worst})")
    print("KERNEL_OK")
</pallas_src>

<mosaic_0001>
module attributes {stable_mosaic.version = 11 : i64} {
  func.func @_tsdm_fused_kernel(%arg0: i32, %arg1: i32, %arg2: memref<1x1x12x20x32xf32, #tpu.memory_space<vmem>>, %arg3: memref<32x128xbf16, #tpu.memory_space<vmem>>, %arg4: memref<1x128xf32, #tpu.memory_space<vmem>>, %arg5: memref<9x128x256xbf16, #tpu.memory_space<vmem>>, %arg6: memref<1x256xf32, #tpu.memory_space<vmem>>, %arg7: memref<9x256x128xbf16, #tpu.memory_space<vmem>>, %arg8: memref<1x128xf32, #tpu.memory_space<vmem>>, %arg9: memref<128x2xbf16, #tpu.memory_space<vmem>>, %arg10: memref<1x2xf32, #tpu.memory_space<vmem>>, %arg11: memref<1x8x16x128xf32, #tpu.memory_space<vmem>>) attributes {dimension_semantics = [#tpu.dimension_semantics<parallel>, #tpu.dimension_semantics<parallel>], iteration_bounds = array<i64: 2, 2>, scalar_prefetch = 0 : i64, scratch_operands = 0 : i64, tpu.core_type = #tpu.core_type<tc>, window_params = [{transform_indices = @transform_0, window_bounds = array<i64: 1, 1, 12, 20, 32>}, {pipeline_mode = #tpu.pipeline_mode<synchronous>, transform_indices = @transform_1, window_bounds = array<i64: 32, 128>}, {pipeline_mode = #tpu.pipeline_mode<synchronous>, transform_indices = @transform_2, window_bounds = array<i64: 1, 128>}, {pipeline_mode = #tpu.pipeline_mode<synchronous>, transform_indices = @transform_3, window_bounds = array<i64: 9, 128, 256>}, {pipeline_mode = #tpu.pipeline_mode<synchronous>, transform_indices = @transform_4, window_bounds = array<i64: 1, 256>}, {pipeline_mode = #tpu.pipeline_mode<synchronous>, transform_indices = @transform_5, window_bounds = array<i64: 9, 256, 128>}, {pipeline_mode = #tpu.pipeline_mode<synchronous>, transform_indices = @transform_6, window_bounds = array<i64: 1, 128>}, {pipeline_mode = #tpu.pipeline_mode<synchronous>, transform_indices = @transform_7, window_bounds = array<i64: 128, 2>}, {pipeline_mode = #tpu.pipeline_mode<synchronous>, transform_indices = @transform_8, window_bounds = array<i64: 1, 2>}, {transform_indices = @transform_9, window_bounds = array<i64: 1, 8, 16, 128>}]} {
    %c8_i32 = arith.constant 8 : i32
    %0 = arith.muli %arg1, %c8_i32 : i32
    %c0 = arith.constant 0 : index
    %c0_0 = arith.constant 0 : index
    %c0_1 = arith.constant 0 : index
    %c0_2 = arith.constant 0 : index
    %c0_3 = arith.constant 0 : index
    %1 = vector.load %arg2[%c0, %c0_0, %c0_1, %c0_2, %c0_3] : memref<1x1x12x20x32xf32, #tpu.memory_space<vmem>>, vector<1x1x12x20x32xf32>
    %2 = vector.shape_cast %1 : vector<1x1x12x20x32xf32> to vector<12x20x32xf32>
    %3 = arith.truncf %2 : vector<12x20x32xf32> to vector<12x20x32xbf16>
    %4 = vector.shape_cast %3 : vector<12x20x32xbf16> to vector<240x32xbf16>
    %c0_4 = arith.constant 0 : index
    %c0_5 = arith.constant 0 : index
    %5 = vector.load %arg3[%c0_4, %c0_5] : memref<32x128xbf16, #tpu.memory_space<vmem>>, vector<32x128xbf16>
    %cst = arith.constant dense<0.000000e+00> : vector<240x128xf32>
    %6 = tpu.matmul %4, %5, %cst {dimension_numbers = #tpu.dot_dimension_numbers<[1], [0], [0], [1], [0, 0, 1, 1], [], []>} : vector<240x32xbf16>, vector<32x128xbf16>, vector<240x128xf32> -> vector<240x128xf32>
    %c0_6 = arith.constant 0 : index
    %c0_7 = arith.constant 0 : index
    %7 = vector.load %arg4[%c0_6, %c0_7] : memref<1x128xf32, #tpu.memory_space<vmem>>, vector<1x128xf32>
    %8 = vector.broadcast %7 : vector<1x128xf32> to vector<240x128xf32>
    %9 = arith.addf %6, %8 : vector<240x128xf32>
    %cst_8 = arith.constant 0.000000e+00 : f32
    %10 = vector.broadcast %cst_8 : f32 to vector<240x128xf32>
    %11 = arith.maximumf %9, %10 : vector<240x128xf32>
    %12 = vector.shape_cast %11 : vector<240x128xf32> to vector<12x20x128xf32>
    %13 = tpu.iota {dimensions = array<i32: 0>} : vector<12x20x1xi32>
    %c2_i32 = arith.constant 2 : i32
    %14 = arith.subi %0, %c2_i32 : i32
    %15 = vector.broadcast %14 : i32 to vector<12x20x1xi32>
    %16 = arith.addi %13, %15 : vector<12x20x1xi32>
    %17 = tpu.iota {dimensions = array<i32: 1>} : vector<12x20x1xi32>
    %c2_i32_9 = arith.constant 2 : i32
    %18 = vector.broadcast %c2_i32_9 : i32 to vector<12x20x1xi32>
    %19 = arith.subi %17, %18 : vector<12x20x1xi32>
    %c0_i32 = arith.constant 0 : i32
    %20 = vector.broadcast %c0_i32 : i32 to vector<12x20x1xi32>
    %21 = arith.cmpi sge, %16, %20 : vector<12x20x1xi32>
    %c16_i32 = arith.constant 16 : i32
    %22 = vector.broadcast %c16_i32 : i32 to vector<12x20x1xi32>
    %23 = arith.cmpi slt, %16, %22 : vector<12x20x1xi32>
    %24 = arith.andi %21, %23 : vector<12x20x1xi1>
    %c0_i32_10 = arith.constant 0 : i32
    %25 = vector.broadcast %c0_i32_10 : i32 to vector<12x20x1xi32>
    %26 = arith.cmpi sge, %19, %25 : vector<12x20x1xi32>
    %27 = arith.andi %24, %26 : vector<12x20x1xi1>
    %c16_i32_11 = arith.constant 16 : i32
    %28 = vector.broadcast %c16_i32_11 : i32 to vector<12x20x1xi32>
    %29 = arith.cmpi slt, %19, %28 : vector<12x20x1xi32>
    %30 = arith.andi %27, %29 : vector<12x20x1xi1>
    %cst_12 = arith.constant 0.000000e+00 : f32
    %31 = vector.shape_cast %30 : vector<12x20x1xi1> to vector<12x20x1xi1>
    %32 = vector.broadcast %31 : vector<12x20x1xi1> to vector<12x20x128xi1>
    %33 = vector.broadcast %cst_12 : f32 to vector<12x20x128xf32>
    %34 = arith.select %32, %12, %33 : vector<12x20x128xi1>, vector<12x20x128xf32>
    %35 = arith.truncf %34 : vector<12x20x128xf32> to vector<12x20x128xbf16>
    %cst_13 = arith.constant 0.000000e+00 : f32
    %36 = vector.broadcast %cst_13 : f32 to vector<180x256xf32>
    %37 = vector.extract_strided_slice %35 {offsets = [0, 0, 0], sizes = [10, 18, 128], strides = [1, 1, 1]} : vector<12x20x128xbf16> to vector<10x18x128xbf16>
    %38 = vector.shape_cast %37 : vector<10x18x128xbf16> to vector<180x128xbf16>
    %c0_14 = arith.constant 0 : index
    %c0_15 = arith.constant 0 : index
    %c0_16 = arith.constant 0 : index
    %39 = vector.load %arg5[%c0_14, %c0_15, %c0_16] : memref<9x128x256xbf16, #tpu.memory_space<vmem>>, vector<1x128x256xbf16>
    %40 = vector.shape_cast %39 : vector<1x128x256xbf16> to vector<128x256xbf16>
    %cst_17 = arith.constant dense<0.000000e+00> : vector<180x256xf32>
    %41 = tpu.matmul %38, %40, %cst_17 {dimension_numbers = #tpu.dot_dimension_numbers<[1], [0], [0], [1], [0, 0, 1, 1], [], []>} : vector<180x128xbf16>, vector<128x256xbf16>, vector<180x256xf32> -> vector<180x256xf32>
    %42 = arith.addf %36, %41 : vector<180x256xf32>
    %43 = vector.extract_strided_slice %35 {offsets = [0, 1, 0], sizes = [10, 18, 128], strides = [1, 1, 1]} : vector<12x20x128xbf16> to vector<10x18x128xbf16>
    %44 = vector.shape_cast %43 : vector<10x18x128xbf16> to vector<180x128xbf16>
    %c1 = arith.constant 1 : index
    %c0_18 = arith.constant 0 : index
    %c0_19 = arith.constant 0 : index
    %45 = vector.load %arg5[%c1, %c0_18, %c0_19] : memref<9x128x256xbf16, #tpu.memory_space<vmem>>, vector<1x128x256xbf16>
    %46 = vector.shape_cast %45 : vector<1x128x256xbf16> to vector<128x256xbf16>
    %cst_20 = arith.constant dense<0.000000e+00> : vector<180x256xf32>
    %47 = tpu.matmul %44, %46, %cst_20 {dimension_numbers = #tpu.dot_dimension_numbers<[1], [0], [0], [1], [0, 0, 1, 1], [], []>} : vector<180x128xbf16>, vector<128x256xbf16>, vector<180x256xf32> -> vector<180x256xf32>
    %48 = arith.addf %42, %47 : vector<180x256xf32>
    %49 = vector.extract_strided_slice %35 {offsets = [0, 2, 0], sizes = [10, 18, 128], strides = [1, 1, 1]} : vector<12x20x128xbf16> to vector<10x18x128xbf16>
    %50 = vector.shape_cast %49 : vector<10x18x128xbf16> to vector<180x128xbf16>
    %c2 = arith.constant 2 : index
    %c0_21 = arith.constant 0 : index
    %c0_22 = arith.constant 0 : index
    %51 = vector.load %arg5[%c2, %c0_21, %c0_22] : memref<9x128x256xbf16, #tpu.memory_space<vmem>>, vector<1x128x256xbf16>
    %52 = vector.shape_cast %51 : vector<1x128x256xbf16> to vector<128x256xbf16>
    %cst_23 = arith.constant dense<0.000000e+00> : vector<180x256xf32>
    %53 = tpu.matmul %50, %52, %cst_23 {dimension_numbers = #tpu.dot_dimension_numbers<[1], [0], [0], [1], [0, 0, 1, 1], [], []>} : vector<180x128xbf16>, vector<128x256xbf16>, vector<180x256xf32> -> vector<180x256xf32>
    %54 = arith.addf %48, %53 : vector<180x256xf32>
    %55 = vector.extract_strided_slice %35 {offsets = [1, 0, 0], sizes = [10, 18, 128], strides = [1, 1, 1]} : vector<12x20x128xbf16> to vector<10x18x128xbf16>
    %56 = vector.shape_cast %55 : vector<10x18x128xbf16> to vector<180x128xbf16>
    %c3 = arith.constant 3 : index
    %c0_24 = arith.constant 0 : index
    %c0_25 = arith.constant 0 : index
    %57 = vector.load %arg5[%c3, %c0_24, %c0_25] : memref<9x128x256xbf16, #tpu.memory_space<vmem>>, vector<1x128x256xbf16>
    %58 = vector.shape_cast %57 : vector<1x128x256xbf16> to vector<128x256xbf16>
    %cst_26 = arith.constant dense<0.000000e+00> : vector<180x256xf32>
    %59 = tpu.matmul %56, %58, %cst_26 {dimension_numbers = #tpu.dot_dimension_numbers<[1], [0], [0], [1], [0, 0, 1, 1], [], []>} : vector<180x128xbf16>, vector<128x256xbf16>, vector<180x256xf32> -> vector<180x256xf32>
    %60 = arith.addf %54, %59 : vector<180x256xf32>
    %61 = vector.extract_strided_slice %35 {offsets = [1, 1, 0], sizes = [10, 18, 128], strides = [1, 1, 1]} : vector<12x20x128xbf16> to vector<10x18x128xbf16>
    %62 = vector.shape_cast %61 : vector<10x18x128xbf16> to vector<180x128xbf16>
    %c4 = arith.constant 4 : index
    %c0_27 = arith.constant 0 : index
    %c0_28 = arith.constant 0 : index
    %63 = vector.load %arg5[%c4, %c0_27, %c0_28] : memref<9x128x256xbf16, #tpu.memory_space<vmem>>, vector<1x128x256xbf16>
    %64 = vector.shape_cast %63 : vector<1x128x256xbf16> to vector<128x256xbf16>
    %cst_29 = arith.constant dense<0.000000e+00> : vector<180x256xf32>
    %65 = tpu.matmul %62, %64, %cst_29 {dimension_numbers = #tpu.dot_dimension_numbers<[1], [0], [0], [1], [0, 0, 1, 1], [], []>} : vector<180x128xbf16>, vector<128x256xbf16>, vector<180x256xf32> -> vector<180x256xf32>
    %66 = arith.addf %60, %65 : vector<180x256xf32>
    %67 = vector.extract_strided_slice %35 {offsets = [1, 2, 0], sizes = [10, 18, 128], strides = [1, 1, 1]} : vector<12x20x128xbf16> to vector<10x18x128xbf16>
    %68 = vector.shape_cast %67 : vector<10x18x128xbf16> to vector<180x128xbf16>
    %c5 = arith.constant 5 : index
    %c0_30 = arith.constant 0 : index
    %c0_31 = arith.constant 0 : index
    %69 = vector.load %arg5[%c5, %c0_30, %c0_31] : memref<9x128x256xbf16, #tpu.memory_space<vmem>>, vector<1x128x256xbf16>
    %70 = vector.shape_cast %69 : vector<1x128x256xbf16> to vector<128x256xbf16>
    %cst_32 = arith.constant dense<0.000000e+00> : vector<180x256xf32>
    %71 = tpu.matmul %68, %70, %cst_32 {dimension_numbers = #tpu.dot_dimension_numbers<[1], [0], [0], [1], [0, 0, 1, 1], [], []>} : vector<180x128xbf16>, vector<128x256xbf16>, vector<180x256xf32> -> vector<180x256xf32>
    %72 = arith.addf %66, %71 : vector<180x256xf32>
    %73 = vector.extract_strided_slice %35 {offsets = [2, 0, 0], sizes = [10, 18, 128], strides = [1, 1, 1]} : vector<12x20x128xbf16> to vector<10x18x128xbf16>
    %74 = vector.shape_cast %73 : vector<10x18x128xbf16> to vector<180x128xbf16>
    %c6 = arith.constant 6 : index
    %c0_33 = arith.constant 0 : index
    %c0_34 = arith.constant 0 : index
    %75 = vector.load %arg5[%c6, %c0_33, %c0_34] : memref<9x128x256xbf16, #tpu.memory_space<vmem>>, vector<1x128x256xbf16>
    %76 = vector.shape_cast %75 : vector<1x128x256xbf16> to vector<128x256xbf16>
    %cst_35 = arith.constant dense<0.000000e+00> : vector<180x256xf32>
    %77 = tpu.matmul %74, %76, %cst_35 {dimension_numbers = #tpu.dot_dimension_numbers<[1], [0], [0], [1], [0, 0, 1, 1], [], []>} : vector<180x128xbf16>, vector<128x256xbf16>, vector<180x256xf32> -> vector<180x256xf32>
    %78 = arith.addf %72, %77 : vector<180x256xf32>
    %79 = vector.extract_strided_slice %35 {offsets = [2, 1, 0], sizes = [10, 18, 128], strides = [1, 1, 1]} : vector<12x20x128xbf16> to vector<10x18x128xbf16>
    %80 = vector.shape_cast %79 : vector<10x18x128xbf16> to vector<180x128xbf16>
    %c7 = arith.constant 7 : index
    %c0_36 = arith.constant 0 : index
    %c0_37 = arith.constant 0 : index
    %81 = vector.load %arg5[%c7, %c0_36, %c0_37] : memref<9x128x256xbf16, #tpu.memory_space<vmem>>, vector<1x128x256xbf16>
    %82 = vector.shape_cast %81 : vector<1x128x256xbf16> to vector<128x256xbf16>
    %cst_38 = arith.constant dense<0.000000e+00> : vector<180x256xf32>
    %83 = tpu.matmul %80, %82, %cst_38 {dimension_numbers = #tpu.dot_dimension_numbers<[1], [0], [0], [1], [0, 0, 1, 1], [], []>} : vector<180x128xbf16>, vector<128x256xbf16>, vector<180x256xf32> -> vector<180x256xf32>
    %84 = arith.addf %78, %83 : vector<180x256xf32>
    %85 = vector.extract_strided_slice %35 {offsets = [2, 2, 0], sizes = [10, 18, 128], strides = [1, 1, 1]} : vector<12x20x128xbf16> to vector<10x18x128xbf16>
    %86 = vector.shape_cast %85 : vector<10x18x128xbf16> to vector<180x128xbf16>
    %c8 = arith.constant 8 : index
    %c0_39 = arith.constant 0 : index
    %c0_40 = arith.constant 0 : index
    %87 = vector.load %arg5[%c8, %c0_39, %c0_40] : memref<9x128x256xbf16, #tpu.memory_space<vmem>>, vector<1x128x256xbf16>
    %88 = vector.shape_cast %87 : vector<1x128x256xbf16> to vector<128x256xbf16>
    %cst_41 = arith.constant dense<0.000000e+00> : vector<180x256xf32>
    %89 = tpu.matmul %86, %88, %cst_41 {dimension_numbers = #tpu.dot_dimension_numbers<[1], [0], [0], [1], [0, 0, 1, 1], [], []>} : vector<180x128xbf16>, vector<128x256xbf16>, vector<180x256xf32> -> vector<180x256xf32>
    %90 = arith.addf %84, %89 : vector<180x256xf32>
    %c0_42 = arith.constant 0 : index
    %c0_43 = arith.constant 0 : index
    %91 = vector.load %arg6[%c0_42, %c0_43] : memref<1x256xf32, #tpu.memory_space<vmem>>, vector<1x256xf32>
    %92 = vector.broadcast %91 : vector<1x256xf32> to vector<180x256xf32>
    %93 = arith.addf %90, %92 : vector<180x256xf32>
    %cst_44 = arith.constant 0.000000e+00 : f32
    %94 = vector.broadcast %cst_44 : f32 to vector<180x256xf32>
    %95 = arith.maximumf %93, %94 : vector<180x256xf32>
    %96 = vector.shape_cast %95 : vector<180x256xf32> to vector<10x18x256xf32>
    %97 = tpu.iota {dimensions = array<i32: 0>} : vector<10x18x1xi32>
    %c1_i32 = arith.constant 1 : i32
    %98 = arith.subi %0, %c1_i32 : i32
    %99 = vector.broadcast %98 : i32 to vector<10x18x1xi32>
    %100 = arith.addi %97, %99 : vector<10x18x1xi32>
    %101 = tpu.iota {dimensions = array<i32: 1>} : vector<10x18x1xi32>
    %c1_i32_45 = arith.constant 1 : i32
    %102 = vector.broadcast %c1_i32_45 : i32 to vector<10x18x1xi32>
    %103 = arith.subi %101, %102 : vector<10x18x1xi32>
    %c0_i32_46 = arith.constant 0 : i32
    %104 = vector.broadcast %c0_i32_46 : i32 to vector<10x18x1xi32>
    %105 = arith.cmpi sge, %100, %104 : vector<10x18x1xi32>
    %c16_i32_47 = arith.constant 16 : i32
    %106 = vector.broadcast %c16_i32_47 : i32 to vector<10x18x1xi32>
    %107 = arith.cmpi slt, %100, %106 : vector<10x18x1xi32>
    %108 = arith.andi %105, %107 : vector<10x18x1xi1>
    %c0_i32_48 = arith.constant 0 : i32
    %109 = vector.broadcast %c0_i32_48 : i32 to vector<10x18x1xi32>
    %110 = arith.cmpi sge, %103, %109 : vector<10x18x1xi32>
    %111 = arith.andi %108, %110 : vector<10x18x1xi1>
    %c16_i32_49 = arith.constant 16 : i32
    %112 = vector.broadcast %c16_i32_49 : i32 to vector<10x18x1xi32>
    %113 = arith.cmpi slt, %103, %112 : vector<10x18x1xi32>
    %114 = arith.andi %111, %113 : vector<10x18x1xi1>
    %cst_50 = arith.constant 0.000000e+00 : f32
    %115 = vector.shape_cast %114 : vector<10x18x1xi1> to vector<10x18x1xi1>
    %116 = vector.broadcast %115 : vector<10x18x1xi1> to vector<10x18x256xi1>
    %117 = vector.broadcast %cst_50 : f32 to vector<10x18x256xf32>
    %118 = arith.select %116, %96, %117 : vector<10x18x256xi1>, vector<10x18x256xf32>
    %119 = arith.truncf %118 : vector<10x18x256xf32> to vector<10x18x256xbf16>
    %cst_51 = arith.constant 0.000000e+00 : f32
    %120 = vector.broadcast %cst_51 : f32 to vector<128x128xf32>
    %121 = vector.extract_strided_slice %119 {offsets = [0, 0, 0], sizes = [8, 16, 256], strides = [1, 1, 1]} : vector<10x18x256xbf16> to vector<8x16x256xbf16>
    %122 = vector.shape_cast %121 : vector<8x16x256xbf16> to vector<128x256xbf16>
    %c0_52 = arith.constant 0 : index
    %c0_53 = arith.constant 0 : index
    %c0_54 = arith.constant 0 : index
    %123 = vector.load %arg7[%c0_52, %c0_53, %c0_54] : memref<9x256x128xbf16, #tpu.memory_space<vmem>>, vector<1x256x128xbf16>
    %124 = vector.shape_cast %123 : vector<1x256x128xbf16> to vector<256x128xbf16>
    %cst_55 = arith.constant dense<0.000000e+00> : vector<128x128xf32>
    %125 = tpu.matmul %122, %124, %cst_55 {dimension_numbers = #tpu.dot_dimension_numbers<[1], [0], [0], [1], [0, 0, 1, 1], [], []>} : vector<128x256xbf16>, vector<256x128xbf16>, vector<128x128xf32> -> vector<128x128xf32>
    %126 = arith.addf %120, %125 : vector<128x128xf32>
    %127 = vector.extract_strided_slice %119 {offsets = [0, 1, 0], sizes = [8, 16, 256], strides = [1, 1, 1]} : vector<10x18x256xbf16> to vector<8x16x256xbf16>
    %128 = vector.shape_cast %127 : vector<8x16x256xbf16> to vector<128x256xbf16>
    %c1_56 = arith.constant 1 : index
    %c0_57 = arith.constant 0 : index
    %c0_58 = arith.constant 0 : index
    %129 = vector.load %arg7[%c1_56, %c0_57, %c0_58] : memref<9x256x128xbf16, #tpu.memory_space<vmem>>, vector<1x256x128xbf16>
    %130 = vector.shape_cast %129 : vector<1x256x128xbf16> to vector<256x128xbf16>
    %cst_59 = arith.constant dense<0.000000e+00> : vector<128x128xf32>
    %131 = tpu.matmul %128, %130, %cst_59 {dimension_numbers = #tpu.dot_dimension_numbers<[1], [0], [0], [1], [0, 0, 1, 1], [], []>} : vector<128x256xbf16>, vector<256x128xbf16>, vector<128x128xf32> -> vector<128x128xf32>
    %132 = arith.addf %126, %131 : vector<128x128xf32>
    %133 = vector.extract_strided_slice %119 {offsets = [0, 2, 0], sizes = [8, 16, 256], strides = [1, 1, 1]} : vector<10x18x256xbf16> to vector<8x16x256xbf16>
    %134 = vector.shape_cast %133 : vector<8x16x256xbf16> to vector<128x256xbf16>
    %c2_60 = arith.constant 2 : index
    %c0_61 = arith.constant 0 : index
    %c0_62 = arith.constant 0 : index
    %135 = vector.load %arg7[%c2_60, %c0_61, %c0_62] : memref<9x256x128xbf16, #tpu.memory_space<vmem>>, vector<1x256x128xbf16>
    %136 = vector.shape_cast %135 : vector<1x256x128xbf16> to vector<256x128xbf16>
    %cst_63 = arith.constant dense<0.000000e+00> : vector<128x128xf32>
    %137 = tpu.matmul %134, %136, %cst_63 {dimension_numbers = #tpu.dot_dimension_numbers<[1], [0], [0], [1], [0, 0, 1, 1], [], []>} : vector<128x256xbf16>, vector<256x128xbf16>, vector<128x128xf32> -> vector<128x128xf32>
    %138 = arith.addf %132, %137 : vector<128x128xf32>
    %139 = vector.extract_strided_slice %119 {offsets = [1, 0, 0], sizes = [8, 16, 256], strides = [1, 1, 1]} : vector<10x18x256xbf16> to vector<8x16x256xbf16>
    %140 = vector.shape_cast %139 : vector<8x16x256xbf16> to vector<128x256xbf16>
    %c3_64 = arith.constant 3 : index
    %c0_65 = arith.constant 0 : index
    %c0_66 = arith.constant 0 : index
    %141 = vector.load %arg7[%c3_64, %c0_65, %c0_66] : memref<9x256x128xbf16, #tpu.memory_space<vmem>>, vector<1x256x128xbf16>
    %142 = vector.shape_cast %141 : vector<1x256x128xbf16> to vector<256x128xbf16>
    %cst_67 = arith.constant dense<0.000000e+00> : vector<128x128xf32>
    %143 = tpu.matmul %140, %142, %cst_67 {dimension_numbers = #tpu.dot_dimension_numbers<[1], [0], [0], [1], [0, 0, 1, 1], [], []>} : vector<128x256xbf16>, vector<256x128xbf16>, vector<128x128xf32> -> vector<128x128xf32>
    %144 = arith.addf %138, %143 : vector<128x128xf32>
    %145 = vector.extract_strided_slice %119 {offsets = [1, 1, 0], sizes = [8, 16, 256], strides = [1, 1, 1]} : vector<10x18x256xbf16> to vector<8x16x256xbf16>
    %146 = vector.shape_cast %145 : vector<8x16x256xbf16> to vector<128x256xbf16>
    %c4_68 = arith.constant 4 : index
    %c0_69 = arith.constant 0 : index
    %c0_70 = arith.constant 0 : index
    %147 = vector.load %arg7[%c4_68, %c0_69, %c0_70] : memref<9x256x128xbf16, #tpu.memory_space<vmem>>, vector<1x256x128xbf16>
    %148 = vector.shape_cast %147 : vector<1x256x128xbf16> to vector<256x128xbf16>
    %cst_71 = arith.constant dense<0.000000e+00> : vector<128x128xf32>
    %149 = tpu.matmul %146, %148, %cst_71 {dimension_numbers = #tpu.dot_dimension_numbers<[1], [0], [0], [1], [0, 0, 1, 1], [], []>} : vector<128x256xbf16>, vector<256x128xbf16>, vector<128x128xf32> -> vector<128x128xf32>
    %150 = arith.addf %144, %149 : vector<128x128xf32>
    %151 = vector.extract_strided_slice %119 {offsets = [1, 2, 0], sizes = [8, 16, 256], strides = [1, 1, 1]} : vector<10x18x256xbf16> to vector<8x16x256xbf16>
    %152 = vector.shape_cast %151 : vector<8x16x256xbf16> to vector<128x256xbf16>
    %c5_72 = arith.constant 5 : index
    %c0_73 = arith.constant 0 : index
    %c0_74 = arith.constant 0 : index
    %153 = vector.load %arg7[%c5_72, %c0_73, %c0_74] : memref<9x256x128xbf16, #tpu.memory_space<vmem>>, vector<1x256x128xbf16>
    %154 = vector.shape_cast %153 : vector<1x256x128xbf16> to vector<256x128xbf16>
    %cst_75 = arith.constant dense<0.000000e+00> : vector<128x128xf32>
    %155 = tpu.matmul %152, %154, %cst_75 {dimension_numbers = #tpu.dot_dimension_numbers<[1], [0], [0], [1], [0, 0, 1, 1], [], []>} : vector<128x256xbf16>, vector<256x128xbf16>, vector<128x128xf32> -> vector<128x128xf32>
    %156 = arith.addf %150, %155 : vector<128x128xf32>
    %157 = vector.extract_strided_slice %119 {offsets = [2, 0, 0], sizes = [8, 16, 256], strides = [1, 1, 1]} : vector<10x18x256xbf16> to vector<8x16x256xbf16>
    %158 = vector.shape_cast %157 : vector<8x16x256xbf16> to vector<128x256xbf16>
    %c6_76 = arith.constant 6 : index
    %c0_77 = arith.constant 0 : index
    %c0_78 = arith.constant 0 : index
    %159 = vector.load %arg7[%c6_76, %c0_77, %c0_78] : memref<9x256x128xbf16, #tpu.memory_space<vmem>>, vector<1x256x128xbf16>
    %160 = vector.shape_cast %159 : vector<1x256x128xbf16> to vector<256x128xbf16>
    %cst_79 = arith.constant dense<0.000000e+00> : vector<128x128xf32>
    %161 = tpu.matmul %158, %160, %cst_79 {dimension_numbers = #tpu.dot_dimension_numbers<[1], [0], [0], [1], [0, 0, 1, 1], [], []>} : vector<128x256xbf16>, vector<256x128xbf16>, vector<128x128xf32> -> vector<128x128xf32>
    %162 = arith.addf %156, %161 : vector<128x128xf32>
    %163 = vector.extract_strided_slice %119 {offsets = [2, 1, 0], sizes = [8, 16, 256], strides = [1, 1, 1]} : vector<10x18x256xbf16> to vector<8x16x256xbf16>
    %164 = vector.shape_cast %163 : vector<8x16x256xbf16> to vector<128x256xbf16>
    %c7_80 = arith.constant 7 : index
    %c0_81 = arith.constant 0 : index
    %c0_82 = arith.constant 0 : index
    %165 = vector.load %arg7[%c7_80, %c0_81, %c0_82] : memref<9x256x128xbf16, #tpu.memory_space<vmem>>, vector<1x256x128xbf16>
    %166 = vector.shape_cast %165 : vector<1x256x128xbf16> to vector<256x128xbf16>
    %cst_83 = arith.constant dense<0.000000e+00> : vector<128x128xf32>
    %167 = tpu.matmul %164, %166, %cst_83 {dimension_numbers = #tpu.dot_dimension_numbers<[1], [0], [0], [1], [0, 0, 1, 1], [], []>} : vector<128x256xbf16>, vector<256x128xbf16>, vector<128x128xf32> -> vector<128x128xf32>
    %168 = arith.addf %162, %167 : vector<128x128xf32>
    %169 = vector.extract_strided_slice %119 {offsets = [2, 2, 0], sizes = [8, 16, 256], strides = [1, 1, 1]} : vector<10x18x256xbf16> to vector<8x16x256xbf16>
    %170 = vector.shape_cast %169 : vector<8x16x256xbf16> to vector<128x256xbf16>
    %c8_84 = arith.constant 8 : index
    %c0_85 = arith.constant 0 : index
    %c0_86 = arith.constant 0 : index
    %171 = vector.load %arg7[%c8_84, %c0_85, %c0_86] : memref<9x256x128xbf16, #tpu.memory_space<vmem>>, vector<1x256x128xbf16>
    %172 = vector.shape_cast %171 : vector<1x256x128xbf16> to vector<256x128xbf16>
    %cst_87 = arith.constant dense<0.000000e+00> : vector<128x128xf32>
    %173 = tpu.matmul %170, %172, %cst_87 {dimension_numbers = #tpu.dot_dimension_numbers<[1], [0], [0], [1], [0, 0, 1, 1], [], []>} : vector<128x256xbf16>, vector<256x128xbf16>, vector<128x128xf32> -> vector<128x128xf32>
    %174 = arith.addf %168, %173 : vector<128x128xf32>
    %c0_88 = arith.constant 0 : index
    %c0_89 = arith.constant 0 : index
    %175 = vector.load %arg8[%c0_88, %c0_89] : memref<1x128xf32, #tpu.memory_space<vmem>>, vector<1x128xf32>
    %176 = vector.broadcast %175 : vector<1x128xf32> to vector<128x128xf32>
    %177 = arith.addf %174, %176 : vector<128x128xf32>
    %cst_90 = arith.constant 0.000000e+00 : f32
    %178 = vector.broadcast %cst_90 : f32 to vector<128x128xf32>
    %179 = arith.maximumf %177, %178 : vector<128x128xf32>
    %180 = arith.truncf %179 : vector<128x128xf32> to vector<128x128xbf16>
    %c0_91 = arith.constant 0 : index
    %c0_92 = arith.constant 0 : index
    %181 = vector.load %arg9[%c0_91, %c0_92] : memref<128x2xbf16, #tpu.memory_space<vmem>>, vector<128x2xbf16>
    %cst_93 = arith.constant dense<0.000000e+00> : vector<128x2xf32>
    %182 = tpu.matmul %180, %181, %cst_93 {dimension_numbers = #tpu.dot_dimension_numbers<[1], [0], [0], [1], [0, 0, 1, 1], [], []>} : vector<128x128xbf16>, vector<128x2xbf16>, vector<128x2xf32> -> vector<128x2xf32>
    %c0_94 = arith.constant 0 : index
    %c0_95 = arith.constant 0 : index
    %183 = vector.load %arg10[%c0_94, %c0_95] : memref<1x2xf32, #tpu.memory_space<vmem>>, vector<1x2xf32>
    %184 = vector.broadcast %183 : vector<1x2xf32> to vector<128x2xf32>
    %185 = arith.addf %182, %184 : vector<128x2xf32>
    %186 = arith.negf %185 : vector<128x2xf32>
    %187 = math.exp %186 : vector<128x2xf32>
    %cst_96 = arith.constant 1.000000e+00 : f32
    %188 = vector.broadcast %cst_96 : f32 to vector<128x2xf32>
    %189 = arith.addf %188, %187 : vector<128x2xf32>
    %190 = arith.divf %188, %189 : vector<128x2xf32>
    %191 = tpu.iota {dimensions = array<i32: 1>} : vector<1x128xi32>
    %c64_i32 = arith.constant 64 : i32
    %192 = vector.broadcast %c64_i32 : i32 to vector<1x128xi32>
    %193 = arith.cmpi slt, %191, %192 : vector<1x128xi32>
    %194 = vector.extract_strided_slice %190 {offsets = [0, 0], sizes = [128, 1], strides = [1, 1]} : vector<128x2xf32> to vector<128x1xf32>
    %195 = vector.extract_strided_slice %190 {offsets = [0, 1], sizes = [128, 1], strides = [1, 1]} : vector<128x2xf32> to vector<128x1xf32>
    %196 = vector.shape_cast %193 : vector<1x128xi1> to vector<1x128xi1>
    %197 = vector.broadcast %196 : vector<1x128xi1> to vector<128x128xi1>
    %198 = vector.shape_cast %194 : vector<128x1xf32> to vector<128x1xf32>
    %199 = vector.broadcast %198 : vector<128x1xf32> to vector<128x128xf32>
    %200 = vector.shape_cast %195 : vector<128x1xf32> to vector<128x1xf32>
    %201 = vector.broadcast %200 : vector<128x1xf32> to vector<128x128xf32>
    %202 = arith.select %197, %199, %201 : vector<128x128xi1>, vector<128x128xf32>
    %203 = arith.mulf %179, %202 : vector<128x128xf32>
    %204 = vector.shape_cast %203 : vector<128x128xf32> to vector<8x16x128xf32>
    %c0_97 = arith.constant 0 : index
    %c0_98 = arith.constant 0 : index
    %c0_99 = arith.constant 0 : index
    %c0_100 = arith.constant 0 : index
    %205 = vector.load %arg11[%c0_97, %c0_98, %c0_99, %c0_100] : memref<1x8x16x128xf32, #tpu.memory_space<vmem>>, vector<1x8x16x128xf32>
    %206 = vector.shape_cast %205 : vector<1x8x16x128xf32> to vector<8x16x128xf32>
    %207 = vector.shape_cast %204 : vector<8x16x128xf32> to vector<1x8x16x128xf32>
    tpu.vector_store %arg11[%c0_97, %c0_98, %c0_99, %c0_100], %207 {strides = array<i32>} : memref<1x8x16x128xf32, #tpu.memory_space<vmem>>, vector<1x8x16x128xf32>,
    return
  }
  func.func @transform_0(%arg0: i32, %arg1: i32) -> (i32, i32, i32, i32, i32) {
    %c0_i32 = arith.constant 0 : i32
    %c0_i32_0 = arith.constant 0 : i32
    %c0_i32_1 = arith.constant 0 : i32
    %c0_i32_2 = arith.constant 0 : i32
    return %arg0, %arg1, %c0_i32, %c0_i32_0, %c0_i32_1 : i32, i32, i32, i32, i32
  }
  func.func @transform_1(%arg0: i32, %arg1: i32) -> (i32, i32) {
    %c0_i32 = arith.constant 0 : i32
    %c0_i32_0 = arith.constant 0 : i32
    %c0_i32_1 = arith.constant 0 : i32
    return %c0_i32, %c0_i32_0 : i32, i32
  }
  func.func @transform_2(%arg0: i32, %arg1: i32) -> (i32, i32) {
    %c0_i32 = arith.constant 0 : i32
    %c0_i32_0 = arith.constant 0 : i32
    %c0_i32_1 = arith.constant 0 : i32
    return %c0_i32, %c0_i32_0 : i32, i32
  }
  func.func @transform_3(%arg0: i32, %arg1: i32) -> (i32, i32, i32) {
    %c0_i32 = arith.constant 0 : i32
    %c0_i32_0 = arith.constant 0 : i32
    %c0_i32_1 = arith.constant 0 : i32
    %c0_i32_2 = arith.constant 0 : i32
    return %c0_i32, %c0_i32_0, %c0_i32_1 : i32, i32, i32
  }
  func.func @transform_4(%arg0: i32, %arg1: i32) -> (i32, i32) {
    %c0_i32 = arith.constant 0 : i32
    %c0_i32_0 = arith.constant 0 : i32
    %c0_i32_1 = arith.constant 0 : i32
    return %c0_i32, %c0_i32_0 : i32, i32
  }
  func.func @transform_5(%arg0: i32, %arg1: i32) -> (i32, i32, i32) {
    %c0_i32 = arith.constant 0 : i32
    %c0_i32_0 = arith.constant 0 : i32
    %c0_i32_1 = arith.constant 0 : i32
    %c0_i32_2 = arith.constant 0 : i32
    return %c0_i32, %c0_i32_0, %c0_i32_1 : i32, i32, i32
  }
  func.func @transform_6(%arg0: i32, %arg1: i32) -> (i32, i32) {
    %c0_i32 = arith.constant 0 : i32
    %c0_i32_0 = arith.constant 0 : i32
    %c0_i32_1 = arith.constant 0 : i32
    return %c0_i32, %c0_i32_0 : i32, i32
  }
  func.func @transform_7(%arg0: i32, %arg1: i32) -> (i32, i32) {
    %c0_i32 = arith.constant 0 : i32
    %c0_i32_0 = arith.constant 0 : i32
    %c0_i32_1 = arith.constant 0 : i32
    return %c0_i32, %c0_i32_0 : i32, i32
  }
  func.func @transform_8(%arg0: i32, %arg1: i32) -> (i32, i32) {
    %c0_i32 = arith.constant 0 : i32
    %c0_i32_0 = arith.constant 0 : i32
    %c0_i32_1 = arith.constant 0 : i32
    return %c0_i32, %c0_i32_0 : i32, i32
  }
  func.func @transform_9(%arg0: i32, %arg1: i32) -> (i32, i32, i32, i32) {
    %c0_i32 = arith.constant 0 : i32
    %c0_i32_0 = arith.constant 0 : i32
    %c0_i32_1 = arith.constant 0 : i32
    return %arg0, %arg1, %c0_i32, %c0_i32_0 : i32, i32, i32, i32
  }
}

</mosaic_0001>

<llo_original>
// kernel: tsdm_forward.1
$region0: #{tsdm_forward.1}
  #allocation0 [shape = 'u32[]', space=smem, size = 0x4, offset = 0x4, fixed_abs, tag = 'smem constant byte address 0x4 - core index']
  #allocation1 [shape = 'u32[72,128]{1,0:T(1,128)}', space=vmem, size = 0x9000, scoped, tag = 'internal scratch']
  %s0 = inlined_call_operand.vmem [shape: f32[2,2,12,20,32], index: 0, kind: input, shape index: {}]
  %s1 = inlined_call_operand.vmem [shape: bf16[32,128], index: 1, kind: input, shape index: {}]
  %s2 = inlined_call_operand.vmem [shape: f32[1,128], index: 2, kind: input, shape index: {}]
  %s3 = inlined_call_operand.vmem [shape: bf16[9,128,256], index: 3, kind: input, shape index: {}]
  %s4 = inlined_call_operand.vmem [shape: f32[1,256], index: 4, kind: input, shape index: {}]
  %s5 = inlined_call_operand.vmem [shape: bf16[9,256,128], index: 5, kind: input, shape index: {}]
  %s6 = inlined_call_operand.vmem [shape: f32[1,128], index: 6, kind: input, shape index: {}]
  %s7 = inlined_call_operand.vmem [shape: bf16[128,2], index: 7, kind: input, shape index: {}]
  %s8 = inlined_call_operand.vmem [shape: f32[1,2], index: 8, kind: input, shape index: {}]
  %s9 = inlined_call_operand.vmem [shape: f32[2,16,16,128], index: 9, kind: output, shape index: {}]
  %s10 = sld [smem:[#allocation0]]
  $region69: #{tsdm_forward.1} parent=0
    _
  %s12 = ssub.s32 1, %s10
  %s13 = scalar_select 0, %s12, %s10
  loop: start=0, step=1, limit=6
  $region2: #{tsdm_forward.1} parent=0 // loop_pre_header
    _
  $region3: #{tsdm_forward.1} parent=0 // loop_header
    %s15 = sphi 0, %s19
    %p16 = scmp.ge.s32.totalorder %s15, 6
    %s22 = sphi 0, %s34
    %s23 = sphi 0, %s30
    %s24 = sphi 0, %s22
    %s25 = sphi 0, %s23
    %s26 = sphi 0, %s24
    %s27 = sphi 0, %s25
    %s39 = sphi 0, %s41
    %s42 = sphi 0, %s39
    %s43 = sphi 0, %s42
    %s59 = sphi 0, %s43
    %s63 = sphi 0, %s63
    %s65 = sphi 0, %s63
    %s66 = sphi 0, %s65
    %s80 = sphi 0, %s66
    %s84 = sphi 0, %s84
    %s86 = sphi 0, %s84
    %s87 = sphi 0, %s86
    %s101 = sphi 0, %s87
    %s105 = sphi 0, %s105
    %s107 = sphi 0, %s105
    %s108 = sphi 0, %s107
    %s122 = sphi 0, %s108
    %s126 = sphi 0, %s126
    %s128 = sphi 0, %s126
    %s129 = sphi 0, %s128
    %s143 = sphi 0, %s129
    %s147 = sphi 0, %s147
    %s149 = sphi 0, %s147
    %s150 = sphi 0, %s149
    %s164 = sphi 0, %s150
    %s168 = sphi 0, %s168
    %s170 = sphi 0, %s168
    %s171 = sphi 0, %s170
    %s185 = sphi 0, %s171
    %s189 = sphi 0, %s189
    %s191 = sphi 0, %s189
    %s192 = sphi 0, %s191
    %s206 = sphi 0, %s192
    %s210 = sphi 0, %s210
    %s212 = sphi 0, %s210
    %s213 = sphi 0, %s212
    %s227 = sphi 0, %s213
    %s235 = sphi 0, %s237
    %s238 = sphi 0, %s235
    %s239 = sphi 0, %s238
    %s255 = sphi 0, %s239
  $region4: #{tsdm_forward.1} parent=0 // loop_header_branch
    %18 = sbr.rel (%p16) target = $region8
  $region5: #{tsdm_forward.1} parent=0 // loop_body
    %s20 = ssub.s32 %s15, 1
    %s21 = ssub.s32 %s15, 2
    %s28 = sadd.s32 1, %s23
    %p29 = scmp.ge.s32.totalorder %s28, 2
    %s30 = scalar_select %p29, 0, %s28
    %s31 = sadd.s32 1, %s22
    %s32 = scalar_select %p29, %s31, %s22
    %p33 = scmp.ge.s32.totalorder %s32, 2
    %s34 = scalar_select %p33, 0, %s32
    %s35 = ssub.s32 %s22, %s34
    %s36 = ssub.s32 %s23, %s30
    %s37 = sor.u32 %s35, %s36
    %p38 = scmp.eq.s32.totalorder %s37, 0
    %s40 = sadd.s32 %s39, 1
    %s41 = scalar_select %p38, %s39, %s40
    %p44 = pneg %p38
    %p45 = scmp.eq.s32.totalorder %s15, 3
    %p46 = por %p44, %p45
    %p47 = scmp.ne.s32.totalorder %s39, %s42
    %p48 = scmp.eq.s32.totalorder %s15, 0
    %p49 = por %p47, %p48
    %p50 = scmp.ne.s32.totalorder %s39, %s42
    %p51 = scmp.eq.s32.totalorder %s20, 3
    %p52 = por %p50, %p51
    %p53 = scmp.ne.s32.totalorder %s42, %s43
    %p54 = scmp.eq.s32.totalorder %s20, 0
    %p55 = por %p53, %p54
    %p56 = scmp.ne.s32.totalorder %s42, %s43
    %p57 = scmp.eq.s32.totalorder %s21, 3
    %p58 = por %p56, %p57
    %p60 = scmp.ne.s32.totalorder %s43, %s59
    %p61 = scmp.eq.s32.totalorder %s21, 0
    %p62 = por %p60, %p61
    %s64 = sadd.s32 %s63, 1
    %p67 = scmp.eq.s32.totalorder %s15, 3
    %p68 = scmp.ne.s32.totalorder %s63, %s65
    %p69 = scmp.eq.s32.totalorder %s15, 0
    %p70 = por %p68, %p69
    %p71 = scmp.ne.s32.totalorder %s63, %s65
    %p72 = scmp.eq.s32.totalorder %s20, 3
    %p73 = por %p71, %p72
    %p74 = scmp.ne.s32.totalorder %s65, %s66
    %p75 = scmp.eq.s32.totalorder %s20, 0
    %p76 = por %p74, %p75
    %p77 = scmp.ne.s32.totalorder %s65, %s66
    %p78 = scmp.eq.s32.totalorder %s21, 3
    %p79 = por %p77, %p78
    %p81 = scmp.ne.s32.totalorder %s66, %s80
    %p82 = scmp.eq.s32.totalorder %s21, 0
    %p83 = por %p81, %p82
    %s85 = sadd.s32 %s84, 1
    %p88 = scmp.eq.s32.totalorder %s15, 3
    %p89 = scmp.ne.s32.totalorder %s84, %s86
    %p90 = scmp.eq.s32.totalorder %s15, 0
    %p91 = por %p89, %p90
    %p92 = scmp.ne.s32.totalorder %s84, %s86
    %p93 = scmp.eq.s32.totalorder %s20, 3
    %p94 = por %p92, %p93
    %p95 = scmp.ne.s32.totalorder %s86, %s87
    %p96 = scmp.eq.s32.totalorder %s20, 0
    %p97 = por %p95, %p96
    %p98 = scmp.ne.s32.totalorder %s86, %s87
    %p99 = scmp.eq.s32.totalorder %s21, 3
    %p100 = por %p98, %p99
    %p102 = scmp.ne.s32.totalorder %s87, %s101
    %p103 = scmp.eq.s32.totalorder %s21, 0
    %p104 = por %p102, %p103
    %s106 = sadd.s32 %s105, 1
    %p109 = scmp.eq.s32.totalorder %s15, 3
    %p110 = scmp.ne.s32.totalorder %s105, %s107
    %p111 = scmp.eq.s32.totalorder %s15, 0
    %p112 = por %p110, %p111
    %p113 = scmp.ne.s32.totalorder %s105, %s107
    %p114 = scmp.eq.s32.totalorder %s20, 3
    %p115 = por %p113, %p114
    %p116 = scmp.ne.s32.totalorder %s107, %s108
    %p117 = scmp.eq.s32.totalorder %s20, 0
    %p118 = por %p116, %p117
    %p119 = scmp.ne.s32.totalorder %s107, %s108
    %p120 = scmp.eq.s32.totalorder %s21, 3
    %p121 = por %p119, %p120
    %p123 = scmp.ne.s32.totalorder %s108, %s122
    %p124 = scmp.eq.s32.totalorder %s21, 0
    %p125 = por %p123, %p124
    %s127 = sadd.s32 %s126, 1
    %p130 = scmp.eq.s32.totalorder %s15, 3
    %p131 = scmp.ne.s32.totalorder %s126, %s128
    %p132 = scmp.eq.s32.totalorder %s15, 0
    %p133 = por %p131, %p132
    %p134 = scmp.ne.s32.totalorder %s126, %s128
    %p135 = scmp.eq.s32.totalorder %s20, 3
    %p136 = por %p134, %p135
    %p137 = scmp.ne.s32.totalorder %s128, %s129
    %p138 = scmp.eq.s32.totalorder %s20, 0
    %p139 = por %p137, %p138
    %p140 = scmp.ne.s32.totalorder %s128, %s129
    %p141 = scmp.eq.s32.totalorder %s21, 3
    %p142 = por %p140, %p141
    %p144 = scmp.ne.s32.totalorder %s129, %s143
    %p145 = scmp.eq.s32.totalorder %s21, 0
    %p146 = por %p144, %p145
    %s148 = sadd.s32 %s147, 1
    %p151 = scmp.eq.s32.totalorder %s15, 3
    %p152 = scmp.ne.s32.totalorder %s147, %s149
    %p153 = scmp.eq.s32.totalorder %s15, 0
    %p154 = por %p152, %p153
    %p155 = scmp.ne.s32.totalorder %s147, %s149
    %p156 = scmp.eq.s32.totalorder %s20, 3
    %p157 = por %p155, %p156
    %p158 = scmp.ne.s32.totalorder %s149, %s150
    %p159 = scmp.eq.s32.totalorder %s20, 0
    %p160 = por %p158, %p159
    %p161 = scmp.ne.s32.totalorder %s149, %s150
    %p162 = scmp.eq.s32.totalorder %s21, 3
    %p163 = por %p161, %p162
    %p165 = scmp.ne.s32.totalorder %s150, %s164
    %p166 = scmp.eq.s32.totalorder %s21, 0
    %p167 = por %p165, %p166
    %s169 = sadd.s32 %s168, 1
    %p172 = scmp.eq.s32.totalorder %s15, 3
    %p173 = scmp.ne.s32.totalorder %s168, %s170
    %p174 = scmp.eq.s32.totalorder %s15, 0
    %p175 = por %p173, %p174
    %p176 = scmp.ne.s32.totalorder %s168, %s170
    %p177 = scmp.eq.s32.totalorder %s20, 3
    %p178 = por %p176, %p177
    %p179 = scmp.ne.s32.totalorder %s170, %s171
    %p180 = scmp.eq.s32.totalorder %s20, 0
    %p181 = por %p179, %p180
    %p182 = scmp.ne.s32.totalorder %s170, %s171
    %p183 = scmp.eq.s32.totalorder %s21, 3
    %p184 = por %p182, %p183
    %p186 = scmp.ne.s32.totalorder %s171, %s185
    %p187 = scmp.eq.s32.totalorder %s21, 0
    %p188 = por %p186, %p187
    %s190 = sadd.s32 %s189, 1
    %p193 = scmp.eq.s32.totalorder %s15, 3
    %p194 = scmp.ne.s32.totalorder %s189, %s191
    %p195 = scmp.eq.s32.totalorder %s15, 0
    %p196 = por %p194, %p195
    %p197 = scmp.ne.s32.totalorder %s189, %s191
    %p198 = scmp.eq.s32.totalorder %s20, 3
    %p199 = por %p197, %p198
    %p200 = scmp.ne.s32.totalorder %s191, %s192
    %p201 = scmp.eq.s32.totalorder %s20, 0
    %p202 = por %p200, %p201
    %p203 = scmp.ne.s32.totalorder %s191, %s192
    %p204 = scmp.eq.s32.totalorder %s21, 3
    %p205 = por %p203, %p204
    %p207 = scmp.ne.s32.totalorder %s192, %s206
    %p208 = scmp.eq.s32.totalorder %s21, 0
    %p209 = por %p207, %p208
    %s211 = sadd.s32 %s210, 1
    %p214 = scmp.eq.s32.totalorder %s15, 3
    %p215 = scmp.ne.s32.totalorder %s210, %s212
    %p216 = scmp.eq.s32.totalorder %s15, 0
    %p217 = por %p215, %p216
    %p218 = scmp.ne.s32.totalorder %s210, %s212
    %p219 = scmp.eq.s32.totalorder %s20, 3
    %p220 = por %p218, %p219
    %p221 = scmp.ne.s32.totalorder %s212, %s213
    %p222 = scmp.eq.s32.totalorder %s20, 0
    %p223 = por %p221, %p222
    %p224 = scmp.ne.s32.totalorder %s212, %s213
    %p225 = scmp.eq.s32.totalorder %s21, 3
    %p226 = por %p224, %p225
    %p228 = scmp.ne.s32.totalorder %s213, %s227
    %p229 = scmp.eq.s32.totalorder %s21, 0
    %p230 = por %p228, %p229
    %s231 = ssub.s32 %s22, %s34
    %s232 = ssub.s32 %s23, %s30
    %s233 = sor.u32 %s231, %s232
    %p234 = scmp.eq.s32.totalorder %s233, 0
    %s236 = sadd.s32 %s235, 1
    %s237 = scalar_select %p234, %s235, %s236
    %p240 = pneg %p234
    %p241 = scmp.eq.s32.totalorder %s15, 3
    %p242 = por %p240, %p241
    %p243 = scmp.ne.s32.totalorder %s235, %s238
    %p244 = scmp.eq.s32.totalorder %s15, 0
    %p245 = por %p243, %p244
    %p246 = scmp.ne.s32.totalorder %s235, %s238
    %p247 = scmp.eq.s32.totalorder %s20, 3
    %p248 = por %p246, %p247
    %p249 = scmp.ne.s32.totalorder %s238, %s239
    %p250 = scmp.eq.s32.totalorder %s20, 0
    %p251 = por %p249, %p250
    %p252 = scmp.ne.s32.totalorder %s238, %s239
    %p253 = scmp.eq.s32.totalorder %s21, 3
    %p254 = por %p252, %p253
    %p256 = scmp.ne.s32.totalorder %s239, %s255
    %p257 = scmp.eq.s32.totalorder %s21, 0
    %p258 = por %p256, %p257
    %p259 = scmp.le.s32.totalorder 1, %s15
    %p260 = scmp.lt.s32.totalorder %s15, 5
    %p261 = pnand %p259, %p260
    %p262 = pneg %p261
    // Predicated region
    $region9: #{tsdm_forward.1} parent=5 // pred_check
      _
    $region10: #{tsdm_forward.1} parent=5 // pred_check_branch
      %264 = sbr.rel (%p261) target = $region12
    $region11: #{tsdm_forward.1} parent=5 // pred_region
      %s265 = ssub.s32 %s15, 1
      // Predicated region
      $region13: #{tsdm_forward.1} parent=11 // pred_check
        %p266 = pneg %p76
      $region14: #{tsdm_forward.1} parent=11 // pred_check_branch
        %268 = sbr.rel (%p266) target = $region16
      $region15: #{tsdm_forward.1} parent=11 // pred_region
        _
      $region16: #{tsdm_forward.1} parent=11 // pred_fallthru
        _
      // Predicated region
      $region17: #{tsdm_forward.1} parent=11 // pred_check
        %p269 = pneg %p97
      $region18: #{tsdm_forward.1} parent=11 // pred_check_branch
        %271 = sbr.rel (%p269) target = $region20
      $region19: #{tsdm_forward.1} parent=11 // pred_region
        _
      $region20: #{tsdm_forward.1} parent=11 // pred_fallthru
        _
      // Predicated region
      $region21: #{tsdm_forward.1} parent=11 // pred_check
        %p272 = pneg %p118
      $region22: #{tsdm_forward.1} parent=11 // pred_check_branch
        %274 = sbr.rel (%p272) target = $region24
      $region23: #{tsdm_forward.1} parent=11 // pred_region
        _
      $region24: #{tsdm_forward.1} parent=11 // pred_fallthru
        _
      // Predicated region
      $region25: #{tsdm_forward.1} parent=11 // pred_check
        %p275 = pneg %p139
      $region26: #{tsdm_forward.1} parent=11 // pred_check_branch
        %277 = sbr.rel (%p275) target = $region28
      $region27: #{tsdm_forward.1} parent=11 // pred_region
        _
      $region28: #{tsdm_forward.1} parent=11 // pred_fallthru
        _
      // Predicated region
      $region29: #{tsdm_forward.1} parent=11 // pred_check
        %p278 = pneg %p160
      $region30: #{tsdm_forward.1} parent=11 // pred_check_branch
        %280 = sbr.rel (%p278) target = $region32
      $region31: #{tsdm_forward.1} parent=11 // pred_region
        _
      $region32: #{tsdm_forward.1} parent=11 // pred_fallthru
        _
      // Predicated region
      $region33: #{tsdm_forward.1} parent=11 // pred_check
        %p281 = pneg %p181
      $region34: #{tsdm_forward.1} parent=11 // pred_check_branch
        %283 = sbr.rel (%p281) target = $region36
      $region35: #{tsdm_forward.1} parent=11 // pred_region
        _
      $region36: #{tsdm_forward.1} parent=11 // pred_fallthru
        _
      // Predicated region
      $region37: #{tsdm_forward.1} parent=11 // pred_check
        %p284 = pneg %p202
      $region38: #{tsdm_forward.1} parent=11 // pred_check_branch
        %286 = sbr.rel (%p284) target = $region40
      $region39: #{tsdm_forward.1} parent=11 // pred_region
        _
      $region40: #{tsdm_forward.1} parent=11 // pred_fallthru
        _
      // Predicated region
      $region41: #{tsdm_forward.1} parent=11 // pred_check
        %p287 = pneg %p223
      $region42: #{tsdm_forward.1} parent=11 // pred_check_branch
        %289 = sbr.rel (%p287) target = $region44
      $region43: #{tsdm_forward.1} parent=11 // pred_region
        _
      $region44: #{tsdm_forward.1} parent=11 // pred_fallthru
        _
    $region12: #{tsdm_forward.1} parent=5 // pred_fallthru
      _
    %p290 = scmp.lt.s32.totalorder %s15, 4
    // Predicated region
    $region45: #{tsdm_forward.1} parent=5 // pred_check
      %p291 = pneg %p290
    $region46: #{tsdm_forward.1} parent=5 // pred_check_branch
      %293 = sbr.rel (%p291) target = $region48
    $region47: #{tsdm_forward.1} parent=5 // pred_region
      // Predicated region
      $region49: #{tsdm_forward.1} parent=47 // pred_check
        %p294 = pneg %p49
      $region50: #{tsdm_forward.1} parent=47 // pred_check_branch
        %296 = sbr.rel (%p294) target = $region52
      $region51: #{tsdm_forward.1} parent=47 // pred_region
        %p297 = scmp.lt.s32.totalorder %s22, 1
        %s298 = scalar_select %p297, %s22, 1
        %p299 = scmp.lt.s32.totalorder %s23, 1
        %s300 = scalar_select %p299, %s23, 1
        %s301 = smul.addr %s300, 36
        %s302 = smul.addr %s298, 72
        %s303 = sadd.s32 %s301, %s302
        %s304 = smul.addr %s303, 8
        %s305 = scalar_lea.vmem %s0, %s304
      $region52: #{tsdm_forward.1} parent=47 // pred_fallthru
        _
    $region48: #{tsdm_forward.1} parent=5 // pred_fallthru
      _
    %p306 = scmp.le.s32.totalorder 1, %s15
    %p307 = scmp.lt.s32.totalorder %s15, 5
    %p308 = pnand %p306, %p307
    %p309 = pneg %p308
    // Predicated region
    $region53: #{tsdm_forward.1} parent=5 // pred_check
      _
    $region54: #{tsdm_forward.1} parent=5 // pred_check_branch
      %311 = sbr.rel (%p308) target = $region56
    $region55: #{tsdm_forward.1} parent=5 // pred_region
      %s312 = ssub.s32 %s15, 1
      %p313 = scmp.lt.s32.totalorder %s24, 1
      %s314 = scalar_select %p313, %s24, 1
      %p315 = scmp.lt.s32.totalorder %s25, 1
      %s316 = scalar_select %p315, %s25, 1
      %s317 = smul.addr %s316, 36
      %s318 = smul.addr %s314, 72
      %s319 = sadd.s32 %s317, %s318
      %s320 = smul.addr %s319, 8
      %s321 = scalar_lea.vmem %s0, %s320
      %p322 = pneg %p55
      %p323 = pneg %p52
      %p324 = pneg %p76
      %p325 = pneg %p73
      %p326 = pneg %p97
      %p327 = pneg %p94
      %p328 = pneg %p118
      %p329 = pneg %p115
      %p330 = pneg %p139
      %p331 = pneg %p136
      %p332 = pneg %p160
      %p333 = pneg %p157
      %p334 = pneg %p181
      %p335 = pneg %p178
      %p336 = pneg %p202
      %p337 = pneg %p199
      %p338 = pneg %p223
      %p339 = pneg %p220
      %p340 = pneg %p251
      %p341 = pneg %p248
      %s342 = smul.u32 8, %s25
      %p343 = scmp.lt.s32.totalorder %s24, 1
      %s344 = scalar_select %p343, %s24, 1
      %p345 = scmp.lt.s32.totalorder %s342, 15
      %s346 = scalar_select %p345, %s342, 15
      %s347 = smul.addr %s346, 2
      %s348 = smul.addr %s344, 32
      %s349 = sadd.s32 %s347, %s348
      %s350 = smul.addr %s349, 8
      %s351 = scalar_lea.vmem %s9, %s350
      %p352 = scmp.lt.s32.totalorder %s24, 1
      %s353 = scalar_select %p352, %s24, 1
      %p354 = scmp.lt.s32.totalorder %s25, 1
      %s355 = scalar_select %p354, %s25, 1
      %s356 = smul.addr %s355, 36
      %s357 = smul.addr %s353, 72
      %s358 = sadd.s32 %s356, %s357
      %s359 = smul.addr %s358, 8
      %s360 = scalar_lea.vmem %s0, %s359
      %s361 = smul.u32 8, %s25
      %p362 = scmp.lt.s32.totalorder %s24, 1
      %s363 = scalar_select %p362, %s24, 1
      %p364 = scmp.lt.s32.totalorder %s361, 15
      %s365 = scalar_select %p364, %s361, 15
      %s366 = smul.addr %s365, 2
      %s367 = smul.addr %s363, 32
      %s368 = sadd.s32 %s366, %s367
      %s369 = smul.addr %s368, 8
      %s370 = scalar_lea.vmem %s9, %s369
      %s371 = smul.u32 8, %s25
      %s373 = smul.u32 %s25, 8
      %v374 = vld [vmem:[%s360] sm:$0xff]
      %v375 = vld [vmem:[%s360 + $0x8] sm:$0xff]
      %v376 = vld [vmem:[%s360 + $0x10] sm:$0xf]
      %v377 = vld [vmem:[%s360 + $0x18] sm:$0xff]
      %v378 = vld [vmem:[%s360 + $0x20] sm:$0xff]
      %v379 = vld [vmem:[%s360 + $0x28] sm:$0xf]
      %v380 = vld [vmem:[%s360 + $0x30] sm:$0xff]
      %v381 = vld [vmem:[%s360 + $0x38] sm:$0xff]
      %v382 = vld [vmem:[%s360 + $0x40] sm:$0xf]
      %v383 = vld [vmem:[%s360 + $0x48] sm:$0xff]
      %v384 = vld [vmem:[%s360 + $0x50] sm:$0xff]
      %v385 = vld [vmem:[%s360 + $0x58] sm:$0xf]
      %v386 = vld [vmem:[%s360 + $0x60] sm:$0xff]
      %v387 = vld [vmem:[%s360 + $0x68] sm:$0xff]
      %v388 = vld [vmem:[%s360 + $0x70] sm:$0xf]
      %v389 = vld [vmem:[%s360 + $0x78] sm:$0xff]
      %v390 = vld [vmem:[%s360 + $0x80] sm:$0xff]
      %v391 = vld [vmem:[%s360 + $0x88] sm:$0xf]
      %v392 = vld [vmem:[%s360 + $0x90] sm:$0xff]
      %v393 = vld [vmem:[%s360 + $0x98] sm:$0xff]
      %v394 = vld [vmem:[%s360 + $0xa0] sm:$0xf]
      %v395 = vld [vmem:[%s360 + $0xa8] sm:$0xff]
      %v396 = vld [vmem:[%s360 + $0xb0] sm:$0xff]
      %v397 = vld [vmem:[%s360 + $0xb8] sm:$0xf]
      %v398 = vld [vmem:[%s360 + $0xc0] sm:$0xff]
      %v399 = vld [vmem:[%s360 + $0xc8] sm:$0xff]
      %v400 = vld [vmem:[%s360 + $0xd0] sm:$0xf]
      %v401 = vld [vmem:[%s360 + $0xd8] sm:$0xff]
      %v402 = vld [vmem:[%s360 + $0xe0] sm:$0xff]
      %v403 = vld [vmem:[%s360 + $0xe8] sm:$0xf]
      %v404 = vld [vmem:[%s360 + $0xf0] sm:$0xff]
      %v405 = vld [vmem:[%s360 + $0xf8] sm:$0xff]
      %v406 = vld [vmem:[%s360 + $0x100] sm:$0xf]
      %v407 = vld [vmem:[%s360 + $0x108] sm:$0xff]
      %v408 = vld [vmem:[%s360 + $0x110] sm:$0xff]
      %v409 = vld [vmem:[%s360 + $0x118] sm:$0xf]
      %v410 = vpack.c.bf16 %v374, %v374
      %v411 = vpack.c.bf16 %v375, %v375
      %v412 = vpack.c.bf16 %v376, %v376
      %v413 = vpack.c.bf16 %v377, %v377
      %v414 = vpack.c.bf16 %v378, %v378
      %v415 = vpack.c.bf16 %v379, %v379
      %v416 = vpack.c.bf16 %v380, %v380
      %v417 = vpack.c.bf16 %v381, %v381
      %v418 = vpack.c.bf16 %v382, %v382
      %v419 = vpack.c.bf16 %v383, %v383
      %v420 = vpack.c.bf16 %v384, %v384
      %v421 = vpack.c.bf16 %v385, %v385
      %v422 = vpack.c.bf16 %v386, %v386
      %v423 = vpack.c.bf16 %v387, %v387
      %v424 = vpack.c.bf16 %v388, %v388
      %v425 = vpack.c.bf16 %v389, %v389
      %v426 = vpack.c.bf16 %v390, %v390
      %v427 = vpack.c.bf16 %v391, %v391
      %v428 = vpack.c.bf16 %v392, %v392
      %v429 = vpack.c.bf16 %v393, %v393
      %v430 = vpack.c.bf16 %v394, %v394
      %v431 = vpack.c.bf16 %v395, %v395
      %v432 = vpack.c.bf16 %v396, %v396
      %v433 = vpack.c.bf16 %v397, %v397
      %v434 = vpack.c.bf16 %v398, %v398
      %v435 = vpack.c.bf16 %v399, %v399
      %v436 = vpack.c.bf16 %v400, %v400
      %v437 = vpack.c.bf16 %v401, %v401
      %v438 = vpack.c.bf16 %v402, %v402
      %v439 = vpack.c.bf16 %v403, %v403
      %v440 = vpack.c.bf16 %v404, %v404
      %v441 = vpack.c.bf16 %v405, %v405
      %v442 = vpack.c.bf16 %v406, %v406
      %v443 = vpack.c.bf16 %v407, %v407
      %v444 = vpack.c.bf16 %v408, %v408
      %v445 = vpack.c.bf16 %v409, %v409
      %v482 = vrot.slane %v410, 2
      %v483 = vrot.slane %v411, 2
      %v484 = vrot.slane %v412, 2
      %v485 = vrot.slane %v413, 2
      %v486 = vrot.slane %v414, 2
      %v487 = vrot.slane %v415, 2
      %v488 = vrot.slane %v416, 2
      %v489 = vrot.slane %v417, 2
      %v490 = vrot.slane %v418, 2
      %v491 = vrot.slane %v419, 2
      %v492 = vrot.slane %v420, 2
      %v493 = vrot.slane %v421, 2
      %v494 = vrot.slane %v422, 2
      %v495 = vrot.slane %v423, 2
      %v496 = vrot.slane %v424, 2
      %v497 = vrot.slane %v425, 2
      %v498 = vrot.slane %v426, 2
      %v499 = vrot.slane %v427, 2
      %v500 = vrot.slane %v428, 2
      %v501 = vrot.slane %v429, 2
      %v502 = vrot.slane %v430, 2
      %v503 = vrot.slane %v431, 2
      %v504 = vrot.slane %v432, 2
      %v505 = vrot.slane %v433, 2
      %v506 = vrot.slane %v434, 2
      %v507 = vrot.slane %v435, 2
      %v508 = vrot.slane %v436, 2
      %v509 = vrot.slane %v437, 2
      %v510 = vrot.slane %v438, 2
      %v511 = vrot.slane %v439, 2
      %v512 = vrot.slane %v440, 2
      %v513 = vrot.slane %v441, 2
      %v514 = vrot.slane %v442, 2
      %v515 = vrot.slane %v443, 2
      %v516 = vrot.slane %v444, 2
      %v517 = vrot.slane %v445, 2
      %vm518 = vcmask 1041408
      %v521 = vsel %vm518, %v410, %v482
      %vm522 = vcmask 1043458
      %v523 = vsel %vm522, %v410, %v482
      %v525 = vrot.slane %v523, 2
      %v528 = vsel %vm518, %v411, %v483
      %v529 = vsel %vm522, %v411, %v483
      %v531 = vrot.slane %v529, 2
      %v534 = vsel %vm518, %v412, %v484
      %v537 = vsel %vm518, %v413, %v485
      %v538 = vsel %vm522, %v413, %v485
      %v540 = vrot.slane %v538, 2
      %v543 = vsel %vm518, %v414, %v486
      %v544 = vsel %vm522, %v414, %v486
      %v546 = vrot.slane %v544, 2
      %v549 = vsel %vm518, %v415, %v487
      %v552 = vsel %vm518, %v416, %v488
      %v553 = vsel %vm522, %v416, %v488
      %v555 = vrot.slane %v553, 2
      %v558 = vsel %vm518, %v417, %v489
      %v559 = vsel %vm522, %v417, %v489
      %v561 = vrot.slane %v559, 2
      %v564 = vsel %vm518, %v418, %v490
      %v567 = vsel %vm518, %v419, %v491
      %v568 = vsel %vm522, %v419, %v491
      %v570 = vrot.slane %v568, 2
      %v573 = vsel %vm518, %v420, %v492
      %v574 = vsel %vm522, %v420, %v492
      %v576 = vrot.slane %v574, 2
      %v579 = vsel %vm518, %v421, %v493
      %v582 = vsel %vm518, %v422, %v494
      %v583 = vsel %vm522, %v422, %v494
      %v585 = vrot.slane %v583, 2
      %v588 = vsel %vm518, %v423, %v495
      %v589 = vsel %vm522, %v423, %v495
      %v591 = vrot.slane %v589, 2
      %v594 = vsel %vm518, %v424, %v496
      %v597 = vsel %vm518, %v425, %v497
      %v598 = vsel %vm522, %v425, %v497
      %v600 = vrot.slane %v598, 2
      %v603 = vsel %vm518, %v426, %v498
      %v604 = vsel %vm522, %v426, %v498
      %v606 = vrot.slane %v604, 2
      %v609 = vsel %vm518, %v427, %v499
      %v612 = vsel %vm518, %v428, %v500
      %v613 = vsel %vm522, %v428, %v500
      %v615 = vrot.slane %v613, 2
      %v618 = vsel %vm518, %v429, %v501
      %v619 = vsel %vm522, %v429, %v501
      %v621 = vrot.slane %v619, 2
      %v624 = vsel %vm518, %v430, %v502
      %v627 = vsel %vm518, %v431, %v503
      %v628 = vsel %vm522, %v431, %v503
      %v630 = vrot.slane %v628, 2
      %v633 = vsel %vm518, %v432, %v504
      %v634 = vsel %vm522, %v432, %v504
      %v636 = vrot.slane %v634, 2
      %v639 = vsel %vm518, %v433, %v505
      %v642 = vsel %vm518, %v434, %v506
      %v643 = vsel %vm522, %v434, %v506
      %v645 = vrot.slane %v643, 2
      %v648 = vsel %vm518, %v435, %v507
      %v649 = vsel %vm522, %v435, %v507
      %v651 = vrot.slane %v649, 2
      %v654 = vsel %vm518, %v436, %v508
      %v657 = vsel %vm518, %v437, %v509
      %v658 = vsel %vm522, %v437, %v509
      %v660 = vrot.slane %v658, 2
      %v663 = vsel %vm518, %v438, %v510
      %v664 = vsel %vm522, %v438, %v510
      %v666 = vrot.slane %v664, 2
      %v669 = vsel %vm518, %v439, %v511
      %v672 = vsel %vm518, %v440, %v512
      %v673 = vsel %vm522, %v440, %v512
      %v675 = vrot.slane %v673, 2
      %v678 = vsel %vm518, %v441, %v513
      %v679 = vsel %vm522, %v441, %v513
      %v681 = vrot.slane %v679, 2
      %v684 = vsel %vm518, %v442, %v514
      %v687 = vsel %vm518, %v443, %v515
      %v688 = vsel %vm522, %v443, %v515
      %v690 = vrot.slane %v688, 2
      %v693 = vsel %vm518, %v444, %v516
      %v694 = vsel %vm522, %v444, %v516
      %v696 = vrot.slane %v694, 2
      %v699 = vsel %vm518, %v445, %v517
      %v700 = vld [vmem:[%s1] sm:$0xf]
      %v701 = vld [vmem:[%s1 + $0x4] sm:$0xf]
      %v702 = vld [vmem:[%s1 + $0x8] sm:$0xf]
      %v703 = vld [vmem:[%s1 + $0xc] sm:$0xf]
      %v704 = vld [vmem:[%s2] sm:$0x1]
      %v706 = vperm.slane %v704, 0
      %708 = vst [vmem:[#allocation1] ss:$4 sm:$0xff] %v521
      %s710 = scalar_lea.vmem [#allocation1], 1
      %711 = vst [vmem:[%s710] ss:$4 sm:$0xff] %v525
      %s712 = scalar_lea.vmem [#allocation1], 2
      %713 = vst [vmem:[%s712] ss:$4 sm:$0xff] %v528
      %s715 = scalar_lea.vmem [#allocation1], 3
      %716 = vst [vmem:[%s715] ss:$4 sm:$0xff] %v531
      %s717 = scalar_lea.vmem [#allocation1], 32
      %718 = vst [vmem:[%s717] ss:$4 sm:$0xff] %v534
      %s719 = scalar_lea.vmem [#allocation1], 33
      %720 = vst [vmem:[%s719] ss:$4 sm:$0xff] %v537
      %s722 = scalar_lea.vmem [#allocation1], 34
      %723 = vst [vmem:[%s722] ss:$4 sm:$0xff] %v540
      %s724 = scalar_lea.vmem [#allocation1], 35
      %725 = vst [vmem:[%s724] ss:$4 sm:$0xff] %v543
      %v726 = vld.sshfl [vmem:[#allocation1] sm:$0xff pattern:$0x73625140]
      %v727 = vld.sshfl [vmem:[#allocation1 + $0x20] sm:$0xff pattern:$0x73625140]
      %729 = vst [vmem:[#allocation1] ss:$4 sm:$0xff] %v546
      %730 = vst [vmem:[%s710] ss:$4 sm:$0xff] %v549
      %731 = vst [vmem:[%s712] ss:$4 sm:$0xff] %v552
      %733 = vst [vmem:[%s715] ss:$4 sm:$0xff] %v555
      %734 = vst [vmem:[%s717] ss:$4 sm:$0xff] %v558
      %736 = vst [vmem:[%s719] ss:$4 sm:$0xff] %v561
      %737 = vst [vmem:[%s722] ss:$4 sm:$0xff] %v564
      %738 = vst [vmem:[%s724] ss:$4 sm:$0xff] %v567
      %v739 = vld.sshfl [vmem:[#allocation1] sm:$0xff pattern:$0x73625140]
      %v740 = vld.sshfl [vmem:[#allocation1 + $0x20] sm:$0xff pattern:$0x73625140]
      %742 = vst [vmem:[#allocation1] ss:$4 sm:$0xff] %v570
      %743 = vst [vmem:[%s710] ss:$4 sm:$0xff] %v573
      %745 = vst [vmem:[%s712] ss:$4 sm:$0xff] %v576
      %746 = vst [vmem:[%s715] ss:$4 sm:$0xff] %v579
      %747 = vst [vmem:[%s717] ss:$4 sm:$0xff] %v582
      %749 = vst [vmem:[%s719] ss:$4 sm:$0xff] %v585
      %750 = vst [vmem:[%s722] ss:$4 sm:$0xff] %v588
      %752 = vst [vmem:[%s724] ss:$4 sm:$0xff] %v591
      %v753 = vld.sshfl [vmem:[#allocation1] sm:$0xff pattern:$0x73625140]
      %v754 = vld.sshfl [vmem:[#allocation1 + $0x20] sm:$0xff pattern:$0x73625140]
      %755 = vst [vmem:[#allocation1] ss:$4 sm:$0xff] %v594
      %756 = vst [vmem:[%s710] ss:$4 sm:$0xff] %v597
      %758 = vst [vmem:[%s712] ss:$4 sm:$0xff] %v600
      %759 = vst [vmem:[%s715] ss:$4 sm:$0xff] %v603
      %761 = vst [vmem:[%s717] ss:$4 sm:$0xff] %v606
      %762 = vst [vmem:[%s719] ss:$4 sm:$0xff] %v609
      %763 = vst [vmem:[%s722] ss:$4 sm:$0xff] %v612
      %765 = vst [vmem:[%s724] ss:$4 sm:$0xff] %v615
      %v766 = vld.sshfl [vmem:[#allocation1] sm:$0xff pattern:$0x73625140]
      %v767 = vld.sshfl [vmem:[#allocation1 + $0x20] sm:$0xff pattern:$0x73625140]
      %768 = vst [vmem:[#allocation1] ss:$4 sm:$0xff] %v618
      %770 = vst [vmem:[%s710] ss:$4 sm:$0xff] %v621
      %771 = vst [vmem:[%s712] ss:$4 sm:$0xff] %v624
      %772 = vst [vmem:[%s715] ss:$4 sm:$0xff] %v627
      %774 = vst [vmem:[%s717] ss:$4 sm:$0xff] %v630
      %775 = vst [vmem:[%s719] ss:$4 sm:$0xff] %v633
      %777 = vst [vmem:[%s722] ss:$4 sm:$0xff] %v636
      %778 = vst [vmem:[%s724] ss:$4 sm:$0xff] %v639
      %v779 = vld.sshfl [vmem:[#allocation1] sm:$0xff pattern:$0x73625140]
      %v780 = vld.sshfl [vmem:[#allocation1 + $0x20] sm:$0xff pattern:$0x73625140]
      %781 = vst [vmem:[#allocation1] ss:$4 sm:$0xff] %v642
      %783 = vst [vmem:[%s710] ss:$4 sm:$0xff] %v645
      %784 = vst [vmem:[%s712] ss:$4 sm:$0xff] %v648
      %786 = vst [vmem:[%s715] ss:$4 sm:$0xff] %v651
      %787 = vst [vmem:[%s717] ss:$4 sm:$0xff] %v654
      %788 = vst [vmem:[%s719] ss:$4 sm:$0xff] %v657
      %790 = vst [vmem:[%s722] ss:$4 sm:$0xff] %v660
      %791 = vst [vmem:[%s724] ss:$4 sm:$0xff] %v663
      %v792 = vld.sshfl [vmem:[#allocation1] sm:$0xff pattern:$0x73625140]
      %v793 = vld.sshfl [vmem:[#allocation1 + $0x20] sm:$0xff pattern:$0x73625140]
      %795 = vst [vmem:[#allocation1] ss:$4 sm:$0xff] %v666
      %796 = vst [vmem:[%s710] ss:$4 sm:$0xff] %v669
      %797 = vst [vmem:[%s712] ss:$4 sm:$0xff] %v672
      %799 = vst [vmem:[%s715] ss:$4 sm:$0xff] %v675
      %800 = vst [vmem:[%s717] ss:$4 sm:$0xff] %v678
      %802 = vst [vmem:[%s719] ss:$4 sm:$0xff] %v681
      %803 = vst [vmem:[%s722] ss:$4 sm:$0xff] %v684
      %804 = vst [vmem:[%s724] ss:$4 sm:$0xff] %v687
      %v805 = vld.sshfl [vmem:[#allocation1] sm:$0xff pattern:$0x73625140]
      %v806 = vld.sshfl [vmem:[#allocation1 + $0x20] sm:$0xff pattern:$0x73625140]
      %808 = vst [vmem:[#allocation1] ss:$4 sm:$0xff] %v690
      %809 = vst [vmem:[%s710] ss:$4 sm:$0xff] %v693
      %811 = vst [vmem:[%s712] ss:$4 sm:$0xff] %v696
      %812 = vst [vmem:[%s715] ss:$4 sm:$0xff] %v699
      %v813 = vld.sshfl [vmem:[#allocation1] sm:$0xff pattern:$0x73625140]
      %v818 = vunpack.c.l.b16 %v700
      %v819 = vunpack.c.l.b16 %v701
      %v820 = vunpack.c.l.b16 %v702
      %v821 = vunpack.c.l.b16 %v703
      %v822 = vpack.c.b16 %v819, %v818
      %v823 = vpack.c.b16 %v821, %v820
      %vm826 = vcmask 261120
      %v827 = vsel %vm826, %v726, 0
      %v829 = vsel %vm826, %v727, 0
      %v831 = vsel %vm826, %v739, 0
      %v833 = vsel %vm826, %v740, 0
      %v835 = vsel %vm826, %v753, 0
      %v837 = vsel %vm826, %v754, 0
      %v839 = vsel %vm826, %v766, 0
      %v841 = vsel %vm826, %v767, 0
      %v843 = vsel %vm826, %v779, 0
      %v845 = vsel %vm826, %v780, 0
      %v847 = vsel %vm826, %v792, 0
      %v849 = vsel %vm826, %v793, 0
      %v851 = vsel %vm826, %v805, 0
      %v853 = vsel %vm826, %v806, 0
      %v855 = vsel %vm826, %v813, 0
      %857 = vmatpush.bf16.msra.mxu0 0
      %858 = vmatpush.bf16.msra.mxu0 0
      %859 = vmatpush.bf16.msra.mxu0 0
      %860 = vmatpush.bf16.msra.mxu0 0
      %861 = vmatpush.bf16.msra.mxu0 0
      %862 = vmatpush.bf16.msra.mxu0 0
      %863 = vmatpush.bf16.msra.mxu0 %v823
      %864 = vmatpush.bf16.msra.mxu0 %v822
      %865 = vmatmul.bf16.gmra.mxu0 %v827
      %v866 = vpop.f32.mrf.mxu0
      %v867 = vadd.f32 %v706, %v866
      %v868 = vpop.f32.mrf.mxu0
      %v869 = vadd.f32 %v706, %v868
      %870 = vmatmul.bf16.gmra.mxu0 %v829
      %v871 = vpop.f32.mrf.mxu0
      %v872 = vadd.f32 %v706, %v871
      %v873 = vpop.f32.mrf.mxu0
      %v874 = vadd.f32 %v706, %v873
      %875 = vmatmul.bf16.gmra.mxu0 %v831
      %v876 = vpop.f32.mrf.mxu0
      %v877 = vadd.f32 %v706, %v876
      %v878 = vpop.f32.mrf.mxu0
      %v879 = vadd.f32 %v706, %v878
      %880 = vmatmul.bf16.gmra.mxu0 %v833
      %v881 = vpop.f32.mrf.mxu0
      %v882 = vadd.f32 %v706, %v881
      %v883 = vpop.f32.mrf.mxu0
      %v884 = vadd.f32 %v706, %v883
      %885 = vmatmul.bf16.gmra.mxu0 %v835
      %v886 = vpop.f32.mrf.mxu0
      %v887 = vadd.f32 %v706, %v886
      %v888 = vpop.f32.mrf.mxu0
      %v889 = vadd.f32 %v706, %v888
      %890 = vmatmul.bf16.gmra.mxu0 %v837
      %v891 = vpop.f32.mrf.mxu0
      %v892 = vadd.f32 %v706, %v891
      %v893 = vpop.f32.mrf.mxu0
      %v894 = vadd.f32 %v706, %v893
      %895 = vmatmul.bf16.gmra.mxu0 %v839
      %v896 = vpop.f32.mrf.mxu0
      %v897 = vadd.f32 %v706, %v896
      %v898 = vpop.f32.mrf.mxu0
      %v899 = vadd.f32 %v706, %v898
      %900 = vmatmul.bf16.gmra.mxu0 %v841
      %v901 = vpop.f32.mrf.mxu0
      %v902 = vadd.f32 %v706, %v901
      %v903 = vpop.f32.mrf.mxu0
      %v904 = vadd.f32 %v706, %v903
      %905 = vmatmul.bf16.gmra.mxu0 %v843
      %v906 = vpop.f32.mrf.mxu0
      %v907 = vadd.f32 %v706, %v906
      %v908 = vpop.f32.mrf.mxu0
      %v909 = vadd.f32 %v706, %v908
      %910 = vmatmul.bf16.gmra.mxu0 %v845
      %v911 = vpop.f32.mrf.mxu0
      %v912 = vadd.f32 %v706, %v911
      %v913 = vpop.f32.mrf.mxu0
      %v914 = vadd.f32 %v706, %v913
      %915 = vmatmul.bf16.gmra.mxu0 %v847
      %v916 = vpop.f32.mrf.mxu0
      %v917 = vadd.f32 %v706, %v916
      %v918 = vpop.f32.mrf.mxu0
      %v919 = vadd.f32 %v706, %v918
      %920 = vmatmul.bf16.gmra.mxu0 %v849
      %v921 = vpop.f32.mrf.mxu0
      %v922 = vadd.f32 %v706, %v921
      %v923 = vpop.f32.mrf.mxu0
      %v924 = vadd.f32 %v706, %v923
      %925 = vmatmul.bf16.gmra.mxu0 %v851
      %v926 = vpop.f32.mrf.mxu0
      %v927 = vadd.f32 %v706, %v926
      %v928 = vpop.f32.mrf.mxu0
      %v929 = vadd.f32 %v706, %v928
      %930 = vmatmul.bf16.gmra.mxu0 %v853
      %v931 = vpop.f32.mrf.mxu0
      %v932 = vadd.f32 %v706, %v931
      %v933 = vpop.f32.mrf.mxu0
      %v934 = vadd.f32 %v706, %v933
      %935 = vmatmul.bf16.gmra.mxu0 %v855
      %v936 = vpop.f32.mrf.mxu0
      %v937 = vadd.f32 %v706, %v936
      %v938 = vpop.f32.mrf.mxu0
      %v939 = vadd.f32 %v706, %v938
      %940 = vdwg.mxu0
      %v941 = vmax.f32 %v867, 0.0
      %v942 = vmax.f32 %v869, 0.0
      %v943 = vmax.f32 %v872, 0.0
      %v944 = vmax.f32 %v874, 0.0
      %v945 = vmax.f32 %v877, 0.0
      %v946 = vmax.f32 %v879, 0.0
      %v947 = vmax.f32 %v882, 0.0
      %v948 = vmax.f32 %v884, 0.0
      %v949 = vmax.f32 %v887, 0.0
      %v950 = vmax.f32 %v889, 0.0
      %v951 = vmax.f32 %v892, 0.0
      %v952 = vmax.f32 %v894, 0.0
      %v953 = vmax.f32 %v897, 0.0
      %v954 = vmax.f32 %v899, 0.0
      %v955 = vmax.f32 %v902, 0.0
      %v956 = vmax.f32 %v904, 0.0
      %v957 = vmax.f32 %v907, 0.0
      %v958 = vmax.f32 %v909, 0.0
      %v959 = vmax.f32 %v912, 0.0
      %v960 = vmax.f32 %v914, 0.0
      %v961 = vmax.f32 %v917, 0.0
      %v962 = vmax.f32 %v919, 0.0
      %v963 = vmax.f32 %v922, 0.0
      %v964 = vmax.f32 %v924, 0.0
      %v965 = vmax.f32 %v927, 0.0
      %v966 = vmax.f32 %v929, 0.0
      %v967 = vmax.f32 %v932, 0.0
      %v968 = vmax.f32 %v934, 0.0
      %v969 = vmax.f32 %v937, 0.0
      %v970 = vmax.f32 %v939, 0.0
      %v1001 = vrot.slane %v941, 4
      %v1002 = vrot.slane %v942, 4
      %v1003 = vrot.slane %v943, 4
      %v1004 = vrot.slane %v944, 4
      %v1005 = vrot.slane %v945, 4
      %v1006 = vrot.slane %v946, 4
      %v1007 = vrot.slane %v947, 4
      %v1008 = vrot.slane %v948, 4
      %v1009 = vrot.slane %v949, 4
      %v1010 = vrot.slane %v950, 4
      %v1011 = vrot.slane %v951, 4
      %v1012 = vrot.slane %v952, 4
      %v1013 = vrot.slane %v953, 4
      %v1014 = vrot.slane %v954, 4
      %v1015 = vrot.slane %v955, 4
      %v1016 = vrot.slane %v956, 4
      %v1017 = vrot.slane %v957, 4
      %v1018 = vrot.slane %v958, 4
      %v1019 = vrot.slane %v959, 4
      %v1020 = vrot.slane %v960, 4
      %v1021 = vrot.slane %v961, 4
      %v1022 = vrot.slane %v962, 4
      %v1023 = vrot.slane %v963, 4
      %v1024 = vrot.slane %v964, 4
      %v1025 = vrot.slane %v965, 4
      %v1026 = vrot.slane %v966, 4
      %v1027 = vrot.slane %v967, 4
      %v1028 = vrot.slane %v968, 4
      %v1029 = vrot.slane %v969, 4
      %v1030 = vrot.slane %v970, 4
      %s1031 = ssub.s32 %s373, 2
      %v1032 = vstv %s1031
      %v1033 = vadd.s32 %v1032, 1
      %v1034 = vadd.s32 %v1032, 2
      %v1035 = vadd.s32 %v1032, 3
      %v1036 = vadd.s32 %v1032, 4
      %v1037 = vadd.s32 %v1032, 5
      %v1038 = vadd.s32 %v1032, 6
      %v1039 = vadd.s32 %v1032, 7
      %v1040 = vadd.s32 %v1032, 8
      %v1041 = vadd.s32 %v1032, 9
      %v1042 = vadd.s32 %v1032, 10
      %v1043 = vadd.s32 %v1032, 11
      %v1044 = vlaneseq
      %v1045 = vshrl.u32 %v1044, 7
      %v1046 = vadd.s32 %v1045, 8
      %v1047 = vadd.s32 %v1045, 16
      %v1048 = vsub.s32 %v1045, 2
      %v1049 = vsub.s32 %v1046, 2
      %v1050 = vsub.s32 %v1047, 2
      %vm1051 = vcmp.ge.s32.totalorder %v1032, 0
      %vm1052 = vcmp.ge.s32.totalorder %v1033, 0
      %vm1053 = vcmp.ge.s32.totalorder %v1034, 0
      %vm1054 = vcmp.ge.s32.totalorder %v1035, 0
      %vm1055 = vcmp.ge.s32.totalorder %v1036, 0
      %vm1056 = vcmp.ge.s32.totalorder %v1037, 0
      %vm1057 = vcmp.ge.s32.totalorder %v1038, 0
      %vm1058 = vcmp.ge.s32.totalorder %v1039, 0
      %vm1059 = vcmp.ge.s32.totalorder %v1040, 0
      %vm1060 = vcmp.ge.s32.totalorder %v1041, 0
      %vm1061 = vcmp.ge.s32.totalorder %v1042, 0
      %vm1062 = vcmp.ge.s32.totalorder %v1043, 0
      %vm1063 = vcmp.lt.s32.totalorder %v1032, 16
      %vm1064 = vcmp.lt.s32.totalorder %v1033, 16
      %vm1065 = vcmp.lt.s32.totalorder %v1034, 16
      %vm1066 = vcmp.lt.s32.totalorder %v1035, 16
      %vm1067 = vcmp.lt.s32.totalorder %v1036, 16
      %vm1068 = vcmp.lt.s32.totalorder %v1037, 16
      %vm1069 = vcmp.lt.s32.totalorder %v1038, 16
      %vm1070 = vcmp.lt.s32.totalorder %v1039, 16
      %vm1071 = vcmp.lt.s32.totalorder %v1040, 16
      %vm1072 = vcmp.lt.s32.totalorder %v1041, 16
      %vm1073 = vcmp.lt.s32.totalorder %v1042, 16
      %vm1074 = vcmp.lt.s32.totalorder %v1043, 16
      %vm1075 = vmand %vm1051, %vm1063
      %vm1076 = vmand %vm1052, %vm1064
      %vm1077 = vmand %vm1053, %vm1065
      %vm1078 = vmand %vm1054, %vm1066
      %vm1079 = vmand %vm1055, %vm1067
      %vm1080 = vmand %vm1056, %vm1068
      %vm1081 = vmand %vm1057, %vm1069
      %vm1082 = vmand %vm1058, %vm1070
      %vm1083 = vmand %vm1059, %vm1071
      %vm1084 = vmand %vm1060, %vm1072
      %vm1085 = vmand %vm1061, %vm1073
      %vm1086 = vmand %vm1062, %vm1074
      %vm1087 = vcmp.ge.s32.totalorder %v1048, 0
      %vm1088 = vcmp.ge.s32.totalorder %v1049, 0
      %vm1089 = vcmp.ge.s32.totalorder %v1050, 0
      %vm1090 = vmand %vm1075, %vm1087
      %vm1091 = vmand %vm1075, %vm1088
      %vm1092 = vmand %vm1075, %vm1089
      %vm1093 = vmand %vm1076, %vm1087
      %vm1094 = vmand %vm1076, %vm1088
      %vm1095 = vmand %vm1076, %vm1089
      %vm1096 = vmand %vm1077, %vm1087
      %vm1097 = vmand %vm1077, %vm1088
      %vm1098 = vmand %vm1077, %vm1089
      %vm1099 = vmand %vm1078, %vm1087
      %vm1100 = vmand %vm1078, %vm1088
      %vm1101 = vmand %vm1078, %vm1089
      %vm1102 = vmand %vm1079, %vm1087
      %vm1103 = vmand %vm1079, %vm1088
      %vm1104 = vmand %vm1079, %vm1089
      %vm1105 = vmand %vm1080, %vm1087
      %vm1106 = vmand %vm1080, %vm1088
      %vm1107 = vmand %vm1080, %vm1089
      %vm1108 = vmand %vm1081, %vm1087
      %vm1109 = vmand %vm1081, %vm1088
      %vm1110 = vmand %vm1081, %vm1089
      %vm1111 = vmand %vm1082, %vm1087
      %vm1112 = vmand %vm1082, %vm1088
      %vm1113 = vmand %vm1082, %vm1089
      %vm1114 = vmand %vm1083, %vm1087
      %vm1115 = vmand %vm1083, %vm1088
      %vm1116 = vmand %vm1083, %vm1089
      %vm1117 = vmand %vm1084, %vm1087
      %vm1118 = vmand %vm1084, %vm1088
      %vm1119 = vmand %vm1084, %vm1089
      %vm1120 = vmand %vm1085, %vm1087
      %vm1121 = vmand %vm1085, %vm1088
      %vm1122 = vmand %vm1085, %vm1089
      %vm1123 = vmand %vm1086, %vm1087
      %vm1124 = vmand %vm1086, %vm1088
      %vm1125 = vmand %vm1086, %vm1089
      %vm1126 = vcmp.lt.s32.totalorder %v1048, 16
      %vm1127 = vcmp.lt.s32.totalorder %v1049, 16
      %vm1128 = vcmp.lt.s32.totalorder %v1050, 16
      %vm1129 = vmand %vm1090, %vm1126
      %vm1130 = vmand %vm1091, %vm1127
      %vm1131 = vmand %vm1092, %vm1128
      %vm1132 = vmand %vm1093, %vm1126
      %vm1133 = vmand %vm1094, %vm1127
      %vm1134 = vmand %vm1095, %vm1128
      %vm1135 = vmand %vm1096, %vm1126
      %vm1136 = vmand %vm1097, %vm1127
      %vm1137 = vmand %vm1098, %vm1128
      %vm1138 = vmand %vm1099, %vm1126
      %vm1139 = vmand %vm1100, %vm1127
      %vm1140 = vmand %vm1101, %vm1128
      %vm1141 = vmand %vm1102, %vm1126
      %vm1142 = vmand %vm1103, %vm1127
      %vm1143 = vmand %vm1104, %vm1128
      %vm1144 = vmand %vm1105, %vm1126
      %vm1145 = vmand %vm1106, %vm1127
      %vm1146 = vmand %vm1107, %vm1128
      %vm1147 = vmand %vm1108, %vm1126
      %vm1148 = vmand %vm1109, %vm1127
      %vm1149 = vmand %vm1110, %vm1128
      %vm1150 = vmand %vm1111, %vm1126
      %vm1151 = vmand %vm1112, %vm1127
      %vm1152 = vmand %vm1113, %vm1128
      %vm1153 = vmand %vm1114, %vm1126
      %vm1154 = vmand %vm1115, %vm1127
      %vm1155 = vmand %vm1116, %vm1128
      %vm1156 = vmand %vm1117, %vm1126
      %vm1157 = vmand %vm1118, %vm1127
      %vm1158 = vmand %vm1119, %vm1128
      %vm1159 = vmand %vm1120, %vm1126
      %vm1160 = vmand %vm1121, %vm1127
      %vm1161 = vmand %vm1122, %vm1128
      %vm1162 = vmand %vm1123, %vm1126
      %vm1163 = vmand %vm1124, %vm1127
      %vm1164 = vmand %vm1125, %vm1128
      %v1165 = vsel %vm1129, 1, 0
      %v1166 = vsel %vm1130, 1, 0
      %v1167 = vsel %vm1131, 1, 0
      %v1168 = vsel %vm1132, 1, 0
      %v1169 = vsel %vm1133, 1, 0
      %v1170 = vsel %vm1134, 1, 0
      %v1171 = vsel %vm1135, 1, 0
      %v1172 = vsel %vm1136, 1, 0
      %v1173 = vsel %vm1137, 1, 0
      %v1174 = vsel %vm1138, 1, 0
      %v1175 = vsel %vm1139, 1, 0
      %v1176 = vsel %vm1140, 1, 0
      %v1177 = vsel %vm1141, 1, 0
      %v1178 = vsel %vm1142, 1, 0
      %v1179 = vsel %vm1143, 1, 0
      %v1180 = vsel %vm1144, 1, 0
      %v1181 = vsel %vm1145, 1, 0
      %v1182 = vsel %vm1146, 1, 0
      %v1183 = vsel %vm1147, 1, 0
      %v1184 = vsel %vm1148, 1, 0
      %v1185 = vsel %vm1149, 1, 0
      %v1186 = vsel %vm1150, 1, 0
      %v1187 = vsel %vm1151, 1, 0
      %v1188 = vsel %vm1152, 1, 0
      %v1189 = vsel %vm1153, 1, 0
      %v1190 = vsel %vm1154, 1, 0
      %v1191 = vsel %vm1155, 1, 0
      %v1192 = vsel %vm1156, 1, 0
      %v1193 = vsel %vm1157, 1, 0
      %v1194 = vsel %vm1158, 1, 0
      %v1195 = vsel %vm1159, 1, 0
      %v1196 = vsel %vm1160, 1, 0
      %v1197 = vsel %vm1161, 1, 0
      %v1198 = vsel %vm1162, 1, 0
      %v1199 = vsel %vm1163, 1, 0
      %v1200 = vsel %vm1164, 1, 0
      %vm1201 = vcmp.eq.s32.totalorder %v1165, 1
      %vm1202 = vcmp.eq.s32.totalorder %v1166, 1
      %vm1203 = vcmp.eq.s32.totalorder %v1167, 1
      %vm1204 = vcmp.eq.s32.totalorder %v1168, 1
      %vm1205 = vcmp.eq.s32.totalorder %v1169, 1
      %vm1206 = vcmp.eq.s32.totalorder %v1170, 1
      %vm1207 = vcmp.eq.s32.totalorder %v1171, 1
      %vm1208 = vcmp.eq.s32.totalorder %v1172, 1
      %vm1209 = vcmp.eq.s32.totalorder %v1173, 1
      %vm1210 = vcmp.eq.s32.totalorder %v1174, 1
      %vm1211 = vcmp.eq.s32.totalorder %v1175, 1
      %vm1212 = vcmp.eq.s32.totalorder %v1176, 1
      %vm1213 = vcmp.eq.s32.totalorder %v1177, 1
      %vm1214 = vcmp.eq.s32.totalorder %v1178, 1
      %vm1215 = vcmp.eq.s32.totalorder %v1179, 1
      %vm1216 = vcmp.eq.s32.totalorder %v1180, 1
      %vm1217 = vcmp.eq.s32.totalorder %v1181, 1
      %vm1218 = vcmp.eq.s32.totalorder %v1182, 1
      %vm1219 = vcmp.eq.s32.totalorder %v1183, 1
      %vm1220 = vcmp.eq.s32.totalorder %v1184, 1
      %vm1221 = vcmp.eq.s32.totalorder %v1185, 1
      %vm1222 = vcmp.eq.s32.totalorder %v1186, 1
      %vm1223 = vcmp.eq.s32.totalorder %v1187, 1
      %vm1224 = vcmp.eq.s32.totalorder %v1188, 1
      %vm1225 = vcmp.eq.s32.totalorder %v1189, 1
      %vm1226 = vcmp.eq.s32.totalorder %v1190, 1
      %vm1227 = vcmp.eq.s32.totalorder %v1191, 1
      %vm1228 = vcmp.eq.s32.totalorder %v1192, 1
      %vm1229 = vcmp.eq.s32.totalorder %v1193, 1
      %vm1230 = vcmp.eq.s32.totalorder %v1194, 1
      %vm1231 = vcmp.eq.s32.totalorder %v1195, 1
      %vm1232 = vcmp.eq.s32.totalorder %v1196, 1
      %vm1233 = vcmp.eq.s32.totalorder %v1197, 1
      %vm1234 = vcmp.eq.s32.totalorder %v1198, 1
      %vm1235 = vcmp.eq.s32.totalorder %v1199, 1
      %vm1236 = vcmp.eq.s32.totalorder %v1200, 1
      %1237 = vst [vmem:[#allocation1] ss:$2 sm:$0xff] %v941
      %s1238 = scalar_lea.vmem [#allocation1], 1
      %1239 = vst [vmem:[%s1238] ss:$2 sm:$0xff] %v1001
      %s1240 = scalar_lea.vmem [#allocation1], 16
      %1241 = vst [vmem:[%s1240] ss:$2 sm:$0xff] %v942
      %s1242 = scalar_lea.vmem [#allocation1], 17
      %1243 = vst [vmem:[%s1242] ss:$2 sm:$0xff] %v1002
      %s1244 = scalar_lea.vmem [#allocation1], 32
      %1245 = vst [vmem:[%s1244] ss:$2 sm:$0xff] %v943
      %v1246 = vld.sshfl [vmem:[#allocation1] sm:$0xff pattern:$0x75316420]
      %v1247 = vld.sshfl [vmem:[#allocation1 + $0x10] sm:$0xff pattern:$0x75316420]
      %v1248 = vld.sshfl [vmem:[#allocation1 + $0x20] sm:$0xff pattern:$0x75316420]
      %s1249 = scalar_lea.vmem [#allocation1], 48
      %1250 = vst [vmem:[%s1249] ss:$2 sm:$0xff] %v1003
      %s1251 = scalar_lea.vmem [#allocation1], 49
      %1252 = vst [vmem:[%s1251] ss:$2 sm:$0xff] %v944
      %v1253 = vld.sshfl [vmem:[#allocation1 + $0x30] sm:$0xff pattern:$0x75316420]
      %1254 = vst [vmem:[#allocation1] ss:$2 sm:$0xff] %v1004
      %1255 = vst [vmem:[%s1238] ss:$2 sm:$0xff] %v945
      %1256 = vst [vmem:[%s1240] ss:$2 sm:$0xff] %v1005
      %v1257 = vld.sshfl [vmem:[#allocation1] sm:$0xff pattern:$0x75316420]
      %v1258 = vld.sshfl [vmem:[#allocation1 + $0x10] sm:$0xff pattern:$0x75316420]
      %1259 = vst [vmem:[%s1244] ss:$2 sm:$0xff] %v946
      %s1260 = scalar_lea.vmem [#allocation1], 33
      %1261 = vst [vmem:[%s1260] ss:$2 sm:$0xff] %v1006
      %1262 = vst [vmem:[%s1249] ss:$2 sm:$0xff] %v947
      %1263 = vst [vmem:[%s1251] ss:$2 sm:$0xff] %v1007
      %v1264 = vld.sshfl [vmem:[#allocation1 + $0x20] sm:$0xff pattern:$0x75316420]
      %v1265 = vld.sshfl [vmem:[#allocation1 + $0x30] sm:$0xff pattern:$0x75316420]
      %1266 = vst [vmem:[#allocation1] ss:$2 sm:$0xff] %v948
      %v1267 = vld.sshfl [vmem:[#allocation1] sm:$0xff pattern:$0x75316420]
      %1268 = vst [vmem:[%s1240] ss:$2 sm:$0xff] %v1008
      %1269 = vst [vmem:[%s1242] ss:$2 sm:$0xff] %v949
      %1270 = vst [vmem:[%s1244] ss:$2 sm:$0xff] %v1009
      %1271 = vst [vmem:[%s1260] ss:$2 sm:$0xff] %v950
      %1272 = vst [vmem:[%s1249] ss:$2 sm:$0xff] %v1010
      %v1273 = vld.sshfl [vmem:[#allocation1 + $0x10] sm:$0xff pattern:$0x75316420]
      %v1274 = vld.sshfl [vmem:[#allocation1 + $0x20] sm:$0xff pattern:$0x75316420]
      %v1275 = vld.sshfl [vmem:[#allocation1 + $0x30] sm:$0xff pattern:$0x75316420]
      %1276 = vst [vmem:[#allocation1] ss:$2 sm:$0xff] %v951
      %1277 = vst [vmem:[%s1238] ss:$2 sm:$0xff] %v1011
      %1278 = vst [vmem:[%s1240] ss:$2 sm:$0xff] %v952
      %1279 = vst [vmem:[%s1242] ss:$2 sm:$0xff] %v1012
      %1280 = vst [vmem:[%s1244] ss:$2 sm:$0xff] %v953
      %v1281 = vld.sshfl [vmem:[#allocation1] sm:$0xff pattern:$0x75316420]
      %v1282 = vld.sshfl [vmem:[#allocation1 + $0x10] sm:$0xff pattern:$0x75316420]
      %v1283 = vld.sshfl [vmem:[#allocation1 + $0x20] sm:$0xff pattern:$0x75316420]
      %1284 = vst [vmem:[%s1249] ss:$2 sm:$0xff] %v1013
      %1285 = vst [vmem:[%s1251] ss:$2 sm:$0xff] %v954
      %v1286 = vld.sshfl [vmem:[#allocation1 + $0x30] sm:$0xff pattern:$0x75316420]
      %1287 = vst [vmem:[#allocation1] ss:$2 sm:$0xff] %v1014
      %1288 = vst [vmem:[%s1238] ss:$2 sm:$0xff] %v955
      %1289 = vst [vmem:[%s1240] ss:$2 sm:$0xff] %v1015
      %v1290 = vld.sshfl [vmem:[#allocation1] sm:$0xff pattern:$0x75316420]
      %v1291 = vld.sshfl [vmem:[#allocation1 + $0x10] sm:$0xff pattern:$0x75316420]
      %1292 = vst [vmem:[%s1244] ss:$2 sm:$0xff] %v956
      %1293 = vst [vmem:[%s1260] ss:$2 sm:$0xff] %v1016
      %1294 = vst [vmem:[%s1249] ss:$2 sm:$0xff] %v957
      %1295 = vst [vmem:[%s1251] ss:$2 sm:$0xff] %v1017
      %v1296 = vld.sshfl [vmem:[#allocation1 + $0x20] sm:$0xff pattern:$0x75316420]
      %v1297 = vld.sshfl [vmem:[#allocation1 + $0x30] sm:$0xff pattern:$0x75316420]
      %1298 = vst [vmem:[#allocation1] ss:$2 sm:$0xff] %v958
      %v1299 = vld.sshfl [vmem:[#allocation1] sm:$0xff pattern:$0x75316420]
      %1300 = vst [vmem:[%s1240] ss:$2 sm:$0xff] %v1018
      %1301 = vst [vmem:[%s1242] ss:$2 sm:$0xff] %v959
      %1302 = vst [vmem:[%s1244] ss:$2 sm:$0xff] %v1019
      %1303 = vst [vmem:[%s1260] ss:$2 sm:$0xff] %v960
      %1304 = vst [vmem:[%s1249] ss:$2 sm:$0xff] %v1020
      %v1305 = vld.sshfl [vmem:[#allocation1 + $0x10] sm:$0xff pattern:$0x75316420]
      %v1306 = vld.sshfl [vmem:[#allocation1 + $0x20] sm:$0xff pattern:$0x75316420]
      %v1307 = vld.sshfl [vmem:[#allocation1 + $0x30] sm:$0xff pattern:$0x75316420]
      %1308 = vst [vmem:[#allocation1] ss:$2 sm:$0xff] %v961
      %1309 = vst [vmem:[%s1238] ss:$2 sm:$0xff] %v1021
      %1310 = vst [vmem:[%s1240] ss:$2 sm:$0xff] %v962
      %1311 = vst [vmem:[%s1242] ss:$2 sm:$0xff] %v1022
      %1312 = vst [vmem:[%s1244] ss:$2 sm:$0xff] %v963
      %v1313 = vld.sshfl [vmem:[#allocation1] sm:$0xff pattern:$0x75316420]
      %v1314 = vld.sshfl [vmem:[#allocation1 + $0x10] sm:$0xff pattern:$0x75316420]
      %v1315 = vld.sshfl [vmem:[#allocation1 + $0x20] sm:$0xff pattern:$0x75316420]
      %1316 = vst [vmem:[%s1249] ss:$2 sm:$0xff] %v1023
      %1317 = vst [vmem:[%s1251] ss:$2 sm:$0xff] %v964
      %v1318 = vld.sshfl [vmem:[#allocation1 + $0x30] sm:$0xff pattern:$0x75316420]
      %1319 = vst [vmem:[#allocation1] ss:$2 sm:$0xff] %v1024
      %1320 = vst [vmem:[%s1238] ss:$2 sm:$0xff] %v965
      %1321 = vst [vmem:[%s1240] ss:$2 sm:$0xff] %v1025
      %v1322 = vld.sshfl [vmem:[#allocation1] sm:$0xff pattern:$0x75316420]
      %v1323 = vld.sshfl [vmem:[#allocation1 + $0x10] sm:$0xff pattern:$0x75316420]
      %1324 = vst [vmem:[%s1244] ss:$2 sm:$0xff] %v966
      %1325 = vst [vmem:[%s1260] ss:$2 sm:$0xff] %v1026
      %1326 = vst [vmem:[%s1249] ss:$2 sm:$0xff] %v967
      %1327 = vst [vmem:[%s1251] ss:$2 sm:$0xff] %v1027
      %v1328 = vld.sshfl [vmem:[#allocation1 + $0x20] sm:$0xff pattern:$0x75316420]
      %v1329 = vld.sshfl [vmem:[#allocation1 + $0x30] sm:$0xff pattern:$0x75316420]
      %1330 = vst [vmem:[#allocation1] ss:$2 sm:$0xff] %v968
      %v1331 = vld.sshfl [vmem:[#allocation1] sm:$0xff pattern:$0x75316420]
      %1332 = vst [vmem:[%s1240] ss:$2 sm:$0xff] %v1028
      %1333 = vst [vmem:[%s1242] ss:$2 sm:$0xff] %v969
      %1334 = vst [vmem:[%s1244] ss:$2 sm:$0xff] %v1029
      %1335 = vst [vmem:[%s1260] ss:$2 sm:$0xff] %v970
      %1336 = vst [vmem:[%s1249] ss:$2 sm:$0xff] %v1030
      %v1337 = vld.sshfl [vmem:[#allocation1 + $0x10] sm:$0xff pattern:$0x75316420]
      %v1338 = vld.sshfl [vmem:[#allocation1 + $0x20] sm:$0xff pattern:$0x75316420]
      %v1339 = vld.sshfl [vmem:[#allocation1 + $0x30] sm:$0xff pattern:$0x75316420]
      %v1376 = vsel %vm1201, %v1246, 0.0
      %v1377 = vsel %vm1202, %v1247, 0.0
      %v1378 = vsel %vm1203, %v1248, 0.0
      %v1379 = vsel %vm1204, %v1253, 0.0
      %v1380 = vsel %vm1205, %v1257, 0.0
      %v1381 = vsel %vm1206, %v1258, 0.0
      %v1382 = vsel %vm1207, %v1264, 0.0
      %v1383 = vsel %vm1208, %v1265, 0.0
      %v1384 = vsel %vm1209, %v1267, 0.0
      %v1385 = vsel %vm1210, %v1273, 0.0
      %v1386 = vsel %vm1211, %v1274, 0.0
      %v1387 = vsel %vm1212, %v1275, 0.0
      %v1388 = vsel %vm1213, %v1281, 0.0
      %v1389 = vsel %vm1214, %v1282, 0.0
      %v1390 = vsel %vm1215, %v1283, 0.0
      %v1391 = vsel %vm1216, %v1286, 0.0
      %v1392 = vsel %vm1217, %v1290, 0.0
      %v1393 = vsel %vm1218, %v1291, 0.0
      %v1394 = vsel %vm1219, %v1296, 0.0
      %v1395 = vsel %vm1220, %v1297, 0.0
      %v1396 = vsel %vm1221, %v1299, 0.0
      %v1397 = vsel %vm1222, %v1305, 0.0
      %v1398 = vsel %vm1223, %v1306, 0.0
      %v1399 = vsel %vm1224, %v1307, 0.0
      %v1400 = vsel %vm1225, %v1313, 0.0
      %v1401 = vsel %vm1226, %v1314, 0.0
      %v1402 = vsel %vm1227, %v1315, 0.0
      %v1403 = vsel %vm1228, %v1318, 0.0
      %v1404 = vsel %vm1229, %v1322, 0.0
      %v1405 = vsel %vm1230, %v1323, 0.0
      %v1406 = vsel %vm1231, %v1328, 0.0
      %v1407 = vsel %vm1232, %v1329, 0.0
      %v1408 = vsel %vm1233, %v1331, 0.0
      %v1409 = vsel %vm1234, %v1337, 0.0
      %v1410 = vsel %vm1235, %v1338, 0.0
      %v1411 = vsel %vm1236, %v1339, 0.0
      %v1412 = vpack.c.bf16 %v1376, %v1376
      %v1413 = vpack.c.bf16 %v1377, %v1377
      %v1414 = vpack.c.bf16 %v1378, %v1378
      %v1415 = vpack.c.bf16 %v1379, %v1379
      %v1416 = vpack.c.bf16 %v1380, %v1380
      %v1417 = vpack.c.bf16 %v1381, %v1381
      %v1418 = vpack.c.bf16 %v1382, %v1382
      %v1419 = vpack.c.bf16 %v1383, %v1383
      %v1420 = vpack.c.bf16 %v1384, %v1384
      %v1421 = vpack.c.bf16 %v1385, %v1385
      %v1422 = vpack.c.bf16 %v1386, %v1386
      %v1423 = vpack.c.bf16 %v1387, %v1387
      %v1424 = vpack.c.bf16 %v1388, %v1388
      %v1425 = vpack.c.bf16 %v1389, %v1389
      %v1426 = vpack.c.bf16 %v1390, %v1390
      %v1427 = vpack.c.bf16 %v1391, %v1391
      %v1428 = vpack.c.bf16 %v1392, %v1392
      %v1429 = vpack.c.bf16 %v1393, %v1393
      %v1430 = vpack.c.bf16 %v1394, %v1394
      %v1431 = vpack.c.bf16 %v1395, %v1395
      %v1432 = vpack.c.bf16 %v1396, %v1396
      %v1433 = vpack.c.bf16 %v1397, %v1397
      %v1434 = vpack.c.bf16 %v1398, %v1398
      %v1435 = vpack.c.bf16 %v1399, %v1399
      %v1436 = vpack.c.bf16 %v1400, %v1400
      %v1437 = vpack.c.bf16 %v1401, %v1401
      %v1438 = vpack.c.bf16 %v1402, %v1402
      %v1439 = vpack.c.bf16 %v1403, %v1403
      %v1440 = vpack.c.bf16 %v1404, %v1404
      %v1441 = vpack.c.bf16 %v1405, %v1405
      %v1442 = vpack.c.bf16 %v1406, %v1406
      %v1443 = vpack.c.bf16 %v1407, %v1407
      %v1444 = vpack.c.bf16 %v1408, %v1408
      %v1445 = vpack.c.bf16 %v1409, %v1409
      %v1446 = vpack.c.bf16 %v1410, %v1410
      %v1447 = vpack.c.bf16 %v1411, %v1411
      %v1478 = vrot.slane %v1412, 3
      %v1479 = vrot.slane %v1413, 3
      %v1480 = vrot.slane %v1414, 3
      %v1481 = vrot.slane %v1415, 3
      %v1482 = vrot.slane %v1416, 3
      %v1483 = vrot.slane %v1417, 3
      %v1484 = vrot.slane %v1418, 3
      %v1485 = vrot.slane %v1419, 3
      %v1486 = vrot.slane %v1420, 3
      %v1487 = vrot.slane %v1421, 3
      %v1488 = vrot.slane %v1422, 3
      %v1489 = vrot.slane %v1423, 3
      %v1490 = vrot.slane %v1424, 3
      %v1491 = vrot.slane %v1425, 3
      %v1492 = vrot.slane %v1426, 3
      %v1493 = vrot.slane %v1427, 3
      %v1494 = vrot.slane %v1428, 3
      %v1495 = vrot.slane %v1429, 3
      %v1496 = vrot.slane %v1430, 3
      %v1497 = vrot.slane %v1431, 3
      %v1498 = vrot.slane %v1432, 3
      %v1499 = vrot.slane %v1433, 3
      %v1500 = vrot.slane %v1434, 3
      %v1501 = vrot.slane %v1435, 3
      %v1502 = vrot.slane %v1436, 3
      %v1503 = vrot.slane %v1437, 3
      %v1504 = vrot.slane %v1438, 3
      %v1505 = vrot.slane %v1439, 3
      %v1506 = vrot.slane %v1440, 3
      %v1507 = vrot.slane %v1441, 3
      %vm1508 = vcmask 1040384
      %v1511 = vsel %vm1508, %v1412, %v1478
      %vm1512 = vcmask 1041409
      %v1513 = vsel %vm1512, %v1412, %v1478
      %v1515 = vrot.slane %v1513, 1
      %vm1516 = vcmask 1042434
      %v1517 = vsel %vm1516, %v1412, %v1478
      %v1519 = vrot.slane %v1517, 2
      %vm1520 = vcmask 1043459
      %v1521 = vsel %vm1520, %v1412, %v1478
      %v1523 = vrot.slane %v1521, 3
      %v1526 = vsel %vm1508, %v1413, %v1479
      %v1527 = vsel %vm1512, %v1413, %v1479
      %v1529 = vrot.slane %v1527, 1
      %v1530 = vsel %vm1516, %v1413, %v1479
      %v1532 = vrot.slane %v1530, 2
      %v1533 = vsel %vm1520, %v1413, %v1479
      %v1535 = vrot.slane %v1533, 3
      %v1538 = vsel %vm1508, %v1414, %v1480
      %v1541 = vsel %vm1508, %v1415, %v1481
      %v1542 = vsel %vm1512, %v1415, %v1481
      %v1544 = vrot.slane %v1542, 1
      %v1545 = vsel %vm1516, %v1415, %v1481
      %v1547 = vrot.slane %v1545, 2
      %v1548 = vsel %vm1520, %v1415, %v1481
      %v1550 = vrot.slane %v1548, 3
      %v1553 = vsel %vm1508, %v1416, %v1482
      %v1554 = vsel %vm1512, %v1416, %v1482
      %v1556 = vrot.slane %v1554, 1
      %v1557 = vsel %vm1516, %v1416, %v1482
      %v1559 = vrot.slane %v1557, 2
      %v1560 = vsel %vm1520, %v1416, %v1482
      %v1562 = vrot.slane %v1560, 3
      %v1565 = vsel %vm1508, %v1417, %v1483
      %v1568 = vsel %vm1508, %v1418, %v1484
      %v1569 = vsel %vm1512, %v1418, %v1484
      %v1571 = vrot.slane %v1569, 1
      %v1572 = vsel %vm1516, %v1418, %v1484
      %v1574 = vrot.slane %v1572, 2
      %v1575 = vsel %vm1520, %v1418, %v1484
      %v1577 = vrot.slane %v1575, 3
      %v1580 = vsel %vm1508, %v1419, %v1485
      %v1581 = vsel %vm1512, %v1419, %v1485
      %v1583 = vrot.slane %v1581, 1
      %v1584 = vsel %vm1516, %v1419, %v1485
      %v1586 = vrot.slane %v1584, 2
      %v1587 = vsel %vm1520, %v1419, %v1485
      %v1589 = vrot.slane %v1587, 3
      %v1592 = vsel %vm1508, %v1420, %v1486
      %v1595 = vsel %vm1508, %v1421, %v1487
      %v1596 = vsel %vm1512, %v1421, %v1487
      %v1598 = vrot.slane %v1596, 1
      %v1599 = vsel %vm1516, %v1421, %v1487
      %v1601 = vrot.slane %v1599, 2
      %v1602 = vsel %vm1520, %v1421, %v1487
      %v1604 = vrot.slane %v1602, 3
      %v1607 = vsel %vm1508, %v1422, %v1488
      %v1608 = vsel %vm1512, %v1422, %v1488
      %v1610 = vrot.slane %v1608, 1
      %v1611 = vsel %vm1516, %v1422, %v1488
      %v1613 = vrot.slane %v1611, 2
      %v1614 = vsel %vm1520, %v1422, %v1488
      %v1616 = vrot.slane %v1614, 3
      %v1619 = vsel %vm1508, %v1423, %v1489
      %v1622 = vsel %vm1508, %v1424, %v1490
      %v1623 = vsel %vm1512, %v1424, %v1490
      %v1625 = vrot.slane %v1623, 1
      %v1626 = vsel %vm1516, %v1424, %v1490
      %v1628 = vrot.slane %v1626, 2
      %v1629 = vsel %vm1520, %v1424, %v1490
      %v1631 = vrot.slane %v1629, 3
      %v1634 = vsel %vm1508, %v1425, %v1491
      %v1635 = vsel %vm1512, %v1425, %v1491
      %v1637 = vrot.slane %v1635, 1
      %v1638 = vsel %vm1516, %v1425, %v1491
      %v1640 = vrot.slane %v1638, 2
      %v1641 = vsel %vm1520, %v1425, %v1491
      %v1643 = vrot.slane %v1641, 3
      %v1646 = vsel %vm1508, %v1426, %v1492
      %v1649 = vsel %vm1508, %v1427, %v1493
      %v1650 = vsel %vm1512, %v1427, %v1493
      %v1652 = vrot.slane %v1650, 1
      %v1653 = vsel %vm1516, %v1427, %v1493
      %v1655 = vrot.slane %v1653, 2
      %v1656 = vsel %vm1520, %v1427, %v1493
      %v1658 = vrot.slane %v1656, 3
      %v1661 = vsel %vm1508, %v1428, %v1494
      %v1662 = vsel %vm1512, %v1428, %v1494
      %v1664 = vrot.slane %v1662, 1
      %v1665 = vsel %vm1516, %v1428, %v1494
      %v1667 = vrot.slane %v1665, 2
      %v1668 = vsel %vm1520, %v1428, %v1494
      %v1670 = vrot.slane %v1668, 3
      %v1673 = vsel %vm1508, %v1429, %v1495
      %v1676 = vsel %vm1508, %v1430, %v1496
      %v1677 = vsel %vm1512, %v1430, %v1496
      %v1679 = vrot.slane %v1677, 1
      %v1680 = vsel %vm1516, %v1430, %v1496
      %v1682 = vrot.slane %v1680, 2
      %v1683 = vsel %vm1520, %v1430, %v1496
      %v1685 = vrot.slane %v1683, 3
      %v1688 = vsel %vm1508, %v1431, %v1497
      %v1689 = vsel %vm1512, %v1431, %v1497
      %v1691 = vrot.slane %v1689, 1
      %v1692 = vsel %vm1516, %v1431, %v1497
      %v1694 = vrot.slane %v1692, 2
      %v1695 = vsel %vm1520, %v1431, %v1497
      %v1697 = vrot.slane %v1695, 3
      %v1700 = vsel %vm1508, %v1432, %v1498
      %v1703 = vsel %vm1508, %v1433, %v1499
      %v1704 = vsel %vm1512, %v1433, %v1499
      %v1706 = vrot.slane %v1704, 1
      %v1707 = vsel %vm1516, %v1433, %v1499
      %v1709 = vrot.slane %v1707, 2
      %v1710 = vsel %vm1520, %v1433, %v1499
      %v1712 = vrot.slane %v1710, 3
      %v1715 = vsel %vm1508, %v1434, %v1500
      %v1716 = vsel %vm1512, %v1434, %v1500
      %v1718 = vrot.slane %v1716, 1
      %v1719 = vsel %vm1516, %v1434, %v1500
      %v1721 = vrot.slane %v1719, 2
      %v1722 = vsel %vm1520, %v1434, %v1500
      %v1724 = vrot.slane %v1722, 3
      %v1727 = vsel %vm1508, %v1435, %v1501
      %v1730 = vsel %vm1508, %v1436, %v1502
      %v1731 = vsel %vm1512, %v1436, %v1502
      %v1733 = vrot.slane %v1731, 1
      %v1734 = vsel %vm1516, %v1436, %v1502
      %v1736 = vrot.slane %v1734, 2
      %v1737 = vsel %vm1520, %v1436, %v1502
      %v1739 = vrot.slane %v1737, 3
      %v1742 = vsel %vm1508, %v1437, %v1503
      %v1743 = vsel %vm1512, %v1437, %v1503
      %v1745 = vrot.slane %v1743, 1
      %v1746 = vsel %vm1516, %v1437, %v1503
      %v1748 = vrot.slane %v1746, 2
      %v1749 = vsel %vm1520, %v1437, %v1503
      %v1751 = vrot.slane %v1749, 3
      %v1754 = vsel %vm1508, %v1438, %v1504
      %v1757 = vsel %vm1508, %v1439, %v1505
      %v1758 = vsel %vm1512, %v1439, %v1505
      %v1760 = vrot.slane %v1758, 1
      %v1761 = vsel %vm1516, %v1439, %v1505
      %v1763 = vrot.slane %v1761, 2
      %v1764 = vsel %vm1520, %v1439, %v1505
      %v1766 = vrot.slane %v1764, 3
      %v1769 = vsel %vm1508, %v1440, %v1506
      %v1770 = vsel %vm1512, %v1440, %v1506
      %v1772 = vrot.slane %v1770, 1
      %v1773 = vsel %vm1516, %v1440, %v1506
      %v1775 = vrot.slane %v1773, 2
      %v1776 = vsel %vm1520, %v1440, %v1506
      %v1778 = vrot.slane %v1776, 3
      %v1781 = vsel %vm1508, %v1441, %v1507
      %v1782 = vld [vmem:[%s3] sm:$0xff]
      %v1783 = vld [vmem:[%s3 + $0x8] sm:$0xff]
      %v1784 = vld [vmem:[%s3 + $0x10] sm:$0xff]
      %v1785 = vld [vmem:[%s3 + $0x18] sm:$0xff]
      %v1786 = vld [vmem:[%s3 + $0x20] sm:$0xff]
      %v1787 = vld [vmem:[%s3 + $0x28] sm:$0xff]
      %v1788 = vld [vmem:[%s3 + $0x30] sm:$0xff]
      %v1789 = vld [vmem:[%s3 + $0x38] sm:$0xff]
      %v1790 = vld [vmem:[%s3 + $0x40] sm:$0xff]
      %v1791 = vld [vmem:[%s3 + $0x48] sm:$0xff]
      %v1792 = vld [vmem:[%s3 + $0x50] sm:$0xff]
      %v1793 = vld [vmem:[%s3 + $0x58] sm:$0xff]
      %v1794 = vld [vmem:[%s3 + $0x60] sm:$0xff]
      %v1795 = vld [vmem:[%s3 + $0x68] sm:$0xff]
      %v1796 = vld [vmem:[%s3 + $0x70] sm:$0xff]
      %v1797 = vld [vmem:[%s3 + $0x78] sm:$0xff]
      %v1798 = vsel %vm1512, %v1414, %v1480
      %v1800 = vrot.slane %v1798, 1
      %v1801 = vsel %vm1512, %v1417, %v1483
      %v1803 = vrot.slane %v1801, 1
      %v1804 = vsel %vm1512, %v1420, %v1486
      %v1806 = vrot.slane %v1804, 1
      %v1807 = vsel %vm1512, %v1423, %v1489
      %v1809 = vrot.slane %v1807, 1
      %v1810 = vsel %vm1512, %v1426, %v1492
      %v1812 = vrot.slane %v1810, 1
      %v1813 = vsel %vm1512, %v1429, %v1495
      %v1815 = vrot.slane %v1813, 1
      %v1816 = vsel %vm1512, %v1432, %v1498
      %v1818 = vrot.slane %v1816, 1
      %v1819 = vsel %vm1512, %v1435, %v1501
      %v1821 = vrot.slane %v1819, 1
      %v1822 = vsel %vm1512, %v1438, %v1504
      %v1824 = vrot.slane %v1822, 1
      %v1825 = vsel %vm1512, %v1441, %v1507
      %v1827 = vrot.slane %v1825, 1
      %vm1828 = vsmask.f32 256
      %vm1829 = vsmask.f32 1284
      %vm1830 = vmor %vm1828, %vm1829
      %vm1831 = vsmask.f32 2312
      %vm1832 = vmor %vm1830, %vm1831
      %vm1833 = vsmask.f32 3340
      %vm1834 = vmor %vm1832, %vm1833
      %vm1835 = vsmask.f32 4368
      %vm1836 = vmor %vm1834, %vm1835
      %vm1837 = vsmask.f32 5396
      %vm1838 = vmor %vm1836, %vm1837
      %vm1839 = vsmask.f32 6424
      %vm1840 = vmor %vm1838, %vm1839
      %vm1841 = vsmask.f32 7452
      %vm1842 = vmor %vm1840, %vm1841
      %v1843 = vshrl.u32 %v1511, 16
      %v1845 = vrot.slane %v1843, 7
      %v1846 = vrot.slane %v1845, 1
      %v1848 = vshll.u32 %v1515, 16
      %v1850 = vsel %vm1842, %v1846, %v1848
      %v1851 = vshrl.u32 %v1515, 16
      %v1853 = vrot.slane %v1851, 7
      %v1854 = vrot.slane %v1853, 1
      %v1856 = vshll.u32 %v1519, 16
      %v1858 = vsel %vm1842, %v1854, %v1856
      %v1859 = vshrl.u32 %v1519, 16
      %v1861 = vrot.slane %v1859, 7
      %v1862 = vrot.slane %v1861, 1
      %v1864 = vshll.u32 %v1523, 16
      %v1866 = vsel %vm1842, %v1862, %v1864
      %v1867 = vshrl.u32 %v1523, 16
      %v1869 = vrot.slane %v1867, 7
      %v1870 = vrot.slane %v1869, 1
      %v1871 = vshll.u32 %v1526, 16
      %v1873 = vsel %vm1842, %v1870, %v1871
      %v1874 = vshrl.u32 %v1526, 16
      %v1876 = vrot.slane %v1874, 7
      %v1877 = vrot.slane %v1876, 1
      %v1879 = vshll.u32 %v1529, 16
      %v1881 = vsel %vm1842, %v1877, %v1879
      %v1882 = vshrl.u32 %v1529, 16
      %v1884 = vrot.slane %v1882, 7
      %v1885 = vrot.slane %v1884, 1
      %v1887 = vshll.u32 %v1532, 16
      %v1889 = vsel %vm1842, %v1885, %v1887
      %v1890 = vshrl.u32 %v1532, 16
      %v1892 = vrot.slane %v1890, 7
      %v1893 = vrot.slane %v1892, 1
      %v1895 = vshll.u32 %v1535, 16
      %v1897 = vsel %vm1842, %v1893, %v1895
      %v1898 = vshrl.u32 %v1535, 16
      %v1900 = vrot.slane %v1898, 7
      %v1901 = vrot.slane %v1900, 1
      %v1902 = vshll.u32 %v1538, 16
      %v1904 = vsel %vm1842, %v1901, %v1902
      %v1905 = vshrl.u32 %v1538, 16
      %v1907 = vrot.slane %v1905, 7
      %v1908 = vrot.slane %v1907, 1
      %v1910 = vshll.u32 %v1800, 16
      %v1912 = vsel %vm1842, %v1908, %v1910
      %v1913 = vshrl.u32 %v1541, 16
      %v1915 = vrot.slane %v1913, 7
      %v1916 = vrot.slane %v1915, 1
      %v1918 = vshll.u32 %v1544, 16
      %v1920 = vsel %vm1842, %v1916, %v1918
      %v1921 = vshrl.u32 %v1544, 16
      %v1923 = vrot.slane %v1921, 7
      %v1924 = vrot.slane %v1923, 1
      %v1926 = vshll.u32 %v1547, 16
      %v1928 = vsel %vm1842, %v1924, %v1926
      %v1929 = vshrl.u32 %v1547, 16
      %v1931 = vrot.slane %v1929, 7
      %v1932 = vrot.slane %v1931, 1
      %v1934 = vshll.u32 %v1550, 16
      %v1936 = vsel %vm1842, %v1932, %v1934
      %v1937 = vshrl.u32 %v1550, 16
      %v1939 = vrot.slane %v1937, 7
      %v1940 = vrot.slane %v1939, 1
      %v1941 = vshll.u32 %v1553, 16
      %v1943 = vsel %vm1842, %v1940, %v1941
      %v1944 = vshrl.u32 %v1553, 16
      %v1946 = vrot.slane %v1944, 7
      %v1947 = vrot.slane %v1946, 1
      %v1949 = vshll.u32 %v1556, 16
      %v1951 = vsel %vm1842, %v1947, %v1949
      %v1952 = vshrl.u32 %v1556, 16
      %v1954 = vrot.slane %v1952, 7
      %v1955 = vrot.slane %v1954, 1
      %v1957 = vshll.u32 %v1559, 16
      %v1959 = vsel %vm1842, %v1955, %v1957
      %v1960 = vshrl.u32 %v1559, 16
      %v1962 = vrot.slane %v1960, 7
      %v1963 = vrot.slane %v1962, 1
      %v1965 = vshll.u32 %v1562, 16
      %v1967 = vsel %vm1842, %v1963, %v1965
      %v1968 = vshrl.u32 %v1562, 16
      %v1970 = vrot.slane %v1968, 7
      %v1971 = vrot.slane %v1970, 1
      %v1972 = vshll.u32 %v1565, 16
      %v1974 = vsel %vm1842, %v1971, %v1972
      %v1975 = vshrl.u32 %v1565, 16
      %v1977 = vrot.slane %v1975, 7
      %v1978 = vrot.slane %v1977, 1
      %v1980 = vshll.u32 %v1803, 16
      %v1982 = vsel %vm1842, %v1978, %v1980
      %v1983 = vshrl.u32 %v1568, 16
      %v1985 = vrot.slane %v1983, 7
      %v1986 = vrot.slane %v1985, 1
      %v1988 = vshll.u32 %v1571, 16
      %v1990 = vsel %vm1842, %v1986, %v1988
      %v1991 = vshrl.u32 %v1571, 16
      %v1993 = vrot.slane %v1991, 7
      %v1994 = vrot.slane %v1993, 1
      %v1996 = vshll.u32 %v1574, 16
      %v1998 = vsel %vm1842, %v1994, %v1996
      %v1999 = vshrl.u32 %v1574, 16
      %v2001 = vrot.slane %v1999, 7
      %v2002 = vrot.slane %v2001, 1
      %v2004 = vshll.u32 %v1577, 16
      %v2006 = vsel %vm1842, %v2002, %v2004
      %v2007 = vshrl.u32 %v1577, 16
      %v2009 = vrot.slane %v2007, 7
      %v2010 = vrot.slane %v2009, 1
      %v2011 = vshll.u32 %v1580, 16
      %v2013 = vsel %vm1842, %v2010, %v2011
      %v2014 = vshrl.u32 %v1580, 16
      %v2016 = vrot.slane %v2014, 7
      %v2017 = vrot.slane %v2016, 1
      %v2019 = vshll.u32 %v1583, 16
      %v2021 = vsel %vm1842, %v2017, %v2019
      %v2022 = vshrl.u32 %v1583, 16
      %v2024 = vrot.slane %v2022, 7
      %v2025 = vrot.slane %v2024, 1
      %v2027 = vshll.u32 %v1586, 16
      %v2029 = vsel %vm1842, %v2025, %v2027
      %v2030 = vshrl.u32 %v1586, 16
      %v2032 = vrot.slane %v2030, 7
      %v2033 = vrot.slane %v2032, 1
      %v2035 = vshll.u32 %v1589, 16
      %v2037 = vsel %vm1842, %v2033, %v2035
      %v2038 = vshrl.u32 %v1589, 16
      %v2040 = vrot.slane %v2038, 7
      %v2041 = vrot.slane %v2040, 1
      %v2042 = vshll.u32 %v1592, 16
      %v2044 = vsel %vm1842, %v2041, %v2042
      %v2045 = vshrl.u32 %v1592, 16
      %v2047 = vrot.slane %v2045, 7
      %v2048 = vrot.slane %v2047, 1
      %v2050 = vshll.u32 %v1806, 16
      %v2052 = vsel %vm1842, %v2048, %v2050
      %v2053 = vshrl.u32 %v1595, 16
      %v2055 = vrot.slane %v2053, 7
      %v2056 = vrot.slane %v2055, 1
      %v2058 = vshll.u32 %v1598, 16
      %v2060 = vsel %vm1842, %v2056, %v2058
      %v2061 = vshrl.u32 %v1598, 16
      %v2063 = vrot.slane %v2061, 7
      %v2064 = vrot.slane %v2063, 1
      %v2066 = vshll.u32 %v1601, 16
      %v2068 = vsel %vm1842, %v2064, %v2066
      %v2069 = vshrl.u32 %v1601, 16
      %v2071 = vrot.slane %v2069, 7
      %v2072 = vrot.slane %v2071, 1
      %v2074 = vshll.u32 %v1604, 16
      %v2076 = vsel %vm1842, %v2072, %v2074
      %v2077 = vshrl.u32 %v1604, 16
      %v2079 = vrot.slane %v2077, 7
      %v2080 = vrot.slane %v2079, 1
      %v2081 = vshll.u32 %v1607, 16
      %v2083 = vsel %vm1842, %v2080, %v2081
      %v2084 = vshrl.u32 %v1607, 16
      %v2086 = vrot.slane %v2084, 7
      %v2087 = vrot.slane %v2086, 1
      %v2089 = vshll.u32 %v1610, 16
      %v2091 = vsel %vm1842, %v2087, %v2089
      %v2092 = vshrl.u32 %v1610, 16
      %v2094 = vrot.slane %v2092, 7
      %v2095 = vrot.slane %v2094, 1
      %v2097 = vshll.u32 %v1613, 16
      %v2099 = vsel %vm1842, %v2095, %v2097
      %v2100 = vshrl.u32 %v1613, 16
      %v2102 = vrot.slane %v2100, 7
      %v2103 = vrot.slane %v2102, 1
      %v2105 = vshll.u32 %v1616, 16
      %v2107 = vsel %vm1842, %v2103, %v2105
      %v2108 = vshrl.u32 %v1616, 16
      %v2110 = vrot.slane %v2108, 7
      %v2111 = vrot.slane %v2110, 1
      %v2112 = vshll.u32 %v1619, 16
      %v2114 = vsel %vm1842, %v2111, %v2112
      %v2115 = vshrl.u32 %v1619, 16
      %v2117 = vrot.slane %v2115, 7
      %v2118 = vrot.slane %v2117, 1
      %v2120 = vshll.u32 %v1809, 16
      %v2122 = vsel %vm1842, %v2118, %v2120
      %v2123 = vshrl.u32 %v1622, 16
      %v2125 = vrot.slane %v2123, 7
      %v2126 = vrot.slane %v2125, 1
      %v2128 = vshll.u32 %v1625, 16
      %v2130 = vsel %vm1842, %v2126, %v2128
      %v2131 = vshrl.u32 %v1625, 16
      %v2133 = vrot.slane %v2131, 7
      %v2134 = vrot.slane %v2133, 1
      %v2136 = vshll.u32 %v1628, 16
      %v2138 = vsel %vm1842, %v2134, %v2136
      %v2139 = vshrl.u32 %v1628, 16
      %v2141 = vrot.slane %v2139, 7
      %v2142 = vrot.slane %v2141, 1
      %v2144 = vshll.u32 %v1631, 16
      %v2146 = vsel %vm1842, %v2142, %v2144
      %v2147 = vshrl.u32 %v1631, 16
      %v2149 = vrot.slane %v2147, 7
      %v2150 = vrot.slane %v2149, 1
      %v2151 = vshll.u32 %v1634, 16
      %v2153 = vsel %vm1842, %v2150, %v2151
      %v2154 = vshrl.u32 %v1634, 16
      %v2156 = vrot.slane %v2154, 7
      %v2157 = vrot.slane %v2156, 1
      %v2159 = vshll.u32 %v1637, 16
      %v2161 = vsel %vm1842, %v2157, %v2159
      %v2162 = vshrl.u32 %v1637, 16
      %v2164 = vrot.slane %v2162, 7
      %v2165 = vrot.slane %v2164, 1
      %v2167 = vshll.u32 %v1640, 16
      %v2169 = vsel %vm1842, %v2165, %v2167
      %v2170 = vshrl.u32 %v1640, 16
      %v2172 = vrot.slane %v2170, 7
      %v2173 = vrot.slane %v2172, 1
      %v2175 = vshll.u32 %v1643, 16
      %v2177 = vsel %vm1842, %v2173, %v2175
      %v2178 = vshrl.u32 %v1643, 16
      %v2180 = vrot.slane %v2178, 7
      %v2181 = vrot.slane %v2180, 1
      %v2182 = vshll.u32 %v1646, 16
      %v2184 = vsel %vm1842, %v2181, %v2182
      %v2185 = vshrl.u32 %v1646, 16
      %v2187 = vrot.slane %v2185, 7
      %v2188 = vrot.slane %v2187, 1
      %v2190 = vshll.u32 %v1812, 16
      %v2192 = vsel %vm1842, %v2188, %v2190
      %v2193 = vshrl.u32 %v1649, 16
      %v2195 = vrot.slane %v2193, 7
      %v2196 = vrot.slane %v2195, 1
      %v2198 = vshll.u32 %v1652, 16
      %v2200 = vsel %vm1842, %v2196, %v2198
      %v2201 = vshrl.u32 %v1652, 16
      %v2203 = vrot.slane %v2201, 7
      %v2204 = vrot.slane %v2203, 1
      %v2206 = vshll.u32 %v1655, 16
      %v2208 = vsel %vm1842, %v2204, %v2206
      %v2209 = vshrl.u32 %v1655, 16
      %v2211 = vrot.slane %v2209, 7
      %v2212 = vrot.slane %v2211, 1
      %v2214 = vshll.u32 %v1658, 16
      %v2216 = vsel %vm1842, %v2212, %v2214
      %v2217 = vshrl.u32 %v1658, 16
      %v2219 = vrot.slane %v2217, 7
      %v2220 = vrot.slane %v2219, 1
      %v2221 = vshll.u32 %v1661, 16
      %v2223 = vsel %vm1842, %v2220, %v2221
      %v2224 = vshrl.u32 %v1661, 16
      %v2226 = vrot.slane %v2224, 7
      %v2227 = vrot.slane %v2226, 1
      %v2229 = vshll.u32 %v1664, 16
      %v2231 = vsel %vm1842, %v2227, %v2229
      %v2232 = vshrl.u32 %v1664, 16
      %v2234 = vrot.slane %v2232, 7
      %v2235 = vrot.slane %v2234, 1
      %v2237 = vshll.u32 %v1667, 16
      %v2239 = vsel %vm1842, %v2235, %v2237
      %v2240 = vshrl.u32 %v1667, 16
      %v2242 = vrot.slane %v2240, 7
      %v2243 = vrot.slane %v2242, 1
      %v2245 = vshll.u32 %v1670, 16
      %v2247 = vsel %vm1842, %v2243, %v2245
      %v2248 = vshrl.u32 %v1670, 16
      %v2250 = vrot.slane %v2248, 7
      %v2251 = vrot.slane %v2250, 1
      %v2252 = vshll.u32 %v1673, 16
      %v2254 = vsel %vm1842, %v2251, %v2252
      %v2255 = vshrl.u32 %v1673, 16
      %v2257 = vrot.slane %v2255, 7
      %v2258 = vrot.slane %v2257, 1
      %v2260 = vshll.u32 %v1815, 16
      %v2262 = vsel %vm1842, %v2258, %v2260
      %v2263 = vshrl.u32 %v1676, 16
      %v2265 = vrot.slane %v2263, 7
      %v2266 = vrot.slane %v2265, 1
      %v2268 = vshll.u32 %v1679, 16
      %v2270 = vsel %vm1842, %v2266, %v2268
      %v2271 = vshrl.u32 %v1679, 16
      %v2273 = vrot.slane %v2271, 7
      %v2274 = vrot.slane %v2273, 1
      %v2276 = vshll.u32 %v1682, 16
      %v2278 = vsel %vm1842, %v2274, %v2276
      %v2279 = vshrl.u32 %v1682, 16
      %v2281 = vrot.slane %v2279, 7
      %v2282 = vrot.slane %v2281, 1
      %v2284 = vshll.u32 %v1685, 16
      %v2286 = vsel %vm1842, %v2282, %v2284
      %v2287 = vshrl.u32 %v1685, 16
      %v2289 = vrot.slane %v2287, 7
      %v2290 = vrot.slane %v2289, 1
      %v2291 = vshll.u32 %v1688, 16
      %v2293 = vsel %vm1842, %v2290, %v2291
      %v2294 = vshrl.u32 %v1688, 16
      %v2296 = vrot.slane %v2294, 7
      %v2297 = vrot.slane %v2296, 1
      %v2299 = vshll.u32 %v1691, 16
      %v2301 = vsel %vm1842, %v2297, %v2299
      %v2302 = vshrl.u32 %v1691, 16
      %v2304 = vrot.slane %v2302, 7
      %v2305 = vrot.slane %v2304, 1
      %v2307 = vshll.u32 %v1694, 16
      %v2309 = vsel %vm1842, %v2305, %v2307
      %v2310 = vshrl.u32 %v1694, 16
      %v2312 = vrot.slane %v2310, 7
      %v2313 = vrot.slane %v2312, 1
      %v2315 = vshll.u32 %v1697, 16
      %v2317 = vsel %vm1842, %v2313, %v2315
      %v2318 = vshrl.u32 %v1697, 16
      %v2320 = vrot.slane %v2318, 7
      %v2321 = vrot.slane %v2320, 1
      %v2322 = vshll.u32 %v1700, 16
      %v2324 = vsel %vm1842, %v2321, %v2322
      %v2325 = vshrl.u32 %v1700, 16
      %v2327 = vrot.slane %v2325, 7
      %v2328 = vrot.slane %v2327, 1
      %v2330 = vshll.u32 %v1818, 16
      %v2332 = vsel %vm1842, %v2328, %v2330
      %v2333 = vshrl.u32 %v1703, 16
      %v2335 = vrot.slane %v2333, 7
      %v2336 = vrot.slane %v2335, 1
      %v2338 = vshll.u32 %v1706, 16
      %v2340 = vsel %vm1842, %v2336, %v2338
      %v2341 = vshrl.u32 %v1706, 16
      %v2343 = vrot.slane %v2341, 7
      %v2344 = vrot.slane %v2343, 1
      %v2346 = vshll.u32 %v1709, 16
      %v2348 = vsel %vm1842, %v2344, %v2346
      %v2349 = vshrl.u32 %v1709, 16
      %v2351 = vrot.slane %v2349, 7
      %v2352 = vrot.slane %v2351, 1
      %v2354 = vshll.u32 %v1712, 16
      %v2356 = vsel %vm1842, %v2352, %v2354
      %v2357 = vshrl.u32 %v1712, 16
      %v2359 = vrot.slane %v2357, 7
      %v2360 = vrot.slane %v2359, 1
      %v2361 = vshll.u32 %v1715, 16
      %v2363 = vsel %vm1842, %v2360, %v2361
      %v2364 = vshrl.u32 %v1715, 16
      %v2366 = vrot.slane %v2364, 7
      %v2367 = vrot.slane %v2366, 1
      %v2369 = vshll.u32 %v1718, 16
      %v2371 = vsel %vm1842, %v2367, %v2369
      %v2372 = vshrl.u32 %v1718, 16
      %v2374 = vrot.slane %v2372, 7
      %v2375 = vrot.slane %v2374, 1
      %v2377 = vshll.u32 %v1721, 16
      %v2379 = vsel %vm1842, %v2375, %v2377
      %v2380 = vshrl.u32 %v1721, 16
      %v2382 = vrot.slane %v2380, 7
      %v2383 = vrot.slane %v2382, 1
      %v2385 = vshll.u32 %v1724, 16
      %v2387 = vsel %vm1842, %v2383, %v2385
      %v2388 = vshrl.u32 %v1724, 16
      %v2390 = vrot.slane %v2388, 7
      %v2391 = vrot.slane %v2390, 1
      %v2392 = vshll.u32 %v1727, 16
      %v2394 = vsel %vm1842, %v2391, %v2392
      %v2395 = vshrl.u32 %v1727, 16
      %v2397 = vrot.slane %v2395, 7
      %v2398 = vrot.slane %v2397, 1
      %v2400 = vshll.u32 %v1821, 16
      %v2402 = vsel %vm1842, %v2398, %v2400
      %v2403 = vshrl.u32 %v1730, 16
      %v2405 = vrot.slane %v2403, 7
      %v2406 = vrot.slane %v2405, 1
      %v2408 = vshll.u32 %v1733, 16
      %v2410 = vsel %vm1842, %v2406, %v2408
      %v2411 = vshrl.u32 %v1733, 16
      %v2413 = vrot.slane %v2411, 7
      %v2414 = vrot.slane %v2413, 1
      %v2416 = vshll.u32 %v1736, 16
      %v2418 = vsel %vm1842, %v2414, %v2416
      %v2419 = vshrl.u32 %v1736, 16
      %v2421 = vrot.slane %v2419, 7
      %v2422 = vrot.slane %v2421, 1
      %v2424 = vshll.u32 %v1739, 16
      %v2426 = vsel %vm1842, %v2422, %v2424
      %v2427 = vshrl.u32 %v1739, 16
      %v2429 = vrot.slane %v2427, 7
      %v2430 = vrot.slane %v2429, 1
      %v2431 = vshll.u32 %v1742, 16
      %v2433 = vsel %vm1842, %v2430, %v2431
      %v2434 = vshrl.u32 %v1742, 16
      %v2436 = vrot.slane %v2434, 7
      %v2437 = vrot.slane %v2436, 1
      %v2439 = vshll.u32 %v1745, 16
      %v2441 = vsel %vm1842, %v2437, %v2439
      %v2442 = vshrl.u32 %v1745, 16
      %v2444 = vrot.slane %v2442, 7
      %v2445 = vrot.slane %v2444, 1
      %v2447 = vshll.u32 %v1748, 16
      %v2449 = vsel %vm1842, %v2445, %v2447
      %v2450 = vshrl.u32 %v1748, 16
      %v2452 = vrot.slane %v2450, 7
      %v2453 = vrot.slane %v2452, 1
      %v2455 = vshll.u32 %v1751, 16
      %v2457 = vsel %vm1842, %v2453, %v2455
      %v2458 = vshrl.u32 %v1751, 16
      %v2460 = vrot.slane %v2458, 7
      %v2461 = vrot.slane %v2460, 1
      %v2462 = vshll.u32 %v1754, 16
      %v2464 = vsel %vm1842, %v2461, %v2462
      %v2465 = vshrl.u32 %v1754, 16
      %v2467 = vrot.slane %v2465, 7
      %v2468 = vrot.slane %v2467, 1
      %v2470 = vshll.u32 %v1824, 16
      %v2472 = vsel %vm1842, %v2468, %v2470
      %v2473 = vshrl.u32 %v1757, 16
      %v2475 = vrot.slane %v2473, 7
      %v2476 = vrot.slane %v2475, 1
      %v2478 = vshll.u32 %v1760, 16
      %v2480 = vsel %vm1842, %v2476, %v2478
      %v2481 = vshrl.u32 %v1760, 16
      %v2483 = vrot.slane %v2481, 7
      %v2484 = vrot.slane %v2483, 1
      %v2486 = vshll.u32 %v1763, 16
      %v2488 = vsel %vm1842, %v2484, %v2486
      %v2489 = vshrl.u32 %v1763, 16
      %v2491 = vrot.slane %v2489, 7
      %v2492 = vrot.slane %v2491, 1
      %v2494 = vshll.u32 %v1766, 16
      %v2496 = vsel %vm1842, %v2492, %v2494
      %v2497 = vshrl.u32 %v1766, 16
      %v2499 = vrot.slane %v2497, 7
      %v2500 = vrot.slane %v2499, 1
      %v2501 = vshll.u32 %v1769, 16
      %v2503 = vsel %vm1842, %v2500, %v2501
      %v2504 = vshrl.u32 %v1769, 16
      %v2506 = vrot.slane %v2504, 7
      %v2507 = vrot.slane %v2506, 1
      %v2509 = vshll.u32 %v1772, 16
      %v2511 = vsel %vm1842, %v2507, %v2509
      %v2512 = vshrl.u32 %v1772, 16
      %v2514 = vrot.slane %v2512, 7
      %v2515 = vrot.slane %v2514, 1
      %v2517 = vshll.u32 %v1775, 16
      %v2519 = vsel %vm1842, %v2515, %v2517
      %v2520 = vshrl.u32 %v1775, 16
      %v2522 = vrot.slane %v2520, 7
      %v2523 = vrot.slane %v2522, 1
      %v2525 = vshll.u32 %v1778, 16
      %v2527 = vsel %vm1842, %v2523, %v2525
      %v2528 = vshrl.u32 %v1778, 16
      %v2530 = vrot.slane %v2528, 7
      %v2531 = vrot.slane %v2530, 1
      %v2532 = vshll.u32 %v1781, 16
      %v2534 = vsel %vm1842, %v2531, %v2532
      %v2535 = vshrl.u32 %v1781, 16
      %v2537 = vrot.slane %v2535, 7
      %v2538 = vrot.slane %v2537, 1
      %v2540 = vshll.u32 %v1827, 16
      %v2542 = vsel %vm1842, %v2538, %v2540
      %s2543 = scalar_lea.vmem %s3, 128
      %v2544 = vld [vmem:[%s2543] sm:$0xff]
      %v2545 = vld [vmem:[%s2543 + $0x8] sm:$0xff]
      %v2546 = vld [vmem:[%s2543 + $0x10] sm:$0xff]
      %v2547 = vld [vmem:[%s2543 + $0x18] sm:$0xff]
      %v2548 = vld [vmem:[%s2543 + $0x20] sm:$0xff]
      %v2549 = vld [vmem:[%s2543 + $0x28] sm:$0xff]
      %v2550 = vld [vmem:[%s2543 + $0x30] sm:$0xff]
      %v2551 = vld [vmem:[%s2543 + $0x38] sm:$0xff]
      %v2552 = vld [vmem:[%s2543 + $0x40] sm:$0xff]
      %v2553 = vld [vmem:[%s2543 + $0x48] sm:$0xff]
      %v2554 = vld [vmem:[%s2543 + $0x50] sm:$0xff]
      %v2555 = vld [vmem:[%s2543 + $0x58] sm:$0xff]
      %v2556 = vld [vmem:[%s2543 + $0x60] sm:$0xff]
      %v2557 = vld [vmem:[%s2543 + $0x68] sm:$0xff]
      %v2558 = vld [vmem:[%s2543 + $0x70] sm:$0xff]
      %v2559 = vld [vmem:[%s2543 + $0x78] sm:$0xff]
      %2561 = vst [vmem:[#allocation1] ss:$9 sm:$0xff] %v1850
      %s2563 = scalar_lea.vmem [#allocation1], 1
      %2564 = vst [vmem:[%s2563] ss:$9 sm:$0xff] %v1858
      %s2566 = scalar_lea.vmem [#allocation1], 2
      %2567 = vst [vmem:[%s2566] ss:$9 sm:$0xff] %v1866
      %s2569 = scalar_lea.vmem [#allocation1], 3
      %2570 = vst [vmem:[%s2569] ss:$9 sm:$0xff] %v1873
      %s2572 = scalar_lea.vmem [#allocation1], 4
      %2573 = vst [vmem:[%s2572] ss:$9 sm:$0xff] %v1881
      %s2575 = scalar_lea.vmem [#allocation1], 5
      %2576 = vst [vmem:[%s2575] ss:$9 sm:$0xff] %v1889
      %s2578 = scalar_lea.vmem [#allocation1], 6
      %2579 = vst [vmem:[%s2578] ss:$9 sm:$0xff] %v1897
      %s2581 = scalar_lea.vmem [#allocation1], 7
      %2582 = vst [vmem:[%s2581] ss:$9 sm:$0xff] %v1904
      %v2583 = vld [vmem:[#allocation1] sm:$0xff]
      %2585 = vst [vmem:[#allocation1] ss:$9 sm:$0xff] %v1912
      %2587 = vst [vmem:[%s2563] ss:$9 sm:$0xff] %v1920
      %2589 = vst [vmem:[%s2566] ss:$9 sm:$0xff] %v1928
      %2591 = vst [vmem:[%s2569] ss:$9 sm:$0xff] %v1936
      %2593 = vst [vmem:[%s2572] ss:$9 sm:$0xff] %v1943
      %2595 = vst [vmem:[%s2575] ss:$9 sm:$0xff] %v1951
      %2597 = vst [vmem:[%s2578] ss:$9 sm:$0xff] %v1959
      %2599 = vst [vmem:[%s2581] ss:$9 sm:$0xff] %v1967
      %v2600 = vld [vmem:[#allocation1] sm:$0xff]
      %2602 = vst [vmem:[#allocation1] ss:$9 sm:$0xff] %v1974
      %2604 = vst [vmem:[%s2563] ss:$9 sm:$0xff] %v1982
      %2606 = vst [vmem:[%s2566] ss:$9 sm:$0xff] %v1990
      %2608 = vst [vmem:[%s2569] ss:$9 sm:$0xff] %v1998
      %2610 = vst [vmem:[%s2572] ss:$9 sm:$0xff] %v2006
      %2612 = vst [vmem:[%s2575] ss:$9 sm:$0xff] %v2013
      %2614 = vst [vmem:[%s2578] ss:$9 sm:$0xff] %v2021
      %2616 = vst [vmem:[%s2581] ss:$9 sm:$0xff] %v2029
      %v2617 = vld [vmem:[#allocation1] sm:$0xff]
      %2619 = vst [vmem:[#allocation1] ss:$9 sm:$0xff] %v2037
      %2621 = vst [vmem:[%s2563] ss:$9 sm:$0xff] %v2044
      %2623 = vst [vmem:[%s2566] ss:$9 sm:$0xff] %v2052
      %2625 = vst [vmem:[%s2569] ss:$9 sm:$0xff] %v2060
      %2627 = vst [vmem:[%s2572] ss:$9 sm:$0xff] %v2068
      %2629 = vst [vmem:[%s2575] ss:$9 sm:$0xff] %v2076
      %2631 = vst [vmem:[%s2578] ss:$9 sm:$0xff] %v2083
      %2633 = vst [vmem:[%s2581] ss:$9 sm:$0xff] %v2091
      %v2634 = vld [vmem:[#allocation1] sm:$0xff]
      %2636 = vst [vmem:[#allocation1] ss:$9 sm:$0xff] %v2099
      %2638 = vst [vmem:[%s2563] ss:$9 sm:$0xff] %v2107
      %2640 = vst [vmem:[%s2566] ss:$9 sm:$0xff] %v2114
      %2642 = vst [vmem:[%s2569] ss:$9 sm:$0xff] %v2122
      %2644 = vst [vmem:[%s2572] ss:$9 sm:$0xff] %v2130
      %2646 = vst [vmem:[%s2575] ss:$9 sm:$0xff] %v2138
      %2648 = vst [vmem:[%s2578] ss:$9 sm:$0xff] %v2146
      %2650 = vst [vmem:[%s2581] ss:$9 sm:$0xff] %v2153
      %v2651 = vld [vmem:[#allocation1] sm:$0xff]
      %2653 = vst [vmem:[#allocation1] ss:$9 sm:$0xff] %v2161
      %2655 = vst [vmem:[%s2563] ss:$9 sm:$0xff] %v2169
      %2657 = vst [vmem:[%s2566] ss:$9 sm:$0xff] %v2177
      %2659 = vst [vmem:[%s2569] ss:$9 sm:$0xff] %v2184
      %2661 = vst [vmem:[%s2572] ss:$9 sm:$0xff] %v2192
      %2663 = vst [vmem:[%s2575] ss:$9 sm:$0xff] %v2200
      %2665 = vst [vmem:[%s2578] ss:$9 sm:$0xff] %v2208
      %2667 = vst [vmem:[%s2581] ss:$9 sm:$0xff] %v2216
      %v2668 = vld [vmem:[#allocation1] sm:$0xff]
      %2670 = vst [vmem:[#allocation1] ss:$9 sm:$0xff] %v2223
      %2672 = vst [vmem:[%s2563] ss:$9 sm:$0xff] %v2231
      %2674 = vst [vmem:[%s2566] ss:$9 sm:$0xff] %v2239
      %2676 = vst [vmem:[%s2569] ss:$9 sm:$0xff] %v2247
      %2678 = vst [vmem:[%s2572] ss:$9 sm:$0xff] %v2254
      %2680 = vst [vmem:[%s2575] ss:$9 sm:$0xff] %v2262
      %2682 = vst [vmem:[%s2578] ss:$9 sm:$0xff] %v2270
      %2684 = vst [vmem:[%s2581] ss:$9 sm:$0xff] %v2278
      %v2685 = vld [vmem:[#allocation1] sm:$0xff]
      %2687 = vst [vmem:[#allocation1] ss:$9 sm:$0xff] %v2286
      %2689 = vst [vmem:[%s2563] ss:$9 sm:$0xff] %v2293
      %2691 = vst [vmem:[%s2566] ss:$9 sm:$0xff] %v2301
      %2693 = vst [vmem:[%s2569] ss:$9 sm:$0xff] %v2309
      %2695 = vst [vmem:[%s2572] ss:$9 sm:$0xff] %v2317
      %2697 = vst [vmem:[%s2575] ss:$9 sm:$0xff] %v2324
      %2699 = vst [vmem:[%s2578] ss:$9 sm:$0xff] %v2332
      %2701 = vst [vmem:[%s2581] ss:$9 sm:$0xff] %v2340
      %v2702 = vld [vmem:[#allocation1] sm:$0xff]
      %2704 = vst [vmem:[#allocation1] ss:$9 sm:$0xff] %v2348
      %2706 = vst [vmem:[%s2563] ss:$9 sm:$0xff] %v2356
      %2708 = vst [vmem:[%s2566] ss:$9 sm:$0xff] %v2363
      %2710 = vst [vmem:[%s2569] ss:$9 sm:$0xff] %v2371
      %2712 = vst [vmem:[%s2572] ss:$9 sm:$0xff] %v2379
      %2714 = vst [vmem:[%s2575] ss:$9 sm:$0xff] %v2387
      %2716 = vst [vmem:[%s2578] ss:$9 sm:$0xff] %v2394
      %2718 = vst [vmem:[%s2581] ss:$9 sm:$0xff] %v2402
      %v2719 = vld [vmem:[#allocation1] sm:$0xff]
      %2721 = vst [vmem:[#allocation1] ss:$9 sm:$0xff] %v2410
      %2723 = vst [vmem:[%s2563] ss:$9 sm:$0xff] %v2418
      %2725 = vst [vmem:[%s2566] ss:$9 sm:$0xff] %v2426
      %2727 = vst [vmem:[%s2569] ss:$9 sm:$0xff] %v2433
      %2729 = vst [vmem:[%s2572] ss:$9 sm:$0xff] %v2441
      %2731 = vst [vmem:[%s2575] ss:$9 sm:$0xff] %v2449
      %2733 = vst [vmem:[%s2578] ss:$9 sm:$0xff] %v2457
      %2735 = vst [vmem:[%s2581] ss:$9 sm:$0xff] %v2464
      %v2736 = vld [vmem:[#allocation1] sm:$0xff]
      %2738 = vst [vmem:[#allocation1] ss:$9 sm:$0xff] %v2472
      %2740 = vst [vmem:[%s2563] ss:$9 sm:$0xff] %v2480
      %2742 = vst [vmem:[%s2566] ss:$9 sm:$0xff] %v2488
      %2744 = vst [vmem:[%s2569] ss:$9 sm:$0xff] %v2496
      %2746 = vst [vmem:[%s2572] ss:$9 sm:$0xff] %v2503
      %2748 = vst [vmem:[%s2575] ss:$9 sm:$0xff] %v2511
      %2750 = vst [vmem:[%s2578] ss:$9 sm:$0xff] %v2519
      %2752 = vst [vmem:[%s2581] ss:$9 sm:$0xff] %v2527
      %v2753 = vld [vmem:[#allocation1] sm:$0xff]
      %2755 = vst [vmem:[#allocation1] ss:$9 sm:$0xff] %v2534
      %2757 = vst [vmem:[%s2563] ss:$9 sm:$0xff] %v2542
      %v2758 = vld [vmem:[#allocation1] sm:$0xff]
      %v2787 = vunpack.c.l.b16 %v2544
      %v2788 = vunpack.c.h.b16 %v2544
      %v2789 = vunpack.c.l.b16 %v2545
      %v2790 = vunpack.c.h.b16 %v2545
      %v2791 = vunpack.c.l.b16 %v2546
      %v2792 = vunpack.c.h.b16 %v2546
      %v2793 = vunpack.c.l.b16 %v2547
      %v2794 = vunpack.c.h.b16 %v2547
      %v2795 = vunpack.c.l.b16 %v2548
      %v2796 = vunpack.c.h.b16 %v2548
      %v2797 = vunpack.c.l.b16 %v2549
      %v2798 = vunpack.c.h.b16 %v2549
      %v2799 = vunpack.c.l.b16 %v2550
      %v2800 = vunpack.c.h.b16 %v2550
      %v2801 = vunpack.c.l.b16 %v2551
      %v2802 = vunpack.c.h.b16 %v2551
      %v2803 = vunpack.c.l.b16 %v2552
      %v2804 = vunpack.c.h.b16 %v2552
      %v2805 = vunpack.c.l.b16 %v2553
      %v2806 = vunpack.c.h.b16 %v2553
      %v2807 = vunpack.c.l.b16 %v2554
      %v2808 = vunpack.c.h.b16 %v2554
      %v2809 = vunpack.c.l.b16 %v2555
      %v2810 = vunpack.c.h.b16 %v2555
      %v2811 = vunpack.c.l.b16 %v2556
      %v2812 = vunpack.c.h.b16 %v2556
      %v2813 = vunpack.c.l.b16 %v2557
      %v2814 = vunpack.c.h.b16 %v2557
      %v2815 = vunpack.c.l.b16 %v2558
      %v2816 = vunpack.c.h.b16 %v2558
      %v2817 = vunpack.c.l.b16 %v2559
      %v2818 = vunpack.c.h.b16 %v2559
      %v2819 = vpack.c.b16 %v2789, %v2787
      %v2820 = vpack.c.b16 %v2790, %v2788
      %v2821 = vpack.c.b16 %v2793, %v2791
      %v2822 = vpack.c.b16 %v2794, %v2792
      %v2823 = vpack.c.b16 %v2797, %v2795
      %v2824 = vpack.c.b16 %v2798, %v2796
      %v2825 = vpack.c.b16 %v2801, %v2799
      %v2826 = vpack.c.b16 %v2802, %v2800
      %v2827 = vpack.c.b16 %v2805, %v2803
      %v2828 = vpack.c.b16 %v2806, %v2804
      %v2829 = vpack.c.b16 %v2809, %v2807
      %v2830 = vpack.c.b16 %v2810, %v2808
      %v2831 = vpack.c.b16 %v2813, %v2811
      %v2832 = vpack.c.b16 %v2814, %v2812
      %v2833 = vpack.c.b16 %v2817, %v2815
      %v2834 = vpack.c.b16 %v2818, %v2816
      %2851 = vmatpush.bf16.msra.mxu0 %v2833
      %2852 = vmatpush.bf16.msra.mxu0 %v2831
      %2853 = vmatpush.bf16.msra.mxu0 %v2829
      %2854 = vmatpush.bf16.msra.mxu0 %v2827
      %2855 = vmatpush.bf16.msra.mxu0 %v2825
      %2856 = vmatpush.bf16.msra.mxu0 %v2823
      %2857 = vmatpush.bf16.msra.mxu0 %v2821
      %2858 = vmatpush.bf16.msra.mxu0 %v2819
      %2859 = vmatmul.bf16.gmra.mxu0 %v2583
      %v2860 = vpop.f32.mrf.mxu0
      %v2861 = vadd.f32 0.0, %v2860
      %v2862 = vpop.f32.mrf.mxu0
      %v2863 = vadd.f32 0.0, %v2862
      %2864 = vmatmul.bf16.gmra.mxu0 %v2600
      %v2865 = vpop.f32.mrf.mxu0
      %v2866 = vadd.f32 0.0, %v2865
      %v2867 = vpop.f32.mrf.mxu0
      %v2868 = vadd.f32 0.0, %v2867
      %2869 = vmatmul.bf16.gmra.mxu0 %v2617
      %v2870 = vpop.f32.mrf.mxu0
      %v2871 = vadd.f32 0.0, %v2870
      %v2872 = vpop.f32.mrf.mxu0
      %v2873 = vadd.f32 0.0, %v2872
      %2874 = vmatmul.bf16.gmra.mxu0 %v2634
      %v2875 = vpop.f32.mrf.mxu0
      %v2876 = vadd.f32 0.0, %v2875
      %v2877 = vpop.f32.mrf.mxu0
      %v2878 = vadd.f32 0.0, %v2877
      %2879 = vmatmul.bf16.gmra.mxu0 %v2651
      %v2880 = vpop.f32.mrf.mxu0
      %v2881 = vadd.f32 0.0, %v2880
      %v2882 = vpop.f32.mrf.mxu0
      %v2883 = vadd.f32 0.0, %v2882
      %2884 = vmatmul.bf16.gmra.mxu0 %v2668
      %v2885 = vpop.f32.mrf.mxu0
      %v2886 = vadd.f32 0.0, %v2885
      %v2887 = vpop.f32.mrf.mxu0
      %v2888 = vadd.f32 0.0, %v2887
      %2889 = vmatmul.bf16.gmra.mxu0 %v2685
      %v2890 = vpop.f32.mrf.mxu0
      %v2891 = vadd.f32 0.0, %v2890
      %v2892 = vpop.f32.mrf.mxu0
      %v2893 = vadd.f32 0.0, %v2892
      %2894 = vmatmul.bf16.gmra.mxu0 %v2702
      %v2895 = vpop.f32.mrf.mxu0
      %v2896 = vadd.f32 0.0, %v2895
      %v2897 = vpop.f32.mrf.mxu0
      %v2898 = vadd.f32 0.0, %v2897
      %2899 = vmatmul.bf16.gmra.mxu0 %v2719
      %v2900 = vpop.f32.mrf.mxu0
      %v2901 = vadd.f32 0.0, %v2900
      %v2902 = vpop.f32.mrf.mxu0
      %v2903 = vadd.f32 0.0, %v2902
      %2904 = vmatmul.bf16.gmra.mxu0 %v2736
      %v2905 = vpop.f32.mrf.mxu0
      %v2906 = vadd.f32 0.0, %v2905
      %v2907 = vpop.f32.mrf.mxu0
      %v2908 = vadd.f32 0.0, %v2907
      %2909 = vmatmul.bf16.gmra.mxu0 %v2753
      %v2910 = vpop.f32.mrf.mxu0
      %v2911 = vadd.f32 0.0, %v2910
      %v2912 = vpop.f32.mrf.mxu0
      %v2913 = vadd.f32 0.0, %v2912
      %2914 = vmatmul.bf16.gmra.mxu0 %v2758
      %v2915 = vpop.f32.mrf.mxu0
      %v2916 = vadd.f32 0.0, %v2915
      %v2917 = vpop.f32.mrf.mxu0
      %2918 = vdwg.mxu0
      %2919 = vmatpush.bf16.msra.mxu0 %v2834
      %2920 = vmatpush.bf16.msra.mxu0 %v2832
      %2921 = vmatpush.bf16.msra.mxu0 %v2830
      %2922 = vmatpush.bf16.msra.mxu0 %v2828
      %2923 = vmatpush.bf16.msra.mxu0 %v2826
      %2924 = vmatpush.bf16.msra.mxu0 %v2824
      %2925 = vmatpush.bf16.msra.mxu0 %v2822
      %2926 = vmatpush.bf16.msra.mxu0 %v2820
      %2927 = vmatmul.bf16.gmra.mxu0 %v2583
      %v2928 = vpop.f32.mrf.mxu0
      %v2929 = vadd.f32 0.0, %v2928
      %v2930 = vpop.f32.mrf.mxu0
      %v2931 = vadd.f32 0.0, %v2930
      %2932 = vmatmul.bf16.gmra.mxu0 %v2600
      %v2933 = vpop.f32.mrf.mxu0
      %v2934 = vadd.f32 0.0, %v2933
      %v2935 = vpop.f32.mrf.mxu0
      %v2936 = vadd.f32 0.0, %v2935
      %2937 = vmatmul.bf16.gmra.mxu0 %v2617
      %v2938 = vpop.f32.mrf.mxu0
      %v2939 = vadd.f32 0.0, %v2938
      %v2940 = vpop.f32.mrf.mxu0
      %v2941 = vadd.f32 0.0, %v2940
      %2942 = vmatmul.bf16.gmra.mxu0 %v2634
      %v2943 = vpop.f32.mrf.mxu0
      %v2944 = vadd.f32 0.0, %v2943
      %v2945 = vpop.f32.mrf.mxu0
      %v2946 = vadd.f32 0.0, %v2945
      %2947 = vmatmul.bf16.gmra.mxu0 %v2651
      %v2948 = vpop.f32.mrf.mxu0
      %v2949 = vadd.f32 0.0, %v2948
      %v2950 = vpop.f32.mrf.mxu0
      %v2951 = vadd.f32 0.0, %v2950
      %2952 = vmatmul.bf16.gmra.mxu0 %v2668
      %v2953 = vpop.f32.mrf.mxu0
      %v2954 = vadd.f32 0.0, %v2953
      %v2955 = vpop.f32.mrf.mxu0
      %v2956 = vadd.f32 0.0, %v2955
      %2957 = vmatmul.bf16.gmra.mxu0 %v2685
      %v2958 = vpop.f32.mrf.mxu0
      %v2959 = vadd.f32 0.0, %v2958
      %v2960 = vpop.f32.mrf.mxu0
      %v2961 = vadd.f32 0.0, %v2960
      %2962 = vmatmul.bf16.gmra.mxu0 %v2702
      %v2963 = vpop.f32.mrf.mxu0
      %v2964 = vadd.f32 0.0, %v2963
      %v2965 = vpop.f32.mrf.mxu0
      %v2966 = vadd.f32 0.0, %v2965
      %2967 = vmatmul.bf16.gmra.mxu0 %v2719
      %v2968 = vpop.f32.mrf.mxu0
      %v2969 = vadd.f32 0.0, %v2968
      %v2970 = vpop.f32.mrf.mxu0
      %v2971 = vadd.f32 0.0, %v2970
      %2972 = vmatmul.bf16.gmra.mxu0 %v2736
      %v2973 = vpop.f32.mrf.mxu0
      %v2974 = vadd.f32 0.0, %v2973
      %v2975 = vpop.f32.mrf.mxu0
      %v2976 = vadd.f32 0.0, %v2975
      %2977 = vmatmul.bf16.gmra.mxu0 %v2753
      %v2978 = vpop.f32.mrf.mxu0
      %v2979 = vadd.f32 0.0, %v2978
      %v2980 = vpop.f32.mrf.mxu0
      %v2981 = vadd.f32 0.0, %v2980
      %2982 = vmatmul.bf16.gmra.mxu0 %v2758
      %v2983 = vpop.f32.mrf.mxu0
      %v2984 = vadd.f32 0.0, %v2983
      %v2985 = vpop.f32.mrf.mxu0
      %2986 = vdwg.mxu0
      %2987 = vst [vmem:[#allocation1] ss:$9 sm:$0xff] %v1511
      %s2988 = scalar_lea.vmem [#allocation1], 1
      %2989 = vst [vmem:[%s2988] ss:$9 sm:$0xff] %v1515
      %s2990 = scalar_lea.vmem [#allocation1], 2
      %2991 = vst [vmem:[%s2990] ss:$9 sm:$0xff] %v1519
      %s2992 = scalar_lea.vmem [#allocation1], 3
      %2993 = vst [vmem:[%s2992] ss:$9 sm:$0xff] %v1523
      %s2994 = scalar_lea.vmem [#allocation1], 4
      %2995 = vst [vmem:[%s2994] ss:$9 sm:$0xff] %v1526
      %s2996 = scalar_lea.vmem [#allocation1], 5
      %2997 = vst [vmem:[%s2996] ss:$9 sm:$0xff] %v1529
      %s2998 = scalar_lea.vmem [#allocation1], 6
      %2999 = vst [vmem:[%s2998] ss:$9 sm:$0xff] %v1532
      %s3000 = scalar_lea.vmem [#allocation1], 7
      %3001 = vst [vmem:[%s3000] ss:$9 sm:$0xff] %v1535
      %v3002 = vld [vmem:[#allocation1] sm:$0xff]
      %3003 = vst [vmem:[#allocation1] ss:$9 sm:$0xff] %v1538
      %3004 = vst [vmem:[%s2988] ss:$9 sm:$0xff] %v1541
      %3005 = vst [vmem:[%s2990] ss:$9 sm:$0xff] %v1544
      %3006 = vst [vmem:[%s2992] ss:$9 sm:$0xff] %v1547
      %3007 = vst [vmem:[%s2994] ss:$9 sm:$0xff] %v1550
      %3008 = vst [vmem:[%s2996] ss:$9 sm:$0xff] %v1553
      %3009 = vst [vmem:[%s2998] ss:$9 sm:$0xff] %v1556
      %3010 = vst [vmem:[%s3000] ss:$9 sm:$0xff] %v1559
      %v3011 = vld [vmem:[#allocation1] sm:$0xff]
      %3012 = vst [vmem:[#allocation1] ss:$9 sm:$0xff] %v1562
      %3013 = vst [vmem:[%s2988] ss:$9 sm:$0xff] %v1565
      %3014 = vst [vmem:[%s2990] ss:$9 sm:$0xff] %v1568
      %3015 = vst [vmem:[%s2992] ss:$9 sm:$0xff] %v1571
      %3016 = vst [vmem:[%s2994] ss:$9 sm:$0xff] %v1574
      %3017 = vst [vmem:[%s2996] ss:$9 sm:$0xff] %v1577
      %3018 = vst [vmem:[%s2998] ss:$9 sm:$0xff] %v1580
      %3019 = vst [vmem:[%s3000] ss:$9 sm:$0xff] %v1583
      %v3020 = vld [vmem:[#allocation1] sm:$0xff]
      %3021 = vst [vmem:[#allocation1] ss:$9 sm:$0xff] %v1586
      %3022 = vst [vmem:[%s2988] ss:$9 sm:$0xff] %v1589
      %3023 = vst [vmem:[%s2990] ss:$9 sm:$0xff] %v1592
      %3024 = vst [vmem:[%s2992] ss:$9 sm:$0xff] %v1595
      %3025 = vst [vmem:[%s2994] ss:$9 sm:$0xff] %v1598
      %3026 = vst [vmem:[%s2996] ss:$9 sm:$0xff] %v1601
      %3027 = vst [vmem:[%s2998] ss:$9 sm:$0xff] %v1604
      %3028 = vst [vmem:[%s3000] ss:$9 sm:$0xff] %v1607
      %v3029 = vld [vmem:[#allocation1] sm:$0xff]
      %3030 = vst [vmem:[#allocation1] ss:$9 sm:$0xff] %v1610
      %3031 = vst [vmem:[%s2988] ss:$9 sm:$0xff] %v1613
      %3032 = vst [vmem:[%s2990] ss:$9 sm:$0xff] %v1616
      %3033 = vst [vmem:[%s2992] ss:$9 sm:$0xff] %v1619
      %3034 = vst [vmem:[%s2994] ss:$9 sm:$0xff] %v1622
      %3035 = vst [vmem:[%s2996] ss:$9 sm:$0xff] %v1625
      %3036 = vst [vmem:[%s2998] ss:$9 sm:$0xff] %v1628
      %3037 = vst [vmem:[%s3000] ss:$9 sm:$0xff] %v1631
      %v3038 = vld [vmem:[#allocation1] sm:$0xff]
      %3039 = vst [vmem:[#allocation1] ss:$9 sm:$0xff] %v1634
      %3040 = vst [vmem:[%s2988] ss:$9 sm:$0xff] %v1637
      %3041 = vst [vmem:[%s2990] ss:$9 sm:$0xff] %v1640
      %3042 = vst [vmem:[%s2992] ss:$9 sm:$0xff] %v1643
      %3043 = vst [vmem:[%s2994] ss:$9 sm:$0xff] %v1646
      %3044 = vst [vmem:[%s2996] ss:$9 sm:$0xff] %v1649
      %3045 = vst [vmem:[%s2998] ss:$9 sm:$0xff] %v1652
      %3046 = vst [vmem:[%s3000] ss:$9 sm:$0xff] %v1655
      %v3047 = vld [vmem:[#allocation1] sm:$0xff]
      %3048 = vst [vmem:[#allocation1] ss:$9 sm:$0xff] %v1658
      %3049 = vst [vmem:[%s2988] ss:$9 sm:$0xff] %v1661
      %3050 = vst [vmem:[%s2990] ss:$9 sm:$0xff] %v1664
      %3051 = vst [vmem:[%s2992] ss:$9 sm:$0xff] %v1667
      %3052 = vst [vmem:[%s2994] ss:$9 sm:$0xff] %v1670
      %3053 = vst [vmem:[%s2996] ss:$9 sm:$0xff] %v1673
      %3054 = vst [vmem:[%s2998] ss:$9 sm:$0xff] %v1676
      %3055 = vst [vmem:[%s3000] ss:$9 sm:$0xff] %v1679
      %v3056 = vld [vmem:[#allocation1] sm:$0xff]
      %3057 = vst [vmem:[#allocation1] ss:$9 sm:$0xff] %v1682
      %3058 = vst [vmem:[%s2988] ss:$9 sm:$0xff] %v1685
      %3059 = vst [vmem:[%s2990] ss:$9 sm:$0xff] %v1688
      %3060 = vst [vmem:[%s2992] ss:$9 sm:$0xff] %v1691
      %3061 = vst [vmem:[%s2994] ss:$9 sm:$0xff] %v1694
      %3062 = vst [vmem:[%s2996] ss:$9 sm:$0xff] %v1697
      %3063 = vst [vmem:[%s2998] ss:$9 sm:$0xff] %v1700
      %3064 = vst [vmem:[%s3000] ss:$9 sm:$0xff] %v1703
      %v3065 = vld [vmem:[#allocation1] sm:$0xff]
      %3066 = vst [vmem:[#allocation1] ss:$9 sm:$0xff] %v1706
      %3067 = vst [vmem:[%s2988] ss:$9 sm:$0xff] %v1709
      %3068 = vst [vmem:[%s2990] ss:$9 sm:$0xff] %v1712
      %3069 = vst [vmem:[%s2992] ss:$9 sm:$0xff] %v1715
      %3070 = vst [vmem:[%s2994] ss:$9 sm:$0xff] %v1718
      %3071 = vst [vmem:[%s2996] ss:$9 sm:$0xff] %v1721
      %3072 = vst [vmem:[%s2998] ss:$9 sm:$0xff] %v1724
      %3073 = vst [vmem:[%s3000] ss:$9 sm:$0xff] %v1727
      %v3074 = vld [vmem:[#allocation1] sm:$0xff]
      %3075 = vst [vmem:[#allocation1] ss:$9 sm:$0xff] %v1730
      %3076 = vst [vmem:[%s2988] ss:$9 sm:$0xff] %v1733
      %3077 = vst [vmem:[%s2990] ss:$9 sm:$0xff] %v1736
      %3078 = vst [vmem:[%s2992] ss:$9 sm:$0xff] %v1739
      %3079 = vst [vmem:[%s2994] ss:$9 sm:$0xff] %v1742
      %3080 = vst [vmem:[%s2996] ss:$9 sm:$0xff] %v1745
      %3081 = vst [vmem:[%s2998] ss:$9 sm:$0xff] %v1748
      %3082 = vst [vmem:[%s3000] ss:$9 sm:$0xff] %v1751
      %v3083 = vld [vmem:[#allocation1] sm:$0xff]
      %3084 = vst [vmem:[#allocation1] ss:$9 sm:$0xff] %v1754
      %3085 = vst [vmem:[%s2988] ss:$9 sm:$0xff] %v1757
      %3086 = vst [vmem:[%s2990] ss:$9 sm:$0xff] %v1760
      %3087 = vst [vmem:[%s2992] ss:$9 sm:$0xff] %v1763
      %3088 = vst [vmem:[%s2994] ss:$9 sm:$0xff] %v1766
      %3089 = vst [vmem:[%s2996] ss:$9 sm:$0xff] %v1769
      %3090 = vst [vmem:[%s2998] ss:$9 sm:$0xff] %v1772
      %3091 = vst [vmem:[%s3000] ss:$9 sm:$0xff] %v1775
      %v3092 = vld [vmem:[#allocation1] sm:$0xff]
      %3093 = vst [vmem:[#allocation1] ss:$9 sm:$0xff] %v1778
      %3094 = vst [vmem:[%s2988] ss:$9 sm:$0xff] %v1781
      %v3095 = vld [vmem:[#allocation1] sm:$0xff]
      %v3124 = vunpack.c.l.b16 %v1782
      %v3125 = vunpack.c.h.b16 %v1782
      %v3126 = vunpack.c.l.b16 %v1783
      %v3127 = vunpack.c.h.b16 %v1783
      %v3128 = vunpack.c.l.b16 %v1784
      %v3129 = vunpack.c.h.b16 %v1784
      %v3130 = vunpack.c.l.b16 %v1785
      %v3131 = vunpack.c.h.b16 %v1785
      %v3132 = vunpack.c.l.b16 %v1786
      %v3133 = vunpack.c.h.b16 %v1786
      %v3134 = vunpack.c.l.b16 %v1787
      %v3135 = vunpack.c.h.b16 %v1787
      %v3136 = vunpack.c.l.b16 %v1788
      %v3137 = vunpack.c.h.b16 %v1788
      %v3138 = vunpack.c.l.b16 %v1789
      %v3139 = vunpack.c.h.b16 %v1789
      %v3140 = vunpack.c.l.b16 %v1790
      %v3141 = vunpack.c.h.b16 %v1790
      %v3142 = vunpack.c.l.b16 %v1791
      %v3143 = vunpack.c.h.b16 %v1791
      %v3144 = vunpack.c.l.b16 %v1792
      %v3145 = vunpack.c.h.b16 %v1792
      %v3146 = vunpack.c.l.b16 %v1793
      %v3147 = vunpack.c.h.b16 %v1793
      %v3148 = vunpack.c.l.b16 %v1794
      %v3149 = vunpack.c.h.b16 %v1794
      %v3150 = vunpack.c.l.b16 %v1795
      %v3151 = vunpack.c.h.b16 %v1795
      %v3152 = vunpack.c.l.b16 %v1796
      %v3153 = vunpack.c.h.b16 %v1796
      %v3154 = vunpack.c.l.b16 %v1797
      %v3155 = vunpack.c.h.b16 %v1797
      %v3156 = vpack.c.b16 %v3126, %v3124
      %v3157 = vpack.c.b16 %v3127, %v3125
      %v3158 = vpack.c.b16 %v3130, %v3128
      %v3159 = vpack.c.b16 %v3131, %v3129
      %v3160 = vpack.c.b16 %v3134, %v3132
      %v3161 = vpack.c.b16 %v3135, %v3133
      %v3162 = vpack.c.b16 %v3138, %v3136
      %v3163 = vpack.c.b16 %v3139, %v3137
      %v3164 = vpack.c.b16 %v3142, %v3140
      %v3165 = vpack.c.b16 %v3143, %v3141
      %v3166 = vpack.c.b16 %v3146, %v3144
      %v3167 = vpack.c.b16 %v3147, %v3145
      %v3168 = vpack.c.b16 %v3150, %v3148
      %v3169 = vpack.c.b16 %v3151, %v3149
      %v3170 = vpack.c.b16 %v3154, %v3152
      %v3171 = vpack.c.b16 %v3155, %v3153
      %3188 = vmatpush.bf16.msra.mxu0 %v3170
      %3189 = vmatpush.bf16.msra.mxu0 %v3168
      %3190 = vmatpush.bf16.msra.mxu0 %v3166
      %3191 = vmatpush.bf16.msra.mxu0 %v3164
      %3192 = vmatpush.bf16.msra.mxu0 %v3162
      %3193 = vmatpush.bf16.msra.mxu0 %v3160
      %3194 = vmatpush.bf16.msra.mxu0 %v3158
      %3195 = vmatpush.bf16.msra.mxu0 %v3156
      %3196 = vmatmul.bf16.gmra.mxu0 %v3002
      %v3197 = vpop.f32.mrf.mxu0
      %v3198 = vadd.f32 %v2861, %v3197
      %v3199 = vpop.f32.mrf.mxu0
      %v3200 = vadd.f32 %v2863, %v3199
      %3201 = vmatmul.bf16.gmra.mxu0 %v3011
      %v3202 = vpop.f32.mrf.mxu0
      %v3203 = vadd.f32 %v2866, %v3202
      %v3204 = vpop.f32.mrf.mxu0
      %v3205 = vadd.f32 %v2868, %v3204
      %3206 = vmatmul.bf16.gmra.mxu0 %v3020
      %v3207 = vpop.f32.mrf.mxu0
      %v3208 = vadd.f32 %v2871, %v3207
      %v3209 = vpop.f32.mrf.mxu0
      %v3210 = vadd.f32 %v2873, %v3209
      %3211 = vmatmul.bf16.gmra.mxu0 %v3029
      %v3212 = vpop.f32.mrf.mxu0
      %v3213 = vadd.f32 %v2876, %v3212
      %v3214 = vpop.f32.mrf.mxu0
      %v3215 = vadd.f32 %v2878, %v3214
      %3216 = vmatmul.bf16.gmra.mxu0 %v3038
      %v3217 = vpop.f32.mrf.mxu0
      %v3218 = vadd.f32 %v2881, %v3217
      %v3219 = vpop.f32.mrf.mxu0
      %v3220 = vadd.f32 %v2883, %v3219
      %3221 = vmatmul.bf16.gmra.mxu0 %v3047
      %v3222 = vpop.f32.mrf.mxu0
      %v3223 = vadd.f32 %v2886, %v3222
      %v3224 = vpop.f32.mrf.mxu0
      %v3225 = vadd.f32 %v2888, %v3224
      %3226 = vmatmul.bf16.gmra.mxu0 %v3056
      %v3227 = vpop.f32.mrf.mxu0
      %v3228 = vadd.f32 %v2891, %v3227
      %v3229 = vpop.f32.mrf.mxu0
      %v3230 = vadd.f32 %v2893, %v3229
      %3231 = vmatmul.bf16.gmra.mxu0 %v3065
      %v3232 = vpop.f32.mrf.mxu0
      %v3233 = vadd.f32 %v2896, %v3232
      %v3234 = vpop.f32.mrf.mxu0
      %v3235 = vadd.f32 %v2898, %v3234
      %3236 = vmatmul.bf16.gmra.mxu0 %v3074
      %v3237 = vpop.f32.mrf.mxu0
      %v3238 = vadd.f32 %v2901, %v3237
      %v3239 = vpop.f32.mrf.mxu0
      %v3240 = vadd.f32 %v2903, %v3239
      %3241 = vmatmul.bf16.gmra.mxu0 %v3083
      %v3242 = vpop.f32.mrf.mxu0
      %v3243 = vadd.f32 %v2906, %v3242
      %v3244 = vpop.f32.mrf.mxu0
      %v3245 = vadd.f32 %v2908, %v3244
      %3246 = vmatmul.bf16.gmra.mxu0 %v3092
      %v3247 = vpop.f32.mrf.mxu0
      %v3248 = vadd.f32 %v2911, %v3247
      %v3249 = vpop.f32.mrf.mxu0
      %v3250 = vadd.f32 %v2913, %v3249
      %3251 = vmatmul.bf16.gmra.mxu0 %v3095
      %v3252 = vpop.f32.mrf.mxu0
      %v3253 = vadd.f32 %v2916, %v3252
      %v3254 = vpop.f32.mrf.mxu0
      %3255 = vdwg.mxu0
      %3256 = vmatpush.bf16.msra.mxu0 %v3171
      %3257 = vmatpush.bf16.msra.mxu0 %v3169
      %3258 = vmatpush.bf16.msra.mxu0 %v3167
      %3259 = vmatpush.bf16.msra.mxu0 %v3165
      %3260 = vmatpush.bf16.msra.mxu0 %v3163
      %3261 = vmatpush.bf16.msra.mxu0 %v3161
      %3262 = vmatpush.bf16.msra.mxu0 %v3159
      %3263 = vmatpush.bf16.msra.mxu0 %v3157
      %3264 = vmatmul.bf16.gmra.mxu0 %v3002
      %v3265 = vpop.f32.mrf.mxu0
      %v3266 = vadd.f32 %v2929, %v3265
      %v3267 = vpop.f32.mrf.mxu0
      %v3268 = vadd.f32 %v2931, %v3267
      %3269 = vmatmul.bf16.gmra.mxu0 %v3011
      %v3270 = vpop.f32.mrf.mxu0
      %v3271 = vadd.f32 %v2934, %v3270
      %v3272 = vpop.f32.mrf.mxu0
      %v3273 = vadd.f32 %v2936, %v3272
      %3274 = vmatmul.bf16.gmra.mxu0 %v3020
      %v3275 = vpop.f32.mrf.mxu0
      %v3276 = vadd.f32 %v2939, %v3275
      %v3277 = vpop.f32.mrf.mxu0
      %v3278 = vadd.f32 %v2941, %v3277
      %3279 = vmatmul.bf16.gmra.mxu0 %v3029
      %v3280 = vpop.f32.mrf.mxu0
      %v3281 = vadd.f32 %v2944, %v3280
      %v3282 = vpop.f32.mrf.mxu0
      %v3283 = vadd.f32 %v2946, %v3282
      %3284 = vmatmul.bf16.gmra.mxu0 %v3038
      %v3285 = vpop.f32.mrf.mxu0
      %v3286 = vadd.f32 %v2949, %v3285
      %v3287 = vpop.f32.mrf.mxu0
      %v3288 = vadd.f32 %v2951, %v3287
      %3289 = vmatmul.bf16.gmra.mxu0 %v3047
      %v3290 = vpop.f32.mrf.mxu0
      %v3291 = vadd.f32 %v2954, %v3290
      %v3292 = vpop.f32.mrf.mxu0
      %v3293 = vadd.f32 %v2956, %v3292
      %3294 = vmatmul.bf16.gmra.mxu0 %v3056
      %v3295 = vpop.f32.mrf.mxu0
      %v3296 = vadd.f32 %v2959, %v3295
      %v3297 = vpop.f32.mrf.mxu0
      %v3298 = vadd.f32 %v2961, %v3297
      %3299 = vmatmul.bf16.gmra.mxu0 %v3065
      %v3300 = vpop.f32.mrf.mxu0
      %v3301 = vadd.f32 %v2964, %v3300
      %v3302 = vpop.f32.mrf.mxu0
      %v3303 = vadd.f32 %v2966, %v3302
      %3304 = vmatmul.bf16.gmra.mxu0 %v3074
      %v3305 = vpop.f32.mrf.mxu0
      %v3306 = vadd.f32 %v2969, %v3305
      %v3307 = vpop.f32.mrf.mxu0
      %v3308 = vadd.f32 %v2971, %v3307
      %3309 = vmatmul.bf16.gmra.mxu0 %v3083
      %v3310 = vpop.f32.mrf.mxu0
      %v3311 = vadd.f32 %v2974, %v3310
      %v3312 = vpop.f32.mrf.mxu0
      %v3313 = vadd.f32 %v2976, %v3312
      %3314 = vmatmul.bf16.gmra.mxu0 %v3092
      %v3315 = vpop.f32.mrf.mxu0
      %v3316 = vadd.f32 %v2979, %v3315
      %v3317 = vpop.f32.mrf.mxu0
      %v3318 = vadd.f32 %v2981, %v3317
      %3319 = vmatmul.bf16.gmra.mxu0 %v3095
      %v3320 = vpop.f32.mrf.mxu0
      %v3321 = vadd.f32 %v2984, %v3320
      %v3322 = vpop.f32.mrf.mxu0
      %3323 = vdwg.mxu0
      %3324 = vst [vmem:[#allocation1] sm:$0xff] %v1412
      %3325 = vst [vmem:[#allocation1 + $0x20] sm:$0xff] %v1413
      %s3326 = scalar_lea.vmem [#allocation1], 1
      %v3327 = vld [vmem:[%s3326] ss:$4 sm:$0xff]
      %s3328 = scalar_lea.vmem [#allocation1], 2
      %v3329 = vld [vmem:[%s3328] ss:$4 sm:$0xff]
      %s3330 = scalar_lea.vmem [#allocation1], 3
      %v3331 = vld [vmem:[%s3330] ss:$4 sm:$0xff]
      %s3332 = scalar_lea.vmem [#allocation1], 32
      %v3333 = vld [vmem:[%s3332] ss:$4 sm:$0xff]
      %s3334 = scalar_lea.vmem [#allocation1], 33
      %v3335 = vld [vmem:[%s3334] ss:$4 sm:$0xff]
      %s3336 = scalar_lea.vmem [#allocation1], 34
      %v3337 = vld [vmem:[%s3336] ss:$4 sm:$0xff]
      %s3338 = scalar_lea.vmem [#allocation1], 35
      %v3339 = vld [vmem:[%s3338] ss:$4 sm:$0xff]
      %3340 = vst [vmem:[#allocation1] sm:$0xff] %v1414
      %v3341 = vld [vmem:[#allocation1] ss:$4 sm:$0xff]
      %v3342 = vld [vmem:[%s3326] ss:$4 sm:$0xff]
      %3343 = vst [vmem:[#allocation1 + $0x20] sm:$0xff] %v1415
      %v3344 = vld [vmem:[%s3334] ss:$4 sm:$0xff]
      %v3345 = vld [vmem:[%s3336] ss:$4 sm:$0xff]
      %v3346 = vld [vmem:[%s3338] ss:$4 sm:$0xff]
      %3347 = vst [vmem:[#allocation1] sm:$0xff] %v1416
      %3348 = vst [vmem:[#allocation1 + $0x20] sm:$0xff] %v1417
      %v3349 = vld [vmem:[#allocation1] ss:$4 sm:$0xff]
      %v3350 = vld [vmem:[%s3326] ss:$4 sm:$0xff]
      %v3351 = vld [vmem:[%s3328] ss:$4 sm:$0xff]
      %v3352 = vld [vmem:[%s3330] ss:$4 sm:$0xff]
      %v3353 = vld [vmem:[%s3332] ss:$4 sm:$0xff]
      %v3354 = vld [vmem:[%s3334] ss:$4 sm:$0xff]
      %3355 = vst [vmem:[#allocation1] sm:$0xff] %v1418
      %3356 = vst [vmem:[#allocation1 + $0x20] sm:$0xff] %v1419
      %v3357 = vld [vmem:[%s3326] ss:$4 sm:$0xff]
      %v3358 = vld [vmem:[%s3328] ss:$4 sm:$0xff]
      %v3359 = vld [vmem:[%s3330] ss:$4 sm:$0xff]
      %v3360 = vld [vmem:[%s3332] ss:$4 sm:$0xff]
      %v3361 = vld [vmem:[%s3334] ss:$4 sm:$0xff]
      %v3362 = vld [vmem:[%s3336] ss:$4 sm:$0xff]
      %v3363 = vld [vmem:[%s3338] ss:$4 sm:$0xff]
      %3364 = vst [vmem:[#allocation1] sm:$0xff] %v1420
      %v3365 = vld [vmem:[#allocation1] ss:$4 sm:$0xff]
      %v3366 = vld [vmem:[%s3326] ss:$4 sm:$0xff]
      %3367 = vst [vmem:[#allocation1 + $0x20] sm:$0xff] %v1421
      %v3368 = vld [vmem:[%s3334] ss:$4 sm:$0xff]
      %v3369 = vld [vmem:[%s3336] ss:$4 sm:$0xff]
      %v3370 = vld [vmem:[%s3338] ss:$4 sm:$0xff]
      %3371 = vst [vmem:[#allocation1] sm:$0xff] %v1422
      %3372 = vst [vmem:[#allocation1 + $0x20] sm:$0xff] %v1423
      %v3373 = vld [vmem:[#allocation1] ss:$4 sm:$0xff]
      %v3374 = vld [vmem:[%s3326] ss:$4 sm:$0xff]
      %v3375 = vld [vmem:[%s3328] ss:$4 sm:$0xff]
      %v3376 = vld [vmem:[%s3330] ss:$4 sm:$0xff]
      %v3377 = vld [vmem:[%s3332] ss:$4 sm:$0xff]
      %v3378 = vld [vmem:[%s3334] ss:$4 sm:$0xff]
      %3379 = vst [vmem:[#allocation1] sm:$0xff] %v1424
      %3380 = vst [vmem:[#allocation1 + $0x20] sm:$0xff] %v1425
      %v3381 = vld [vmem:[%s3326] ss:$4 sm:$0xff]
      %v3382 = vld [vmem:[%s3328] ss:$4 sm:$0xff]
      %v3383 = vld [vmem:[%s3330] ss:$4 sm:$0xff]
      %v3384 = vld [vmem:[%s3332] ss:$4 sm:$0xff]
      %v3385 = vld [vmem:[%s3334] ss:$4 sm:$0xff]
      %v3386 = vld [vmem:[%s3336] ss:$4 sm:$0xff]
      %v3387 = vld [vmem:[%s3338] ss:$4 sm:$0xff]
      %3388 = vst [vmem:[#allocation1] sm:$0xff] %v1426
      %v3389 = vld [vmem:[#allocation1] ss:$4 sm:$0xff]
      %v3390 = vld [vmem:[%s3326] ss:$4 sm:$0xff]
      %3391 = vst [vmem:[#allocation1 + $0x20] sm:$0xff] %v1427
      %v3392 = vld [vmem:[%s3334] ss:$4 sm:$0xff]
      %v3393 = vld [vmem:[%s3336] ss:$4 sm:$0xff]
      %v3394 = vld [vmem:[%s3338] ss:$4 sm:$0xff]
      %3395 = vst [vmem:[#allocation1] sm:$0xff] %v1428
      %3396 = vst [vmem:[#allocation1 + $0x20] sm:$0xff] %v1429
      %v3397 = vld [vmem:[#allocation1] ss:$4 sm:$0xff]
      %v3398 = vld [vmem:[%s3326] ss:$4 sm:$0xff]
      %v3399 = vld [vmem:[%s3328] ss:$4 sm:$0xff]
      %v3400 = vld [vmem:[%s3330] ss:$4 sm:$0xff]
      %v3401 = vld [vmem:[%s3332] ss:$4 sm:$0xff]
      %v3402 = vld [vmem:[%s3334] ss:$4 sm:$0xff]
      %3403 = vst [vmem:[#allocation1] sm:$0xff] %v1430
      %3404 = vst [vmem:[#allocation1 + $0x20] sm:$0xff] %v1431
      %v3405 = vld [vmem:[%s3326] ss:$4 sm:$0xff]
      %v3406 = vld [vmem:[%s3328] ss:$4 sm:$0xff]
      %v3407 = vld [vmem:[%s3330] ss:$4 sm:$0xff]
      %v3408 = vld [vmem:[%s3332] ss:$4 sm:$0xff]
      %v3409 = vld [vmem:[%s3334] ss:$4 sm:$0xff]
      %v3410 = vld [vmem:[%s3336] ss:$4 sm:$0xff]
      %v3411 = vld [vmem:[%s3338] ss:$4 sm:$0xff]
      %3412 = vst [vmem:[#allocation1] sm:$0xff] %v1432
      %v3413 = vld [vmem:[#allocation1] ss:$4 sm:$0xff]
      %v3414 = vld [vmem:[%s3326] ss:$4 sm:$0xff]
      %3415 = vst [vmem:[#allocation1 + $0x20] sm:$0xff] %v1433
      %v3416 = vld [vmem:[%s3334] ss:$4 sm:$0xff]
      %v3417 = vld [vmem:[%s3336] ss:$4 sm:$0xff]
      %v3418 = vld [vmem:[%s3338] ss:$4 sm:$0xff]
      %3419 = vst [vmem:[#allocation1] sm:$0xff] %v1434
      %3420 = vst [vmem:[#allocation1 + $0x20] sm:$0xff] %v1435
      %v3421 = vld [vmem:[#allocation1] ss:$4 sm:$0xff]
      %v3422 = vld [vmem:[%s3326] ss:$4 sm:$0xff]
      %v3423 = vld [vmem:[%s3328] ss:$4 sm:$0xff]
      %v3424 = vld [vmem:[%s3330] ss:$4 sm:$0xff]
      %v3425 = vld [vmem:[%s3332] ss:$4 sm:$0xff]
      %v3426 = vld [vmem:[%s3334] ss:$4 sm:$0xff]
      %3427 = vst [vmem:[#allocation1] sm:$0xff] %v1436
      %3428 = vst [vmem:[#allocation1 + $0x20] sm:$0xff] %v1437
      %v3429 = vld [vmem:[%s3326] ss:$4 sm:$0xff]
      %v3430 = vld [vmem:[%s3328] ss:$4 sm:$0xff]
      %v3431 = vld [vmem:[%s3330] ss:$4 sm:$0xff]
      %v3432 = vld [vmem:[%s3332] ss:$4 sm:$0xff]
      %v3433 = vld [vmem:[%s3334] ss:$4 sm:$0xff]
      %v3434 = vld [vmem:[%s3336] ss:$4 sm:$0xff]
      %v3435 = vld [vmem:[%s3338] ss:$4 sm:$0xff]
      %3436 = vst [vmem:[#allocation1] sm:$0xff] %v1438
      %v3437 = vld [vmem:[#allocation1] ss:$4 sm:$0xff]
      %v3438 = vld [vmem:[%s3326] ss:$4 sm:$0xff]
      %3439 = vst [vmem:[#allocation1 + $0x20] sm:$0xff] %v1439
      %v3440 = vld [vmem:[%s3334] ss:$4 sm:$0xff]
      %v3441 = vld [vmem:[%s3336] ss:$4 sm:$0xff]
      %v3442 = vld [vmem:[%s3338] ss:$4 sm:$0xff]
      %3443 = vst [vmem:[#allocation1] sm:$0xff] %v1440
      %3444 = vst [vmem:[#allocation1 + $0x20] sm:$0xff] %v1441
      %v3445 = vld [vmem:[#allocation1] ss:$4 sm:$0xff]
      %v3446 = vld [vmem:[%s3326] ss:$4 sm:$0xff]
      %v3447 = vld [vmem:[%s3328] ss:$4 sm:$0xff]
      %v3448 = vld [vmem:[%s3330] ss:$4 sm:$0xff]
      %v3449 = vld [vmem:[%s3332] ss:$4 sm:$0xff]
      %v3450 = vld [vmem:[%s3334] ss:$4 sm:$0xff]
      %s3451 = scalar_lea.vmem %s3, 256
      %v3452 = vld [vmem:[%s3451] sm:$0xff]
      %v3453 = vld [vmem:[%s3451 + $0x8] sm:$0xff]
      %v3454 = vld [vmem:[%s3451 + $0x10] sm:$0xff]
      %v3455 = vld [vmem:[%s3451 + $0x18] sm:$0xff]
      %v3456 = vld [vmem:[%s3451 + $0x20] sm:$0xff]
      %v3457 = vld [vmem:[%s3451 + $0x28] sm:$0xff]
      %v3458 = vld [vmem:[%s3451 + $0x30] sm:$0xff]
      %v3459 = vld [vmem:[%s3451 + $0x38] sm:$0xff]
      %v3460 = vld [vmem:[%s3451 + $0x40] sm:$0xff]
      %v3461 = vld [vmem:[%s3451 + $0x48] sm:$0xff]
      %v3462 = vld [vmem:[%s3451 + $0x50] sm:$0xff]
      %v3463 = vld [vmem:[%s3451 + $0x58] sm:$0xff]
      %v3464 = vld [vmem:[%s3451 + $0x60] sm:$0xff]
      %v3465 = vld [vmem:[%s3451 + $0x68] sm:$0xff]
      %v3466 = vld [vmem:[%s3451 + $0x70] sm:$0xff]
      %v3467 = vld [vmem:[%s3451 + $0x78] sm:$0xff]
      %3468 = vst [vmem:[#allocation1] ss:$9 sm:$0xff] %v3327
      %s3469 = scalar_lea.vmem [#allocation1], 1
      %3470 = vst [vmem:[%s3469] ss:$9 sm:$0xff] %v3329
      %s3471 = scalar_lea.vmem [#allocation1], 2
      %3472 = vst [vmem:[%s3471] ss:$9 sm:$0xff] %v3331
      %s3473 = scalar_lea.vmem [#allocation1], 3
      %3474 = vst [vmem:[%s3473] ss:$9 sm:$0xff] %v3333
      %s3475 = scalar_lea.vmem [#allocation1], 4
      %3476 = vst [vmem:[%s3475] ss:$9 sm:$0xff] %v3335
      %s3477 = scalar_lea.vmem [#allocation1], 5
      %3478 = vst [vmem:[%s3477] ss:$9 sm:$0xff] %v3337
      %s3479 = scalar_lea.vmem [#allocation1], 6
      %3480 = vst [vmem:[%s3479] ss:$9 sm:$0xff] %v3339
      %s3481 = scalar_lea.vmem [#allocation1], 7
      %3482 = vst [vmem:[%s3481] ss:$9 sm:$0xff] %v3341
      %v3483 = vld [vmem:[#allocation1] sm:$0xff]
      %3484 = vst [vmem:[#allocation1] ss:$9 sm:$0xff] %v3342
      %3485 = vst [vmem:[%s3469] ss:$9 sm:$0xff] %v3344
      %3486 = vst [vmem:[%s3471] ss:$9 sm:$0xff] %v3345
      %3487 = vst [vmem:[%s3473] ss:$9 sm:$0xff] %v3346
      %3488 = vst [vmem:[%s3475] ss:$9 sm:$0xff] %v3349
      %3489 = vst [vmem:[%s3477] ss:$9 sm:$0xff] %v3350
      %3490 = vst [vmem:[%s3479] ss:$9 sm:$0xff] %v3351
      %3491 = vst [vmem:[%s3481] ss:$9 sm:$0xff] %v3352
      %v3492 = vld [vmem:[#allocation1] sm:$0xff]
      %3493 = vst [vmem:[#allocation1] ss:$9 sm:$0xff] %v3353
      %3494 = vst [vmem:[%s3469] ss:$9 sm:$0xff] %v3354
      %3495 = vst [vmem:[%s3471] ss:$9 sm:$0xff] %v3357
      %3496 = vst [vmem:[%s3473] ss:$9 sm:$0xff] %v3358
      %3497 = vst [vmem:[%s3475] ss:$9 sm:$0xff] %v3359
      %3498 = vst [vmem:[%s3477] ss:$9 sm:$0xff] %v3360
      %3499 = vst [vmem:[%s3479] ss:$9 sm:$0xff] %v3361
      %3500 = vst [vmem:[%s3481] ss:$9 sm:$0xff] %v3362
      %v3501 = vld [vmem:[#allocation1] sm:$0xff]
      %3502 = vst [vmem:[#allocation1] ss:$9 sm:$0xff] %v3363
      %3503 = vst [vmem:[%s3469] ss:$9 sm:$0xff] %v3365
      %3504 = vst [vmem:[%s3471] ss:$9 sm:$0xff] %v3366
      %3505 = vst [vmem:[%s3473] ss:$9 sm:$0xff] %v3368
      %3506 = vst [vmem:[%s3475] ss:$9 sm:$0xff] %v3369
      %3507 = vst [vmem:[%s3477] ss:$9 sm:$0xff] %v3370
      %3508 = vst [vmem:[%s3479] ss:$9 sm:$0xff] %v3373
      %3509 = vst [vmem:[%s3481] ss:$9 sm:$0xff] %v3374
      %v3510 = vld [vmem:[#allocation1] sm:$0xff]
      %3511 = vst [vmem:[#allocation1] ss:$9 sm:$0xff] %v3375
      %3512 = vst [vmem:[%s3469] ss:$9 sm:$0xff] %v3376
      %3513 = vst [vmem:[%s3471] ss:$9 sm:$0xff] %v3377
      %3514 = vst [vmem:[%s3473] ss:$9 sm:$0xff] %v3378
      %3515 = vst [vmem:[%s3475] ss:$9 sm:$0xff] %v3381
      %3516 = vst [vmem:[%s3477] ss:$9 sm:$0xff] %v3382
      %3517 = vst [vmem:[%s3479] ss:$9 sm:$0xff] %v3383
      %3518 = vst [vmem:[%s3481] ss:$9 sm:$0xff] %v3384
      %v3519 = vld [vmem:[#allocation1] sm:$0xff]
      %3520 = vst [vmem:[#allocation1] ss:$9 sm:$0xff] %v3385
      %3521 = vst [vmem:[%s3469] ss:$9 sm:$0xff] %v3386
      %3522 = vst [vmem:[%s3471] ss:$9 sm:$0xff] %v3387
      %3523 = vst [vmem:[%s3473] ss:$9 sm:$0xff] %v3389
      %3524 = vst [vmem:[%s3475] ss:$9 sm:$0xff] %v3390
      %3525 = vst [vmem:[%s3477] ss:$9 sm:$0xff] %v3392
      %3526 = vst [vmem:[%s3479] ss:$9 sm:$0xff] %v3393
      %3527 = vst [vmem:[%s3481] ss:$9 sm:$0xff] %v3394
      %v3528 = vld [vmem:[#allocation1] sm:$0xff]
      %3529 = vst [vmem:[#allocation1] ss:$9 sm:$0xff] %v3397
      %3530 = vst [vmem:[%s3469] ss:$9 sm:$0xff] %v3398
      %3531 = vst [vmem:[%s3471] ss:$9 sm:$0xff] %v3399
      %3532 = vst [vmem:[%s3473] ss:$9 sm:$0xff] %v3400
      %3533 = vst [vmem:[%s3475] ss:$9 sm:$0xff] %v3401
      %3534 = vst [vmem:[%s3477] ss:$9 sm:$0xff] %v3402
      %3535 = vst [vmem:[%s3479] ss:$9 sm:$0xff] %v3405
      %3536 = vst [vmem:[%s3481] ss:$9 sm:$0xff] %v3406
      %v3537 = vld [vmem:[#allocation1] sm:$0xff]
      %3538 = vst [vmem:[#allocation1] ss:$9 sm:$0xff] %v3407
      %3539 = vst [vmem:[%s3469] ss:$9 sm:$0xff] %v3408
      %3540 = vst [vmem:[%s3471] ss:$9 sm:$0xff] %v3409
      %3541 = vst [vmem:[%s3473] ss:$9 sm:$0xff] %v3410
      %3542 = vst [vmem:[%s3475] ss:$9 sm:$0xff] %v3411
      %3543 = vst [vmem:[%s3477] ss:$9 sm:$0xff] %v3413
      %3544 = vst [vmem:[%s3479] ss:$9 sm:$0xff] %v3414
      %3545 = vst [vmem:[%s3481] ss:$9 sm:$0xff] %v3416
      %v3546 = vld [vmem:[#allocation1] sm:$0xff]
      %3547 = vst [vmem:[#allocation1] ss:$9 sm:$0xff] %v3417
      %3548 = vst [vmem:[%s3469] ss:$9 sm:$0xff] %v3418
      %3549 = vst [vmem:[%s3471] ss:$9 sm:$0xff] %v3421
      %3550 = vst [vmem:[%s3473] ss:$9 sm:$0xff] %v3422
      %3551 = vst [vmem:[%s3475] ss:$9 sm:$0xff] %v3423
      %3552 = vst [vmem:[%s3477] ss:$9 sm:$0xff] %v3424
      %3553 = vst [vmem:[%s3479] ss:$9 sm:$0xff] %v3425
      %3554 = vst [vmem:[%s3481] ss:$9 sm:$0xff] %v3426
      %v3555 = vld [vmem:[#allocation1] sm:$0xff]
      %3556 = vst [vmem:[#allocation1] ss:$9 sm:$0xff] %v3429
      %3557 = vst [vmem:[%s3469] ss:$9 sm:$0xff] %v3430
      %3558 = vst [vmem:[%s3471] ss:$9 sm:$0xff] %v3431
      %3559 = vst [vmem:[%s3473] ss:$9 sm:$0xff] %v3432
      %3560 = vst [vmem:[%s3475] ss:$9 sm:$0xff] %v3433
      %3561 = vst [vmem:[%s3477] ss:$9 sm:$0xff] %v3434
      %3562 = vst [vmem:[%s3479] ss:$9 sm:$0xff] %v3435
      %3563 = vst [vmem:[%s3481] ss:$9 sm:$0xff] %v3437
      %v3564 = vld [vmem:[#allocation1] sm:$0xff]
      %3565 = vst [vmem:[#allocation1] ss:$9 sm:$0xff] %v3438
      %3566 = vst [vmem:[%s3469] ss:$9 sm:$0xff] %v3440
      %3567 = vst [vmem:[%s3471] ss:$9 sm:$0xff] %v3441
      %3568 = vst [vmem:[%s3473] ss:$9 sm:$0xff] %v3442
      %3569 = vst [vmem:[%s3475] ss:$9 sm:$0xff] %v3445
      %3570 = vst [vmem:[%s3477] ss:$9 sm:$0xff] %v3446
      %3571 = vst [vmem:[%s3479] ss:$9 sm:$0xff] %v3447
      %3572 = vst [vmem:[%s3481] ss:$9 sm:$0xff] %v3448
      %v3573 = vld [vmem:[#allocation1] sm:$0xff]
      %3574 = vst [vmem:[#allocation1] ss:$9 sm:$0xff] %v3449
      %3575 = vst [vmem:[%s3469] ss:$9 sm:$0xff] %v3450
      %v3576 = vld [vmem:[#allocation1] sm:$0xff]
      %v3605 = vunpack.c.l.b16 %v3452
      %v3606 = vunpack.c.h.b16 %v3452
      %v3607 = vunpack.c.l.b16 %v3453
      %v3608 = vunpack.c.h.b16 %v3453
      %v3609 = vunpack.c.l.b16 %v3454
      %v3610 = vunpack.c.h.b16 %v3454
      %v3611 = vunpack.c.l.b16 %v3455
      %v3612 = vunpack.c.h.b16 %v3455
      %v3613 = vunpack.c.l.b16 %v3456
      %v3614 = vunpack.c.h.b16 %v3456
      %v3615 = vunpack.c.l.b16 %v3457
      %v3616 = vunpack.c.h.b16 %v3457
      %v3617 = vunpack.c.l.b16 %v3458
      %v3618 = vunpack.c.h.b16 %v3458
      %v3619 = vunpack.c.l.b16 %v3459
      %v3620 = vunpack.c.h.b16 %v3459
      %v3621 = vunpack.c.l.b16 %v3460
      %v3622 = vunpack.c.h.b16 %v3460
      %v3623 = vunpack.c.l.b16 %v3461
      %v3624 = vunpack.c.h.b16 %v3461
      %v3625 = vunpack.c.l.b16 %v3462
      %v3626 = vunpack.c.h.b16 %v3462
      %v3627 = vunpack.c.l.b16 %v3463
      %v3628 = vunpack.c.h.b16 %v3463
      %v3629 = vunpack.c.l.b16 %v3464
      %v3630 = vunpack.c.h.b16 %v3464
      %v3631 = vunpack.c.l.b16 %v3465
      %v3632 = vunpack.c.h.b16 %v3465
      %v3633 = vunpack.c.l.b16 %v3466
      %v3634 = vunpack.c.h.b16 %v3466
      %v3635 = vunpack.c.l.b16 %v3467
      %v3636 = vunpack.c.h.b16 %v3467
      %v3637 = vpack.c.b16 %v3607, %v3605
      %v3638 = vpack.c.b16 %v3608, %v3606
      %v3639 = vpack.c.b16 %v3611, %v3609
      %v3640 = vpack.c.b16 %v3612, %v3610
      %v3641 = vpack.c.b16 %v3615, %v3613
      %v3642 = vpack.c.b16 %v3616, %v3614
      %v3643 = vpack.c.b16 %v3619, %v3617
      %v3644 = vpack.c.b16 %v3620, %v3618
      %v3645 = vpack.c.b16 %v3623, %v3621
      %v3646 = vpack.c.b16 %v3624, %v3622
      %v3647 = vpack.c.b16 %v3627, %v3625
      %v3648 = vpack.c.b16 %v3628, %v3626
      %v3649 = vpack.c.b16 %v3631, %v3629
      %v3650 = vpack.c.b16 %v3632, %v3630
      %v3651 = vpack.c.b16 %v3635, %v3633
      %v3652 = vpack.c.b16 %v3636, %v3634
      %3669 = vmatpush.bf16.msra.mxu0 %v3651
      %3670 = vmatpush.bf16.msra.mxu0 %v3649
      %3671 = vmatpush.bf16.msra.mxu0 %v3647
      %3672 = vmatpush.bf16.msra.mxu0 %v3645
      %3673 = vmatpush.bf16.msra.mxu0 %v3643
      %3674 = vmatpush.bf16.msra.mxu0 %v3641
      %3675 = vmatpush.bf16.msra.mxu0 %v3639
      %3676 = vmatpush.bf16.msra.mxu0 %v3637
      %3677 = vmatmul.bf16.gmra.mxu0 %v3483
      %v3678 = vpop.f32.mrf.mxu0
      %v3679 = vadd.f32 0.0, %v3678
      %v3680 = vpop.f32.mrf.mxu0
      %v3681 = vadd.f32 0.0, %v3680
      %3682 = vmatmul.bf16.gmra.mxu0 %v3492
      %v3683 = vpop.f32.mrf.mxu0
      %v3684 = vadd.f32 0.0, %v3683
      %v3685 = vpop.f32.mrf.mxu0
      %v3686 = vadd.f32 0.0, %v3685
      %3687 = vmatmul.bf16.gmra.mxu0 %v3501
      %v3688 = vpop.f32.mrf.mxu0
      %v3689 = vadd.f32 0.0, %v3688
      %v3690 = vpop.f32.mrf.mxu0
      %v3691 = vadd.f32 0.0, %v3690
      %3692 = vmatmul.bf16.gmra.mxu0 %v3510
      %v3693 = vpop.f32.mrf.mxu0
      %v3694 = vadd.f32 0.0, %v3693
      %v3695 = vpop.f32.mrf.mxu0
      %v3696 = vadd.f32 0.0, %v3695
      %3697 = vmatmul.bf16.gmra.mxu0 %v3519
      %v3698 = vpop.f32.mrf.mxu0
      %v3699 = vadd.f32 0.0, %v3698
      %v3700 = vpop.f32.mrf.mxu0
      %v3701 = vadd.f32 0.0, %v3700
      %3702 = vmatmul.bf16.gmra.mxu0 %v3528
      %v3703 = vpop.f32.mrf.mxu0
      %v3704 = vadd.f32 0.0, %v3703
      %v3705 = vpop.f32.mrf.mxu0
      %v3706 = vadd.f32 0.0, %v3705
      %3707 = vmatmul.bf16.gmra.mxu0 %v3537
      %v3708 = vpop.f32.mrf.mxu0
      %v3709 = vadd.f32 0.0, %v3708
      %v3710 = vpop.f32.mrf.mxu0
      %v3711 = vadd.f32 0.0, %v3710
      %3712 = vmatmul.bf16.gmra.mxu0 %v3546
      %v3713 = vpop.f32.mrf.mxu0
      %v3714 = vadd.f32 0.0, %v3713
      %v3715 = vpop.f32.mrf.mxu0
      %v3716 = vadd.f32 0.0, %v3715
      %3717 = vmatmul.bf16.gmra.mxu0 %v3555
      %v3718 = vpop.f32.mrf.mxu0
      %v3719 = vadd.f32 0.0, %v3718
      %v3720 = vpop.f32.mrf.mxu0
      %v3721 = vadd.f32 0.0, %v3720
      %3722 = vmatmul.bf16.gmra.mxu0 %v3564
      %v3723 = vpop.f32.mrf.mxu0
      %v3724 = vadd.f32 0.0, %v3723
      %v3725 = vpop.f32.mrf.mxu0
      %v3726 = vadd.f32 0.0, %v3725
      %3727 = vmatmul.bf16.gmra.mxu0 %v3573
      %v3728 = vpop.f32.mrf.mxu0
      %v3729 = vadd.f32 0.0, %v3728
      %v3730 = vpop.f32.mrf.mxu0
      %v3731 = vadd.f32 0.0, %v3730
      %3732 = vmatmul.bf16.gmra.mxu0 %v3576
      %v3733 = vpop.f32.mrf.mxu0
      %v3734 = vadd.f32 0.0, %v3733
      %v3735 = vpop.f32.mrf.mxu0
      %3736 = vdwg.mxu0
      %3737 = vmatpush.bf16.msra.mxu0 %v3652
      %3738 = vmatpush.bf16.msra.mxu0 %v3650
      %3739 = vmatpush.bf16.msra.mxu0 %v3648
      %3740 = vmatpush.bf16.msra.mxu0 %v3646
      %3741 = vmatpush.bf16.msra.mxu0 %v3644
      %3742 = vmatpush.bf16.msra.mxu0 %v3642
      %3743 = vmatpush.bf16.msra.mxu0 %v3640
      %3744 = vmatpush.bf16.msra.mxu0 %v3638
      %3745 = vmatmul.bf16.gmra.mxu0 %v3483
      %v3746 = vpop.f32.mrf.mxu0
      %v3747 = vadd.f32 0.0, %v3746
      %v3748 = vpop.f32.mrf.mxu0
      %v3749 = vadd.f32 0.0, %v3748
      %3750 = vmatmul.bf16.gmra.mxu0 %v3492
      %v3751 = vpop.f32.mrf.mxu0
      %v3752 = vadd.f32 0.0, %v3751
      %v3753 = vpop.f32.mrf.mxu0
      %v3754 = vadd.f32 0.0, %v3753
      %3755 = vmatmul.bf16.gmra.mxu0 %v3501
      %v3756 = vpop.f32.mrf.mxu0
      %v3757 = vadd.f32 0.0, %v3756
      %v3758 = vpop.f32.mrf.mxu0
      %v3759 = vadd.f32 0.0, %v3758
      %3760 = vmatmul.bf16.gmra.mxu0 %v3510
      %v3761 = vpop.f32.mrf.mxu0
      %v3762 = vadd.f32 0.0, %v3761
      %v3763 = vpop.f32.mrf.mxu0
      %v3764 = vadd.f32 0.0, %v3763
      %3765 = vmatmul.bf16.gmra.mxu0 %v3519
      %v3766 = vpop.f32.mrf.mxu0
      %v3767 = vadd.f32 0.0, %v3766
      %v3768 = vpop.f32.mrf.mxu0
      %v3769 = vadd.f32 0.0, %v3768
      %3770 = vmatmul.bf16.gmra.mxu0 %v3528
      %v3771 = vpop.f32.mrf.mxu0
      %v3772 = vadd.f32 0.0, %v3771
      %v3773 = vpop.f32.mrf.mxu0
      %v3774 = vadd.f32 0.0, %v3773
      %3775 = vmatmul.bf16.gmra.mxu0 %v3537
      %v3776 = vpop.f32.mrf.mxu0
      %v3777 = vadd.f32 0.0, %v3776
      %v3778 = vpop.f32.mrf.mxu0
      %v3779 = vadd.f32 0.0, %v3778
      %3780 = vmatmul.bf16.gmra.mxu0 %v3546
      %v3781 = vpop.f32.mrf.mxu0
      %v3782 = vadd.f32 0.0, %v3781
      %v3783 = vpop.f32.mrf.mxu0
      %v3784 = vadd.f32 0.0, %v3783
      %3785 = vmatmul.bf16.gmra.mxu0 %v3555
      %v3786 = vpop.f32.mrf.mxu0
      %v3787 = vadd.f32 0.0, %v3786
      %v3788 = vpop.f32.mrf.mxu0
      %v3789 = vadd.f32 0.0, %v3788
      %3790 = vmatmul.bf16.gmra.mxu0 %v3564
      %v3791 = vpop.f32.mrf.mxu0
      %v3792 = vadd.f32 0.0, %v3791
      %v3793 = vpop.f32.mrf.mxu0
      %v3794 = vadd.f32 0.0, %v3793
      %3795 = vmatmul.bf16.gmra.mxu0 %v3573
      %v3796 = vpop.f32.mrf.mxu0
      %v3797 = vadd.f32 0.0, %v3796
      %v3798 = vpop.f32.mrf.mxu0
      %v3799 = vadd.f32 0.0, %v3798
      %3800 = vmatmul.bf16.gmra.mxu0 %v3576
      %v3801 = vpop.f32.mrf.mxu0
      %v3802 = vadd.f32 0.0, %v3801
      %v3803 = vpop.f32.mrf.mxu0
      %3804 = vdwg.mxu0
      %v3805 = vadd.f32 %v3198, %v3679
      %v3806 = vadd.f32 %v3266, %v3747
      %v3807 = vadd.f32 %v3200, %v3681
      %v3808 = vadd.f32 %v3268, %v3749
      %v3809 = vadd.f32 %v3203, %v3684
      %v3810 = vadd.f32 %v3271, %v3752
      %v3811 = vadd.f32 %v3205, %v3686
      %v3812 = vadd.f32 %v3273, %v3754
      %v3813 = vadd.f32 %v3208, %v3689
      %v3814 = vadd.f32 %v3276, %v3757
      %v3815 = vadd.f32 %v3210, %v3691
      %v3816 = vadd.f32 %v3278, %v3759
      %v3817 = vadd.f32 %v3213, %v3694
      %v3818 = vadd.f32 %v3281, %v3762
      %v3819 = vadd.f32 %v3215, %v3696
      %v3820 = vadd.f32 %v3283, %v3764
      %v3821 = vadd.f32 %v3218, %v3699
      %v3822 = vadd.f32 %v3286, %v3767
      %v3823 = vadd.f32 %v3220, %v3701
      %v3824 = vadd.f32 %v3288, %v3769
      %v3825 = vadd.f32 %v3223, %v3704
      %v3826 = vadd.f32 %v3291, %v3772
      %v3827 = vadd.f32 %v3225, %v3706
      %v3828 = vadd.f32 %v3293, %v3774
      %v3829 = vadd.f32 %v3228, %v3709
      %v3830 = vadd.f32 %v3296, %v3777
      %v3831 = vadd.f32 %v3230, %v3711
      %v3832 = vadd.f32 %v3298, %v3779
      %v3833 = vadd.f32 %v3233, %v3714
      %v3834 = vadd.f32 %v3301, %v3782
      %v3835 = vadd.f32 %v3235, %v3716
      %v3836 = vadd.f32 %v3303, %v3784
      %v3837 = vadd.f32 %v3238, %v3719
      %v3838 = vadd.f32 %v3306, %v3787
      %v3839 = vadd.f32 %v3240, %v3721
      %v3840 = vadd.f32 %v3308, %v3789
      %v3841 = vadd.f32 %v3243, %v3724
      %v3842 = vadd.f32 %v3311, %v3792
      %v3843 = vadd.f32 %v3245, %v3726
      %v3844 = vadd.f32 %v3313, %v3794
      %v3845 = vadd.f32 %v3248, %v3729
      %v3846 = vadd.f32 %v3316, %v3797
      %v3847 = vadd.f32 %v3250, %v3731
      %v3848 = vadd.f32 %v3318, %v3799
      %v3849 = vadd.f32 %v3253, %v3734
      %v3850 = vadd.f32 %v3321, %v3802
      %v3854 = vrot.slane %v1442, 3
      %v3855 = vrot.slane %v1443, 3
      %v3856 = vrot.slane %v1444, 3
      %v3859 = vsel %vm1508, %v1442, %v3854
      %v3860 = vsel %vm1512, %v1442, %v3854
      %v3862 = vrot.slane %v3860, 1
      %v3863 = vsel %vm1516, %v1442, %v3854
      %v3865 = vrot.slane %v3863, 2
      %v3866 = vsel %vm1520, %v1442, %v3854
      %v3868 = vrot.slane %v3866, 3
      %v3871 = vsel %vm1508, %v1443, %v3855
      %v3872 = vsel %vm1512, %v1443, %v3855
      %v3874 = vrot.slane %v3872, 1
      %v3875 = vsel %vm1516, %v1443, %v3855
      %v3877 = vrot.slane %v3875, 2
      %v3878 = vsel %vm1520, %v1443, %v3855
      %v3880 = vrot.slane %v3878, 3
      %v3883 = vsel %vm1508, %v1444, %v3856
      %s3884 = scalar_lea.vmem %s3, 384
      %v3885 = vld [vmem:[%s3884] sm:$0xff]
      %v3886 = vld [vmem:[%s3884 + $0x8] sm:$0xff]
      %v3887 = vld [vmem:[%s3884 + $0x10] sm:$0xff]
      %v3888 = vld [vmem:[%s3884 + $0x18] sm:$0xff]
      %v3889 = vld [vmem:[%s3884 + $0x20] sm:$0xff]
      %v3890 = vld [vmem:[%s3884 + $0x28] sm:$0xff]
      %v3891 = vld [vmem:[%s3884 + $0x30] sm:$0xff]
      %v3892 = vld [vmem:[%s3884 + $0x38] sm:$0xff]
      %v3893 = vld [vmem:[%s3884 + $0x40] sm:$0xff]
      %v3894 = vld [vmem:[%s3884 + $0x48] sm:$0xff]
      %v3895 = vld [vmem:[%s3884 + $0x50] sm:$0xff]
      %v3896 = vld [vmem:[%s3884 + $0x58] sm:$0xff]
      %v3897 = vld [vmem:[%s3884 + $0x60] sm:$0xff]
      %v3898 = vld [vmem:[%s3884 + $0x68] sm:$0xff]
      %v3899 = vld [vmem:[%s3884 + $0x70] sm:$0xff]
      %v3900 = vld [vmem:[%s3884 + $0x78] sm:$0xff]
      %3901 = vst [vmem:[#allocation1] ss:$9 sm:$0xff] %v1541
      %s3902 = scalar_lea.vmem [#allocation1], 1
      %3903 = vst [vmem:[%s3902] ss:$9 sm:$0xff] %v1544
      %s3904 = scalar_lea.vmem [#allocation1], 2
      %3905 = vst [vmem:[%s3904] ss:$9 sm:$0xff] %v1547
      %s3906 = scalar_lea.vmem [#allocation1], 3
      %3907 = vst [vmem:[%s3906] ss:$9 sm:$0xff] %v1550
      %s3908 = scalar_lea.vmem [#allocation1], 4
      %3909 = vst [vmem:[%s3908] ss:$9 sm:$0xff] %v1553
      %s3910 = scalar_lea.vmem [#allocation1], 5
      %3911 = vst [vmem:[%s3910] ss:$9 sm:$0xff] %v1556
      %s3912 = scalar_lea.vmem [#allocation1], 6
      %3913 = vst [vmem:[%s3912] ss:$9 sm:$0xff] %v1559
      %s3914 = scalar_lea.vmem [#allocation1], 7
      %3915 = vst [vmem:[%s3914] ss:$9 sm:$0xff] %v1562
      %v3916 = vld [vmem:[#allocation1] sm:$0xff]
      %3917 = vst [vmem:[#allocation1] ss:$9 sm:$0xff] %v1565
      %3918 = vst [vmem:[%s3902] ss:$9 sm:$0xff] %v1568
      %3919 = vst [vmem:[%s3904] ss:$9 sm:$0xff] %v1571
      %3920 = vst [vmem:[%s3906] ss:$9 sm:$0xff] %v1574
      %3921 = vst [vmem:[%s3908] ss:$9 sm:$0xff] %v1577
      %3922 = vst [vmem:[%s3910] ss:$9 sm:$0xff] %v1580
      %3923 = vst [vmem:[%s3912] ss:$9 sm:$0xff] %v1583
      %3924 = vst [vmem:[%s3914] ss:$9 sm:$0xff] %v1586
      %v3925 = vld [vmem:[#allocation1] sm:$0xff]
      %3926 = vst [vmem:[#allocation1] ss:$9 sm:$0xff] %v1589
      %3927 = vst [vmem:[%s3902] ss:$9 sm:$0xff] %v1592
      %3928 = vst [vmem:[%s3904] ss:$9 sm:$0xff] %v1595
      %3929 = vst [vmem:[%s3906] ss:$9 sm:$0xff] %v1598
      %3930 = vst [vmem:[%s3908] ss:$9 sm:$0xff] %v1601
      %3931 = vst [vmem:[%s3910] ss:$9 sm:$0xff] %v1604
      %3932 = vst [vmem:[%s3912] ss:$9 sm:$0xff] %v1607
      %3933 = vst [vmem:[%s3914] ss:$9 sm:$0xff] %v1610
      %v3934 = vld [vmem:[#allocation1] sm:$0xff]
      %3935 = vst [vmem:[#allocation1] ss:$9 sm:$0xff] %v1613
      %3936 = vst [vmem:[%s3902] ss:$9 sm:$0xff] %v1616
      %3937 = vst [vmem:[%s3904] ss:$9 sm:$0xff] %v1619
      %3938 = vst [vmem:[%s3906] ss:$9 sm:$0xff] %v1622
      %3939 = vst [vmem:[%s3908] ss:$9 sm:$0xff] %v1625
      %3940 = vst [vmem:[%s3910] ss:$9 sm:$0xff] %v1628
      %3941 = vst [vmem:[%s3912] ss:$9 sm:$0xff] %v1631
      %3942 = vst [vmem:[%s3914] ss:$9 sm:$0xff] %v1634
      %v3943 = vld [vmem:[#allocation1] sm:$0xff]
      %3944 = vst [vmem:[#allocation1] ss:$9 sm:$0xff] %v1637
      %3945 = vst [vmem:[%s3902] ss:$9 sm:$0xff] %v1640
      %3946 = vst [vmem:[%s3904] ss:$9 sm:$0xff] %v1643
      %3947 = vst [vmem:[%s3906] ss:$9 sm:$0xff] %v1646
      %3948 = vst [vmem:[%s3908] ss:$9 sm:$0xff] %v1649
      %3949 = vst [vmem:[%s3910] ss:$9 sm:$0xff] %v1652
      %3950 = vst [vmem:[%s3912] ss:$9 sm:$0xff] %v1655
      %3951 = vst [vmem:[%s3914] ss:$9 sm:$0xff] %v1658
      %v3952 = vld [vmem:[#allocation1] sm:$0xff]
      %3953 = vst [vmem:[#allocation1] ss:$9 sm:$0xff] %v1661
      %3954 = vst [vmem:[%s3902] ss:$9 sm:$0xff] %v1664
      %3955 = vst [vmem:[%s3904] ss:$9 sm:$0xff] %v1667
      %3956 = vst [vmem:[%s3906] ss:$9 sm:$0xff] %v1670
      %3957 = vst [vmem:[%s3908] ss:$9 sm:$0xff] %v1673
      %3958 = vst [vmem:[%s3910] ss:$9 sm:$0xff] %v1676
      %3959 = vst [vmem:[%s3912] ss:$9 sm:$0xff] %v1679
      %3960 = vst [vmem:[%s3914] ss:$9 sm:$0xff] %v1682
      %v3961 = vld [vmem:[#allocation1] sm:$0xff]
      %3962 = vst [vmem:[#allocation1] ss:$9 sm:$0xff] %v1685
      %3963 = vst [vmem:[%s3902] ss:$9 sm:$0xff] %v1688
      %3964 = vst [vmem:[%s3904] ss:$9 sm:$0xff] %v1691
      %3965 = vst [vmem:[%s3906] ss:$9 sm:$0xff] %v1694
      %3966 = vst [vmem:[%s3908] ss:$9 sm:$0xff] %v1697
      %3967 = vst [vmem:[%s3910] ss:$9 sm:$0xff] %v1700
      %3968 = vst [vmem:[%s3912] ss:$9 sm:$0xff] %v1703
      %3969 = vst [vmem:[%s3914] ss:$9 sm:$0xff] %v1706
      %v3970 = vld [vmem:[#allocation1] sm:$0xff]
      %3971 = vst [vmem:[#allocation1] ss:$9 sm:$0xff] %v1709
      %3972 = vst [vmem:[%s3902] ss:$9 sm:$0xff] %v1712
      %3973 = vst [vmem:[%s3904] ss:$9 sm:$0xff] %v1715
      %3974 = vst [vmem:[%s3906] ss:$9 sm:$0xff] %v1718
      %3975 = vst [vmem:[%s3908] ss:$9 sm:$0xff] %v1721
      %3976 = vst [vmem:[%s3910] ss:$9 sm:$0xff] %v1724
      %3977 = vst [vmem:[%s3912] ss:$9 sm:$0xff] %v1727
      %3978 = vst [vmem:[%s3914] ss:$9 sm:$0xff] %v1730
      %v3979 = vld [vmem:[#allocation1] sm:$0xff]
      %3980 = vst [vmem:[#allocation1] ss:$9 sm:$0xff] %v1733
      %3981 = vst [vmem:[%s3902] ss:$9 sm:$0xff] %v1736
      %3982 = vst [vmem:[%s3904] ss:$9 sm:$0xff] %v1739
      %3983 = vst [vmem:[%s3906] ss:$9 sm:$0xff] %v1742
      %3984 = vst [vmem:[%s3908] ss:$9 sm:$0xff] %v1745
      %3985 = vst [vmem:[%s3910] ss:$9 sm:$0xff] %v1748
      %3986 = vst [vmem:[%s3912] ss:$9 sm:$0xff] %v1751
      %3987 = vst [vmem:[%s3914] ss:$9 sm:$0xff] %v1754
      %v3988 = vld [vmem:[#allocation1] sm:$0xff]
      %3989 = vst [vmem:[#allocation1] ss:$9 sm:$0xff] %v1757
      %3990 = vst [vmem:[%s3902] ss:$9 sm:$0xff] %v1760
      %3991 = vst [vmem:[%s3904] ss:$9 sm:$0xff] %v1763
      %3992 = vst [vmem:[%s3906] ss:$9 sm:$0xff] %v1766
      %3993 = vst [vmem:[%s3908] ss:$9 sm:$0xff] %v1769
      %3994 = vst [vmem:[%s3910] ss:$9 sm:$0xff] %v1772
      %3995 = vst [vmem:[%s3912] ss:$9 sm:$0xff] %v1775
      %3996 = vst [vmem:[%s3914] ss:$9 sm:$0xff] %v1778
      %v3997 = vld [vmem:[#allocation1] sm:$0xff]
      %3998 = vst [vmem:[#allocation1] ss:$9 sm:$0xff] %v1781
      %3999 = vst [vmem:[%s3902] ss:$9 sm:$0xff] %v3859
      %4001 = vst [vmem:[%s3904] ss:$9 sm:$0xff] %v3862
      %4003 = vst [vmem:[%s3906] ss:$9 sm:$0xff] %v3865
      %4005 = vst [vmem:[%s3908] ss:$9 sm:$0xff] %v3868
      %4006 = vst [vmem:[%s3910] ss:$9 sm:$0xff] %v3871
      %4008 = vst [vmem:[%s3912] ss:$9 sm:$0xff] %v3874
      %4010 = vst [vmem:[%s3914] ss:$9 sm:$0xff] %v3877
      %v4011 = vld [vmem:[#allocation1] sm:$0xff]
      %4013 = vst [vmem:[#allocation1] ss:$9 sm:$0xff] %v3880
      %4014 = vst [vmem:[%s3902] ss:$9 sm:$0xff] %v3883
      %v4015 = vld [vmem:[#allocation1] sm:$0xff]
      %v4044 = vunpack.c.l.b16 %v3885
      %v4045 = vunpack.c.h.b16 %v3885
      %v4046 = vunpack.c.l.b16 %v3886
      %v4047 = vunpack.c.h.b16 %v3886
      %v4048 = vunpack.c.l.b16 %v3887
      %v4049 = vunpack.c.h.b16 %v3887
      %v4050 = vunpack.c.l.b16 %v3888
      %v4051 = vunpack.c.h.b16 %v3888
      %v4052 = vunpack.c.l.b16 %v3889
      %v4053 = vunpack.c.h.b16 %v3889
      %v4054 = vunpack.c.l.b16 %v3890
      %v4055 = vunpack.c.h.b16 %v3890
      %v4056 = vunpack.c.l.b16 %v3891
      %v4057 = vunpack.c.h.b16 %v3891
      %v4058 = vunpack.c.l.b16 %v3892
      %v4059 = vunpack.c.h.b16 %v3892
      %v4060 = vunpack.c.l.b16 %v3893
      %v4061 = vunpack.c.h.b16 %v3893
      %v4062 = vunpack.c.l.b16 %v3894
      %v4063 = vunpack.c.h.b16 %v3894
      %v4064 = vunpack.c.l.b16 %v3895
      %v4065 = vunpack.c.h.b16 %v3895
      %v4066 = vunpack.c.l.b16 %v3896
      %v4067 = vunpack.c.h.b16 %v3896
      %v4068 = vunpack.c.l.b16 %v3897
      %v4069 = vunpack.c.h.b16 %v3897
      %v4070 = vunpack.c.l.b16 %v3898
      %v4071 = vunpack.c.h.b16 %v3898
      %v4072 = vunpack.c.l.b16 %v3899
      %v4073 = vunpack.c.h.b16 %v3899
      %v4074 = vunpack.c.l.b16 %v3900
      %v4075 = vunpack.c.h.b16 %v3900
      %v4076 = vpack.c.b16 %v4046, %v4044
      %v4077 = vpack.c.b16 %v4047, %v4045
      %v4078 = vpack.c.b16 %v4050, %v4048
      %v4079 = vpack.c.b16 %v4051, %v4049
      %v4080 = vpack.c.b16 %v4054, %v4052
      %v4081 = vpack.c.b16 %v4055, %v4053
      %v4082 = vpack.c.b16 %v4058, %v4056
      %v4083 = vpack.c.b16 %v4059, %v4057
      %v4084 = vpack.c.b16 %v4062, %v4060
      %v4085 = vpack.c.b16 %v4063, %v4061
      %v4086 = vpack.c.b16 %v4066, %v4064
      %v4087 = vpack.c.b16 %v4067, %v4065
      %v4088 = vpack.c.b16 %v4070, %v4068
      %v4089 = vpack.c.b16 %v4071, %v4069
      %v4090 = vpack.c.b16 %v4074, %v4072
      %v4091 = vpack.c.b16 %v4075, %v4073
      %4108 = vmatpush.bf16.msra.mxu0 %v4090
      %4109 = vmatpush.bf16.msra.mxu0 %v4088
      %4110 = vmatpush.bf16.msra.mxu0 %v4086
      %4111 = vmatpush.bf16.msra.mxu0 %v4084
      %4112 = vmatpush.bf16.msra.mxu0 %v4082
      %4113 = vmatpush.bf16.msra.mxu0 %v4080
      %4114 = vmatpush.bf16.msra.mxu0 %v4078
      %4115 = vmatpush.bf16.msra.mxu0 %v4076
      %4116 = vmatmul.bf16.gmra.mxu0 %v3916
      %v4117 = vpop.f32.mrf.mxu0
      %v4118 = vadd.f32 0.0, %v4117
      %v4119 = vpop.f32.mrf.mxu0
      %v4120 = vadd.f32 0.0, %v4119
      %4121 = vmatmul.bf16.gmra.mxu0 %v3925
      %v4122 = vpop.f32.mrf.mxu0
      %v4123 = vadd.f32 0.0, %v4122
      %v4124 = vpop.f32.mrf.mxu0
      %v4125 = vadd.f32 0.0, %v4124
      %4126 = vmatmul.bf16.gmra.mxu0 %v3934
      %v4127 = vpop.f32.mrf.mxu0
      %v4128 = vadd.f32 0.0, %v4127
      %v4129 = vpop.f32.mrf.mxu0
      %v4130 = vadd.f32 0.0, %v4129
      %4131 = vmatmul.bf16.gmra.mxu0 %v3943
      %v4132 = vpop.f32.mrf.mxu0
      %v4133 = vadd.f32 0.0, %v4132
      %v4134 = vpop.f32.mrf.mxu0
      %v4135 = vadd.f32 0.0, %v4134
      %4136 = vmatmul.bf16.gmra.mxu0 %v3952
      %v4137 = vpop.f32.mrf.mxu0
      %v4138 = vadd.f32 0.0, %v4137
      %v4139 = vpop.f32.mrf.mxu0
      %v4140 = vadd.f32 0.0, %v4139
      %4141 = vmatmul.bf16.gmra.mxu0 %v3961
      %v4142 = vpop.f32.mrf.mxu0
      %v4143 = vadd.f32 0.0, %v4142
      %v4144 = vpop.f32.mrf.mxu0
      %v4145 = vadd.f32 0.0, %v4144
      %4146 = vmatmul.bf16.gmra.mxu0 %v3970
      %v4147 = vpop.f32.mrf.mxu0
      %v4148 = vadd.f32 0.0, %v4147
      %v4149 = vpop.f32.mrf.mxu0
      %v4150 = vadd.f32 0.0, %v4149
      %4151 = vmatmul.bf16.gmra.mxu0 %v3979
      %v4152 = vpop.f32.mrf.mxu0
      %v4153 = vadd.f32 0.0, %v4152
      %v4154 = vpop.f32.mrf.mxu0
      %v4155 = vadd.f32 0.0, %v4154
      %4156 = vmatmul.bf16.gmra.mxu0 %v3988
      %v4157 = vpop.f32.mrf.mxu0
      %v4158 = vadd.f32 0.0, %v4157
      %v4159 = vpop.f32.mrf.mxu0
      %v4160 = vadd.f32 0.0, %v4159
      %4161 = vmatmul.bf16.gmra.mxu0 %v3997
      %v4162 = vpop.f32.mrf.mxu0
      %v4163 = vadd.f32 0.0, %v4162
      %v4164 = vpop.f32.mrf.mxu0
      %v4165 = vadd.f32 0.0, %v4164
      %4166 = vmatmul.bf16.gmra.mxu0 %v4011
      %v4167 = vpop.f32.mrf.mxu0
      %v4168 = vadd.f32 0.0, %v4167
      %v4169 = vpop.f32.mrf.mxu0
      %v4170 = vadd.f32 0.0, %v4169
      %4171 = vmatmul.bf16.gmra.mxu0 %v4015
      %v4172 = vpop.f32.mrf.mxu0
      %v4173 = vadd.f32 0.0, %v4172
      %v4174 = vpop.f32.mrf.mxu0
      %4175 = vdwg.mxu0
      %4176 = vmatpush.bf16.msra.mxu0 %v4091
      %4177 = vmatpush.bf16.msra.mxu0 %v4089
      %4178 = vmatpush.bf16.msra.mxu0 %v4087
      %4179 = vmatpush.bf16.msra.mxu0 %v4085
      %4180 = vmatpush.bf16.msra.mxu0 %v4083
      %4181 = vmatpush.bf16.msra.mxu0 %v4081
      %4182 = vmatpush.bf16.msra.mxu0 %v4079
      %4183 = vmatpush.bf16.msra.mxu0 %v4077
      %4184 = vmatmul.bf16.gmra.mxu0 %v3916
      %v4185 = vpop.f32.mrf.mxu0
      %v4186 = vadd.f32 0.0, %v4185
      %v4187 = vpop.f32.mrf.mxu0
      %v4188 = vadd.f32 0.0, %v4187
      %4189 = vmatmul.bf16.gmra.mxu0 %v3925
      %v4190 = vpop.f32.mrf.mxu0
      %v4191 = vadd.f32 0.0, %v4190
      %v4192 = vpop.f32.mrf.mxu0
      %v4193 = vadd.f32 0.0, %v4192
      %4194 = vmatmul.bf16.gmra.mxu0 %v3934
      %v4195 = vpop.f32.mrf.mxu0
      %v4196 = vadd.f32 0.0, %v4195
      %v4197 = vpop.f32.mrf.mxu0
      %v4198 = vadd.f32 0.0, %v4197
      %4199 = vmatmul.bf16.gmra.mxu0 %v3943
      %v4200 = vpop.f32.mrf.mxu0
      %v4201 = vadd.f32 0.0, %v4200
      %v4202 = vpop.f32.mrf.mxu0
      %v4203 = vadd.f32 0.0, %v4202
      %4204 = vmatmul.bf16.gmra.mxu0 %v3952
      %v4205 = vpop.f32.mrf.mxu0
      %v4206 = vadd.f32 0.0, %v4205
      %v4207 = vpop.f32.mrf.mxu0
      %v4208 = vadd.f32 0.0, %v4207
      %4209 = vmatmul.bf16.gmra.mxu0 %v3961
      %v4210 = vpop.f32.mrf.mxu0
      %v4211 = vadd.f32 0.0, %v4210
      %v4212 = vpop.f32.mrf.mxu0
      %v4213 = vadd.f32 0.0, %v4212
      %4214 = vmatmul.bf16.gmra.mxu0 %v3970
      %v4215 = vpop.f32.mrf.mxu0
      %v4216 = vadd.f32 0.0, %v4215
      %v4217 = vpop.f32.mrf.mxu0
      %v4218 = vadd.f32 0.0, %v4217
      %4219 = vmatmul.bf16.gmra.mxu0 %v3979
      %v4220 = vpop.f32.mrf.mxu0
      %v4221 = vadd.f32 0.0, %v4220
      %v4222 = vpop.f32.mrf.mxu0
      %v4223 = vadd.f32 0.0, %v4222
      %4224 = vmatmul.bf16.gmra.mxu0 %v3988
      %v4225 = vpop.f32.mrf.mxu0
      %v4226 = vadd.f32 0.0, %v4225
      %v4227 = vpop.f32.mrf.mxu0
      %v4228 = vadd.f32 0.0, %v4227
      %4229 = vmatmul.bf16.gmra.mxu0 %v3997
      %v4230 = vpop.f32.mrf.mxu0
      %v4231 = vadd.f32 0.0, %v4230
      %v4232 = vpop.f32.mrf.mxu0
      %v4233 = vadd.f32 0.0, %v4232
      %4234 = vmatmul.bf16.gmra.mxu0 %v4011
      %v4235 = vpop.f32.mrf.mxu0
      %v4236 = vadd.f32 0.0, %v4235
      %v4237 = vpop.f32.mrf.mxu0
      %v4238 = vadd.f32 0.0, %v4237
      %4239 = vmatmul.bf16.gmra.mxu0 %v4015
      %v4240 = vpop.f32.mrf.mxu0
      %v4241 = vadd.f32 0.0, %v4240
      %v4242 = vpop.f32.mrf.mxu0
      %4243 = vdwg.mxu0
      %v4244 = vadd.f32 %v3805, %v4118
      %v4245 = vadd.f32 %v3806, %v4186
      %v4246 = vadd.f32 %v3807, %v4120
      %v4247 = vadd.f32 %v3808, %v4188
      %v4248 = vadd.f32 %v3809, %v4123
      %v4249 = vadd.f32 %v3810, %v4191
      %v4250 = vadd.f32 %v3811, %v4125
      %v4251 = vadd.f32 %v3812, %v4193
      %v4252 = vadd.f32 %v3813, %v4128
      %v4253 = vadd.f32 %v3814, %v4196
      %v4254 = vadd.f32 %v3815, %v4130
      %v4255 = vadd.f32 %v3816, %v4198
      %v4256 = vadd.f32 %v3817, %v4133
      %v4257 = vadd.f32 %v3818, %v4201
      %v4258 = vadd.f32 %v3819, %v4135
      %v4259 = vadd.f32 %v3820, %v4203
      %v4260 = vadd.f32 %v3821, %v4138
      %v4261 = vadd.f32 %v3822, %v4206
      %v4262 = vadd.f32 %v3823, %v4140
      %v4263 = vadd.f32 %v3824, %v4208
      %v4264 = vadd.f32 %v3825, %v4143
      %v4265 = vadd.f32 %v3826, %v4211
      %v4266 = vadd.f32 %v3827, %v4145
      %v4267 = vadd.f32 %v3828, %v4213
      %v4268 = vadd.f32 %v3829, %v4148
      %v4269 = vadd.f32 %v3830, %v4216
      %v4270 = vadd.f32 %v3831, %v4150
      %v4271 = vadd.f32 %v3832, %v4218
      %v4272 = vadd.f32 %v3833, %v4153
      %v4273 = vadd.f32 %v3834, %v4221
      %v4274 = vadd.f32 %v3835, %v4155
      %v4275 = vadd.f32 %v3836, %v4223
      %v4276 = vadd.f32 %v3837, %v4158
      %v4277 = vadd.f32 %v3838, %v4226
      %v4278 = vadd.f32 %v3839, %v4160
      %v4279 = vadd.f32 %v3840, %v4228
      %v4280 = vadd.f32 %v3841, %v4163
      %v4281 = vadd.f32 %v3842, %v4231
      %v4282 = vadd.f32 %v3843, %v4165
      %v4283 = vadd.f32 %v3844, %v4233
      %v4284 = vadd.f32 %v3845, %v4168
      %v4285 = vadd.f32 %v3846, %v4236
      %v4286 = vadd.f32 %v3847, %v4170
      %v4287 = vadd.f32 %v3848, %v4238
      %v4288 = vadd.f32 %v3849, %v4173
      %v4289 = vadd.f32 %v3850, %v4241
      %v4290 = vsel %vm1512, %v1444, %v3856
      %v4292 = vrot.slane %v4290, 1
      %v4293 = vshrl.u32 %v3859, 16
      %v4295 = vrot.slane %v4293, 7
      %v4296 = vrot.slane %v4295, 1
      %v4297 = vshll.u32 %v3862, 16
      %v4299 = vsel %vm1842, %v4296, %v4297
      %v4300 = vshrl.u32 %v3862, 16
      %v4302 = vrot.slane %v4300, 7
      %v4303 = vrot.slane %v4302, 1
      %v4304 = vshll.u32 %v3865, 16
      %v4306 = vsel %vm1842, %v4303, %v4304
      %v4307 = vshrl.u32 %v3865, 16
      %v4309 = vrot.slane %v4307, 7
      %v4310 = vrot.slane %v4309, 1
      %v4311 = vshll.u32 %v3868, 16
      %v4313 = vsel %vm1842, %v4310, %v4311
      %v4314 = vshrl.u32 %v3868, 16
      %v4316 = vrot.slane %v4314, 7
      %v4317 = vrot.slane %v4316, 1
      %v4318 = vshll.u32 %v3871, 16
      %v4320 = vsel %vm1842, %v4317, %v4318
      %v4321 = vshrl.u32 %v3871, 16
      %v4323 = vrot.slane %v4321, 7
      %v4324 = vrot.slane %v4323, 1
      %v4325 = vshll.u32 %v3874, 16
      %v4327 = vsel %vm1842, %v4324, %v4325
      %v4328 = vshrl.u32 %v3874, 16
      %v4330 = vrot.slane %v4328, 7
      %v4331 = vrot.slane %v4330, 1
      %v4332 = vshll.u32 %v3877, 16
      %v4334 = vsel %vm1842, %v4331, %v4332
      %v4335 = vshrl.u32 %v3877, 16
      %v4337 = vrot.slane %v4335, 7
      %v4338 = vrot.slane %v4337, 1
      %v4339 = vshll.u32 %v3880, 16
      %v4341 = vsel %vm1842, %v4338, %v4339
      %v4342 = vshrl.u32 %v3880, 16
      %v4344 = vrot.slane %v4342, 7
      %v4345 = vrot.slane %v4344, 1
      %v4346 = vshll.u32 %v3883, 16
      %v4348 = vsel %vm1842, %v4345, %v4346
      %v4349 = vshrl.u32 %v3883, 16
      %v4351 = vrot.slane %v4349, 7
      %v4352 = vrot.slane %v4351, 1
      %v4354 = vshll.u32 %v4292, 16
      %v4356 = vsel %vm1842, %v4352, %v4354
      %s4357 = scalar_lea.vmem %s3, 512
      %v4358 = vld [vmem:[%s4357] sm:$0xff]
      %v4359 = vld [vmem:[%s4357 + $0x8] sm:$0xff]
      %v4360 = vld [vmem:[%s4357 + $0x10] sm:$0xff]
      %v4361 = vld [vmem:[%s4357 + $0x18] sm:$0xff]
      %v4362 = vld [vmem:[%s4357 + $0x20] sm:$0xff]
      %v4363 = vld [vmem:[%s4357 + $0x28] sm:$0xff]
      %v4364 = vld [vmem:[%s4357 + $0x30] sm:$0xff]
      %v4365 = vld [vmem:[%s4357 + $0x38] sm:$0xff]
      %v4366 = vld [vmem:[%s4357 + $0x40] sm:$0xff]
      %v4367 = vld [vmem:[%s4357 + $0x48] sm:$0xff]
      %v4368 = vld [vmem:[%s4357 + $0x50] sm:$0xff]
      %v4369 = vld [vmem:[%s4357 + $0x58] sm:$0xff]
      %v4370 = vld [vmem:[%s4357 + $0x60] sm:$0xff]
      %v4371 = vld [vmem:[%s4357 + $0x68] sm:$0xff]
      %v4372 = vld [vmem:[%s4357 + $0x70] sm:$0xff]
      %v4373 = vld [vmem:[%s4357 + $0x78] sm:$0xff]
      %4374 = vst [vmem:[#allocation1] ss:$9 sm:$0xff] %v1920
      %s4375 = scalar_lea.vmem [#allocation1], 1
      %4376 = vst [vmem:[%s4375] ss:$9 sm:$0xff] %v1928
      %s4377 = scalar_lea.vmem [#allocation1], 2
      %4378 = vst [vmem:[%s4377] ss:$9 sm:$0xff] %v1936
      %s4379 = scalar_lea.vmem [#allocation1], 3
      %4380 = vst [vmem:[%s4379] ss:$9 sm:$0xff] %v1943
      %s4381 = scalar_lea.vmem [#allocation1], 4
      %4382 = vst [vmem:[%s4381] ss:$9 sm:$0xff] %v1951
      %s4383 = scalar_lea.vmem [#allocation1], 5
      %4384 = vst [vmem:[%s4383] ss:$9 sm:$0xff] %v1959
      %s4385 = scalar_lea.vmem [#allocation1], 6
      %4386 = vst [vmem:[%s4385] ss:$9 sm:$0xff] %v1967
      %s4387 = scalar_lea.vmem [#allocation1], 7
      %4388 = vst [vmem:[%s4387] ss:$9 sm:$0xff] %v1974
      %v4389 = vld [vmem:[#allocation1] sm:$0xff]
      %4390 = vst [vmem:[#allocation1] ss:$9 sm:$0xff] %v1982
      %4391 = vst [vmem:[%s4375] ss:$9 sm:$0xff] %v1990
      %4392 = vst [vmem:[%s4377] ss:$9 sm:$0xff] %v1998
      %4393 = vst [vmem:[%s4379] ss:$9 sm:$0xff] %v2006
      %4394 = vst [vmem:[%s4381] ss:$9 sm:$0xff] %v2013
      %4395 = vst [vmem:[%s4383] ss:$9 sm:$0xff] %v2021
      %4396 = vst [vmem:[%s4385] ss:$9 sm:$0xff] %v2029
      %4397 = vst [vmem:[%s4387] ss:$9 sm:$0xff] %v2037
      %v4398 = vld [vmem:[#allocation1] sm:$0xff]
      %4399 = vst [vmem:[#allocation1] ss:$9 sm:$0xff] %v2044
      %4400 = vst [vmem:[%s4375] ss:$9 sm:$0xff] %v2052
      %4401 = vst [vmem:[%s4377] ss:$9 sm:$0xff] %v2060
      %4402 = vst [vmem:[%s4379] ss:$9 sm:$0xff] %v2068
      %4403 = vst [vmem:[%s4381] ss:$9 sm:$0xff] %v2076
      %4404 = vst [vmem:[%s4383] ss:$9 sm:$0xff] %v2083
      %4405 = vst [vmem:[%s4385] ss:$9 sm:$0xff] %v2091
      %4406 = vst [vmem:[%s4387] ss:$9 sm:$0xff] %v2099
      %v4407 = vld [vmem:[#allocation1] sm:$0xff]
      %4408 = vst [vmem:[#allocation1] ss:$9 sm:$0xff] %v2107
      %4409 = vst [vmem:[%s4375] ss:$9 sm:$0xff] %v2114
      %4410 = vst [vmem:[%s4377] ss:$9 sm:$0xff] %v2122
      %4411 = vst [vmem:[%s4379] ss:$9 sm:$0xff] %v2130
      %4412 = vst [vmem:[%s4381] ss:$9 sm:$0xff] %v2138
      %4413 = vst [vmem:[%s4383] ss:$9 sm:$0xff] %v2146
      %4414 = vst [vmem:[%s4385] ss:$9 sm:$0xff] %v2153
      %4415 = vst [vmem:[%s4387] ss:$9 sm:$0xff] %v2161
      %v4416 = vld [vmem:[#allocation1] sm:$0xff]
      %4417 = vst [vmem:[#allocation1] ss:$9 sm:$0xff] %v2169
      %4418 = vst [vmem:[%s4375] ss:$9 sm:$0xff] %v2177
      %4419 = vst [vmem:[%s4377] ss:$9 sm:$0xff] %v2184
      %4420 = vst [vmem:[%s4379] ss:$9 sm:$0xff] %v2192
      %4421 = vst [vmem:[%s4381] ss:$9 sm:$0xff] %v2200
      %4422 = vst [vmem:[%s4383] ss:$9 sm:$0xff] %v2208
      %4423 = vst [vmem:[%s4385] ss:$9 sm:$0xff] %v2216
      %4424 = vst [vmem:[%s4387] ss:$9 sm:$0xff] %v2223
      %v4425 = vld [vmem:[#allocation1] sm:$0xff]
      %4426 = vst [vmem:[#allocation1] ss:$9 sm:$0xff] %v2231
      %4427 = vst [vmem:[%s4375] ss:$9 sm:$0xff] %v2239
      %4428 = vst [vmem:[%s4377] ss:$9 sm:$0xff] %v2247
      %4429 = vst [vmem:[%s4379] ss:$9 sm:$0xff] %v2254
      %4430 = vst [vmem:[%s4381] ss:$9 sm:$0xff] %v2262
      %4431 = vst [vmem:[%s4383] ss:$9 sm:$0xff] %v2270
      %4432 = vst [vmem:[%s4385] ss:$9 sm:$0xff] %v2278
      %4433 = vst [vmem:[%s4387] ss:$9 sm:$0xff] %v2286
      %v4434 = vld [vmem:[#allocation1] sm:$0xff]
      %4435 = vst [vmem:[#allocation1] ss:$9 sm:$0xff] %v2293
      %4436 = vst [vmem:[%s4375] ss:$9 sm:$0xff] %v2301
      %4437 = vst [vmem:[%s4377] ss:$9 sm:$0xff] %v2309
      %4438 = vst [vmem:[%s4379] ss:$9 sm:$0xff] %v2317
      %4439 = vst [vmem:[%s4381] ss:$9 sm:$0xff] %v2324
      %4440 = vst [vmem:[%s4383] ss:$9 sm:$0xff] %v2332
      %4441 = vst [vmem:[%s4385] ss:$9 sm:$0xff] %v2340
      %4442 = vst [vmem:[%s4387] ss:$9 sm:$0xff] %v2348
      %v4443 = vld [vmem:[#allocation1] sm:$0xff]
      %4444 = vst [vmem:[#allocation1] ss:$9 sm:$0xff] %v2356
      %4445 = vst [vmem:[%s4375] ss:$9 sm:$0xff] %v2363
      %4446 = vst [vmem:[%s4377] ss:$9 sm:$0xff] %v2371
      %4447 = vst [vmem:[%s4379] ss:$9 sm:$0xff] %v2379
      %4448 = vst [vmem:[%s4381] ss:$9 sm:$0xff] %v2387
      %4449 = vst [vmem:[%s4383] ss:$9 sm:$0xff] %v2394
      %4450 = vst [vmem:[%s4385] ss:$9 sm:$0xff] %v2402
      %4451 = vst [vmem:[%s4387] ss:$9 sm:$0xff] %v2410
      %v4452 = vld [vmem:[#allocation1] sm:$0xff]
      %4453 = vst [vmem:[#allocation1] ss:$9 sm:$0xff] %v2418
      %4454 = vst [vmem:[%s4375] ss:$9 sm:$0xff] %v2426
      %4455 = vst [vmem:[%s4377] ss:$9 sm:$0xff] %v2433
      %4456 = vst [vmem:[%s4379] ss:$9 sm:$0xff] %v2441
      %4457 = vst [vmem:[%s4381] ss:$9 sm:$0xff] %v2449
      %4458 = vst [vmem:[%s4383] ss:$9 sm:$0xff] %v2457
      %4459 = vst [vmem:[%s4385] ss:$9 sm:$0xff] %v2464
      %4460 = vst [vmem:[%s4387] ss:$9 sm:$0xff] %v2472
      %v4461 = vld [vmem:[#allocation1] sm:$0xff]
      %4462 = vst [vmem:[#allocation1] ss:$9 sm:$0xff] %v2480
      %4463 = vst [vmem:[%s4375] ss:$9 sm:$0xff] %v2488
      %4464 = vst [vmem:[%s4377] ss:$9 sm:$0xff] %v2496
      %4465 = vst [vmem:[%s4379] ss:$9 sm:$0xff] %v2503
      %4466 = vst [vmem:[%s4381] ss:$9 sm:$0xff] %v2511
      %4467 = vst [vmem:[%s4383] ss:$9 sm:$0xff] %v2519
      %4468 = vst [vmem:[%s4385] ss:$9 sm:$0xff] %v2527
      %4469 = vst [vmem:[%s4387] ss:$9 sm:$0xff] %v2534
      %v4470 = vld [vmem:[#allocation1] sm:$0xff]
      %4471 = vst [vmem:[#allocation1] ss:$9 sm:$0xff] %v2542
      %4473 = vst [vmem:[%s4375] ss:$9 sm:$0xff] %v4299
      %4475 = vst [vmem:[%s4377] ss:$9 sm:$0xff] %v4306
      %4477 = vst [vmem:[%s4379] ss:$9 sm:$0xff] %v4313
      %4479 = vst [vmem:[%s4381] ss:$9 sm:$0xff] %v4320
      %4481 = vst [vmem:[%s4383] ss:$9 sm:$0xff] %v4327
      %4483 = vst [vmem:[%s4385] ss:$9 sm:$0xff] %v4334
      %4485 = vst [vmem:[%s4387] ss:$9 sm:$0xff] %v4341
      %v4486 = vld [vmem:[#allocation1] sm:$0xff]
      %4488 = vst [vmem:[#allocation1] ss:$9 sm:$0xff] %v4348
      %4490 = vst [vmem:[%s4375] ss:$9 sm:$0xff] %v4356
      %v4491 = vld [vmem:[#allocation1] sm:$0xff]
      %v4520 = vunpack.c.l.b16 %v4358
      %v4521 = vunpack.c.h.b16 %v4358
      %v4522 = vunpack.c.l.b16 %v4359
      %v4523 = vunpack.c.h.b16 %v4359
      %v4524 = vunpack.c.l.b16 %v4360
      %v4525 = vunpack.c.h.b16 %v4360
      %v4526 = vunpack.c.l.b16 %v4361
      %v4527 = vunpack.c.h.b16 %v4361
      %v4528 = vunpack.c.l.b16 %v4362
      %v4529 = vunpack.c.h.b16 %v4362
      %v4530 = vunpack.c.l.b16 %v4363
      %v4531 = vunpack.c.h.b16 %v4363
      %v4532 = vunpack.c.l.b16 %v4364
      %v4533 = vunpack.c.h.b16 %v4364
      %v4534 = vunpack.c.l.b16 %v4365
      %v4535 = vunpack.c.h.b16 %v4365
      %v4536 = vunpack.c.l.b16 %v4366
      %v4537 = vunpack.c.h.b16 %v4366
      %v4538 = vunpack.c.l.b16 %v4367
      %v4539 = vunpack.c.h.b16 %v4367
      %v4540 = vunpack.c.l.b16 %v4368
      %v4541 = vunpack.c.h.b16 %v4368
      %v4542 = vunpack.c.l.b16 %v4369
      %v4543 = vunpack.c.h.b16 %v4369
      %v4544 = vunpack.c.l.b16 %v4370
      %v4545 = vunpack.c.h.b16 %v4370
      %v4546 = vunpack.c.l.b16 %v4371
      %v4547 = vunpack.c.h.b16 %v4371
      %v4548 = vunpack.c.l.b16 %v4372
      %v4549 = vunpack.c.h.b16 %v4372
      %v4550 = vunpack.c.l.b16 %v4373
      %v4551 = vunpack.c.h.b16 %v4373
      %v4552 = vpack.c.b16 %v4522, %v4520
      %v4553 = vpack.c.b16 %v4523, %v4521
      %v4554 = vpack.c.b16 %v4526, %v4524
      %v4555 = vpack.c.b16 %v4527, %v4525
      %v4556 = vpack.c.b16 %v4530, %v4528
      %v4557 = vpack.c.b16 %v4531, %v4529
      %v4558 = vpack.c.b16 %v4534, %v4532
      %v4559 = vpack.c.b16 %v4535, %v4533
      %v4560 = vpack.c.b16 %v4538, %v4536
      %v4561 = vpack.c.b16 %v4539, %v4537
      %v4562 = vpack.c.b16 %v4542, %v4540
      %v4563 = vpack.c.b16 %v4543, %v4541
      %v4564 = vpack.c.b16 %v4546, %v4544
      %v4565 = vpack.c.b16 %v4547, %v4545
      %v4566 = vpack.c.b16 %v4550, %v4548
      %v4567 = vpack.c.b16 %v4551, %v4549
      %4584 = vmatpush.bf16.msra.mxu0 %v4566
      %4585 = vmatpush.bf16.msra.mxu0 %v4564
      %4586 = vmatpush.bf16.msra.mxu0 %v4562
      %4587 = vmatpush.bf16.msra.mxu0 %v4560
      %4588 = vmatpush.bf16.msra.mxu0 %v4558
      %4589 = vmatpush.bf16.msra.mxu0 %v4556
      %4590 = vmatpush.bf16.msra.mxu0 %v4554
      %4591 = vmatpush.bf16.msra.mxu0 %v4552
      %4592 = vmatmul.bf16.gmra.mxu0 %v4389
      %v4593 = vpop.f32.mrf.mxu0
      %v4594 = vadd.f32 0.0, %v4593
      %v4595 = vpop.f32.mrf.mxu0
      %v4596 = vadd.f32 0.0, %v4595
      %4597 = vmatmul.bf16.gmra.mxu0 %v4398
      %v4598 = vpop.f32.mrf.mxu0
      %v4599 = vadd.f32 0.0, %v4598
      %v4600 = vpop.f32.mrf.mxu0
      %v4601 = vadd.f32 0.0, %v4600
      %4602 = vmatmul.bf16.gmra.mxu0 %v4407
      %v4603 = vpop.f32.mrf.mxu0
      %v4604 = vadd.f32 0.0, %v4603
      %v4605 = vpop.f32.mrf.mxu0
      %v4606 = vadd.f32 0.0, %v4605
      %4607 = vmatmul.bf16.gmra.mxu0 %v4416
      %v4608 = vpop.f32.mrf.mxu0
      %v4609 = vadd.f32 0.0, %v4608
      %v4610 = vpop.f32.mrf.mxu0
      %v4611 = vadd.f32 0.0, %v4610
      %4612 = vmatmul.bf16.gmra.mxu0 %v4425
      %v4613 = vpop.f32.mrf.mxu0
      %v4614 = vadd.f32 0.0, %v4613
      %v4615 = vpop.f32.mrf.mxu0
      %v4616 = vadd.f32 0.0, %v4615
      %4617 = vmatmul.bf16.gmra.mxu0 %v4434
      %v4618 = vpop.f32.mrf.mxu0
      %v4619 = vadd.f32 0.0, %v4618
      %v4620 = vpop.f32.mrf.mxu0
      %v4621 = vadd.f32 0.0, %v4620
      %4622 = vmatmul.bf16.gmra.mxu0 %v4443
      %v4623 = vpop.f32.mrf.mxu0
      %v4624 = vadd.f32 0.0, %v4623
      %v4625 = vpop.f32.mrf.mxu0
      %v4626 = vadd.f32 0.0, %v4625
      %4627 = vmatmul.bf16.gmra.mxu0 %v4452
      %v4628 = vpop.f32.mrf.mxu0
      %v4629 = vadd.f32 0.0, %v4628
      %v4630 = vpop.f32.mrf.mxu0
      %v4631 = vadd.f32 0.0, %v4630
      %4632 = vmatmul.bf16.gmra.mxu0 %v4461
      %v4633 = vpop.f32.mrf.mxu0
      %v4634 = vadd.f32 0.0, %v4633
      %v4635 = vpop.f32.mrf.mxu0
      %v4636 = vadd.f32 0.0, %v4635
      %4637 = vmatmul.bf16.gmra.mxu0 %v4470
      %v4638 = vpop.f32.mrf.mxu0
      %v4639 = vadd.f32 0.0, %v4638
      %v4640 = vpop.f32.mrf.mxu0
      %v4641 = vadd.f32 0.0, %v4640
      %4642 = vmatmul.bf16.gmra.mxu0 %v4486
      %v4643 = vpop.f32.mrf.mxu0
      %v4644 = vadd.f32 0.0, %v4643
      %v4645 = vpop.f32.mrf.mxu0
      %v4646 = vadd.f32 0.0, %v4645
      %4647 = vmatmul.bf16.gmra.mxu0 %v4491
      %v4648 = vpop.f32.mrf.mxu0
      %v4649 = vadd.f32 0.0, %v4648
      %v4650 = vpop.f32.mrf.mxu0
      %4651 = vdwg.mxu0
      %4652 = vmatpush.bf16.msra.mxu0 %v4567
      %4653 = vmatpush.bf16.msra.mxu0 %v4565
      %4654 = vmatpush.bf16.msra.mxu0 %v4563
      %4655 = vmatpush.bf16.msra.mxu0 %v4561
      %4656 = vmatpush.bf16.msra.mxu0 %v4559
      %4657 = vmatpush.bf16.msra.mxu0 %v4557
      %4658 = vmatpush.bf16.msra.mxu0 %v4555
      %4659 = vmatpush.bf16.msra.mxu0 %v4553
      %4660 = vmatmul.bf16.gmra.mxu0 %v4389
      %v4661 = vpop.f32.mrf.mxu0
      %v4662 = vadd.f32 0.0, %v4661
      %v4663 = vpop.f32.mrf.mxu0
      %v4664 = vadd.f32 0.0, %v4663
      %4665 = vmatmul.bf16.gmra.mxu0 %v4398
      %v4666 = vpop.f32.mrf.mxu0
      %v4667 = vadd.f32 0.0, %v4666
      %v4668 = vpop.f32.mrf.mxu0
      %v4669 = vadd.f32 0.0, %v4668
      %4670 = vmatmul.bf16.gmra.mxu0 %v4407
      %v4671 = vpop.f32.mrf.mxu0
      %v4672 = vadd.f32 0.0, %v4671
      %v4673 = vpop.f32.mrf.mxu0
      %v4674 = vadd.f32 0.0, %v4673
      %4675 = vmatmul.bf16.gmra.mxu0 %v4416
      %v4676 = vpop.f32.mrf.mxu0
      %v4677 = vadd.f32 0.0, %v4676
      %v4678 = vpop.f32.mrf.mxu0
      %v4679 = vadd.f32 0.0, %v4678
      %4680 = vmatmul.bf16.gmra.mxu0 %v4425
      %v4681 = vpop.f32.mrf.mxu0
      %v4682 = vadd.f32 0.0, %v4681
      %v4683 = vpop.f32.mrf.mxu0
      %v4684 = vadd.f32 0.0, %v4683
      %4685 = vmatmul.bf16.gmra.mxu0 %v4434
      %v4686 = vpop.f32.mrf.mxu0
      %v4687 = vadd.f32 0.0, %v4686
      %v4688 = vpop.f32.mrf.mxu0
      %v4689 = vadd.f32 0.0, %v4688
      %4690 = vmatmul.bf16.gmra.mxu0 %v4443
      %v4691 = vpop.f32.mrf.mxu0
      %v4692 = vadd.f32 0.0, %v4691
      %v4693 = vpop.f32.mrf.mxu0
      %v4694 = vadd.f32 0.0, %v4693
      %4695 = vmatmul.bf16.gmra.mxu0 %v4452
      %v4696 = vpop.f32.mrf.mxu0
      %v4697 = vadd.f32 0.0, %v4696
      %v4698 = vpop.f32.mrf.mxu0
      %v4699 = vadd.f32 0.0, %v4698
      %4700 = vmatmul.bf16.gmra.mxu0 %v4461
      %v4701 = vpop.f32.mrf.mxu0
      %v4702 = vadd.f32 0.0, %v4701
      %v4703 = vpop.f32.mrf.mxu0
      %v4704 = vadd.f32 0.0, %v4703
      %4705 = vmatmul.bf16.gmra.mxu0 %v4470
      %v4706 = vpop.f32.mrf.mxu0
      %v4707 = vadd.f32 0.0, %v4706
      %v4708 = vpop.f32.mrf.mxu0
      %v4709 = vadd.f32 0.0, %v4708
      %4710 = vmatmul.bf16.gmra.mxu0 %v4486
      %v4711 = vpop.f32.mrf.mxu0
      %v4712 = vadd.f32 0.0, %v4711
      %v4713 = vpop.f32.mrf.mxu0
      %v4714 = vadd.f32 0.0, %v4713
      %4715 = vmatmul.bf16.gmra.mxu0 %v4491
      %v4716 = vpop.f32.mrf.mxu0
      %v4717 = vadd.f32 0.0, %v4716
      %v4718 = vpop.f32.mrf.mxu0
      %4719 = vdwg.mxu0
      %v4720 = vadd.f32 %v4244, %v4594
      %v4721 = vadd.f32 %v4245, %v4662
      %v4722 = vadd.f32 %v4246, %v4596
      %v4723 = vadd.f32 %v4247, %v4664
      %v4724 = vadd.f32 %v4248, %v4599
      %v4725 = vadd.f32 %v4249, %v4667
      %v4726 = vadd.f32 %v4250, %v4601
      %v4727 = vadd.f32 %v4251, %v4669
      %v4728 = vadd.f32 %v4252, %v4604
      %v4729 = vadd.f32 %v4253, %v4672
      %v4730 = vadd.f32 %v4254, %v4606
      %v4731 = vadd.f32 %v4255, %v4674
      %v4732 = vadd.f32 %v4256, %v4609
      %v4733 = vadd.f32 %v4257, %v4677
      %v4734 = vadd.f32 %v4258, %v4611
      %v4735 = vadd.f32 %v4259, %v4679
      %v4736 = vadd.f32 %v4260, %v4614
      %v4737 = vadd.f32 %v4261, %v4682
      %v4738 = vadd.f32 %v4262, %v4616
      %v4739 = vadd.f32 %v4263, %v4684
      %v4740 = vadd.f32 %v4264, %v4619
      %v4741 = vadd.f32 %v4265, %v4687
      %v4742 = vadd.f32 %v4266, %v4621
      %v4743 = vadd.f32 %v4267, %v4689
      %v4744 = vadd.f32 %v4268, %v4624
      %v4745 = vadd.f32 %v4269, %v4692
      %v4746 = vadd.f32 %v4270, %v4626
      %v4747 = vadd.f32 %v4271, %v4694
      %v4748 = vadd.f32 %v4272, %v4629
      %v4749 = vadd.f32 %v4273, %v4697
      %v4750 = vadd.f32 %v4274, %v4631
      %v4751 = vadd.f32 %v4275, %v4699
      %v4752 = vadd.f32 %v4276, %v4634
      %v4753 = vadd.f32 %v4277, %v4702
      %v4754 = vadd.f32 %v4278, %v4636
      %v4755 = vadd.f32 %v4279, %v4704
      %v4756 = vadd.f32 %v4280, %v4639
      %v4757 = vadd.f32 %v4281, %v4707
      %v4758 = vadd.f32 %v4282, %v4641
      %v4759 = vadd.f32 %v4283, %v4709
      %v4760 = vadd.f32 %v4284, %v4644
      %v4761 = vadd.f32 %v4285, %v4712
      %v4762 = vadd.f32 %v4286, %v4646
      %v4763 = vadd.f32 %v4287, %v4714
      %v4764 = vadd.f32 %v4288, %v4649
      %v4765 = vadd.f32 %v4289, %v4717
      %4766 = vst [vmem:[#allocation1] sm:$0xff] %v1415
      %4767 = vst [vmem:[#allocation1 + $0x20] sm:$0xff] %v1416
      %s4768 = scalar_lea.vmem [#allocation1], 1
      %v4769 = vld [vmem:[%s4768] ss:$4 sm:$0xff]
      %s4770 = scalar_lea.vmem [#allocation1], 2
      %v4771 = vld [vmem:[%s4770] ss:$4 sm:$0xff]
      %s4772 = scalar_lea.vmem [#allocation1], 3
      %v4773 = vld [vmem:[%s4772] ss:$4 sm:$0xff]
      %s4774 = scalar_lea.vmem [#allocation1], 32
      %v4775 = vld [vmem:[%s4774] ss:$4 sm:$0xff]
      %s4776 = scalar_lea.vmem [#allocation1], 33
      %v4777 = vld [vmem:[%s4776] ss:$4 sm:$0xff]
      %s4778 = scalar_lea.vmem [#allocation1], 34
      %v4779 = vld [vmem:[%s4778] ss:$4 sm:$0xff]
      %s4780 = scalar_lea.vmem [#allocation1], 35
      %v4781 = vld [vmem:[%s4780] ss:$4 sm:$0xff]
      %4782 = vst [vmem:[#allocation1] sm:$0xff] %v1417
      %v4783 = vld [vmem:[#allocation1] ss:$4 sm:$0xff]
      %v4784 = vld [vmem:[%s4768] ss:$4 sm:$0xff]
      %4785 = vst [vmem:[#allocation1 + $0x20] sm:$0xff] %v1418
      %v4786 = vld [vmem:[%s4776] ss:$4 sm:$0xff]
      %v4787 = vld [vmem:[%s4778] ss:$4 sm:$0xff]
      %v4788 = vld [vmem:[%s4780] ss:$4 sm:$0xff]
      %4789 = vst [vmem:[#allocation1] sm:$0xff] %v1419
      %4790 = vst [vmem:[#allocation1 + $0x20] sm:$0xff] %v1420
      %v4791 = vld [vmem:[#allocation1] ss:$4 sm:$0xff]
      %v4792 = vld [vmem:[%s4768] ss:$4 sm:$0xff]
      %v4793 = vld [vmem:[%s4770] ss:$4 sm:$0xff]
      %v4794 = vld [vmem:[%s4772] ss:$4 sm:$0xff]
      %v4795 = vld [vmem:[%s4774] ss:$4 sm:$0xff]
      %v4796 = vld [vmem:[%s4776] ss:$4 sm:$0xff]
      %4797 = vst [vmem:[#allocation1] sm:$0xff] %v1421
      %4798 = vst [vmem:[#allocation1 + $0x20] sm:$0xff] %v1422
      %v4799 = vld [vmem:[%s4768] ss:$4 sm:$0xff]
      %v4800 = vld [vmem:[%s4770] ss:$4 sm:$0xff]
      %v4801 = vld [vmem:[%s4772] ss:$4 sm:$0xff]
      %v4802 = vld [vmem:[%s4774] ss:$4 sm:$0xff]
      %v4803 = vld [vmem:[%s4776] ss:$4 sm:$0xff]
      %v4804 = vld [vmem:[%s4778] ss:$4 sm:$0xff]
      %v4805 = vld [vmem:[%s4780] ss:$4 sm:$0xff]
      %4806 = vst [vmem:[#allocation1] sm:$0xff] %v1423
      %v4807 = vld [vmem:[#allocation1] ss:$4 sm:$0xff]
      %v4808 = vld [vmem:[%s4768] ss:$4 sm:$0xff]
      %4809 = vst [vmem:[#allocation1 + $0x20] sm:$0xff] %v1424
      %v4810 = vld [vmem:[%s4776] ss:$4 sm:$0xff]
      %v4811 = vld [vmem:[%s4778] ss:$4 sm:$0xff]
      %v4812 = vld [vmem:[%s4780] ss:$4 sm:$0xff]
      %4813 = vst [vmem:[#allocation1] sm:$0xff] %v1425
      %4814 = vst [vmem:[#allocation1 + $0x20] sm:$0xff] %v1426
      %v4815 = vld [vmem:[#allocation1] ss:$4 sm:$0xff]
      %v4816 = vld [vmem:[%s4768] ss:$4 sm:$0xff]
      %v4817 = vld [vmem:[%s4770] ss:$4 sm:$0xff]
      %v4818 = vld [vmem:[%s4772] ss:$4 sm:$0xff]
      %v4819 = vld [vmem:[%s4774] ss:$4 sm:$0xff]
      %v4820 = vld [vmem:[%s4776] ss:$4 sm:$0xff]
      %4821 = vst [vmem:[#allocation1] sm:$0xff] %v1427
      %4822 = vst [vmem:[#allocation1 + $0x20] sm:$0xff] %v1428
      %v4823 = vld [vmem:[%s4768] ss:$4 sm:$0xff]
      %v4824 = vld [vmem:[%s4770] ss:$4 sm:$0xff]
      %v4825 = vld [vmem:[%s4772] ss:$4 sm:$0xff]
      %v4826 = vld [vmem:[%s4774] ss:$4 sm:$0xff]
      %v4827 = vld [vmem:[%s4776] ss:$4 sm:$0xff]
      %v4828 = vld [vmem:[%s4778] ss:$4 sm:$0xff]
      %v4829 = vld [vmem:[%s4780] ss:$4 sm:$0xff]
      %4830 = vst [vmem:[#allocation1] sm:$0xff] %v1429
      %v4831 = vld [vmem:[#allocation1] ss:$4 sm:$0xff]
      %v4832 = vld [vmem:[%s4768] ss:$4 sm:$0xff]
      %4833 = vst [vmem:[#allocation1 + $0x20] sm:$0xff] %v1430
      %v4834 = vld [vmem:[%s4776] ss:$4 sm:$0xff]
      %v4835 = vld [vmem:[%s4778] ss:$4 sm:$0xff]
      %v4836 = vld [vmem:[%s4780] ss:$4 sm:$0xff]
      %4837 = vst [vmem:[#allocation1] sm:$0xff] %v1431
      %4838 = vst [vmem:[#allocation1 + $0x20] sm:$0xff] %v1432
      %v4839 = vld [vmem:[#allocation1] ss:$4 sm:$0xff]
      %v4840 = vld [vmem:[%s4768] ss:$4 sm:$0xff]
      %v4841 = vld [vmem:[%s4770] ss:$4 sm:$0xff]
      %v4842 = vld [vmem:[%s4772] ss:$4 sm:$0xff]
      %v4843 = vld [vmem:[%s4774] ss:$4 sm:$0xff]
      %v4844 = vld [vmem:[%s4776] ss:$4 sm:$0xff]
      %4845 = vst [vmem:[#allocation1] sm:$0xff] %v1433
      %4846 = vst [vmem:[#allocation1 + $0x20] sm:$0xff] %v1434
      %v4847 = vld [vmem:[%s4768] ss:$4 sm:$0xff]
      %v4848 = vld [vmem:[%s4770] ss:$4 sm:$0xff]
      %v4849 = vld [vmem:[%s4772] ss:$4 sm:$0xff]
      %v4850 = vld [vmem:[%s4774] ss:$4 sm:$0xff]
      %v4851 = vld [vmem:[%s4776] ss:$4 sm:$0xff]
      %v4852 = vld [vmem:[%s4778] ss:$4 sm:$0xff]
      %v4853 = vld [vmem:[%s4780] ss:$4 sm:$0xff]
      %4854 = vst [vmem:[#allocation1] sm:$0xff] %v1435
      %v4855 = vld [vmem:[#allocation1] ss:$4 sm:$0xff]
      %v4856 = vld [vmem:[%s4768] ss:$4 sm:$0xff]
      %4857 = vst [vmem:[#allocation1 + $0x20] sm:$0xff] %v1436
      %v4858 = vld [vmem:[%s4776] ss:$4 sm:$0xff]
      %v4859 = vld [vmem:[%s4778] ss:$4 sm:$0xff]
      %v4860 = vld [vmem:[%s4780] ss:$4 sm:$0xff]
      %4861 = vst [vmem:[#allocation1] sm:$0xff] %v1437
      %4862 = vst [vmem:[#allocation1 + $0x20] sm:$0xff] %v1438
      %v4863 = vld [vmem:[#allocation1] ss:$4 sm:$0xff]
      %v4864 = vld [vmem:[%s4768] ss:$4 sm:$0xff]
      %v4865 = vld [vmem:[%s4770] ss:$4 sm:$0xff]
      %v4866 = vld [vmem:[%s4772] ss:$4 sm:$0xff]
      %v4867 = vld [vmem:[%s4774] ss:$4 sm:$0xff]
      %v4868 = vld [vmem:[%s4776] ss:$4 sm:$0xff]
      %4869 = vst [vmem:[#allocation1] sm:$0xff] %v1439
      %4870 = vst [vmem:[#allocation1 + $0x20] sm:$0xff] %v1440
      %v4871 = vld [vmem:[%s4768] ss:$4 sm:$0xff]
      %v4872 = vld [vmem:[%s4770] ss:$4 sm:$0xff]
      %v4873 = vld [vmem:[%s4772] ss:$4 sm:$0xff]
      %v4874 = vld [vmem:[%s4774] ss:$4 sm:$0xff]
      %v4875 = vld [vmem:[%s4776] ss:$4 sm:$0xff]
      %v4876 = vld [vmem:[%s4778] ss:$4 sm:$0xff]
      %v4877 = vld [vmem:[%s4780] ss:$4 sm:$0xff]
      %4878 = vst [vmem:[#allocation1] sm:$0xff] %v1441
      %v4879 = vld [vmem:[#allocation1] ss:$4 sm:$0xff]
      %v4880 = vld [vmem:[%s4768] ss:$4 sm:$0xff]
      %4881 = vst [vmem:[#allocation1 + $0x20] sm:$0xff] %v1442
      %v4882 = vld [vmem:[%s4776] ss:$4 sm:$0xff]
      %v4883 = vld [vmem:[%s4778] ss:$4 sm:$0xff]
      %v4884 = vld [vmem:[%s4780] ss:$4 sm:$0xff]
      %4885 = vst [vmem:[#allocation1] sm:$0xff] %v1443
      %4886 = vst [vmem:[#allocation1 + $0x20] sm:$0xff] %v1444
      %v4887 = vld [vmem:[#allocation1] ss:$4 sm:$0xff]
      %v4888 = vld [vmem:[%s4768] ss:$4 sm:$0xff]
      %v4889 = vld [vmem:[%s4770] ss:$4 sm:$0xff]
      %v4890 = vld [vmem:[%s4772] ss:$4 sm:$0xff]
      %v4891 = vld [vmem:[%s4774] ss:$4 sm:$0xff]
      %v4892 = vld [vmem:[%s4776] ss:$4 sm:$0xff]
      %s4893 = scalar_lea.vmem %s3, 640
      %v4894 = vld [vmem:[%s4893] sm:$0xff]
      %v4895 = vld [vmem:[%s4893 + $0x8] sm:$0xff]
      %v4896 = vld [vmem:[%s4893 + $0x10] sm:$0xff]
      %v4897 = vld [vmem:[%s4893 + $0x18] sm:$0xff]
      %v4898 = vld [vmem:[%s4893 + $0x20] sm:$0xff]
      %v4899 = vld [vmem:[%s4893 + $0x28] sm:$0xff]
      %v4900 = vld [vmem:[%s4893 + $0x30] sm:$0xff]
      %v4901 = vld [vmem:[%s4893 + $0x38] sm:$0xff]
      %v4902 = vld [vmem:[%s4893 + $0x40] sm:$0xff]
      %v4903 = vld [vmem:[%s4893 + $0x48] sm:$0xff]
      %v4904 = vld [vmem:[%s4893 + $0x50] sm:$0xff]
      %v4905 = vld [vmem:[%s4893 + $0x58] sm:$0xff]
      %v4906 = vld [vmem:[%s4893 + $0x60] sm:$0xff]
      %v4907 = vld [vmem:[%s4893 + $0x68] sm:$0xff]
      %v4908 = vld [vmem:[%s4893 + $0x70] sm:$0xff]
      %v4909 = vld [vmem:[%s4893 + $0x78] sm:$0xff]
      %4910 = vst [vmem:[#allocation1] ss:$9 sm:$0xff] %v4769
      %s4911 = scalar_lea.vmem [#allocation1], 1
      %4912 = vst [vmem:[%s4911] ss:$9 sm:$0xff] %v4771
      %s4913 = scalar_lea.vmem [#allocation1], 2
      %4914 = vst [vmem:[%s4913] ss:$9 sm:$0xff] %v4773
      %s4915 = scalar_lea.vmem [#allocation1], 3
      %4916 = vst [vmem:[%s4915] ss:$9 sm:$0xff] %v4775
      %s4917 = scalar_lea.vmem [#allocation1], 4
      %4918 = vst [vmem:[%s4917] ss:$9 sm:$0xff] %v4777
      %s4919 = scalar_lea.vmem [#allocation1], 5
      %4920 = vst [vmem:[%s4919] ss:$9 sm:$0xff] %v4779
      %s4921 = scalar_lea.vmem [#allocation1], 6
      %4922 = vst [vmem:[%s4921] ss:$9 sm:$0xff] %v4781
      %s4923 = scalar_lea.vmem [#allocation1], 7
      %4924 = vst [vmem:[%s4923] ss:$9 sm:$0xff] %v4783
      %v4925 = vld [vmem:[#allocation1] sm:$0xff]
      %4926 = vst [vmem:[#allocation1] ss:$9 sm:$0xff] %v4784
      %4927 = vst [vmem:[%s4911] ss:$9 sm:$0xff] %v4786
      %4928 = vst [vmem:[%s4913] ss:$9 sm:$0xff] %v4787
      %4929 = vst [vmem:[%s4915] ss:$9 sm:$0xff] %v4788
      %4930 = vst [vmem:[%s4917] ss:$9 sm:$0xff] %v4791
      %4931 = vst [vmem:[%s4919] ss:$9 sm:$0xff] %v4792
      %4932 = vst [vmem:[%s4921] ss:$9 sm:$0xff] %v4793
      %4933 = vst [vmem:[%s4923] ss:$9 sm:$0xff] %v4794
      %v4934 = vld [vmem:[#allocation1] sm:$0xff]
      %4935 = vst [vmem:[#allocation1] ss:$9 sm:$0xff] %v4795
      %4936 = vst [vmem:[%s4911] ss:$9 sm:$0xff] %v4796
      %4937 = vst [vmem:[%s4913] ss:$9 sm:$0xff] %v4799
      %4938 = vst [vmem:[%s4915] ss:$9 sm:$0xff] %v4800
      %4939 = vst [vmem:[%s4917] ss:$9 sm:$0xff] %v4801
      %4940 = vst [vmem:[%s4919] ss:$9 sm:$0xff] %v4802
      %4941 = vst [vmem:[%s4921] ss:$9 sm:$0xff] %v4803
      %4942 = vst [vmem:[%s4923] ss:$9 sm:$0xff] %v4804
      %v4943 = vld [vmem:[#allocation1] sm:$0xff]
      %4944 = vst [vmem:[#allocation1] ss:$9 sm:$0xff] %v4805
      %4945 = vst [vmem:[%s4911] ss:$9 sm:$0xff] %v4807
      %4946 = vst [vmem:[%s4913] ss:$9 sm:$0xff] %v4808
      %4947 = vst [vmem:[%s4915] ss:$9 sm:$0xff] %v4810
      %4948 = vst [vmem:[%s4917] ss:$9 sm:$0xff] %v4811
      %4949 = vst [vmem:[%s4919] ss:$9 sm:$0xff] %v4812
      %4950 = vst [vmem:[%s4921] ss:$9 sm:$0xff] %v4815
      %4951 = vst [vmem:[%s4923] ss:$9 sm:$0xff] %v4816
      %v4952 = vld [vmem:[#allocation1] sm:$0xff]
      %4953 = vst [vmem:[#allocation1] ss:$9 sm:$0xff] %v4817
      %4954 = vst [vmem:[%s4911] ss:$9 sm:$0xff] %v4818
      %4955 = vst [vmem:[%s4913] ss:$9 sm:$0xff] %v4819
      %4956 = vst [vmem:[%s4915] ss:$9 sm:$0xff] %v4820
      %4957 = vst [vmem:[%s4917] ss:$9 sm:$0xff] %v4823
      %4958 = vst [vmem:[%s4919] ss:$9 sm:$0xff] %v4824
      %4959 = vst [vmem:[%s4921] ss:$9 sm:$0xff] %v4825
      %4960 = vst [vmem:[%s4923] ss:$9 sm:$0xff] %v4826
      %v4961 = vld [vmem:[#allocation1] sm:$0xff]
      %4962 = vst [vmem:[#allocation1] ss:$9 sm:$0xff] %v4827
      %4963 = vst [vmem:[%s4911] ss:$9 sm:$0xff] %v4828
      %4964 = vst [vmem:[%s4913] ss:$9 sm:$0xff] %v4829
      %4965 = vst [vmem:[%s4915] ss:$9 sm:$0xff] %v4831
      %4966 = vst [vmem:[%s4917] ss:$9 sm:$0xff] %v4832
      %4967 = vst [vmem:[%s4919] ss:$9 sm:$0xff] %v4834
      %4968 = vst [vmem:[%s4921] ss:$9 sm:$0xff] %v4835
      %4969 = vst [vmem:[%s4923] ss:$9 sm:$0xff] %v4836
      %v4970 = vld [vmem:[#allocation1] sm:$0xff]
      %4971 = vst [vmem:[#allocation1] ss:$9 sm:$0xff] %v4839
      %4972 = vst [vmem:[%s4911] ss:$9 sm:$0xff] %v4840
      %4973 = vst [vmem:[%s4913] ss:$9 sm:$0xff] %v4841
      %4974 = vst [vmem:[%s4915] ss:$9 sm:$0xff] %v4842
      %4975 = vst [vmem:[%s4917] ss:$9 sm:$0xff] %v4843
      %4976 = vst [vmem:[%s4919] ss:$9 sm:$0xff] %v4844
      %4977 = vst [vmem:[%s4921] ss:$9 sm:$0xff] %v4847
      %4978 = vst [vmem:[%s4923] ss:$9 sm:$0xff] %v4848
      %v4979 = vld [vmem:[#allocation1] sm:$0xff]
      %4980 = vst [vmem:[#allocation1] ss:$9 sm:$0xff] %v4849
      %4981 = vst [vmem:[%s4911] ss:$9 sm:$0xff] %v4850
      %4982 = vst [vmem:[%s4913] ss:$9 sm:$0xff] %v4851
      %4983 = vst [vmem:[%s4915] ss:$9 sm:$0xff] %v4852
      %4984 = vst [vmem:[%s4917] ss:$9 sm:$0xff] %v4853
      %4985 = vst [vmem:[%s4919] ss:$9 sm:$0xff] %v4855
      %4986 = vst [vmem:[%s4921] ss:$9 sm:$0xff] %v4856
      %4987 = vst [vmem:[%s4923] ss:$9 sm:$0xff] %v4858
      %v4988 = vld [vmem:[#allocation1] sm:$0xff]
      %4989 = vst [vmem:[#allocation1] ss:$9 sm:$0xff] %v4859
      %4990 = vst [vmem:[%s4911] ss:$9 sm:$0xff] %v4860
      %4991 = vst [vmem:[%s4913] ss:$9 sm:$0xff] %v4863
      %4992 = vst [vmem:[%s4915] ss:$9 sm:$0xff] %v4864
      %4993 = vst [vmem:[%s4917] ss:$9 sm:$0xff] %v4865
      %4994 = vst [vmem:[%s4919] ss:$9 sm:$0xff] %v4866
      %4995 = vst [vmem:[%s4921] ss:$9 sm:$0xff] %v4867
      %4996 = vst [vmem:[%s4923] ss:$9 sm:$0xff] %v4868
      %v4997 = vld [vmem:[#allocation1] sm:$0xff]
      %4998 = vst [vmem:[#allocation1] ss:$9 sm:$0xff] %v4871
      %4999 = vst [vmem:[%s4911] ss:$9 sm:$0xff] %v4872
      %5000 = vst [vmem:[%s4913] ss:$9 sm:$0xff] %v4873
      %5001 = vst [vmem:[%s4915] ss:$9 sm:$0xff] %v4874
      %5002 = vst [vmem:[%s4917] ss:$9 sm:$0xff] %v4875
      %5003 = vst [vmem:[%s4919] ss:$9 sm:$0xff] %v4876
      %5004 = vst [vmem:[%s4921] ss:$9 sm:$0xff] %v4877
      %5005 = vst [vmem:[%s4923] ss:$9 sm:$0xff] %v4879
      %v5006 = vld [vmem:[#allocation1] sm:$0xff]
      %5007 = vst [vmem:[#allocation1] ss:$9 sm:$0xff] %v4880
      %5008 = vst [vmem:[%s4911] ss:$9 sm:$0xff] %v4882
      %5009 = vst [vmem:[%s4913] ss:$9 sm:$0xff] %v4883
      %5010 = vst [vmem:[%s4915] ss:$9 sm:$0xff] %v4884
      %5011 = vst [vmem:[%s4917] ss:$9 sm:$0xff] %v4887
      %5012 = vst [vmem:[%s4919] ss:$9 sm:$0xff] %v4888
      %5013 = vst [vmem:[%s4921] ss:$9 sm:$0xff] %v4889
      %5014 = vst [vmem:[%s4923] ss:$9 sm:$0xff] %v4890
      %v5015 = vld [vmem:[#allocation1] sm:$0xff]
      %5016 = vst [vmem:[#allocation1] ss:$9 sm:$0xff] %v4891
      %5017 = vst [vmem:[%s4911] ss:$9 sm:$0xff] %v4892
      %v5018 = vld [vmem:[#allocation1] sm:$0xff]
      %v5047 = vunpack.c.l.b16 %v4894
      %v5048 = vunpack.c.h.b16 %v4894
      %v5049 = vunpack.c.l.b16 %v4895
      %v5050 = vunpack.c.h.b16 %v4895
      %v5051 = vunpack.c.l.b16 %v4896
      %v5052 = vunpack.c.h.b16 %v4896
      %v5053 = vunpack.c.l.b16 %v4897
      %v5054 = vunpack.c.h.b16 %v4897
      %v5055 = vunpack.c.l.b16 %v4898
      %v5056 = vunpack.c.h.b16 %v4898
      %v5057 = vunpack.c.l.b16 %v4899
      %v5058 = vunpack.c.h.b16 %v4899
      %v5059 = vunpack.c.l.b16 %v4900
      %v5060 = vunpack.c.h.b16 %v4900
      %v5061 = vunpack.c.l.b16 %v4901
      %v5062 = vunpack.c.h.b16 %v4901
      %v5063 = vunpack.c.l.b16 %v4902
      %v5064 = vunpack.c.h.b16 %v4902
      %v5065 = vunpack.c.l.b16 %v4903
      %v5066 = vunpack.c.h.b16 %v4903
      %v5067 = vunpack.c.l.b16 %v4904
      %v5068 = vunpack.c.h.b16 %v4904
      %v5069 = vunpack.c.l.b16 %v4905
      %v5070 = vunpack.c.h.b16 %v4905
      %v5071 = vunpack.c.l.b16 %v4906
      %v5072 = vunpack.c.h.b16 %v4906
      %v5073 = vunpack.c.l.b16 %v4907
      %v5074 = vunpack.c.h.b16 %v4907
      %v5075 = vunpack.c.l.b16 %v4908
      %v5076 = vunpack.c.h.b16 %v4908
      %v5077 = vunpack.c.l.b16 %v4909
      %v5078 = vunpack.c.h.b16 %v4909
      %v5079 = vpack.c.b16 %v5049, %v5047
      %v5080 = vpack.c.b16 %v5050, %v5048
      %v5081 = vpack.c.b16 %v5053, %v5051
      %v5082 = vpack.c.b16 %v5054, %v5052
      %v5083 = vpack.c.b16 %v5057, %v5055
      %v5084 = vpack.c.b16 %v5058, %v5056
      %v5085 = vpack.c.b16 %v5061, %v5059
      %v5086 = vpack.c.b16 %v5062, %v5060
      %v5087 = vpack.c.b16 %v5065, %v5063
      %v5088 = vpack.c.b16 %v5066, %v5064
      %v5089 = vpack.c.b16 %v5069, %v5067
      %v5090 = vpack.c.b16 %v5070, %v5068
      %v5091 = vpack.c.b16 %v5073, %v5071
      %v5092 = vpack.c.b16 %v5074, %v5072
      %v5093 = vpack.c.b16 %v5077, %v5075
      %v5094 = vpack.c.b16 %v5078, %v5076
      %5111 = vmatpush.bf16.msra.mxu0 %v5093
      %5112 = vmatpush.bf16.msra.mxu0 %v5091
      %5113 = vmatpush.bf16.msra.mxu0 %v5089
      %5114 = vmatpush.bf16.msra.mxu0 %v5087
      %5115 = vmatpush.bf16.msra.mxu0 %v5085
      %5116 = vmatpush.bf16.msra.mxu0 %v5083
      %5117 = vmatpush.bf16.msra.mxu0 %v5081
      %5118 = vmatpush.bf16.msra.mxu0 %v5079
      %5119 = vmatmul.bf16.gmra.mxu0 %v4925
      %v5120 = vpop.f32.mrf.mxu0
      %v5121 = vadd.f32 0.0, %v5120
      %v5122 = vpop.f32.mrf.mxu0
      %v5123 = vadd.f32 0.0, %v5122
      %5124 = vmatmul.bf16.gmra.mxu0 %v4934
      %v5125 = vpop.f32.mrf.mxu0
      %v5126 = vadd.f32 0.0, %v5125
      %v5127 = vpop.f32.mrf.mxu0
      %v5128 = vadd.f32 0.0, %v5127
      %5129 = vmatmul.bf16.gmra.mxu0 %v4943
      %v5130 = vpop.f32.mrf.mxu0
      %v5131 = vadd.f32 0.0, %v5130
      %v5132 = vpop.f32.mrf.mxu0
      %v5133 = vadd.f32 0.0, %v5132
      %5134 = vmatmul.bf16.gmra.mxu0 %v4952
      %v5135 = vpop.f32.mrf.mxu0
      %v5136 = vadd.f32 0.0, %v5135
      %v5137 = vpop.f32.mrf.mxu0
      %v5138 = vadd.f32 0.0, %v5137
      %5139 = vmatmul.bf16.gmra.mxu0 %v4961
      %v5140 = vpop.f32.mrf.mxu0
      %v5141 = vadd.f32 0.0, %v5140
      %v5142 = vpop.f32.mrf.mxu0
      %v5143 = vadd.f32 0.0, %v5142
      %5144 = vmatmul.bf16.gmra.mxu0 %v4970
      %v5145 = vpop.f32.mrf.mxu0
      %v5146 = vadd.f32 0.0, %v5145
      %v5147 = vpop.f32.mrf.mxu0
      %v5148 = vadd.f32 0.0, %v5147
      %5149 = vmatmul.bf16.gmra.mxu0 %v4979
      %v5150 = vpop.f32.mrf.mxu0
      %v5151 = vadd.f32 0.0, %v5150
      %v5152 = vpop.f32.mrf.mxu0
      %v5153 = vadd.f32 0.0, %v5152
      %5154 = vmatmul.bf16.gmra.mxu0 %v4988
      %v5155 = vpop.f32.mrf.mxu0
      %v5156 = vadd.f32 0.0, %v5155
      %v5157 = vpop.f32.mrf.mxu0
      %v5158 = vadd.f32 0.0, %v5157
      %5159 = vmatmul.bf16.gmra.mxu0 %v4997
      %v5160 = vpop.f32.mrf.mxu0
      %v5161 = vadd.f32 0.0, %v5160
      %v5162 = vpop.f32.mrf.mxu0
      %v5163 = vadd.f32 0.0, %v5162
      %5164 = vmatmul.bf16.gmra.mxu0 %v5006
      %v5165 = vpop.f32.mrf.mxu0
      %v5166 = vadd.f32 0.0, %v5165
      %v5167 = vpop.f32.mrf.mxu0
      %v5168 = vadd.f32 0.0, %v5167
      %5169 = vmatmul.bf16.gmra.mxu0 %v5015
      %v5170 = vpop.f32.mrf.mxu0
      %v5171 = vadd.f32 0.0, %v5170
      %v5172 = vpop.f32.mrf.mxu0
      %v5173 = vadd.f32 0.0, %v5172
      %5174 = vmatmul.bf16.gmra.mxu0 %v5018
      %v5175 = vpop.f32.mrf.mxu0
      %v5176 = vadd.f32 0.0, %v5175
      %v5177 = vpop.f32.mrf.mxu0
      %5178 = vdwg.mxu0
      %5179 = vmatpush.bf16.msra.mxu0 %v5094
      %5180 = vmatpush.bf16.msra.mxu0 %v5092
      %5181 = vmatpush.bf16.msra.mxu0 %v5090
      %5182 = vmatpush.bf16.msra.mxu0 %v5088
      %5183 = vmatpush.bf16.msra.mxu0 %v5086
      %5184 = vmatpush.bf16.msra.mxu0 %v5084
      %5185 = vmatpush.bf16.msra.mxu0 %v5082
      %5186 = vmatpush.bf16.msra.mxu0 %v5080
      %5187 = vmatmul.bf16.gmra.mxu0 %v4925
      %v5188 = vpop.f32.mrf.mxu0
      %v5189 = vadd.f32 0.0, %v5188
      %v5190 = vpop.f32.mrf.mxu0
      %v5191 = vadd.f32 0.0, %v5190
      %5192 = vmatmul.bf16.gmra.mxu0 %v4934
      %v5193 = vpop.f32.mrf.mxu0
      %v5194 = vadd.f32 0.0, %v5193
      %v5195 = vpop.f32.mrf.mxu0
      %v5196 = vadd.f32 0.0, %v5195
      %5197 = vmatmul.bf16.gmra.mxu0 %v4943
      %v5198 = vpop.f32.mrf.mxu0
      %v5199 = vadd.f32 0.0, %v5198
      %v5200 = vpop.f32.mrf.mxu0
      %v5201 = vadd.f32 0.0, %v5200
      %5202 = vmatmul.bf16.gmra.mxu0 %v4952
      %v5203 = vpop.f32.mrf.mxu0
      %v5204 = vadd.f32 0.0, %v5203
      %v5205 = vpop.f32.mrf.mxu0
      %v5206 = vadd.f32 0.0, %v5205
      %5207 = vmatmul.bf16.gmra.mxu0 %v4961
      %v5208 = vpop.f32.mrf.mxu0
      %v5209 = vadd.f32 0.0, %v5208
      %v5210 = vpop.f32.mrf.mxu0
      %v5211 = vadd.f32 0.0, %v5210
      %5212 = vmatmul.bf16.gmra.mxu0 %v4970
      %v5213 = vpop.f32.mrf.mxu0
      %v5214 = vadd.f32 0.0, %v5213
      %v5215 = vpop.f32.mrf.mxu0
      %v5216 = vadd.f32 0.0, %v5215
      %5217 = vmatmul.bf16.gmra.mxu0 %v4979
      %v5218 = vpop.f32.mrf.mxu0
      %v5219 = vadd.f32 0.0, %v5218
      %v5220 = vpop.f32.mrf.mxu0
      %v5221 = vadd.f32 0.0, %v5220
      %5222 = vmatmul.bf16.gmra.mxu0 %v4988
      %v5223 = vpop.f32.mrf.mxu0
      %v5224 = vadd.f32 0.0, %v5223
      %v5225 = vpop.f32.mrf.mxu0
      %v5226 = vadd.f32 0.0, %v5225
      %5227 = vmatmul.bf16.gmra.mxu0 %v4997
      %v5228 = vpop.f32.mrf.mxu0
      %v5229 = vadd.f32 0.0, %v5228
      %v5230 = vpop.f32.mrf.mxu0
      %v5231 = vadd.f32 0.0, %v5230
      %5232 = vmatmul.bf16.gmra.mxu0 %v5006
      %v5233 = vpop.f32.mrf.mxu0
      %v5234 = vadd.f32 0.0, %v5233
      %v5235 = vpop.f32.mrf.mxu0
      %v5236 = vadd.f32 0.0, %v5235
      %5237 = vmatmul.bf16.gmra.mxu0 %v5015
      %v5238 = vpop.f32.mrf.mxu0
      %v5239 = vadd.f32 0.0, %v5238
      %v5240 = vpop.f32.mrf.mxu0
      %v5241 = vadd.f32 0.0, %v5240
      %5242 = vmatmul.bf16.gmra.mxu0 %v5018
      %v5243 = vpop.f32.mrf.mxu0
      %v5244 = vadd.f32 0.0, %v5243
      %v5245 = vpop.f32.mrf.mxu0
      %5246 = vdwg.mxu0
      %v5247 = vadd.f32 %v4720, %v5121
      %v5248 = vadd.f32 %v4721, %v5189
      %v5249 = vadd.f32 %v4722, %v5123
      %v5250 = vadd.f32 %v4723, %v5191
      %v5251 = vadd.f32 %v4724, %v5126
      %v5252 = vadd.f32 %v4725, %v5194
      %v5253 = vadd.f32 %v4726, %v5128
      %v5254 = vadd.f32 %v4727, %v5196
      %v5255 = vadd.f32 %v4728, %v5131
      %v5256 = vadd.f32 %v4729, %v5199
      %v5257 = vadd.f32 %v4730, %v5133
      %v5258 = vadd.f32 %v4731, %v5201
      %v5259 = vadd.f32 %v4732, %v5136
      %v5260 = vadd.f32 %v4733, %v5204
      %v5261 = vadd.f32 %v4734, %v5138
      %v5262 = vadd.f32 %v4735, %v5206
      %v5263 = vadd.f32 %v4736, %v5141
      %v5264 = vadd.f32 %v4737, %v5209
      %v5265 = vadd.f32 %v4738, %v5143
      %v5266 = vadd.f32 %v4739, %v5211
      %v5267 = vadd.f32 %v4740, %v5146
      %v5268 = vadd.f32 %v4741, %v5214
      %v5269 = vadd.f32 %v4742, %v5148
      %v5270 = vadd.f32 %v4743, %v5216
      %v5271 = vadd.f32 %v4744, %v5151
      %v5272 = vadd.f32 %v4745, %v5219
      %v5273 = vadd.f32 %v4746, %v5153
      %v5274 = vadd.f32 %v4747, %v5221
      %v5275 = vadd.f32 %v4748, %v5156
      %v5276 = vadd.f32 %v4749, %v5224
      %v5277 = vadd.f32 %v4750, %v5158
      %v5278 = vadd.f32 %v4751, %v5226
      %v5279 = vadd.f32 %v4752, %v5161
      %v5280 = vadd.f32 %v4753, %v5229
      %v5281 = vadd.f32 %v4754, %v5163
      %v5282 = vadd.f32 %v4755, %v5231
      %v5283 = vadd.f32 %v4756, %v5166
      %v5284 = vadd.f32 %v4757, %v5234
      %v5285 = vadd.f32 %v4758, %v5168
      %v5286 = vadd.f32 %v4759, %v5236
      %v5287 = vadd.f32 %v4760, %v5171
      %v5288 = vadd.f32 %v4761, %v5239
      %v5289 = vadd.f32 %v4762, %v5173
      %v5290 = vadd.f32 %v4763, %v5241
      %v5291 = vadd.f32 %v4764, %v5176
      %v5292 = vadd.f32 %v4765, %v5244
      %v5296 = vrot.slane %v1445, 3
      %v5297 = vrot.slane %v1446, 3
      %v5298 = vrot.slane %v1447, 3
      %v5301 = vsel %vm1508, %v1445, %v5296
      %v5302 = vsel %vm1512, %v1445, %v5296
      %v5304 = vrot.slane %v5302, 1
      %v5305 = vsel %vm1516, %v1445, %v5296
      %v5307 = vrot.slane %v5305, 2
      %v5308 = vsel %vm1520, %v1445, %v5296
      %v5310 = vrot.slane %v5308, 3
      %v5313 = vsel %vm1508, %v1446, %v5297
      %v5314 = vsel %vm1512, %v1446, %v5297
      %v5316 = vrot.slane %v5314, 1
      %v5317 = vsel %vm1516, %v1446, %v5297
      %v5319 = vrot.slane %v5317, 2
      %v5320 = vsel %vm1520, %v1446, %v5297
      %v5322 = vrot.slane %v5320, 3
      %v5325 = vsel %vm1508, %v1447, %v5298
      %s5326 = scalar_lea.vmem %s3, 768
      %v5327 = vld [vmem:[%s5326] sm:$0xff]
      %v5328 = vld [vmem:[%s5326 + $0x8] sm:$0xff]
      %v5329 = vld [vmem:[%s5326 + $0x10] sm:$0xff]
      %v5330 = vld [vmem:[%s5326 + $0x18] sm:$0xff]
      %v5331 = vld [vmem:[%s5326 + $0x20] sm:$0xff]
      %v5332 = vld [vmem:[%s5326 + $0x28] sm:$0xff]
      %v5333 = vld [vmem:[%s5326 + $0x30] sm:$0xff]
      %v5334 = vld [vmem:[%s5326 + $0x38] sm:$0xff]
      %v5335 = vld [vmem:[%s5326 + $0x40] sm:$0xff]
      %v5336 = vld [vmem:[%s5326 + $0x48] sm:$0xff]
      %v5337 = vld [vmem:[%s5326 + $0x50] sm:$0xff]
      %v5338 = vld [vmem:[%s5326 + $0x58] sm:$0xff]
      %v5339 = vld [vmem:[%s5326 + $0x60] sm:$0xff]
      %v5340 = vld [vmem:[%s5326 + $0x68] sm:$0xff]
      %v5341 = vld [vmem:[%s5326 + $0x70] sm:$0xff]
      %v5342 = vld [vmem:[%s5326 + $0x78] sm:$0xff]
      %5343 = vst [vmem:[#allocation1] ss:$9 sm:$0xff] %v1568
      %s5344 = scalar_lea.vmem [#allocation1], 1
      %5345 = vst [vmem:[%s5344] ss:$9 sm:$0xff] %v1571
      %s5346 = scalar_lea.vmem [#allocation1], 2
      %5347 = vst [vmem:[%s5346] ss:$9 sm:$0xff] %v1574
      %s5348 = scalar_lea.vmem [#allocation1], 3
      %5349 = vst [vmem:[%s5348] ss:$9 sm:$0xff] %v1577
      %s5350 = scalar_lea.vmem [#allocation1], 4
      %5351 = vst [vmem:[%s5350] ss:$9 sm:$0xff] %v1580
      %s5352 = scalar_lea.vmem [#allocation1], 5
      %5353 = vst [vmem:[%s5352] ss:$9 sm:$0xff] %v1583
      %s5354 = scalar_lea.vmem [#allocation1], 6
      %5355 = vst [vmem:[%s5354] ss:$9 sm:$0xff] %v1586
      %s5356 = scalar_lea.vmem [#allocation1], 7
      %5357 = vst [vmem:[%s5356] ss:$9 sm:$0xff] %v1589
      %v5358 = vld [vmem:[#allocation1] sm:$0xff]
      %5359 = vst [vmem:[#allocation1] ss:$9 sm:$0xff] %v1592
      %5360 = vst [vmem:[%s5344] ss:$9 sm:$0xff] %v1595
      %5361 = vst [vmem:[%s5346] ss:$9 sm:$0xff] %v1598
      %5362 = vst [vmem:[%s5348] ss:$9 sm:$0xff] %v1601
      %5363 = vst [vmem:[%s5350] ss:$9 sm:$0xff] %v1604
      %5364 = vst [vmem:[%s5352] ss:$9 sm:$0xff] %v1607
      %5365 = vst [vmem:[%s5354] ss:$9 sm:$0xff] %v1610
      %5366 = vst [vmem:[%s5356] ss:$9 sm:$0xff] %v1613
      %v5367 = vld [vmem:[#allocation1] sm:$0xff]
      %5368 = vst [vmem:[#allocation1] ss:$9 sm:$0xff] %v1616
      %5369 = vst [vmem:[%s5344] ss:$9 sm:$0xff] %v1619
      %5370 = vst [vmem:[%s5346] ss:$9 sm:$0xff] %v1622
      %5371 = vst [vmem:[%s5348] ss:$9 sm:$0xff] %v1625
      %5372 = vst [vmem:[%s5350] ss:$9 sm:$0xff] %v1628
      %5373 = vst [vmem:[%s5352] ss:$9 sm:$0xff] %v1631
      %5374 = vst [vmem:[%s5354] ss:$9 sm:$0xff] %v1634
      %5375 = vst [vmem:[%s5356] ss:$9 sm:$0xff] %v1637
      %v5376 = vld [vmem:[#allocation1] sm:$0xff]
      %5377 = vst [vmem:[#allocation1] ss:$9 sm:$0xff] %v1640
      %5378 = vst [vmem:[%s5344] ss:$9 sm:$0xff] %v1643
      %5379 = vst [vmem:[%s5346] ss:$9 sm:$0xff] %v1646
      %5380 = vst [vmem:[%s5348] ss:$9 sm:$0xff] %v1649
      %5381 = vst [vmem:[%s5350] ss:$9 sm:$0xff] %v1652
      %5382 = vst [vmem:[%s5352] ss:$9 sm:$0xff] %v1655
      %5383 = vst [vmem:[%s5354] ss:$9 sm:$0xff] %v1658
      %5384 = vst [vmem:[%s5356] ss:$9 sm:$0xff] %v1661
      %v5385 = vld [vmem:[#allocation1] sm:$0xff]
      %5386 = vst [vmem:[#allocation1] ss:$9 sm:$0xff] %v1664
      %5387 = vst [vmem:[%s5344] ss:$9 sm:$0xff] %v1667
      %5388 = vst [vmem:[%s5346] ss:$9 sm:$0xff] %v1670
      %5389 = vst [vmem:[%s5348] ss:$9 sm:$0xff] %v1673
      %5390 = vst [vmem:[%s5350] ss:$9 sm:$0xff] %v1676
      %5391 = vst [vmem:[%s5352] ss:$9 sm:$0xff] %v1679
      %5392 = vst [vmem:[%s5354] ss:$9 sm:$0xff] %v1682
      %5393 = vst [vmem:[%s5356] ss:$9 sm:$0xff] %v1685
      %v5394 = vld [vmem:[#allocation1] sm:$0xff]
      %5395 = vst [vmem:[#allocation1] ss:$9 sm:$0xff] %v1688
      %5396 = vst [vmem:[%s5344] ss:$9 sm:$0xff] %v1691
      %5397 = vst [vmem:[%s5346] ss:$9 sm:$0xff] %v1694
      %5398 = vst [vmem:[%s5348] ss:$9 sm:$0xff] %v1697
      %5399 = vst [vmem:[%s5350] ss:$9 sm:$0xff] %v1700
      %5400 = vst [vmem:[%s5352] ss:$9 sm:$0xff] %v1703
      %5401 = vst [vmem:[%s5354] ss:$9 sm:$0xff] %v1706
      %5402 = vst [vmem:[%s5356] ss:$9 sm:$0xff] %v1709
      %v5403 = vld [vmem:[#allocation1] sm:$0xff]
      %5404 = vst [vmem:[#allocation1] ss:$9 sm:$0xff] %v1712
      %5405 = vst [vmem:[%s5344] ss:$9 sm:$0xff] %v1715
      %5406 = vst [vmem:[%s5346] ss:$9 sm:$0xff] %v1718
      %5407 = vst [vmem:[%s5348] ss:$9 sm:$0xff] %v1721
      %5408 = vst [vmem:[%s5350] ss:$9 sm:$0xff] %v1724
      %5409 = vst [vmem:[%s5352] ss:$9 sm:$0xff] %v1727
      %5410 = vst [vmem:[%s5354] ss:$9 sm:$0xff] %v1730
      %5411 = vst [vmem:[%s5356] ss:$9 sm:$0xff] %v1733
      %v5412 = vld [vmem:[#allocation1] sm:$0xff]
      %5413 = vst [vmem:[#allocation1] ss:$9 sm:$0xff] %v1736
      %5414 = vst [vmem:[%s5344] ss:$9 sm:$0xff] %v1739
      %5415 = vst [vmem:[%s5346] ss:$9 sm:$0xff] %v1742
      %5416 = vst [vmem:[%s5348] ss:$9 sm:$0xff] %v1745
      %5417 = vst [vmem:[%s5350] ss:$9 sm:$0xff] %v1748
      %5418 = vst [vmem:[%s5352] ss:$9 sm:$0xff] %v1751
      %5419 = vst [vmem:[%s5354] ss:$9 sm:$0xff] %v1754
      %5420 = vst [vmem:[%s5356] ss:$9 sm:$0xff] %v1757
      %v5421 = vld [vmem:[#allocation1] sm:$0xff]
      %5422 = vst [vmem:[#allocation1] ss:$9 sm:$0xff] %v1760
      %5423 = vst [vmem:[%s5344] ss:$9 sm:$0xff] %v1763
      %5424 = vst [vmem:[%s5346] ss:$9 sm:$0xff] %v1766
      %5425 = vst [vmem:[%s5348] ss:$9 sm:$0xff] %v1769
      %5426 = vst [vmem:[%s5350] ss:$9 sm:$0xff] %v1772
      %5427 = vst [vmem:[%s5352] ss:$9 sm:$0xff] %v1775
      %5428 = vst [vmem:[%s5354] ss:$9 sm:$0xff] %v1778
      %5429 = vst [vmem:[%s5356] ss:$9 sm:$0xff] %v1781
      %v5430 = vld [vmem:[#allocation1] sm:$0xff]
      %5431 = vst [vmem:[#allocation1] ss:$9 sm:$0xff] %v3859
      %5432 = vst [vmem:[%s5344] ss:$9 sm:$0xff] %v3862
      %5433 = vst [vmem:[%s5346] ss:$9 sm:$0xff] %v3865
      %5434 = vst [vmem:[%s5348] ss:$9 sm:$0xff] %v3868
      %5435 = vst [vmem:[%s5350] ss:$9 sm:$0xff] %v3871
      %5436 = vst [vmem:[%s5352] ss:$9 sm:$0xff] %v3874
      %5437 = vst [vmem:[%s5354] ss:$9 sm:$0xff] %v3877
      %5438 = vst [vmem:[%s5356] ss:$9 sm:$0xff] %v3880
      %v5439 = vld [vmem:[#allocation1] sm:$0xff]
      %5440 = vst [vmem:[#allocation1] ss:$9 sm:$0xff] %v3883
      %5441 = vst [vmem:[%s5344] ss:$9 sm:$0xff] %v5301
      %5443 = vst [vmem:[%s5346] ss:$9 sm:$0xff] %v5304
      %5445 = vst [vmem:[%s5348] ss:$9 sm:$0xff] %v5307
      %5447 = vst [vmem:[%s5350] ss:$9 sm:$0xff] %v5310
      %5448 = vst [vmem:[%s5352] ss:$9 sm:$0xff] %v5313
      %5450 = vst [vmem:[%s5354] ss:$9 sm:$0xff] %v5316
      %5452 = vst [vmem:[%s5356] ss:$9 sm:$0xff] %v5319
      %v5453 = vld [vmem:[#allocation1] sm:$0xff]
      %5455 = vst [vmem:[#allocation1] ss:$9 sm:$0xff] %v5322
      %5456 = vst [vmem:[%s5344] ss:$9 sm:$0xff] %v5325
      %v5457 = vld [vmem:[#allocation1] sm:$0xff]
      %v5486 = vunpack.c.l.b16 %v5327
      %v5487 = vunpack.c.h.b16 %v5327
      %v5488 = vunpack.c.l.b16 %v5328
      %v5489 = vunpack.c.h.b16 %v5328
      %v5490 = vunpack.c.l.b16 %v5329
      %v5491 = vunpack.c.h.b16 %v5329
      %v5492 = vunpack.c.l.b16 %v5330
      %v5493 = vunpack.c.h.b16 %v5330
      %v5494 = vunpack.c.l.b16 %v5331
      %v5495 = vunpack.c.h.b16 %v5331
      %v5496 = vunpack.c.l.b16 %v5332
      %v5497 = vunpack.c.h.b16 %v5332
      %v5498 = vunpack.c.l.b16 %v5333
      %v5499 = vunpack.c.h.b16 %v5333
      %v5500 = vunpack.c.l.b16 %v5334
      %v5501 = vunpack.c.h.b16 %v5334
      %v5502 = vunpack.c.l.b16 %v5335
      %v5503 = vunpack.c.h.b16 %v5335
      %v5504 = vunpack.c.l.b16 %v5336
      %v5505 = vunpack.c.h.b16 %v5336
      %v5506 = vunpack.c.l.b16 %v5337
      %v5507 = vunpack.c.h.b16 %v5337
      %v5508 = vunpack.c.l.b16 %v5338
      %v5509 = vunpack.c.h.b16 %v5338
      %v5510 = vunpack.c.l.b16 %v5339
      %v5511 = vunpack.c.h.b16 %v5339
      %v5512 = vunpack.c.l.b16 %v5340
      %v5513 = vunpack.c.h.b16 %v5340
      %v5514 = vunpack.c.l.b16 %v5341
      %v5515 = vunpack.c.h.b16 %v5341
      %v5516 = vunpack.c.l.b16 %v5342
      %v5517 = vunpack.c.h.b16 %v5342
      %v5518 = vpack.c.b16 %v5488, %v5486
      %v5519 = vpack.c.b16 %v5489, %v5487
      %v5520 = vpack.c.b16 %v5492, %v5490
      %v5521 = vpack.c.b16 %v5493, %v5491
      %v5522 = vpack.c.b16 %v5496, %v5494
      %v5523 = vpack.c.b16 %v5497, %v5495
      %v5524 = vpack.c.b16 %v5500, %v5498
      %v5525 = vpack.c.b16 %v5501, %v5499
      %v5526 = vpack.c.b16 %v5504, %v5502
      %v5527 = vpack.c.b16 %v5505, %v5503
      %v5528 = vpack.c.b16 %v5508, %v5506
      %v5529 = vpack.c.b16 %v5509, %v5507
      %v5530 = vpack.c.b16 %v5512, %v5510
      %v5531 = vpack.c.b16 %v5513, %v5511
      %v5532 = vpack.c.b16 %v5516, %v5514
      %v5533 = vpack.c.b16 %v5517, %v5515
      %5550 = vmatpush.bf16.msra.mxu0 %v5532
      %5551 = vmatpush.bf16.msra.mxu0 %v5530
      %5552 = vmatpush.bf16.msra.mxu0 %v5528
      %5553 = vmatpush.bf16.msra.mxu0 %v5526
      %5554 = vmatpush.bf16.msra.mxu0 %v5524
      %5555 = vmatpush.bf16.msra.mxu0 %v5522
      %5556 = vmatpush.bf16.msra.mxu0 %v5520
      %5557 = vmatpush.bf16.msra.mxu0 %v5518
      %5558 = vmatmul.bf16.gmra.mxu0 %v5358
      %v5559 = vpop.f32.mrf.mxu0
      %v5560 = vadd.f32 0.0, %v5559
      %v5561 = vpop.f32.mrf.mxu0
      %v5562 = vadd.f32 0.0, %v5561
      %5563 = vmatmul.bf16.gmra.mxu0 %v5367
      %v5564 = vpop.f32.mrf.mxu0
      %v5565 = vadd.f32 0.0, %v5564
      %v5566 = vpop.f32.mrf.mxu0
      %v5567 = vadd.f32 0.0, %v5566
      %5568 = vmatmul.bf16.gmra.mxu0 %v5376
      %v5569 = vpop.f32.mrf.mxu0
      %v5570 = vadd.f32 0.0, %v5569
      %v5571 = vpop.f32.mrf.mxu0
      %v5572 = vadd.f32 0.0, %v5571
      %5573 = vmatmul.bf16.gmra.mxu0 %v5385
      %v5574 = vpop.f32.mrf.mxu0
      %v5575 = vadd.f32 0.0, %v5574
      %v5576 = vpop.f32.mrf.mxu0
      %v5577 = vadd.f32 0.0, %v5576
      %5578 = vmatmul.bf16.gmra.mxu0 %v5394
      %v5579 = vpop.f32.mrf.mxu0
      %v5580 = vadd.f32 0.0, %v5579
      %v5581 = vpop.f32.mrf.mxu0
      %v5582 = vadd.f32 0.0, %v5581
      %5583 = vmatmul.bf16.gmra.mxu0 %v5403
      %v5584 = vpop.f32.mrf.mxu0
      %v5585 = vadd.f32 0.0, %v5584
      %v5586 = vpop.f32.mrf.mxu0
      %v5587 = vadd.f32 0.0, %v5586
      %5588 = vmatmul.bf16.gmra.mxu0 %v5412
      %v5589 = vpop.f32.mrf.mxu0
      %v5590 = vadd.f32 0.0, %v5589
      %v5591 = vpop.f32.mrf.mxu0
      %v5592 = vadd.f32 0.0, %v5591
      %5593 = vmatmul.bf16.gmra.mxu0 %v5421
      %v5594 = vpop.f32.mrf.mxu0
      %v5595 = vadd.f32 0.0, %v5594
      %v5596 = vpop.f32.mrf.mxu0
      %v5597 = vadd.f32 0.0, %v5596
      %5598 = vmatmul.bf16.gmra.mxu0 %v5430
      %v5599 = vpop.f32.mrf.mxu0
      %v5600 = vadd.f32 0.0, %v5599
      %v5601 = vpop.f32.mrf.mxu0
      %v5602 = vadd.f32 0.0, %v5601
      %5603 = vmatmul.bf16.gmra.mxu0 %v5439
      %v5604 = vpop.f32.mrf.mxu0
      %v5605 = vadd.f32 0.0, %v5604
      %v5606 = vpop.f32.mrf.mxu0
      %v5607 = vadd.f32 0.0, %v5606
      %5608 = vmatmul.bf16.gmra.mxu0 %v5453
      %v5609 = vpop.f32.mrf.mxu0
      %v5610 = vadd.f32 0.0, %v5609
      %v5611 = vpop.f32.mrf.mxu0
      %v5612 = vadd.f32 0.0, %v5611
      %5613 = vmatmul.bf16.gmra.mxu0 %v5457
      %v5614 = vpop.f32.mrf.mxu0
      %v5615 = vadd.f32 0.0, %v5614
      %v5616 = vpop.f32.mrf.mxu0
      %5617 = vdwg.mxu0
      %5618 = vmatpush.bf16.msra.mxu0 %v5533
      %5619 = vmatpush.bf16.msra.mxu0 %v5531
      %5620 = vmatpush.bf16.msra.mxu0 %v5529
      %5621 = vmatpush.bf16.msra.mxu0 %v5527
      %5622 = vmatpush.bf16.msra.mxu0 %v5525
      %5623 = vmatpush.bf16.msra.mxu0 %v5523
      %5624 = vmatpush.bf16.msra.mxu0 %v5521
      %5625 = vmatpush.bf16.msra.mxu0 %v5519
      %5626 = vmatmul.bf16.gmra.mxu0 %v5358
      %v5627 = vpop.f32.mrf.mxu0
      %v5628 = vadd.f32 0.0, %v5627
      %v5629 = vpop.f32.mrf.mxu0
      %v5630 = vadd.f32 0.0, %v5629
      %5631 = vmatmul.bf16.gmra.mxu0 %v5367
      %v5632 = vpop.f32.mrf.mxu0
      %v5633 = vadd.f32 0.0, %v5632
      %v5634 = vpop.f32.mrf.mxu0
      %v5635 = vadd.f32 0.0, %v5634
      %5636 = vmatmul.bf16.gmra.mxu0 %v5376
      %v5637 = vpop.f32.mrf.mxu0
      %v5638 = vadd.f32 0.0, %v5637
      %v5639 = vpop.f32.mrf.mxu0
      %v5640 = vadd.f32 0.0, %v5639
      %5641 = vmatmul.bf16.gmra.mxu0 %v5385
      %v5642 = vpop.f32.mrf.mxu0
      %v5643 = vadd.f32 0.0, %v5642
      %v5644 = vpop.f32.mrf.mxu0
      %v5645 = vadd.f32 0.0, %v5644
      %5646 = vmatmul.bf16.gmra.mxu0 %v5394
      %v5647 = vpop.f32.mrf.mxu0
      %v5648 = vadd.f32 0.0, %v5647
      %v5649 = vpop.f32.mrf.mxu0
      %v5650 = vadd.f32 0.0, %v5649
      %5651 = vmatmul.bf16.gmra.mxu0 %v5403
      %v5652 = vpop.f32.mrf.mxu0
      %v5653 = vadd.f32 0.0, %v5652
      %v5654 = vpop.f32.mrf.mxu0
      %v5655 = vadd.f32 0.0, %v5654
      %5656 = vmatmul.bf16.gmra.mxu0 %v5412
      %v5657 = vpop.f32.mrf.mxu0
      %v5658 = vadd.f32 0.0, %v5657
      %v5659 = vpop.f32.mrf.mxu0
      %v5660 = vadd.f32 0.0, %v5659
      %5661 = vmatmul.bf16.gmra.mxu0 %v5421
      %v5662 = vpop.f32.mrf.mxu0
      %v5663 = vadd.f32 0.0, %v5662
      %v5664 = vpop.f32.mrf.mxu0
      %v5665 = vadd.f32 0.0, %v5664
      %5666 = vmatmul.bf16.gmra.mxu0 %v5430
      %v5667 = vpop.f32.mrf.mxu0
      %v5668 = vadd.f32 0.0, %v5667
      %v5669 = vpop.f32.mrf.mxu0
      %v5670 = vadd.f32 0.0, %v5669
      %5671 = vmatmul.bf16.gmra.mxu0 %v5439
      %v5672 = vpop.f32.mrf.mxu0
      %v5673 = vadd.f32 0.0, %v5672
      %v5674 = vpop.f32.mrf.mxu0
      %v5675 = vadd.f32 0.0, %v5674
      %5676 = vmatmul.bf16.gmra.mxu0 %v5453
      %v5677 = vpop.f32.mrf.mxu0
      %v5678 = vadd.f32 0.0, %v5677
      %v5679 = vpop.f32.mrf.mxu0
      %v5680 = vadd.f32 0.0, %v5679
      %5681 = vmatmul.bf16.gmra.mxu0 %v5457
      %v5682 = vpop.f32.mrf.mxu0
      %v5683 = vadd.f32 0.0, %v5682
      %v5684 = vpop.f32.mrf.mxu0
      %5685 = vdwg.mxu0
      %v5686 = vadd.f32 %v5247, %v5560
      %v5687 = vadd.f32 %v5248, %v5628
      %v5688 = vadd.f32 %v5249, %v5562
      %v5689 = vadd.f32 %v5250, %v5630
      %v5690 = vadd.f32 %v5251, %v5565
      %v5691 = vadd.f32 %v5252, %v5633
      %v5692 = vadd.f32 %v5253, %v5567
      %v5693 = vadd.f32 %v5254, %v5635
      %v5694 = vadd.f32 %v5255, %v5570
      %v5695 = vadd.f32 %v5256, %v5638
      %v5696 = vadd.f32 %v5257, %v5572
      %v5697 = vadd.f32 %v5258, %v5640
      %v5698 = vadd.f32 %v5259, %v5575
      %v5699 = vadd.f32 %v5260, %v5643
      %v5700 = vadd.f32 %v5261, %v5577
      %v5701 = vadd.f32 %v5262, %v5645
      %v5702 = vadd.f32 %v5263, %v5580
      %v5703 = vadd.f32 %v5264, %v5648
      %v5704 = vadd.f32 %v5265, %v5582
      %v5705 = vadd.f32 %v5266, %v5650
      %v5706 = vadd.f32 %v5267, %v5585
      %v5707 = vadd.f32 %v5268, %v5653
      %v5708 = vadd.f32 %v5269, %v5587
      %v5709 = vadd.f32 %v5270, %v5655
      %v5710 = vadd.f32 %v5271, %v5590
      %v5711 = vadd.f32 %v5272, %v5658
      %v5712 = vadd.f32 %v5273, %v5592
      %v5713 = vadd.f32 %v5274, %v5660
      %v5714 = vadd.f32 %v5275, %v5595
      %v5715 = vadd.f32 %v5276, %v5663
      %v5716 = vadd.f32 %v5277, %v5597
      %v5717 = vadd.f32 %v5278, %v5665
      %v5718 = vadd.f32 %v5279, %v5600
      %v5719 = vadd.f32 %v5280, %v5668
      %v5720 = vadd.f32 %v5281, %v5602
      %v5721 = vadd.f32 %v5282, %v5670
      %v5722 = vadd.f32 %v5283, %v5605
      %v5723 = vadd.f32 %v5284, %v5673
      %v5724 = vadd.f32 %v5285, %v5607
      %v5725 = vadd.f32 %v5286, %v5675
      %v5726 = vadd.f32 %v5287, %v5610
      %v5727 = vadd.f32 %v5288, %v5678
      %v5728 = vadd.f32 %v5289, %v5612
      %v5729 = vadd.f32 %v5290, %v5680
      %v5730 = vadd.f32 %v5291, %v5615
      %v5731 = vadd.f32 %v5292, %v5683
      %v5732 = vsel %vm1512, %v1447, %v5298
      %v5734 = vrot.slane %v5732, 1
      %v5735 = vshrl.u32 %v5301, 16
      %v5737 = vrot.slane %v5735, 7
      %v5738 = vrot.slane %v5737, 1
      %v5739 = vshll.u32 %v5304, 16
      %v5741 = vsel %vm1842, %v5738, %v5739
      %v5742 = vshrl.u32 %v5304, 16
      %v5744 = vrot.slane %v5742, 7
      %v5745 = vrot.slane %v5744, 1
      %v5746 = vshll.u32 %v5307, 16
      %v5748 = vsel %vm1842, %v5745, %v5746
      %v5749 = vshrl.u32 %v5307, 16
      %v5751 = vrot.slane %v5749, 7
      %v5752 = vrot.slane %v5751, 1
      %v5753 = vshll.u32 %v5310, 16
      %v5755 = vsel %vm1842, %v5752, %v5753
      %v5756 = vshrl.u32 %v5310, 16
      %v5758 = vrot.slane %v5756, 7
      %v5759 = vrot.slane %v5758, 1
      %v5760 = vshll.u32 %v5313, 16
      %v5762 = vsel %vm1842, %v5759, %v5760
      %v5763 = vshrl.u32 %v5313, 16
      %v5765 = vrot.slane %v5763, 7
      %v5766 = vrot.slane %v5765, 1
      %v5767 = vshll.u32 %v5316, 16
      %v5769 = vsel %vm1842, %v5766, %v5767
      %v5770 = vshrl.u32 %v5316, 16
      %v5772 = vrot.slane %v5770, 7
      %v5773 = vrot.slane %v5772, 1
      %v5774 = vshll.u32 %v5319, 16
      %v5776 = vsel %vm1842, %v5773, %v5774
      %v5777 = vshrl.u32 %v5319, 16
      %v5779 = vrot.slane %v5777, 7
      %v5780 = vrot.slane %v5779, 1
      %v5781 = vshll.u32 %v5322, 16
      %v5783 = vsel %vm1842, %v5780, %v5781
      %v5784 = vshrl.u32 %v5322, 16
      %v5786 = vrot.slane %v5784, 7
      %v5787 = vrot.slane %v5786, 1
      %v5788 = vshll.u32 %v5325, 16
      %v5790 = vsel %vm1842, %v5787, %v5788
      %v5791 = vshrl.u32 %v5325, 16
      %v5793 = vrot.slane %v5791, 7
      %v5794 = vrot.slane %v5793, 1
      %v5796 = vshll.u32 %v5734, 16
      %v5798 = vsel %vm1842, %v5794, %v5796
      %s5799 = scalar_lea.vmem %s3, 896
      %v5800 = vld [vmem:[%s5799] sm:$0xff]
      %v5801 = vld [vmem:[%s5799 + $0x8] sm:$0xff]
      %v5802 = vld [vmem:[%s5799 + $0x10] sm:$0xff]
      %v5803 = vld [vmem:[%s5799 + $0x18] sm:$0xff]
      %v5804 = vld [vmem:[%s5799 + $0x20] sm:$0xff]
      %v5805 = vld [vmem:[%s5799 + $0x28] sm:$0xff]
      %v5806 = vld [vmem:[%s5799 + $0x30] sm:$0xff]
      %v5807 = vld [vmem:[%s5799 + $0x38] sm:$0xff]
      %v5808 = vld [vmem:[%s5799 + $0x40] sm:$0xff]
      %v5809 = vld [vmem:[%s5799 + $0x48] sm:$0xff]
      %v5810 = vld [vmem:[%s5799 + $0x50] sm:$0xff]
      %v5811 = vld [vmem:[%s5799 + $0x58] sm:$0xff]
      %v5812 = vld [vmem:[%s5799 + $0x60] sm:$0xff]
      %v5813 = vld [vmem:[%s5799 + $0x68] sm:$0xff]
      %v5814 = vld [vmem:[%s5799 + $0x70] sm:$0xff]
      %v5815 = vld [vmem:[%s5799 + $0x78] sm:$0xff]
      %5816 = vst [vmem:[#allocation1] ss:$9 sm:$0xff] %v1990
      %s5817 = scalar_lea.vmem [#allocation1], 1
      %5818 = vst [vmem:[%s5817] ss:$9 sm:$0xff] %v1998
      %s5819 = scalar_lea.vmem [#allocation1], 2
      %5820 = vst [vmem:[%s5819] ss:$9 sm:$0xff] %v2006
      %s5821 = scalar_lea.vmem [#allocation1], 3
      %5822 = vst [vmem:[%s5821] ss:$9 sm:$0xff] %v2013
      %s5823 = scalar_lea.vmem [#allocation1], 4
      %5824 = vst [vmem:[%s5823] ss:$9 sm:$0xff] %v2021
      %s5825 = scalar_lea.vmem [#allocation1], 5
      %5826 = vst [vmem:[%s5825] ss:$9 sm:$0xff] %v2029
      %s5827 = scalar_lea.vmem [#allocation1], 6
      %5828 = vst [vmem:[%s5827] ss:$9 sm:$0xff] %v2037
      %s5829 = scalar_lea.vmem [#allocation1], 7
      %5830 = vst [vmem:[%s5829] ss:$9 sm:$0xff] %v2044
      %v5831 = vld [vmem:[#allocation1] sm:$0xff]
      %5832 = vst [vmem:[#allocation1] ss:$9 sm:$0xff] %v2052
      %5833 = vst [vmem:[%s5817] ss:$9 sm:$0xff] %v2060
      %5834 = vst [vmem:[%s5819] ss:$9 sm:$0xff] %v2068
      %5835 = vst [vmem:[%s5821] ss:$9 sm:$0xff] %v2076
      %5836 = vst [vmem:[%s5823] ss:$9 sm:$0xff] %v2083
      %5837 = vst [vmem:[%s5825] ss:$9 sm:$0xff] %v2091
      %5838 = vst [vmem:[%s5827] ss:$9 sm:$0xff] %v2099
      %5839 = vst [vmem:[%s5829] ss:$9 sm:$0xff] %v2107
      %v5840 = vld [vmem:[#allocation1] sm:$0xff]
      %5841 = vst [vmem:[#allocation1] ss:$9 sm:$0xff] %v2114
      %5842 = vst [vmem:[%s5817] ss:$9 sm:$0xff] %v2122
      %5843 = vst [vmem:[%s5819] ss:$9 sm:$0xff] %v2130
      %5844 = vst [vmem:[%s5821] ss:$9 sm:$0xff] %v2138
      %5845 = vst [vmem:[%s5823] ss:$9 sm:$0xff] %v2146
      %5846 = vst [vmem:[%s5825] ss:$9 sm:$0xff] %v2153
      %5847 = vst [vmem:[%s5827] ss:$9 sm:$0xff] %v2161
      %5848 = vst [vmem:[%s5829] ss:$9 sm:$0xff] %v2169
      %v5849 = vld [vmem:[#allocation1] sm:$0xff]
      %5850 = vst [vmem:[#allocation1] ss:$9 sm:$0xff] %v2177
      %5851 = vst [vmem:[%s5817] ss:$9 sm:$0xff] %v2184
      %5852 = vst [vmem:[%s5819] ss:$9 sm:$0xff] %v2192
      %5853 = vst [vmem:[%s5821] ss:$9 sm:$0xff] %v2200
      %5854 = vst [vmem:[%s5823] ss:$9 sm:$0xff] %v2208
      %5855 = vst [vmem:[%s5825] ss:$9 sm:$0xff] %v2216
      %5856 = vst [vmem:[%s5827] ss:$9 sm:$0xff] %v2223
      %5857 = vst [vmem:[%s5829] ss:$9 sm:$0xff] %v2231
      %v5858 = vld [vmem:[#allocation1] sm:$0xff]
      %5859 = vst [vmem:[#allocation1] ss:$9 sm:$0xff] %v2239
      %5860 = vst [vmem:[%s5817] ss:$9 sm:$0xff] %v2247
      %5861 = vst [vmem:[%s5819] ss:$9 sm:$0xff] %v2254
      %5862 = vst [vmem:[%s5821] ss:$9 sm:$0xff] %v2262
      %5863 = vst [vmem:[%s5823] ss:$9 sm:$0xff] %v2270
      %5864 = vst [vmem:[%s5825] ss:$9 sm:$0xff] %v2278
      %5865 = vst [vmem:[%s5827] ss:$9 sm:$0xff] %v2286
      %5866 = vst [vmem:[%s5829] ss:$9 sm:$0xff] %v2293
      %v5867 = vld [vmem:[#allocation1] sm:$0xff]
      %5868 = vst [vmem:[#allocation1] ss:$9 sm:$0xff] %v2301
      %5869 = vst [vmem:[%s5817] ss:$9 sm:$0xff] %v2309
      %5870 = vst [vmem:[%s5819] ss:$9 sm:$0xff] %v2317
      %5871 = vst [vmem:[%s5821] ss:$9 sm:$0xff] %v2324
      %5872 = vst [vmem:[%s5823] ss:$9 sm:$0xff] %v2332
      %5873 = vst [vmem:[%s5825] ss:$9 sm:$0xff] %v2340
      %5874 = vst [vmem:[%s5827] ss:$9 sm:$0xff] %v2348
      %5875 = vst [vmem:[%s5829] ss:$9 sm:$0xff] %v2356
      %v5876 = vld [vmem:[#allocation1] sm:$0xff]
      %5877 = vst [vmem:[#allocation1] ss:$9 sm:$0xff] %v2363
      %5878 = vst [vmem:[%s5817] ss:$9 sm:$0xff] %v2371
      %5879 = vst [vmem:[%s5819] ss:$9 sm:$0xff] %v2379
      %5880 = vst [vmem:[%s5821] ss:$9 sm:$0xff] %v2387
      %5881 = vst [vmem:[%s5823] ss:$9 sm:$0xff] %v2394
      %5882 = vst [vmem:[%s5825] ss:$9 sm:$0xff] %v2402
      %5883 = vst [vmem:[%s5827] ss:$9 sm:$0xff] %v2410
      %5884 = vst [vmem:[%s5829] ss:$9 sm:$0xff] %v2418
      %v5885 = vld [vmem:[#allocation1] sm:$0xff]
      %5886 = vst [vmem:[#allocation1] ss:$9 sm:$0xff] %v2426
      %5887 = vst [vmem:[%s5817] ss:$9 sm:$0xff] %v2433
      %5888 = vst [vmem:[%s5819] ss:$9 sm:$0xff] %v2441
      %5889 = vst [vmem:[%s5821] ss:$9 sm:$0xff] %v2449
      %5890 = vst [vmem:[%s5823] ss:$9 sm:$0xff] %v2457
      %5891 = vst [vmem:[%s5825] ss:$9 sm:$0xff] %v2464
      %5892 = vst [vmem:[%s5827] ss:$9 sm:$0xff] %v2472
      %5893 = vst [vmem:[%s5829] ss:$9 sm:$0xff] %v2480
      %v5894 = vld [vmem:[#allocation1] sm:$0xff]
      %5895 = vst [vmem:[#allocation1] ss:$9 sm:$0xff] %v2488
      %5896 = vst [vmem:[%s5817] ss:$9 sm:$0xff] %v2496
      %5897 = vst [vmem:[%s5819] ss:$9 sm:$0xff] %v2503
      %5898 = vst [vmem:[%s5821] ss:$9 sm:$0xff] %v2511
      %5899 = vst [vmem:[%s5823] ss:$9 sm:$0xff] %v2519
      %5900 = vst [vmem:[%s5825] ss:$9 sm:$0xff] %v2527
      %5901 = vst [vmem:[%s5827] ss:$9 sm:$0xff] %v2534
      %5902 = vst [vmem:[%s5829] ss:$9 sm:$0xff] %v2542
      %v5903 = vld [vmem:[#allocation1] sm:$0xff]
      %5904 = vst [vmem:[#allocation1] ss:$9 sm:$0xff] %v4299
      %5905 = vst [vmem:[%s5817] ss:$9 sm:$0xff] %v4306
      %5906 = vst [vmem:[%s5819] ss:$9 sm:$0xff] %v4313
      %5907 = vst [vmem:[%s5821] ss:$9 sm:$0xff] %v4320
      %5908 = vst [vmem:[%s5823] ss:$9 sm:$0xff] %v4327
      %5909 = vst [vmem:[%s5825] ss:$9 sm:$0xff] %v4334
      %5910 = vst [vmem:[%s5827] ss:$9 sm:$0xff] %v4341
      %5911 = vst [vmem:[%s5829] ss:$9 sm:$0xff] %v4348
      %v5912 = vld [vmem:[#allocation1] sm:$0xff]
      %5913 = vst [vmem:[#allocation1] ss:$9 sm:$0xff] %v4356
      %5915 = vst [vmem:[%s5817] ss:$9 sm:$0xff] %v5741
      %5917 = vst [vmem:[%s5819] ss:$9 sm:$0xff] %v5748
      %5919 = vst [vmem:[%s5821] ss:$9 sm:$0xff] %v5755
      %5921 = vst [vmem:[%s5823] ss:$9 sm:$0xff] %v5762
      %5923 = vst [vmem:[%s5825] ss:$9 sm:$0xff] %v5769
      %5925 = vst [vmem:[%s5827] ss:$9 sm:$0xff] %v5776
      %5927 = vst [vmem:[%s5829] ss:$9 sm:$0xff] %v5783
      %v5928 = vld [vmem:[#allocation1] sm:$0xff]
      %5930 = vst [vmem:[#allocation1] ss:$9 sm:$0xff] %v5790
      %5932 = vst [vmem:[%s5817] ss:$9 sm:$0xff] %v5798
      %v5933 = vld [vmem:[#allocation1] sm:$0xff]
      %v5962 = vunpack.c.l.b16 %v5800
      %v5963 = vunpack.c.h.b16 %v5800
      %v5964 = vunpack.c.l.b16 %v5801
      %v5965 = vunpack.c.h.b16 %v5801
      %v5966 = vunpack.c.l.b16 %v5802
      %v5967 = vunpack.c.h.b16 %v5802
      %v5968 = vunpack.c.l.b16 %v5803
      %v5969 = vunpack.c.h.b16 %v5803
      %v5970 = vunpack.c.l.b16 %v5804
      %v5971 = vunpack.c.h.b16 %v5804
      %v5972 = vunpack.c.l.b16 %v5805
      %v5973 = vunpack.c.h.b16 %v5805
      %v5974 = vunpack.c.l.b16 %v5806
      %v5975 = vunpack.c.h.b16 %v5806
      %v5976 = vunpack.c.l.b16 %v5807
      %v5977 = vunpack.c.h.b16 %v5807
      %v5978 = vunpack.c.l.b16 %v5808
      %v5979 = vunpack.c.h.b16 %v5808
      %v5980 = vunpack.c.l.b16 %v5809
      %v5981 = vunpack.c.h.b16 %v5809
      %v5982 = vunpack.c.l.b16 %v5810
      %v5983 = vunpack.c.h.b16 %v5810
      %v5984 = vunpack.c.l.b16 %v5811
      %v5985 = vunpack.c.h.b16 %v5811
      %v5986 = vunpack.c.l.b16 %v5812
      %v5987 = vunpack.c.h.b16 %v5812
      %v5988 = vunpack.c.l.b16 %v5813
      %v5989 = vunpack.c.h.b16 %v5813
      %v5990 = vunpack.c.l.b16 %v5814
      %v5991 = vunpack.c.h.b16 %v5814
      %v5992 = vunpack.c.l.b16 %v5815
      %v5993 = vunpack.c.h.b16 %v5815
      %v5994 = vpack.c.b16 %v5964, %v5962
      %v5995 = vpack.c.b16 %v5965, %v5963
      %v5996 = vpack.c.b16 %v5968, %v5966
      %v5997 = vpack.c.b16 %v5969, %v5967
      %v5998 = vpack.c.b16 %v5972, %v5970
      %v5999 = vpack.c.b16 %v5973, %v5971
      %v6000 = vpack.c.b16 %v5976, %v5974
      %v6001 = vpack.c.b16 %v5977, %v5975
      %v6002 = vpack.c.b16 %v5980, %v5978
      %v6003 = vpack.c.b16 %v5981, %v5979
      %v6004 = vpack.c.b16 %v5984, %v5982
      %v6005 = vpack.c.b16 %v5985, %v5983
      %v6006 = vpack.c.b16 %v5988, %v5986
      %v6007 = vpack.c.b16 %v5989, %v5987
      %v6008 = vpack.c.b16 %v5992, %v5990
      %v6009 = vpack.c.b16 %v5993, %v5991
      %6026 = vmatpush.bf16.msra.mxu0 %v6008
      %6027 = vmatpush.bf16.msra.mxu0 %v6006
      %6028 = vmatpush.bf16.msra.mxu0 %v6004
      %6029 = vmatpush.bf16.msra.mxu0 %v6002
      %6030 = vmatpush.bf16.msra.mxu0 %v6000
      %6031 = vmatpush.bf16.msra.mxu0 %v5998
      %6032 = vmatpush.bf16.msra.mxu0 %v5996
      %6033 = vmatpush.bf16.msra.mxu0 %v5994
      %6034 = vmatmul.bf16.gmra.mxu0 %v5831
      %v6035 = vpop.f32.mrf.mxu0
      %v6036 = vadd.f32 0.0, %v6035
      %v6037 = vpop.f32.mrf.mxu0
      %v6038 = vadd.f32 0.0, %v6037
      %6039 = vmatmul.bf16.gmra.mxu0 %v5840
      %v6040 = vpop.f32.mrf.mxu0
      %v6041 = vadd.f32 0.0, %v6040
      %v6042 = vpop.f32.mrf.mxu0
      %v6043 = vadd.f32 0.0, %v6042
      %6044 = vmatmul.bf16.gmra.mxu0 %v5849
      %v6045 = vpop.f32.mrf.mxu0
      %v6046 = vadd.f32 0.0, %v6045
      %v6047 = vpop.f32.mrf.mxu0
      %v6048 = vadd.f32 0.0, %v6047
      %6049 = vmatmul.bf16.gmra.mxu0 %v5858
      %v6050 = vpop.f32.mrf.mxu0
      %v6051 = vadd.f32 0.0, %v6050
      %v6052 = vpop.f32.mrf.mxu0
      %v6053 = vadd.f32 0.0, %v6052
      %6054 = vmatmul.bf16.gmra.mxu0 %v5867
      %v6055 = vpop.f32.mrf.mxu0
      %v6056 = vadd.f32 0.0, %v6055
      %v6057 = vpop.f32.mrf.mxu0
      %v6058 = vadd.f32 0.0, %v6057
      %6059 = vmatmul.bf16.gmra.mxu0 %v5876
      %v6060 = vpop.f32.mrf.mxu0
      %v6061 = vadd.f32 0.0, %v6060
      %v6062 = vpop.f32.mrf.mxu0
      %v6063 = vadd.f32 0.0, %v6062
      %6064 = vmatmul.bf16.gmra.mxu0 %v5885
      %v6065 = vpop.f32.mrf.mxu0
      %v6066 = vadd.f32 0.0, %v6065
      %v6067 = vpop.f32.mrf.mxu0
      %v6068 = vadd.f32 0.0, %v6067
      %6069 = vmatmul.bf16.gmra.mxu0 %v5894
      %v6070 = vpop.f32.mrf.mxu0
      %v6071 = vadd.f32 0.0, %v6070
      %v6072 = vpop.f32.mrf.mxu0
      %v6073 = vadd.f32 0.0, %v6072
      %6074 = vmatmul.bf16.gmra.mxu0 %v5903
      %v6075 = vpop.f32.mrf.mxu0
      %v6076 = vadd.f32 0.0, %v6075
      %v6077 = vpop.f32.mrf.mxu0
      %v6078 = vadd.f32 0.0, %v6077
      %6079 = vmatmul.bf16.gmra.mxu0 %v5912
      %v6080 = vpop.f32.mrf.mxu0
      %v6081 = vadd.f32 0.0, %v6080
      %v6082 = vpop.f32.mrf.mxu0
      %v6083 = vadd.f32 0.0, %v6082
      %6084 = vmatmul.bf16.gmra.mxu0 %v5928
      %v6085 = vpop.f32.mrf.mxu0
      %v6086 = vadd.f32 0.0, %v6085
      %v6087 = vpop.f32.mrf.mxu0
      %v6088 = vadd.f32 0.0, %v6087
      %6089 = vmatmul.bf16.gmra.mxu0 %v5933
      %v6090 = vpop.f32.mrf.mxu0
      %v6091 = vadd.f32 0.0, %v6090
      %v6092 = vpop.f32.mrf.mxu0
      %6093 = vdwg.mxu0
      %6094 = vmatpush.bf16.msra.mxu0 %v6009
      %6095 = vmatpush.bf16.msra.mxu0 %v6007
      %6096 = vmatpush.bf16.msra.mxu0 %v6005
      %6097 = vmatpush.bf16.msra.mxu0 %v6003
      %6098 = vmatpush.bf16.msra.mxu0 %v6001
      %6099 = vmatpush.bf16.msra.mxu0 %v5999
      %6100 = vmatpush.bf16.msra.mxu0 %v5997
      %6101 = vmatpush.bf16.msra.mxu0 %v5995
      %6102 = vmatmul.bf16.gmra.mxu0 %v5831
      %v6103 = vpop.f32.mrf.mxu0
      %v6104 = vadd.f32 0.0, %v6103
      %v6105 = vpop.f32.mrf.mxu0
      %v6106 = vadd.f32 0.0, %v6105
      %6107 = vmatmul.bf16.gmra.mxu0 %v5840
      %v6108 = vpop.f32.mrf.mxu0
      %v6109 = vadd.f32 0.0, %v6108
      %v6110 = vpop.f32.mrf.mxu0
      %v6111 = vadd.f32 0.0, %v6110
      %6112 = vmatmul.bf16.gmra.mxu0 %v5849
      %v6113 = vpop.f32.mrf.mxu0
      %v6114 = vadd.f32 0.0, %v6113
      %v6115 = vpop.f32.mrf.mxu0
      %v6116 = vadd.f32 0.0, %v6115
      %6117 = vmatmul.bf16.gmra.mxu0 %v5858
      %v6118 = vpop.f32.mrf.mxu0
      %v6119 = vadd.f32 0.0, %v6118
      %v6120 = vpop.f32.mrf.mxu0
      %v6121 = vadd.f32 0.0, %v6120
      %6122 = vmatmul.bf16.gmra.mxu0 %v5867
      %v6123 = vpop.f32.mrf.mxu0
      %v6124 = vadd.f32 0.0, %v6123
      %v6125 = vpop.f32.mrf.mxu0
      %v6126 = vadd.f32 0.0, %v6125
      %6127 = vmatmul.bf16.gmra.mxu0 %v5876
      %v6128 = vpop.f32.mrf.mxu0
      %v6129 = vadd.f32 0.0, %v6128
      %v6130 = vpop.f32.mrf.mxu0
      %v6131 = vadd.f32 0.0, %v6130
      %6132 = vmatmul.bf16.gmra.mxu0 %v5885
      %v6133 = vpop.f32.mrf.mxu0
      %v6134 = vadd.f32 0.0, %v6133
      %v6135 = vpop.f32.mrf.mxu0
      %v6136 = vadd.f32 0.0, %v6135
      %6137 = vmatmul.bf16.gmra.mxu0 %v5894
      %v6138 = vpop.f32.mrf.mxu0
      %v6139 = vadd.f32 0.0, %v6138
      %v6140 = vpop.f32.mrf.mxu0
      %v6141 = vadd.f32 0.0, %v6140
      %6142 = vmatmul.bf16.gmra.mxu0 %v5903
      %v6143 = vpop.f32.mrf.mxu0
      %v6144 = vadd.f32 0.0, %v6143
      %v6145 = vpop.f32.mrf.mxu0
      %v6146 = vadd.f32 0.0, %v6145
      %6147 = vmatmul.bf16.gmra.mxu0 %v5912
      %v6148 = vpop.f32.mrf.mxu0
      %v6149 = vadd.f32 0.0, %v6148
      %v6150 = vpop.f32.mrf.mxu0
      %v6151 = vadd.f32 0.0, %v6150
      %6152 = vmatmul.bf16.gmra.mxu0 %v5928
      %v6153 = vpop.f32.mrf.mxu0
      %v6154 = vadd.f32 0.0, %v6153
      %v6155 = vpop.f32.mrf.mxu0
      %v6156 = vadd.f32 0.0, %v6155
      %6157 = vmatmul.bf16.gmra.mxu0 %v5933
      %v6158 = vpop.f32.mrf.mxu0
      %v6159 = vadd.f32 0.0, %v6158
      %v6160 = vpop.f32.mrf.mxu0
      %6161 = vdwg.mxu0
      %v6162 = vadd.f32 %v5686, %v6036
      %v6163 = vadd.f32 %v5687, %v6104
      %v6164 = vadd.f32 %v5688, %v6038
      %v6165 = vadd.f32 %v5689, %v6106
      %v6166 = vadd.f32 %v5690, %v6041
      %v6167 = vadd.f32 %v5691, %v6109
      %v6168 = vadd.f32 %v5692, %v6043
      %v6169 = vadd.f32 %v5693, %v6111
      %v6170 = vadd.f32 %v5694, %v6046
      %v6171 = vadd.f32 %v5695, %v6114
      %v6172 = vadd.f32 %v5696, %v6048
      %v6173 = vadd.f32 %v5697, %v6116
      %v6174 = vadd.f32 %v5698, %v6051
      %v6175 = vadd.f32 %v5699, %v6119
      %v6176 = vadd.f32 %v5700, %v6053
      %v6177 = vadd.f32 %v5701, %v6121
      %v6178 = vadd.f32 %v5702, %v6056
      %v6179 = vadd.f32 %v5703, %v6124
      %v6180 = vadd.f32 %v5704, %v6058
      %v6181 = vadd.f32 %v5705, %v6126
      %v6182 = vadd.f32 %v5706, %v6061
      %v6183 = vadd.f32 %v5707, %v6129
      %v6184 = vadd.f32 %v5708, %v6063
      %v6185 = vadd.f32 %v5709, %v6131
      %v6186 = vadd.f32 %v5710, %v6066
      %v6187 = vadd.f32 %v5711, %v6134
      %v6188 = vadd.f32 %v5712, %v6068
      %v6189 = vadd.f32 %v5713, %v6136
      %v6190 = vadd.f32 %v5714, %v6071
      %v6191 = vadd.f32 %v5715, %v6139
      %v6192 = vadd.f32 %v5716, %v6073
      %v6193 = vadd.f32 %v5717, %v6141
      %v6194 = vadd.f32 %v5718, %v6076
      %v6195 = vadd.f32 %v5719, %v6144
      %v6196 = vadd.f32 %v5720, %v6078
      %v6197 = vadd.f32 %v5721, %v6146
      %v6198 = vadd.f32 %v5722, %v6081
      %v6199 = vadd.f32 %v5723, %v6149
      %v6200 = vadd.f32 %v5724, %v6083
      %v6201 = vadd.f32 %v5725, %v6151
      %v6202 = vadd.f32 %v5726, %v6086
      %v6203 = vadd.f32 %v5727, %v6154
      %v6204 = vadd.f32 %v5728, %v6088
      %v6205 = vadd.f32 %v5729, %v6156
      %v6206 = vadd.f32 %v5730, %v6091
      %v6207 = vadd.f32 %v5731, %v6159
      %6208 = vst [vmem:[#allocation1] sm:$0xff] %v1418
      %6209 = vst [vmem:[#allocation1 + $0x20] sm:$0xff] %v1419
      %s6210 = scalar_lea.vmem [#allocation1], 1
      %v6211 = vld [vmem:[%s6210] ss:$4 sm:$0xff]
      %s6212 = scalar_lea.vmem [#allocation1], 2
      %v6213 = vld [vmem:[%s6212] ss:$4 sm:$0xff]
      %s6214 = scalar_lea.vmem [#allocation1], 3
      %v6215 = vld [vmem:[%s6214] ss:$4 sm:$0xff]
      %s6216 = scalar_lea.vmem [#allocation1], 32
      %v6217 = vld [vmem:[%s6216] ss:$4 sm:$0xff]
      %s6218 = scalar_lea.vmem [#allocation1], 33
      %v6219 = vld [vmem:[%s6218] ss:$4 sm:$0xff]
      %s6220 = scalar_lea.vmem [#allocation1], 34
      %v6221 = vld [vmem:[%s6220] ss:$4 sm:$0xff]
      %s6222 = scalar_lea.vmem [#allocation1], 35
      %v6223 = vld [vmem:[%s6222] ss:$4 sm:$0xff]
      %6224 = vst [vmem:[#allocation1] sm:$0xff] %v1420
      %v6225 = vld [vmem:[#allocation1] ss:$4 sm:$0xff]
      %v6226 = vld [vmem:[%s6210] ss:$4 sm:$0xff]
      %6227 = vst [vmem:[#allocation1 + $0x20] sm:$0xff] %v1421
      %v6228 = vld [vmem:[%s6218] ss:$4 sm:$0xff]
      %v6229 = vld [vmem:[%s6220] ss:$4 sm:$0xff]
      %v6230 = vld [vmem:[%s6222] ss:$4 sm:$0xff]
      %6231 = vst [vmem:[#allocation1] sm:$0xff] %v1422
      %6232 = vst [vmem:[#allocation1 + $0x20] sm:$0xff] %v1423
      %v6233 = vld [vmem:[#allocation1] ss:$4 sm:$0xff]
      %v6234 = vld [vmem:[%s6210] ss:$4 sm:$0xff]
      %v6235 = vld [vmem:[%s6212] ss:$4 sm:$0xff]
      %v6236 = vld [vmem:[%s6214] ss:$4 sm:$0xff]
      %v6237 = vld [vmem:[%s6216] ss:$4 sm:$0xff]
      %v6238 = vld [vmem:[%s6218] ss:$4 sm:$0xff]
      %6239 = vst [vmem:[#allocation1] sm:$0xff] %v1424
      %6240 = vst [vmem:[#allocation1 + $0x20] sm:$0xff] %v1425
      %v6241 = vld [vmem:[%s6210] ss:$4 sm:$0xff]
      %v6242 = vld [vmem:[%s6212] ss:$4 sm:$0xff]
      %v6243 = vld [vmem:[%s6214] ss:$4 sm:$0xff]
      %v6244 = vld [vmem:[%s6216] ss:$4 sm:$0xff]
      %v6245 = vld [vmem:[%s6218] ss:$4 sm:$0xff]
      %v6246 = vld [vmem:[%s6220] ss:$4 sm:$0xff]
      %v6247 = vld [vmem:[%s6222] ss:$4 sm:$0xff]
      %6248 = vst [vmem:[#allocation1] sm:$0xff] %v1426
      %v6249 = vld [vmem:[#allocation1] ss:$4 sm:$0xff]
      %v6250 = vld [vmem:[%s6210] ss:$4 sm:$0xff]
      %6251 = vst [vmem:[#allocation1 + $0x20] sm:$0xff] %v1427
      %v6252 = vld [vmem:[%s6218] ss:$4 sm:$0xff]
      %v6253 = vld [vmem:[%s6220] ss:$4 sm:$0xff]
      %v6254 = vld [vmem:[%s6222] ss:$4 sm:$0xff]
      %6255 = vst [vmem:[#allocation1] sm:$0xff] %v1428
      %6256 = vst [vmem:[#allocation1 + $0x20] sm:$0xff] %v1429
      %v6257 = vld [vmem:[#allocation1] ss:$4 sm:$0xff]
      %v6258 = vld [vmem:[%s6210] ss:$4 sm:$0xff]
      %v6259 = vld [vmem:[%s6212] ss:$4 sm:$0xff]
      %v6260 = vld [vmem:[%s6214] ss:$4 sm:$0xff]
      %v6261 = vld [vmem:[%s6216] ss:$4 sm:$0xff]
      %v6262 = vld [vmem:[%s6218] ss:$4 sm:$0xff]
      %6263 = vst [vmem:[#allocation1] sm:$0xff] %v1430
      %6264 = vst [vmem:[#allocation1 + $0x20] sm:$0xff] %v1431
      %v6265 = vld [vmem:[%s6210] ss:$4 sm:$0xff]
      %v6266 = vld [vmem:[%s6212] ss:$4 sm:$0xff]
      %v6267 = vld [vmem:[%s6214] ss:$4 sm:$0xff]
      %v6268 = vld [vmem:[%s6216] ss:$4 sm:$0xff]
      %v6269 = vld [vmem:[%s6218] ss:$4 sm:$0xff]
      %v6270 = vld [vmem:[%s6220] ss:$4 sm:$0xff]
      %v6271 = vld [vmem:[%s6222] ss:$4 sm:$0xff]
      %6272 = vst [vmem:[#allocation1] sm:$0xff] %v1432
      %v6273 = vld [vmem:[#allocation1] ss:$4 sm:$0xff]
      %v6274 = vld [vmem:[%s6210] ss:$4 sm:$0xff]
      %6275 = vst [vmem:[#allocation1 + $0x20] sm:$0xff] %v1433
      %v6276 = vld [vmem:[%s6218] ss:$4 sm:$0xff]
      %v6277 = vld [vmem:[%s6220] ss:$4 sm:$0xff]
      %v6278 = vld [vmem:[%s6222] ss:$4 sm:$0xff]
      %6279 = vst [vmem:[#allocation1] sm:$0xff] %v1434
      %6280 = vst [vmem:[#allocation1 + $0x20] sm:$0xff] %v1435
      %v6281 = vld [vmem:[#allocation1] ss:$4 sm:$0xff]
      %v6282 = vld [vmem:[%s6210] ss:$4 sm:$0xff]
      %v6283 = vld [vmem:[%s6212] ss:$4 sm:$0xff]
      %v6284 = vld [vmem:[%s6214] ss:$4 sm:$0xff]
      %v6285 = vld [vmem:[%s6216] ss:$4 sm:$0xff]
      %v6286 = vld [vmem:[%s6218] ss:$4 sm:$0xff]
      %6287 = vst [vmem:[#allocation1] sm:$0xff] %v1436
      %6288 = vst [vmem:[#allocation1 + $0x20] sm:$0xff] %v1437
      %v6289 = vld [vmem:[%s6210] ss:$4 sm:$0xff]
      %v6290 = vld [vmem:[%s6212] ss:$4 sm:$0xff]
      %v6291 = vld [vmem:[%s6214] ss:$4 sm:$0xff]
      %v6292 = vld [vmem:[%s6216] ss:$4 sm:$0xff]
      %v6293 = vld [vmem:[%s6218] ss:$4 sm:$0xff]
      %v6294 = vld [vmem:[%s6220] ss:$4 sm:$0xff]
      %v6295 = vld [vmem:[%s6222] ss:$4 sm:$0xff]
      %6296 = vst [vmem:[#allocation1] sm:$0xff] %v1438
      %v6297 = vld [vmem:[#allocation1] ss:$4 sm:$0xff]
      %v6298 = vld [vmem:[%s6210] ss:$4 sm:$0xff]
      %6299 = vst [vmem:[#allocation1 + $0x20] sm:$0xff] %v1439
      %v6300 = vld [vmem:[%s6218] ss:$4 sm:$0xff]
      %v6301 = vld [vmem:[%s6220] ss:$4 sm:$0xff]
      %v6302 = vld [vmem:[%s6222] ss:$4 sm:$0xff]
      %6303 = vst [vmem:[#allocation1] sm:$0xff] %v1440
      %6304 = vst [vmem:[#allocation1 + $0x20] sm:$0xff] %v1441
      %v6305 = vld [vmem:[#allocation1] ss:$4 sm:$0xff]
      %v6306 = vld [vmem:[%s6210] ss:$4 sm:$0xff]
      %v6307 = vld [vmem:[%s6212] ss:$4 sm:$0xff]
      %v6308 = vld [vmem:[%s6214] ss:$4 sm:$0xff]
      %v6309 = vld [vmem:[%s6216] ss:$4 sm:$0xff]
      %v6310 = vld [vmem:[%s6218] ss:$4 sm:$0xff]
      %6311 = vst [vmem:[#allocation1] sm:$0xff] %v1442
      %6312 = vst [vmem:[#allocation1 + $0x20] sm:$0xff] %v1443
      %v6313 = vld [vmem:[%s6210] ss:$4 sm:$0xff]
      %v6314 = vld [vmem:[%s6212] ss:$4 sm:$0xff]
      %v6315 = vld [vmem:[%s6214] ss:$4 sm:$0xff]
      %v6316 = vld [vmem:[%s6216] ss:$4 sm:$0xff]
      %v6317 = vld [vmem:[%s6218] ss:$4 sm:$0xff]
      %v6318 = vld [vmem:[%s6220] ss:$4 sm:$0xff]
      %v6319 = vld [vmem:[%s6222] ss:$4 sm:$0xff]
      %6320 = vst [vmem:[#allocation1] sm:$0xff] %v1444
      %v6321 = vld [vmem:[#allocation1] ss:$4 sm:$0xff]
      %v6322 = vld [vmem:[%s6210] ss:$4 sm:$0xff]
      %6323 = vst [vmem:[#allocation1 + $0x20] sm:$0xff] %v1445
      %v6324 = vld [vmem:[%s6218] ss:$4 sm:$0xff]
      %v6325 = vld [vmem:[%s6220] ss:$4 sm:$0xff]
      %v6326 = vld [vmem:[%s6222] ss:$4 sm:$0xff]
      %6327 = vst [vmem:[#allocation1] sm:$0xff] %v1446
      %6328 = vst [vmem:[#allocation1 + $0x20] sm:$0xff] %v1447
      %v6329 = vld [vmem:[#allocation1] ss:$4 sm:$0xff]
      %v6330 = vld [vmem:[%s6210] ss:$4 sm:$0xff]
      %v6331 = vld [vmem:[%s6212] ss:$4 sm:$0xff]
      %v6332 = vld [vmem:[%s6214] ss:$4 sm:$0xff]
      %v6333 = vld [vmem:[%s6216] ss:$4 sm:$0xff]
      %v6334 = vld [vmem:[%s6218] ss:$4 sm:$0xff]
      %s6335 = scalar_lea.vmem %s3, 1024
      %v6336 = vld [vmem:[%s6335] sm:$0xff]
      %v6337 = vld [vmem:[%s6335 + $0x8] sm:$0xff]
      %v6338 = vld [vmem:[%s6335 + $0x10] sm:$0xff]
      %v6339 = vld [vmem:[%s6335 + $0x18] sm:$0xff]
      %v6340 = vld [vmem:[%s6335 + $0x20] sm:$0xff]
      %v6341 = vld [vmem:[%s6335 + $0x28] sm:$0xff]
      %v6342 = vld [vmem:[%s6335 + $0x30] sm:$0xff]
      %v6343 = vld [vmem:[%s6335 + $0x38] sm:$0xff]
      %v6344 = vld [vmem:[%s6335 + $0x40] sm:$0xff]
      %v6345 = vld [vmem:[%s6335 + $0x48] sm:$0xff]
      %v6346 = vld [vmem:[%s6335 + $0x50] sm:$0xff]
      %v6347 = vld [vmem:[%s6335 + $0x58] sm:$0xff]
      %v6348 = vld [vmem:[%s6335 + $0x60] sm:$0xff]
      %v6349 = vld [vmem:[%s6335 + $0x68] sm:$0xff]
      %v6350 = vld [vmem:[%s6335 + $0x70] sm:$0xff]
      %v6351 = vld [vmem:[%s6335 + $0x78] sm:$0xff]
      %6352 = vst [vmem:[#allocation1] ss:$9 sm:$0xff] %v6211
      %s6353 = scalar_lea.vmem [#allocation1], 1
      %6354 = vst [vmem:[%s6353] ss:$9 sm:$0xff] %v6213
      %s6355 = scalar_lea.vmem [#allocation1], 2
      %6356 = vst [vmem:[%s6355] ss:$9 sm:$0xff] %v6215
      %s6357 = scalar_lea.vmem [#allocation1], 3
      %6358 = vst [vmem:[%s6357] ss:$9 sm:$0xff] %v6217
      %s6359 = scalar_lea.vmem [#allocation1], 4
      %6360 = vst [vmem:[%s6359] ss:$9 sm:$0xff] %v6219
      %s6361 = scalar_lea.vmem [#allocation1], 5
      %6362 = vst [vmem:[%s6361] ss:$9 sm:$0xff] %v6221
      %s6363 = scalar_lea.vmem [#allocation1], 6
      %6364 = vst [vmem:[%s6363] ss:$9 sm:$0xff] %v6223
      %s6365 = scalar_lea.vmem [#allocation1], 7
      %6366 = vst [vmem:[%s6365] ss:$9 sm:$0xff] %v6225
      %v6367 = vld [vmem:[#allocation1] sm:$0xff]
      %6368 = vst [vmem:[#allocation1] ss:$9 sm:$0xff] %v6226
      %6369 = vst [vmem:[%s6353] ss:$9 sm:$0xff] %v6228
      %6370 = vst [vmem:[%s6355] ss:$9 sm:$0xff] %v6229
      %6371 = vst [vmem:[%s6357] ss:$9 sm:$0xff] %v6230
      %6372 = vst [vmem:[%s6359] ss:$9 sm:$0xff] %v6233
      %6373 = vst [vmem:[%s6361] ss:$9 sm:$0xff] %v6234
      %6374 = vst [vmem:[%s6363] ss:$9 sm:$0xff] %v6235
      %6375 = vst [vmem:[%s6365] ss:$9 sm:$0xff] %v6236
      %v6376 = vld [vmem:[#allocation1] sm:$0xff]
      %6377 = vst [vmem:[#allocation1] ss:$9 sm:$0xff] %v6237
      %6378 = vst [vmem:[%s6353] ss:$9 sm:$0xff] %v6238
      %6379 = vst [vmem:[%s6355] ss:$9 sm:$0xff] %v6241
      %6380 = vst [vmem:[%s6357] ss:$9 sm:$0xff] %v6242
      %6381 = vst [vmem:[%s6359] ss:$9 sm:$0xff] %v6243
      %6382 = vst [vmem:[%s6361] ss:$9 sm:$0xff] %v6244
      %6383 = vst [vmem:[%s6363] ss:$9 sm:$0xff] %v6245
      %6384 = vst [vmem:[%s6365] ss:$9 sm:$0xff] %v6246
      %v6385 = vld [vmem:[#allocation1] sm:$0xff]
      %6386 = vst [vmem:[#allocation1] ss:$9 sm:$0xff] %v6247
      %6387 = vst [vmem:[%s6353] ss:$9 sm:$0xff] %v6249
      %6388 = vst [vmem:[%s6355] ss:$9 sm:$0xff] %v6250
      %6389 = vst [vmem:[%s6357] ss:$9 sm:$0xff] %v6252
      %6390 = vst [vmem:[%s6359] ss:$9 sm:$0xff] %v6253
      %6391 = vst [vmem:[%s6361] ss:$9 sm:$0xff] %v6254
      %6392 = vst [vmem:[%s6363] ss:$9 sm:$0xff] %v6257
      %6393 = vst [vmem:[%s6365] ss:$9 sm:$0xff] %v6258
      %v6394 = vld [vmem:[#allocation1] sm:$0xff]
      %6395 = vst [vmem:[#allocation1] ss:$9 sm:$0xff] %v6259
      %6396 = vst [vmem:[%s6353] ss:$9 sm:$0xff] %v6260
      %6397 = vst [vmem:[%s6355] ss:$9 sm:$0xff] %v6261
      %6398 = vst [vmem:[%s6357] ss:$9 sm:$0xff] %v6262
      %6399 = vst [vmem:[%s6359] ss:$9 sm:$0xff] %v6265
      %6400 = vst [vmem:[%s6361] ss:$9 sm:$0xff] %v6266
      %6401 = vst [vmem:[%s6363] ss:$9 sm:$0xff] %v6267
      %6402 = vst [vmem:[%s6365] ss:$9 sm:$0xff] %v6268
      %v6403 = vld [vmem:[#allocation1] sm:$0xff]
      %6404 = vst [vmem:[#allocation1] ss:$9 sm:$0xff] %v6269
      %6405 = vst [vmem:[%s6353] ss:$9 sm:$0xff] %v6270
      %6406 = vst [vmem:[%s6355] ss:$9 sm:$0xff] %v6271
      %6407 = vst [vmem:[%s6357] ss:$9 sm:$0xff] %v6273
      %6408 = vst [vmem:[%s6359] ss:$9 sm:$0xff] %v6274
      %6409 = vst [vmem:[%s6361] ss:$9 sm:$0xff] %v6276
      %6410 = vst [vmem:[%s6363] ss:$9 sm:$0xff] %v6277
      %6411 = vst [vmem:[%s6365] ss:$9 sm:$0xff] %v6278
      %v6412 = vld [vmem:[#allocation1] sm:$0xff]
      %6413 = vst [vmem:[#allocation1] ss:$9 sm:$0xff] %v6281
      %6414 = vst [vmem:[%s6353] ss:$9 sm:$0xff] %v6282
      %6415 = vst [vmem:[%s6355] ss:$9 sm:$0xff] %v6283
      %6416 = vst [vmem:[%s6357] ss:$9 sm:$0xff] %v6284
      %6417 = vst [vmem:[%s6359] ss:$9 sm:$0xff] %v6285
      %6418 = vst [vmem:[%s6361] ss:$9 sm:$0xff] %v6286
      %6419 = vst [vmem:[%s6363] ss:$9 sm:$0xff] %v6289
      %6420 = vst [vmem:[%s6365] ss:$9 sm:$0xff] %v6290
      %v6421 = vld [vmem:[#allocation1] sm:$0xff]
      %6422 = vst [vmem:[#allocation1] ss:$9 sm:$0xff] %v6291
      %6423 = vst [vmem:[%s6353] ss:$9 sm:$0xff] %v6292
      %6424 = vst [vmem:[%s6355] ss:$9 sm:$0xff] %v6293
      %6425 = vst [vmem:[%s6357] ss:$9 sm:$0xff] %v6294
      %6426 = vst [vmem:[%s6359] ss:$9 sm:$0xff] %v6295
      %6427 = vst [vmem:[%s6361] ss:$9 sm:$0xff] %v6297
      %6428 = vst [vmem:[%s6363] ss:$9 sm:$0xff] %v6298
      %6429 = vst [vmem:[%s6365] ss:$9 sm:$0xff] %v6300
      %v6430 = vld [vmem:[#allocation1] sm:$0xff]
      %6431 = vst [vmem:[#allocation1] ss:$9 sm:$0xff] %v6301
      %6432 = vst [vmem:[%s6353] ss:$9 sm:$0xff] %v6302
      %6433 = vst [vmem:[%s6355] ss:$9 sm:$0xff] %v6305
      %6434 = vst [vmem:[%s6357] ss:$9 sm:$0xff] %v6306
      %6435 = vst [vmem:[%s6359] ss:$9 sm:$0xff] %v6307
      %6436 = vst [vmem:[%s6361] ss:$9 sm:$0xff] %v6308
      %6437 = vst [vmem:[%s6363] ss:$9 sm:$0xff] %v6309
      %6438 = vst [vmem:[%s6365] ss:$9 sm:$0xff] %v6310
      %v6439 = vld [vmem:[#allocation1] sm:$0xff]
      %6440 = vst [vmem:[#allocation1] ss:$9 sm:$0xff] %v6313
      %6441 = vst [vmem:[%s6353] ss:$9 sm:$0xff] %v6314
      %6442 = vst [vmem:[%s6355] ss:$9 sm:$0xff] %v6315
      %6443 = vst [vmem:[%s6357] ss:$9 sm:$0xff] %v6316
      %6444 = vst [vmem:[%s6359] ss:$9 sm:$0xff] %v6317
      %6445 = vst [vmem:[%s6361] ss:$9 sm:$0xff] %v6318
      %6446 = vst [vmem:[%s6363] ss:$9 sm:$0xff] %v6319
      %6447 = vst [vmem:[%s6365] ss:$9 sm:$0xff] %v6321
      %v6448 = vld [vmem:[#allocation1] sm:$0xff]
      %6449 = vst [vmem:[#allocation1] ss:$9 sm:$0xff] %v6322
      %6450 = vst [vmem:[%s6353] ss:$9 sm:$0xff] %v6324
      %6451 = vst [vmem:[%s6355] ss:$9 sm:$0xff] %v6325
      %6452 = vst [vmem:[%s6357] ss:$9 sm:$0xff] %v6326
      %6453 = vst [vmem:[%s6359] ss:$9 sm:$0xff] %v6329
      %6454 = vst [vmem:[%s6361] ss:$9 sm:$0xff] %v6330
      %6455 = vst [vmem:[%s6363] ss:$9 sm:$0xff] %v6331
      %6456 = vst [vmem:[%s6365] ss:$9 sm:$0xff] %v6332
      %v6457 = vld [vmem:[#allocation1] sm:$0xff]
      %6458 = vst [vmem:[#allocation1] ss:$9 sm:$0xff] %v6333
      %6459 = vst [vmem:[%s6353] ss:$9 sm:$0xff] %v6334
      %v6460 = vld [vmem:[#allocation1] sm:$0xff]
      %v6489 = vunpack.c.l.b16 %v6336
      %v6490 = vunpack.c.h.b16 %v6336
      %v6491 = vunpack.c.l.b16 %v6337
      %v6492 = vunpack.c.h.b16 %v6337
      %v6493 = vunpack.c.l.b16 %v6338
      %v6494 = vunpack.c.h.b16 %v6338
      %v6495 = vunpack.c.l.b16 %v6339
      %v6496 = vunpack.c.h.b16 %v6339
      %v6497 = vunpack.c.l.b16 %v6340
      %v6498 = vunpack.c.h.b16 %v6340
      %v6499 = vunpack.c.l.b16 %v6341
      %v6500 = vunpack.c.h.b16 %v6341
      %v6501 = vunpack.c.l.b16 %v6342
      %v6502 = vunpack.c.h.b16 %v6342
      %v6503 = vunpack.c.l.b16 %v6343
      %v6504 = vunpack.c.h.b16 %v6343
      %v6505 = vunpack.c.l.b16 %v6344
      %v6506 = vunpack.c.h.b16 %v6344
      %v6507 = vunpack.c.l.b16 %v6345
      %v6508 = vunpack.c.h.b16 %v6345
      %v6509 = vunpack.c.l.b16 %v6346
      %v6510 = vunpack.c.h.b16 %v6346
      %v6511 = vunpack.c.l.b16 %v6347
      %v6512 = vunpack.c.h.b16 %v6347
      %v6513 = vunpack.c.l.b16 %v6348
      %v6514 = vunpack.c.h.b16 %v6348
      %v6515 = vunpack.c.l.b16 %v6349
      %v6516 = vunpack.c.h.b16 %v6349
      %v6517 = vunpack.c.l.b16 %v6350
      %v6518 = vunpack.c.h.b16 %v6350
      %v6519 = vunpack.c.l.b16 %v6351
      %v6520 = vunpack.c.h.b16 %v6351
      %v6521 = vpack.c.b16 %v6491, %v6489
      %v6522 = vpack.c.b16 %v6492, %v6490
      %v6523 = vpack.c.b16 %v6495, %v6493
      %v6524 = vpack.c.b16 %v6496, %v6494
      %v6525 = vpack.c.b16 %v6499, %v6497
      %v6526 = vpack.c.b16 %v6500, %v6498
      %v6527 = vpack.c.b16 %v6503, %v6501
      %v6528 = vpack.c.b16 %v6504, %v6502
      %v6529 = vpack.c.b16 %v6507, %v6505
      %v6530 = vpack.c.b16 %v6508, %v6506
      %v6531 = vpack.c.b16 %v6511, %v6509
      %v6532 = vpack.c.b16 %v6512, %v6510
      %v6533 = vpack.c.b16 %v6515, %v6513
      %v6534 = vpack.c.b16 %v6516, %v6514
      %v6535 = vpack.c.b16 %v6519, %v6517
      %v6536 = vpack.c.b16 %v6520, %v6518
      %6553 = vmatpush.bf16.msra.mxu0 %v6535
      %6554 = vmatpush.bf16.msra.mxu0 %v6533
      %6555 = vmatpush.bf16.msra.mxu0 %v6531
      %6556 = vmatpush.bf16.msra.mxu0 %v6529
      %6557 = vmatpush.bf16.msra.mxu0 %v6527
      %6558 = vmatpush.bf16.msra.mxu0 %v6525
      %6559 = vmatpush.bf16.msra.mxu0 %v6523
      %6560 = vmatpush.bf16.msra.mxu0 %v6521
      %6561 = vmatmul.bf16.gmra.mxu0 %v6367
      %v6562 = vpop.f32.mrf.mxu0
      %v6563 = vadd.f32 0.0, %v6562
      %v6564 = vpop.f32.mrf.mxu0
      %v6565 = vadd.f32 0.0, %v6564
      %6566 = vmatmul.bf16.gmra.mxu0 %v6376
      %v6567 = vpop.f32.mrf.mxu0
      %v6568 = vadd.f32 0.0, %v6567
      %v6569 = vpop.f32.mrf.mxu0
      %v6570 = vadd.f32 0.0, %v6569
      %6571 = vmatmul.bf16.gmra.mxu0 %v6385
      %v6572 = vpop.f32.mrf.mxu0
      %v6573 = vadd.f32 0.0, %v6572
      %v6574 = vpop.f32.mrf.mxu0
      %v6575 = vadd.f32 0.0, %v6574
      %6576 = vmatmul.bf16.gmra.mxu0 %v6394
      %v6577 = vpop.f32.mrf.mxu0
      %v6578 = vadd.f32 0.0, %v6577
      %v6579 = vpop.f32.mrf.mxu0
      %v6580 = vadd.f32 0.0, %v6579
      %6581 = vmatmul.bf16.gmra.mxu0 %v6403
      %v6582 = vpop.f32.mrf.mxu0
      %v6583 = vadd.f32 0.0, %v6582
      %v6584 = vpop.f32.mrf.mxu0
      %v6585 = vadd.f32 0.0, %v6584
      %6586 = vmatmul.bf16.gmra.mxu0 %v6412
      %v6587 = vpop.f32.mrf.mxu0
      %v6588 = vadd.f32 0.0, %v6587
      %v6589 = vpop.f32.mrf.mxu0
      %v6590 = vadd.f32 0.0, %v6589
      %6591 = vmatmul.bf16.gmra.mxu0 %v6421
      %v6592 = vpop.f32.mrf.mxu0
      %v6593 = vadd.f32 0.0, %v6592
      %v6594 = vpop.f32.mrf.mxu0
      %v6595 = vadd.f32 0.0, %v6594
      %6596 = vmatmul.bf16.gmra.mxu0 %v6430
      %v6597 = vpop.f32.mrf.mxu0
      %v6598 = vadd.f32 0.0, %v6597
      %v6599 = vpop.f32.mrf.mxu0
      %v6600 = vadd.f32 0.0, %v6599
      %6601 = vmatmul.bf16.gmra.mxu0 %v6439
      %v6602 = vpop.f32.mrf.mxu0
      %v6603 = vadd.f32 0.0, %v6602
      %v6604 = vpop.f32.mrf.mxu0
      %v6605 = vadd.f32 0.0, %v6604
      %6606 = vmatmul.bf16.gmra.mxu0 %v6448
      %v6607 = vpop.f32.mrf.mxu0
      %v6608 = vadd.f32 0.0, %v6607
      %v6609 = vpop.f32.mrf.mxu0
      %v6610 = vadd.f32 0.0, %v6609
      %6611 = vmatmul.bf16.gmra.mxu0 %v6457
      %v6612 = vpop.f32.mrf.mxu0
      %v6613 = vadd.f32 0.0, %v6612
      %v6614 = vpop.f32.mrf.mxu0
      %v6615 = vadd.f32 0.0, %v6614
      %6616 = vmatmul.bf16.gmra.mxu0 %v6460
      %v6617 = vpop.f32.mrf.mxu0
      %v6618 = vadd.f32 0.0, %v6617
      %v6619 = vpop.f32.mrf.mxu0
      %6620 = vdwg.mxu0
      %6621 = vmatpush.bf16.msra.mxu0 %v6536
      %6622 = vmatpush.bf16.msra.mxu0 %v6534
      %6623 = vmatpush.bf16.msra.mxu0 %v6532
      %6624 = vmatpush.bf16.msra.mxu0 %v6530
      %6625 = vmatpush.bf16.msra.mxu0 %v6528
      %6626 = vmatpush.bf16.msra.mxu0 %v6526
      %6627 = vmatpush.bf16.msra.mxu0 %v6524
      %6628 = vmatpush.bf16.msra.mxu0 %v6522
      %6629 = vmatmul.bf16.gmra.mxu0 %v6367
      %v6630 = vpop.f32.mrf.mxu0
      %v6631 = vadd.f32 0.0, %v6630
      %v6632 = vpop.f32.mrf.mxu0
      %v6633 = vadd.f32 0.0, %v6632
      %6634 = vmatmul.bf16.gmra.mxu0 %v6376
      %v6635 = vpop.f32.mrf.mxu0
      %v6636 = vadd.f32 0.0, %v6635
      %v6637 = vpop.f32.mrf.mxu0
      %v6638 = vadd.f32 0.0, %v6637
      %6639 = vmatmul.bf16.gmra.mxu0 %v6385
      %v6640 = vpop.f32.mrf.mxu0
      %v6641 = vadd.f32 0.0, %v6640
      %v6642 = vpop.f32.mrf.mxu0
      %v6643 = vadd.f32 0.0, %v6642
      %6644 = vmatmul.bf16.gmra.mxu0 %v6394
      %v6645 = vpop.f32.mrf.mxu0
      %v6646 = vadd.f32 0.0, %v6645
      %v6647 = vpop.f32.mrf.mxu0
      %v6648 = vadd.f32 0.0, %v6647
      %6649 = vmatmul.bf16.gmra.mxu0 %v6403
      %v6650 = vpop.f32.mrf.mxu0
      %v6651 = vadd.f32 0.0, %v6650
      %v6652 = vpop.f32.mrf.mxu0
      %v6653 = vadd.f32 0.0, %v6652
      %6654 = vmatmul.bf16.gmra.mxu0 %v6412
      %v6655 = vpop.f32.mrf.mxu0
      %v6656 = vadd.f32 0.0, %v6655
      %v6657 = vpop.f32.mrf.mxu0
      %v6658 = vadd.f32 0.0, %v6657
      %6659 = vmatmul.bf16.gmra.mxu0 %v6421
      %v6660 = vpop.f32.mrf.mxu0
      %v6661 = vadd.f32 0.0, %v6660
      %v6662 = vpop.f32.mrf.mxu0
      %v6663 = vadd.f32 0.0, %v6662
      %6664 = vmatmul.bf16.gmra.mxu0 %v6430
      %v6665 = vpop.f32.mrf.mxu0
      %v6666 = vadd.f32 0.0, %v6665
      %v6667 = vpop.f32.mrf.mxu0
      %v6668 = vadd.f32 0.0, %v6667
      %6669 = vmatmul.bf16.gmra.mxu0 %v6439
      %v6670 = vpop.f32.mrf.mxu0
      %v6671 = vadd.f32 0.0, %v6670
      %v6672 = vpop.f32.mrf.mxu0
      %v6673 = vadd.f32 0.0, %v6672
      %6674 = vmatmul.bf16.gmra.mxu0 %v6448
      %v6675 = vpop.f32.mrf.mxu0
      %v6676 = vadd.f32 0.0, %v6675
      %v6677 = vpop.f32.mrf.mxu0
      %v6678 = vadd.f32 0.0, %v6677
      %6679 = vmatmul.bf16.gmra.mxu0 %v6457
      %v6680 = vpop.f32.mrf.mxu0
      %v6681 = vadd.f32 0.0, %v6680
      %v6682 = vpop.f32.mrf.mxu0
      %v6683 = vadd.f32 0.0, %v6682
      %6684 = vmatmul.bf16.gmra.mxu0 %v6460
      %v6685 = vpop.f32.mrf.mxu0
      %v6686 = vadd.f32 0.0, %v6685
      %v6687 = vpop.f32.mrf.mxu0
      %6688 = vdwg.mxu0
      %v6689 = vadd.f32 %v6162, %v6563
      %v6690 = vadd.f32 %v6163, %v6631
      %v6691 = vadd.f32 %v6164, %v6565
      %v6692 = vadd.f32 %v6165, %v6633
      %v6693 = vadd.f32 %v6166, %v6568
      %v6694 = vadd.f32 %v6167, %v6636
      %v6695 = vadd.f32 %v6168, %v6570
      %v6696 = vadd.f32 %v6169, %v6638
      %v6697 = vadd.f32 %v6170, %v6573
      %v6698 = vadd.f32 %v6171, %v6641
      %v6699 = vadd.f32 %v6172, %v6575
      %v6700 = vadd.f32 %v6173, %v6643
      %v6701 = vadd.f32 %v6174, %v6578
      %v6702 = vadd.f32 %v6175, %v6646
      %v6703 = vadd.f32 %v6176, %v6580
      %v6704 = vadd.f32 %v6177, %v6648
      %v6705 = vadd.f32 %v6178, %v6583
      %v6706 = vadd.f32 %v6179, %v6651
      %v6707 = vadd.f32 %v6180, %v6585
      %v6708 = vadd.f32 %v6181, %v6653
      %v6709 = vadd.f32 %v6182, %v6588
      %v6710 = vadd.f32 %v6183, %v6656
      %v6711 = vadd.f32 %v6184, %v6590
      %v6712 = vadd.f32 %v6185, %v6658
      %v6713 = vadd.f32 %v6186, %v6593
      %v6714 = vadd.f32 %v6187, %v6661
      %v6715 = vadd.f32 %v6188, %v6595
      %v6716 = vadd.f32 %v6189, %v6663
      %v6717 = vadd.f32 %v6190, %v6598
      %v6718 = vadd.f32 %v6191, %v6666
      %v6719 = vadd.f32 %v6192, %v6600
      %v6720 = vadd.f32 %v6193, %v6668
      %v6721 = vadd.f32 %v6194, %v6603
      %v6722 = vadd.f32 %v6195, %v6671
      %v6723 = vadd.f32 %v6196, %v6605
      %v6724 = vadd.f32 %v6197, %v6673
      %v6725 = vadd.f32 %v6198, %v6608
      %v6726 = vadd.f32 %v6199, %v6676
      %v6727 = vadd.f32 %v6200, %v6610
      %v6728 = vadd.f32 %v6201, %v6678
      %v6729 = vadd.f32 %v6202, %v6613
      %v6730 = vadd.f32 %v6203, %v6681
      %v6731 = vadd.f32 %v6204, %v6615
      %v6732 = vadd.f32 %v6205, %v6683
      %v6733 = vadd.f32 %v6206, %v6618
      %v6734 = vadd.f32 %v6207, %v6686
      %v6735 = vld [vmem:[%s4] sm:$0x3]
      %v6737 = vperm.slane %v6735, 0
      %v6738 = vperm.slane %v6735, 1
      %v6741 = vadd.f32 %v6689, %v6737
      %v6742 = vadd.f32 %v6690, %v6738
      %v6743 = vadd.f32 %v6691, %v6737
      %v6744 = vadd.f32 %v6692, %v6738
      %v6745 = vadd.f32 %v6693, %v6737
      %v6746 = vadd.f32 %v6694, %v6738
      %v6747 = vadd.f32 %v6695, %v6737
      %v6748 = vadd.f32 %v6696, %v6738
      %v6749 = vadd.f32 %v6697, %v6737
      %v6750 = vadd.f32 %v6698, %v6738
      %v6751 = vadd.f32 %v6699, %v6737
      %v6752 = vadd.f32 %v6700, %v6738
      %v6753 = vadd.f32 %v6701, %v6737
      %v6754 = vadd.f32 %v6702, %v6738
      %v6755 = vadd.f32 %v6703, %v6737
      %v6756 = vadd.f32 %v6704, %v6738
      %v6757 = vadd.f32 %v6705, %v6737
      %v6758 = vadd.f32 %v6706, %v6738
      %v6759 = vadd.f32 %v6707, %v6737
      %v6760 = vadd.f32 %v6708, %v6738
      %v6761 = vadd.f32 %v6709, %v6737
      %v6762 = vadd.f32 %v6710, %v6738
      %v6763 = vadd.f32 %v6711, %v6737
      %v6764 = vadd.f32 %v6712, %v6738
      %v6765 = vadd.f32 %v6713, %v6737
      %v6766 = vadd.f32 %v6714, %v6738
      %v6767 = vadd.f32 %v6715, %v6737
      %v6768 = vadd.f32 %v6716, %v6738
      %v6769 = vadd.f32 %v6717, %v6737
      %v6770 = vadd.f32 %v6718, %v6738
      %v6771 = vadd.f32 %v6719, %v6737
      %v6772 = vadd.f32 %v6720, %v6738
      %v6773 = vadd.f32 %v6721, %v6737
      %v6774 = vadd.f32 %v6722, %v6738
      %v6775 = vadd.f32 %v6723, %v6737
      %v6776 = vadd.f32 %v6724, %v6738
      %v6777 = vadd.f32 %v6725, %v6737
      %v6778 = vadd.f32 %v6726, %v6738
      %v6779 = vadd.f32 %v6727, %v6737
      %v6780 = vadd.f32 %v6728, %v6738
      %v6781 = vadd.f32 %v6729, %v6737
      %v6782 = vadd.f32 %v6730, %v6738
      %v6783 = vadd.f32 %v6731, %v6737
      %v6784 = vadd.f32 %v6732, %v6738
      %v6785 = vadd.f32 %v6733, %v6737
      %v6786 = vadd.f32 %v6734, %v6738
      %v6787 = vmax.f32 %v6741, 0.0
      %v6788 = vmax.f32 %v6742, 0.0
      %v6789 = vmax.f32 %v6743, 0.0
      %v6790 = vmax.f32 %v6744, 0.0
      %v6791 = vmax.f32 %v6745, 0.0
      %v6792 = vmax.f32 %v6746, 0.0
      %v6793 = vmax.f32 %v6747, 0.0
      %v6794 = vmax.f32 %v6748, 0.0
      %v6795 = vmax.f32 %v6749, 0.0
      %v6796 = vmax.f32 %v6750, 0.0
      %v6797 = vmax.f32 %v6751, 0.0
      %v6798 = vmax.f32 %v6752, 0.0
      %v6799 = vmax.f32 %v6753, 0.0
      %v6800 = vmax.f32 %v6754, 0.0
      %v6801 = vmax.f32 %v6755, 0.0
      %v6802 = vmax.f32 %v6756, 0.0
      %v6803 = vmax.f32 %v6757, 0.0
      %v6804 = vmax.f32 %v6758, 0.0
      %v6805 = vmax.f32 %v6759, 0.0
      %v6806 = vmax.f32 %v6760, 0.0
      %v6807 = vmax.f32 %v6761, 0.0
      %v6808 = vmax.f32 %v6762, 0.0
      %v6809 = vmax.f32 %v6763, 0.0
      %v6810 = vmax.f32 %v6764, 0.0
      %v6811 = vmax.f32 %v6765, 0.0
      %v6812 = vmax.f32 %v6766, 0.0
      %v6813 = vmax.f32 %v6767, 0.0
      %v6814 = vmax.f32 %v6768, 0.0
      %v6815 = vmax.f32 %v6769, 0.0
      %v6816 = vmax.f32 %v6770, 0.0
      %v6817 = vmax.f32 %v6771, 0.0
      %v6818 = vmax.f32 %v6772, 0.0
      %v6819 = vmax.f32 %v6773, 0.0
      %v6820 = vmax.f32 %v6774, 0.0
      %v6821 = vmax.f32 %v6775, 0.0
      %v6822 = vmax.f32 %v6776, 0.0
      %v6823 = vmax.f32 %v6777, 0.0
      %v6824 = vmax.f32 %v6778, 0.0
      %v6825 = vmax.f32 %v6779, 0.0
      %v6826 = vmax.f32 %v6780, 0.0
      %v6827 = vmax.f32 %v6781, 0.0
      %v6828 = vmax.f32 %v6782, 0.0
      %v6829 = vmax.f32 %v6783, 0.0
      %v6830 = vmax.f32 %v6784, 0.0
      %v6831 = vmax.f32 %v6785, 0.0
      %v6832 = vmax.f32 %v6786, 0.0
      %v6879 = vrot.slane %v6788, 6
      %v6880 = vrot.slane %v6790, 6
      %v6881 = vrot.slane %v6792, 6
      %v6882 = vrot.slane %v6794, 6
      %v6883 = vrot.slane %v6796, 6
      %v6884 = vrot.slane %v6798, 6
      %v6885 = vrot.slane %v6800, 6
      %v6886 = vrot.slane %v6802, 6
      %v6887 = vrot.slane %v6804, 6
      %v6888 = vrot.slane %v6806, 6
      %v6889 = vrot.slane %v6808, 6
      %v6890 = vrot.slane %v6810, 6
      %v6891 = vrot.slane %v6812, 6
      %v6892 = vrot.slane %v6814, 6
      %v6893 = vrot.slane %v6816, 6
      %v6894 = vrot.slane %v6818, 6
      %v6895 = vrot.slane %v6820, 6
      %v6896 = vrot.slane %v6822, 6
      %v6897 = vrot.slane %v6824, 6
      %v6898 = vrot.slane %v6826, 6
      %v6899 = vrot.slane %v6828, 6
      %v6900 = vrot.slane %v6830, 6
      %v6901 = vrot.slane %v6832, 6
      %v6902 = vsel %vm518, %v6787, %v6879
      %v6903 = vsel %vm522, %v6787, %v6879
      %v6904 = vrot.slane %v6903, 2
      %vm6905 = vcmask 1045508
      %v6906 = vsel %vm6905, %v6787, %v6879
      %v6907 = vrot.slane %v6906, 4
      %vm6908 = vcmask 1045504
      %v6909 = vsel %vm6908, %v6879, %v6787
      %v6910 = vrot.slane %v6909, 6
      %v6911 = vsel %vm518, %v6789, %v6880
      %v6912 = vsel %vm522, %v6789, %v6880
      %v6913 = vrot.slane %v6912, 2
      %v6914 = vsel %vm6905, %v6789, %v6880
      %v6915 = vrot.slane %v6914, 4
      %v6916 = vsel %vm6908, %v6880, %v6789
      %v6917 = vrot.slane %v6916, 6
      %v6918 = vsel %vm518, %v6791, %v6881
      %v6919 = vsel %vm522, %v6791, %v6881
      %v6920 = vrot.slane %v6919, 2
      %v6921 = vsel %vm6905, %v6791, %v6881
      %v6922 = vrot.slane %v6921, 4
      %v6923 = vsel %vm6908, %v6881, %v6791
      %v6924 = vrot.slane %v6923, 6
      %v6925 = vsel %vm518, %v6793, %v6882
      %v6926 = vsel %vm522, %v6793, %v6882
      %v6927 = vrot.slane %v6926, 2
      %v6928 = vsel %vm6905, %v6793, %v6882
      %v6929 = vrot.slane %v6928, 4
      %v6930 = vsel %vm6908, %v6882, %v6793
      %v6931 = vrot.slane %v6930, 6
      %v6932 = vsel %vm518, %v6795, %v6883
      %v6933 = vsel %vm522, %v6795, %v6883
      %v6934 = vrot.slane %v6933, 2
      %v6935 = vsel %vm6905, %v6795, %v6883
      %v6936 = vrot.slane %v6935, 4
      %v6937 = vsel %vm6908, %v6883, %v6795
      %v6938 = vrot.slane %v6937, 6
      %v6939 = vsel %vm518, %v6797, %v6884
      %v6940 = vsel %vm522, %v6797, %v6884
      %v6941 = vrot.slane %v6940, 2
      %v6942 = vsel %vm6905, %v6797, %v6884
      %v6943 = vrot.slane %v6942, 4
      %v6944 = vsel %vm6908, %v6884, %v6797
      %v6945 = vrot.slane %v6944, 6
      %v6946 = vsel %vm518, %v6799, %v6885
      %v6947 = vsel %vm522, %v6799, %v6885
      %v6948 = vrot.slane %v6947, 2
      %v6949 = vsel %vm6905, %v6799, %v6885
      %v6950 = vrot.slane %v6949, 4
      %v6951 = vsel %vm6908, %v6885, %v6799
      %v6952 = vrot.slane %v6951, 6
      %v6953 = vsel %vm518, %v6801, %v6886
      %v6954 = vsel %vm522, %v6801, %v6886
      %v6955 = vrot.slane %v6954, 2
      %v6956 = vsel %vm6905, %v6801, %v6886
      %v6957 = vrot.slane %v6956, 4
      %v6958 = vsel %vm6908, %v6886, %v6801
      %v6959 = vrot.slane %v6958, 6
      %v6960 = vsel %vm518, %v6803, %v6887
      %v6961 = vsel %vm522, %v6803, %v6887
      %v6962 = vrot.slane %v6961, 2
      %v6963 = vsel %vm6905, %v6803, %v6887
      %v6964 = vrot.slane %v6963, 4
      %v6965 = vsel %vm6908, %v6887, %v6803
      %v6966 = vrot.slane %v6965, 6
      %v6967 = vsel %vm518, %v6805, %v6888
      %v6968 = vsel %vm522, %v6805, %v6888
      %v6969 = vrot.slane %v6968, 2
      %v6970 = vsel %vm6905, %v6805, %v6888
      %v6971 = vrot.slane %v6970, 4
      %v6972 = vsel %vm6908, %v6888, %v6805
      %v6973 = vrot.slane %v6972, 6
      %v6974 = vsel %vm518, %v6807, %v6889
      %v6975 = vsel %vm522, %v6807, %v6889
      %v6976 = vrot.slane %v6975, 2
      %v6977 = vsel %vm6905, %v6807, %v6889
      %v6978 = vrot.slane %v6977, 4
      %v6979 = vsel %vm6908, %v6889, %v6807
      %v6980 = vrot.slane %v6979, 6
      %v6981 = vsel %vm518, %v6809, %v6890
      %v6982 = vsel %vm522, %v6809, %v6890
      %v6983 = vrot.slane %v6982, 2
      %v6984 = vsel %vm6905, %v6809, %v6890
      %v6985 = vrot.slane %v6984, 4
      %v6986 = vsel %vm6908, %v6890, %v6809
      %v6987 = vrot.slane %v6986, 6
      %v6988 = vsel %vm518, %v6811, %v6891
      %v6989 = vsel %vm522, %v6811, %v6891
      %v6990 = vrot.slane %v6989, 2
      %v6991 = vsel %vm6905, %v6811, %v6891
      %v6992 = vrot.slane %v6991, 4
      %v6993 = vsel %vm6908, %v6891, %v6811
      %v6994 = vrot.slane %v6993, 6
      %v6995 = vsel %vm518, %v6813, %v6892
      %v6996 = vsel %vm522, %v6813, %v6892
      %v6997 = vrot.slane %v6996, 2
      %v6998 = vsel %vm6905, %v6813, %v6892
      %v6999 = vrot.slane %v6998, 4
      %v7000 = vsel %vm6908, %v6892, %v6813
      %v7001 = vrot.slane %v7000, 6
      %v7002 = vsel %vm518, %v6815, %v6893
      %v7003 = vsel %vm522, %v6815, %v6893
      %v7004 = vrot.slane %v7003, 2
      %v7005 = vsel %vm6905, %v6815, %v6893
      %v7006 = vrot.slane %v7005, 4
      %v7007 = vsel %vm6908, %v6893, %v6815
      %v7008 = vrot.slane %v7007, 6
      %v7009 = vsel %vm518, %v6817, %v6894
      %v7010 = vsel %vm522, %v6817, %v6894
      %v7011 = vrot.slane %v7010, 2
      %v7012 = vsel %vm6905, %v6817, %v6894
      %v7013 = vrot.slane %v7012, 4
      %v7014 = vsel %vm6908, %v6894, %v6817
      %v7015 = vrot.slane %v7014, 6
      %v7016 = vsel %vm518, %v6819, %v6895
      %v7017 = vsel %vm522, %v6819, %v6895
      %v7018 = vrot.slane %v7017, 2
      %v7019 = vsel %vm6905, %v6819, %v6895
      %v7020 = vrot.slane %v7019, 4
      %v7021 = vsel %vm6908, %v6895, %v6819
      %v7022 = vrot.slane %v7021, 6
      %v7023 = vsel %vm518, %v6821, %v6896
      %v7024 = vsel %vm522, %v6821, %v6896
      %v7025 = vrot.slane %v7024, 2
      %v7026 = vsel %vm6905, %v6821, %v6896
      %v7027 = vrot.slane %v7026, 4
      %v7028 = vsel %vm6908, %v6896, %v6821
      %v7029 = vrot.slane %v7028, 6
      %v7030 = vsel %vm518, %v6823, %v6897
      %v7031 = vsel %vm522, %v6823, %v6897
      %v7032 = vrot.slane %v7031, 2
      %v7033 = vsel %vm6905, %v6823, %v6897
      %v7034 = vrot.slane %v7033, 4
      %v7035 = vsel %vm6908, %v6897, %v6823
      %v7036 = vrot.slane %v7035, 6
      %v7037 = vsel %vm518, %v6825, %v6898
      %v7038 = vsel %vm522, %v6825, %v6898
      %v7039 = vrot.slane %v7038, 2
      %v7040 = vsel %vm6905, %v6825, %v6898
      %v7041 = vrot.slane %v7040, 4
      %v7042 = vsel %vm6908, %v6898, %v6825
      %v7043 = vrot.slane %v7042, 6
      %v7044 = vsel %vm518, %v6827, %v6899
      %v7045 = vsel %vm522, %v6827, %v6899
      %v7046 = vrot.slane %v7045, 2
      %v7047 = vsel %vm6905, %v6827, %v6899
      %v7048 = vrot.slane %v7047, 4
      %v7049 = vsel %vm6908, %v6899, %v6827
      %v7050 = vrot.slane %v7049, 6
      %v7051 = vsel %vm518, %v6829, %v6900
      %v7052 = vsel %vm522, %v6829, %v6900
      %v7053 = vrot.slane %v7052, 2
      %v7054 = vsel %vm6905, %v6829, %v6900
      %v7055 = vrot.slane %v7054, 4
      %v7056 = vsel %vm6908, %v6900, %v6829
      %v7057 = vrot.slane %v7056, 6
      %v7058 = vsel %vm518, %v6831, %v6901
      %v7059 = vsel %vm522, %v6831, %v6901
      %v7060 = vrot.slane %v7059, 2
      %s7061 = ssub.s32 %s373, 1
      %v7062 = vstv %s7061
      %v7063 = vadd.s32 %v7062, 1
      %v7064 = vadd.s32 %v7062, 2
      %v7065 = vadd.s32 %v7062, 3
      %v7066 = vadd.s32 %v7062, 4
      %v7067 = vadd.s32 %v7062, 5
      %v7068 = vadd.s32 %v7062, 6
      %v7069 = vadd.s32 %v7062, 7
      %v7070 = vadd.s32 %v7062, 8
      %v7071 = vadd.s32 %v7062, 9
      %v7072 = vsub.s32 %v1045, 1
      %v7073 = vsub.s32 %v1046, 1
      %v7074 = vsub.s32 %v1047, 1
      %vm7075 = vcmp.ge.s32.totalorder %v7062, 0
      %vm7076 = vcmp.ge.s32.totalorder %v7063, 0
      %vm7077 = vcmp.ge.s32.totalorder %v7064, 0
      %vm7078 = vcmp.ge.s32.totalorder %v7065, 0
      %vm7079 = vcmp.ge.s32.totalorder %v7066, 0
      %vm7080 = vcmp.ge.s32.totalorder %v7067, 0
      %vm7081 = vcmp.ge.s32.totalorder %v7068, 0
      %vm7082 = vcmp.ge.s32.totalorder %v7069, 0
      %vm7083 = vcmp.ge.s32.totalorder %v7070, 0
      %vm7084 = vcmp.ge.s32.totalorder %v7071, 0
      %vm7085 = vcmp.lt.s32.totalorder %v7062, 16
      %vm7086 = vcmp.lt.s32.totalorder %v7063, 16
      %vm7087 = vcmp.lt.s32.totalorder %v7064, 16
      %vm7088 = vcmp.lt.s32.totalorder %v7065, 16
      %vm7089 = vcmp.lt.s32.totalorder %v7066, 16
      %vm7090 = vcmp.lt.s32.totalorder %v7067, 16
      %vm7091 = vcmp.lt.s32.totalorder %v7068, 16
      %vm7092 = vcmp.lt.s32.totalorder %v7069, 16
      %vm7093 = vcmp.lt.s32.totalorder %v7070, 16
      %vm7094 = vcmp.lt.s32.totalorder %v7071, 16
      %vm7095 = vmand %vm7075, %vm7085
      %vm7096 = vmand %vm7076, %vm7086
      %vm7097 = vmand %vm7077, %vm7087
      %vm7098 = vmand %vm7078, %vm7088
      %vm7099 = vmand %vm7079, %vm7089
      %vm7100 = vmand %vm7080, %vm7090
      %vm7101 = vmand %vm7081, %vm7091
      %vm7102 = vmand %vm7082, %vm7092
      %vm7103 = vmand %vm7083, %vm7093
      %vm7104 = vmand %vm7084, %vm7094
      %vm7105 = vcmp.ge.s32.totalorder %v7072, 0
      %vm7106 = vcmp.ge.s32.totalorder %v7073, 0
      %vm7107 = vcmp.ge.s32.totalorder %v7074, 0
      %vm7108 = vmand %vm7095, %vm7105
      %vm7109 = vmand %vm7095, %vm7106
      %vm7110 = vmand %vm7095, %vm7107
      %vm7111 = vmand %vm7096, %vm7105
      %vm7112 = vmand %vm7096, %vm7106
      %vm7113 = vmand %vm7096, %vm7107
      %vm7114 = vmand %vm7097, %vm7105
      %vm7115 = vmand %vm7097, %vm7106
      %vm7116 = vmand %vm7097, %vm7107
      %vm7117 = vmand %vm7098, %vm7105
      %vm7118 = vmand %vm7098, %vm7106
      %vm7119 = vmand %vm7098, %vm7107
      %vm7120 = vmand %vm7099, %vm7105
      %vm7121 = vmand %vm7099, %vm7106
      %vm7122 = vmand %vm7099, %vm7107
      %vm7123 = vmand %vm7100, %vm7105
      %vm7124 = vmand %vm7100, %vm7106
      %vm7125 = vmand %vm7100, %vm7107
      %vm7126 = vmand %vm7101, %vm7105
      %vm7127 = vmand %vm7101, %vm7106
      %vm7128 = vmand %vm7101, %vm7107
      %vm7129 = vmand %vm7102, %vm7105
      %vm7130 = vmand %vm7102, %vm7106
      %vm7131 = vmand %vm7102, %vm7107
      %vm7132 = vmand %vm7103, %vm7105
      %vm7133 = vmand %vm7103, %vm7106
      %vm7134 = vmand %vm7103, %vm7107
      %vm7135 = vmand %vm7104, %vm7105
      %vm7136 = vmand %vm7104, %vm7106
      %vm7137 = vmand %vm7104, %vm7107
      %vm7138 = vcmp.lt.s32.totalorder %v7072, 16
      %vm7139 = vcmp.lt.s32.totalorder %v7073, 16
      %vm7140 = vcmp.lt.s32.totalorder %v7074, 16
      %vm7141 = vmand %vm7108, %vm7138
      %vm7142 = vmand %vm7109, %vm7139
      %vm7143 = vmand %vm7110, %vm7140
      %vm7144 = vmand %vm7111, %vm7138
      %vm7145 = vmand %vm7112, %vm7139
      %vm7146 = vmand %vm7113, %vm7140
      %vm7147 = vmand %vm7114, %vm7138
      %vm7148 = vmand %vm7115, %vm7139
      %vm7149 = vmand %vm7116, %vm7140
      %vm7150 = vmand %vm7117, %vm7138
      %vm7151 = vmand %vm7118, %vm7139
      %vm7152 = vmand %vm7119, %vm7140
      %vm7153 = vmand %vm7120, %vm7138
      %vm7154 = vmand %vm7121, %vm7139
      %vm7155 = vmand %vm7122, %vm7140
      %vm7156 = vmand %vm7123, %vm7138
      %vm7157 = vmand %vm7124, %vm7139
      %vm7158 = vmand %vm7125, %vm7140
      %vm7159 = vmand %vm7126, %vm7138
      %vm7160 = vmand %vm7127, %vm7139
      %vm7161 = vmand %vm7128, %vm7140
      %vm7162 = vmand %vm7129, %vm7138
      %vm7163 = vmand %vm7130, %vm7139
      %vm7164 = vmand %vm7131, %vm7140
      %vm7165 = vmand %vm7132, %vm7138
      %vm7166 = vmand %vm7133, %vm7139
      %vm7167 = vmand %vm7134, %vm7140
      %vm7168 = vmand %vm7135, %vm7138
      %vm7169 = vmand %vm7136, %vm7139
      %vm7170 = vmand %vm7137, %vm7140
      %v7171 = vsel %vm7141, 1, 0
      %v7172 = vsel %vm7142, 1, 0
      %v7173 = vsel %vm7143, 1, 0
      %v7174 = vsel %vm7144, 1, 0
      %v7175 = vsel %vm7145, 1, 0
      %v7176 = vsel %vm7146, 1, 0
      %v7177 = vsel %vm7147, 1, 0
      %v7178 = vsel %vm7148, 1, 0
      %v7179 = vsel %vm7149, 1, 0
      %v7180 = vsel %vm7150, 1, 0
      %v7181 = vsel %vm7151, 1, 0
      %v7182 = vsel %vm7152, 1, 0
      %v7183 = vsel %vm7153, 1, 0
      %v7184 = vsel %vm7154, 1, 0
      %v7185 = vsel %vm7155, 1, 0
      %v7186 = vsel %vm7156, 1, 0
      %v7187 = vsel %vm7157, 1, 0
      %v7188 = vsel %vm7158, 1, 0
      %v7189 = vsel %vm7159, 1, 0
      %v7190 = vsel %vm7160, 1, 0
      %v7191 = vsel %vm7161, 1, 0
      %v7192 = vsel %vm7162, 1, 0
      %v7193 = vsel %vm7163, 1, 0
      %v7194 = vsel %vm7164, 1, 0
      %v7195 = vsel %vm7165, 1, 0
      %v7196 = vsel %vm7166, 1, 0
      %v7197 = vsel %vm7167, 1, 0
      %v7198 = vsel %vm7168, 1, 0
      %v7199 = vsel %vm7169, 1, 0
      %v7200 = vsel %vm7170, 1, 0
      %vm7201 = vcmp.eq.s32.totalorder %v7171, 1
      %vm7202 = vcmp.eq.s32.totalorder %v7172, 1
      %vm7203 = vcmp.eq.s32.totalorder %v7173, 1
      %vm7204 = vcmp.eq.s32.totalorder %v7174, 1
      %vm7205 = vcmp.eq.s32.totalorder %v7175, 1
      %vm7206 = vcmp.eq.s32.totalorder %v7176, 1
      %vm7207 = vcmp.eq.s32.totalorder %v7177, 1
      %vm7208 = vcmp.eq.s32.totalorder %v7178, 1
      %vm7209 = vcmp.eq.s32.totalorder %v7179, 1
      %vm7210 = vcmp.eq.s32.totalorder %v7180, 1
      %vm7211 = vcmp.eq.s32.totalorder %v7181, 1
      %vm7212 = vcmp.eq.s32.totalorder %v7182, 1
      %vm7213 = vcmp.eq.s32.totalorder %v7183, 1
      %vm7214 = vcmp.eq.s32.totalorder %v7184, 1
      %vm7215 = vcmp.eq.s32.totalorder %v7185, 1
      %vm7216 = vcmp.eq.s32.totalorder %v7186, 1
      %vm7217 = vcmp.eq.s32.totalorder %v7187, 1
      %vm7218 = vcmp.eq.s32.totalorder %v7188, 1
      %vm7219 = vcmp.eq.s32.totalorder %v7189, 1
      %vm7220 = vcmp.eq.s32.totalorder %v7190, 1
      %vm7221 = vcmp.eq.s32.totalorder %v7191, 1
      %vm7222 = vcmp.eq.s32.totalorder %v7192, 1
      %vm7223 = vcmp.eq.s32.totalorder %v7193, 1
      %vm7224 = vcmp.eq.s32.totalorder %v7194, 1
      %vm7225 = vcmp.eq.s32.totalorder %v7195, 1
      %vm7226 = vcmp.eq.s32.totalorder %v7196, 1
      %vm7227 = vcmp.eq.s32.totalorder %v7197, 1
      %vm7228 = vcmp.eq.s32.totalorder %v7198, 1
      %vm7229 = vcmp.eq.s32.totalorder %v7199, 1
      %vm7230 = vcmp.eq.s32.totalorder %v7200, 1
      %7231 = vst [vmem:[#allocation1] ss:$4 sm:$0xff] %v6902
      %s7232 = scalar_lea.vmem [#allocation1], 1
      %7233 = vst [vmem:[%s7232] ss:$4 sm:$0xff] %v6904
      %s7234 = scalar_lea.vmem [#allocation1], 2
      %7235 = vst [vmem:[%s7234] ss:$4 sm:$0xff] %v6907
      %s7236 = scalar_lea.vmem [#allocation1], 3
      %7237 = vst [vmem:[%s7236] ss:$4 sm:$0xff] %v6910
      %s7238 = scalar_lea.vmem [#allocation1], 32
      %7239 = vst [vmem:[%s7238] ss:$4 sm:$0xff] %v6911
      %s7240 = scalar_lea.vmem [#allocation1], 33
      %7241 = vst [vmem:[%s7240] ss:$4 sm:$0xff] %v6913
      %s7242 = scalar_lea.vmem [#allocation1], 34
      %7243 = vst [vmem:[%s7242] ss:$4 sm:$0xff] %v6915
      %s7244 = scalar_lea.vmem [#allocation1], 35
      %7245 = vst [vmem:[%s7244] ss:$4 sm:$0xff] %v6917
      %v7246 = vld.sshfl [vmem:[#allocation1] sm:$0xff pattern:$0x73625140]
      %v7247 = vld.sshfl [vmem:[#allocation1 + $0x8] sm:$0xff pattern:$0x73625140]
      %v7248 = vld.sshfl [vmem:[#allocation1 + $0x20] sm:$0xff pattern:$0x73625140]
      %v7249 = vld.sshfl [vmem:[#allocation1 + $0x28] sm:$0xff pattern:$0x73625140]
      %7250 = vst [vmem:[#allocation1] ss:$4 sm:$0xff] %v6918
      %v7251 = vld.sshfl [vmem:[#allocation1] sm:$0xff pattern:$0x73625140]
      %v7252 = vld.sshfl [vmem:[#allocation1 + $0x8] sm:$0xff pattern:$0x73625140]
      %7253 = vst [vmem:[%s7238] ss:$4 sm:$0xff] %v6920
      %7254 = vst [vmem:[%s7240] ss:$4 sm:$0xff] %v6922
      %7255 = vst [vmem:[%s7242] ss:$4 sm:$0xff] %v6924
      %7256 = vst [vmem:[%s7244] ss:$4 sm:$0xff] %v6925
      %v7257 = vld.sshfl [vmem:[#allocation1 + $0x20] sm:$0xff pattern:$0x73625140]
      %v7258 = vld.sshfl [vmem:[#allocation1 + $0x28] sm:$0xff pattern:$0x73625140]
      %7259 = vst [vmem:[#allocation1] ss:$4 sm:$0xff] %v6927
      %7260 = vst [vmem:[%s7232] ss:$4 sm:$0xff] %v6929
      %7261 = vst [vmem:[%s7234] ss:$4 sm:$0xff] %v6931
      %7262 = vst [vmem:[%s7236] ss:$4 sm:$0xff] %v6932
      %7263 = vst [vmem:[%s7238] ss:$4 sm:$0xff] %v6934
      %v7264 = vld.sshfl [vmem:[#allocation1] sm:$0xff pattern:$0x73625140]
      %v7265 = vld.sshfl [vmem:[#allocation1 + $0x8] sm:$0xff pattern:$0x73625140]
      %v7266 = vld.sshfl [vmem:[#allocation1 + $0x20] sm:$0xff pattern:$0x73625140]
      %v7267 = vld.sshfl [vmem:[#allocation1 + $0x28] sm:$0xff pattern:$0x73625140]
      %7268 = vst [vmem:[#allocation1] ss:$4 sm:$0xff] %v6936
      %7269 = vst [vmem:[%s7232] ss:$4 sm:$0xff] %v6938
      %7270 = vst [vmem:[%s7234] ss:$4 sm:$0xff] %v6939
      %7271 = vst [vmem:[%s7236] ss:$4 sm:$0xff] %v6941
      %7272 = vst [vmem:[%s7238] ss:$4 sm:$0xff] %v6943
      %7273 = vst [vmem:[%s7240] ss:$4 sm:$0xff] %v6945
      %7274 = vst [vmem:[%s7242] ss:$4 sm:$0xff] %v6946
      %7275 = vst [vmem:[%s7244] ss:$4 sm:$0xff] %v6948
      %v7276 = vld.sshfl [vmem:[#allocation1] sm:$0xff pattern:$0x73625140]
      %v7277 = vld.sshfl [vmem:[#allocation1 + $0x8] sm:$0xff pattern:$0x73625140]
      %v7278 = vld.sshfl [vmem:[#allocation1 + $0x20] sm:$0xff pattern:$0x73625140]
      %v7279 = vld.sshfl [vmem:[#allocation1 + $0x28] sm:$0xff pattern:$0x73625140]
      %7280 = vst [vmem:[#allocation1] ss:$4 sm:$0xff] %v6950
      %v7281 = vld.sshfl [vmem:[#allocation1] sm:$0xff pattern:$0x73625140]
      %v7282 = vld.sshfl [vmem:[#allocation1 + $0x8] sm:$0xff pattern:$0x73625140]
      %7283 = vst [vmem:[%s7238] ss:$4 sm:$0xff] %v6952
      %7284 = vst [vmem:[%s7240] ss:$4 sm:$0xff] %v6953
      %7285 = vst [vmem:[%s7242] ss:$4 sm:$0xff] %v6955
      %7286 = vst [vmem:[%s7244] ss:$4 sm:$0xff] %v6957
      %v7287 = vld.sshfl [vmem:[#allocation1 + $0x20] sm:$0xff pattern:$0x73625140]
      %v7288 = vld.sshfl [vmem:[#allocation1 + $0x28] sm:$0xff pattern:$0x73625140]
      %7289 = vst [vmem:[#allocation1] ss:$4 sm:$0xff] %v6959
      %7290 = vst [vmem:[%s7232] ss:$4 sm:$0xff] %v6960
      %7291 = vst [vmem:[%s7234] ss:$4 sm:$0xff] %v6962
      %7292 = vst [vmem:[%s7236] ss:$4 sm:$0xff] %v6964
      %7293 = vst [vmem:[%s7238] ss:$4 sm:$0xff] %v6966
      %v7294 = vld.sshfl [vmem:[#allocation1] sm:$0xff pattern:$0x73625140]
      %v7295 = vld.sshfl [vmem:[#allocation1 + $0x8] sm:$0xff pattern:$0x73625140]
      %v7296 = vld.sshfl [vmem:[#allocation1 + $0x20] sm:$0xff pattern:$0x73625140]
      %v7297 = vld.sshfl [vmem:[#allocation1 + $0x28] sm:$0xff pattern:$0x73625140]
      %7298 = vst [vmem:[#allocation1] ss:$4 sm:$0xff] %v6967
      %7299 = vst [vmem:[%s7232] ss:$4 sm:$0xff] %v6969
      %7300 = vst [vmem:[%s7234] ss:$4 sm:$0xff] %v6971
      %7301 = vst [vmem:[%s7236] ss:$4 sm:$0xff] %v6973
      %7302 = vst [vmem:[%s7238] ss:$4 sm:$0xff] %v6974
      %7303 = vst [vmem:[%s7240] ss:$4 sm:$0xff] %v6976
      %7304 = vst [vmem:[%s7242] ss:$4 sm:$0xff] %v6978
      %7305 = vst [vmem:[%s7244] ss:$4 sm:$0xff] %v6980
      %v7306 = vld.sshfl [vmem:[#allocation1] sm:$0xff pattern:$0x73625140]
      %v7307 = vld.sshfl [vmem:[#allocation1 + $0x8] sm:$0xff pattern:$0x73625140]
      %v7308 = vld.sshfl [vmem:[#allocation1 + $0x20] sm:$0xff pattern:$0x73625140]
      %v7309 = vld.sshfl [vmem:[#allocation1 + $0x28] sm:$0xff pattern:$0x73625140]
      %7310 = vst [vmem:[#allocation1] ss:$4 sm:$0xff] %v6981
      %v7311 = vld.sshfl [vmem:[#allocation1] sm:$0xff pattern:$0x73625140]
      %v7312 = vld.sshfl [vmem:[#allocation1 + $0x8] sm:$0xff pattern:$0x73625140]
      %7313 = vst [vmem:[%s7238] ss:$4 sm:$0xff] %v6983
      %7314 = vst [vmem:[%s7240] ss:$4 sm:$0xff] %v6985
      %7315 = vst [vmem:[%s7242] ss:$4 sm:$0xff] %v6987
      %7316 = vst [vmem:[%s7244] ss:$4 sm:$0xff] %v6988
      %v7317 = vld.sshfl [vmem:[#allocation1 + $0x20] sm:$0xff pattern:$0x73625140]
      %v7318 = vld.sshfl [vmem:[#allocation1 + $0x28] sm:$0xff pattern:$0x73625140]
      %7319 = vst [vmem:[#allocation1] ss:$4 sm:$0xff] %v6990
      %7320 = vst [vmem:[%s7232] ss:$4 sm:$0xff] %v6992
      %7321 = vst [vmem:[%s7234] ss:$4 sm:$0xff] %v6994
      %7322 = vst [vmem:[%s7236] ss:$4 sm:$0xff] %v6995
      %7323 = vst [vmem:[%s7238] ss:$4 sm:$0xff] %v6997
      %v7324 = vld.sshfl [vmem:[#allocation1] sm:$0xff pattern:$0x73625140]
      %v7325 = vld.sshfl [vmem:[#allocation1 + $0x8] sm:$0xff pattern:$0x73625140]
      %v7326 = vld.sshfl [vmem:[#allocation1 + $0x20] sm:$0xff pattern:$0x73625140]
      %v7327 = vld.sshfl [vmem:[#allocation1 + $0x28] sm:$0xff pattern:$0x73625140]
      %7328 = vst [vmem:[#allocation1] ss:$4 sm:$0xff] %v6999
      %7329 = vst [vmem:[%s7232] ss:$4 sm:$0xff] %v7001
      %7330 = vst [vmem:[%s7234] ss:$4 sm:$0xff] %v7002
      %7331 = vst [vmem:[%s7236] ss:$4 sm:$0xff] %v7004
      %7332 = vst [vmem:[%s7238] ss:$4 sm:$0xff] %v7006
      %7333 = vst [vmem:[%s7240] ss:$4 sm:$0xff] %v7008
      %7334 = vst [vmem:[%s7242] ss:$4 sm:$0xff] %v7009
      %7335 = vst [vmem:[%s7244] ss:$4 sm:$0xff] %v7011
      %v7336 = vld.sshfl [vmem:[#allocation1] sm:$0xff pattern:$0x73625140]
      %v7337 = vld.sshfl [vmem:[#allocation1 + $0x8] sm:$0xff pattern:$0x73625140]
      %v7338 = vld.sshfl [vmem:[#allocation1 + $0x20] sm:$0xff pattern:$0x73625140]
      %v7339 = vld.sshfl [vmem:[#allocation1 + $0x28] sm:$0xff pattern:$0x73625140]
      %7340 = vst [vmem:[#allocation1] ss:$4 sm:$0xff] %v7013
      %v7341 = vld.sshfl [vmem:[#allocation1] sm:$0xff pattern:$0x73625140]
      %v7342 = vld.sshfl [vmem:[#allocation1 + $0x8] sm:$0xff pattern:$0x73625140]
      %7343 = vst [vmem:[%s7238] ss:$4 sm:$0xff] %v7015
      %7344 = vst [vmem:[%s7240] ss:$4 sm:$0xff] %v7016
      %7345 = vst [vmem:[%s7242] ss:$4 sm:$0xff] %v7018
      %7346 = vst [vmem:[%s7244] ss:$4 sm:$0xff] %v7020
      %v7347 = vld.sshfl [vmem:[#allocation1 + $0x20] sm:$0xff pattern:$0x73625140]
      %v7348 = vld.sshfl [vmem:[#allocation1 + $0x28] sm:$0xff pattern:$0x73625140]
      %7349 = vst [vmem:[#allocation1] ss:$4 sm:$0xff] %v7022
      %7350 = vst [vmem:[%s7232] ss:$4 sm:$0xff] %v7023
      %7351 = vst [vmem:[%s7234] ss:$4 sm:$0xff] %v7025
      %7352 = vst [vmem:[%s7236] ss:$4 sm:$0xff] %v7027
      %7353 = vst [vmem:[%s7238] ss:$4 sm:$0xff] %v7029
      %v7354 = vld.sshfl [vmem:[#allocation1] sm:$0xff pattern:$0x73625140]
      %v7355 = vld.sshfl [vmem:[#allocation1 + $0x8] sm:$0xff pattern:$0x73625140]
      %v7356 = vld.sshfl [vmem:[#allocation1 + $0x20] sm:$0xff pattern:$0x73625140]
      %v7357 = vld.sshfl [vmem:[#allocation1 + $0x28] sm:$0xff pattern:$0x73625140]
      %7358 = vst [vmem:[#allocation1] ss:$4 sm:$0xff] %v7030
      %7359 = vst [vmem:[%s7232] ss:$4 sm:$0xff] %v7032
      %7360 = vst [vmem:[%s7234] ss:$4 sm:$0xff] %v7034
      %7361 = vst [vmem:[%s7236] ss:$4 sm:$0xff] %v7036
      %7362 = vst [vmem:[%s7238] ss:$4 sm:$0xff] %v7037
      %7363 = vst [vmem:[%s7240] ss:$4 sm:$0xff] %v7039
      %7364 = vst [vmem:[%s7242] ss:$4 sm:$0xff] %v7041
      %7365 = vst [vmem:[%s7244] ss:$4 sm:$0xff] %v7043
      %v7366 = vld.sshfl [vmem:[#allocation1] sm:$0xff pattern:$0x73625140]
      %v7367 = vld.sshfl [vmem:[#allocation1 + $0x8] sm:$0xff pattern:$0x73625140]
      %v7368 = vld.sshfl [vmem:[#allocation1 + $0x20] sm:$0xff pattern:$0x73625140]
      %v7369 = vld.sshfl [vmem:[#allocation1 + $0x28] sm:$0xff pattern:$0x73625140]
      %7370 = vst [vmem:[#allocation1] ss:$4 sm:$0xff] %v7044
      %v7371 = vld.sshfl [vmem:[#allocation1] sm:$0xff pattern:$0x73625140]
      %v7372 = vld.sshfl [vmem:[#allocation1 + $0x8] sm:$0xff pattern:$0x73625140]
      %7373 = vst [vmem:[%s7238] ss:$4 sm:$0xff] %v7046
      %7374 = vst [vmem:[%s7240] ss:$4 sm:$0xff] %v7048
      %7375 = vst [vmem:[%s7242] ss:$4 sm:$0xff] %v7050
      %7376 = vst [vmem:[%s7244] ss:$4 sm:$0xff] %v7051
      %v7377 = vld.sshfl [vmem:[#allocation1 + $0x20] sm:$0xff pattern:$0x73625140]
      %v7378 = vld.sshfl [vmem:[#allocation1 + $0x28] sm:$0xff pattern:$0x73625140]
      %7379 = vst [vmem:[#allocation1] ss:$4 sm:$0xff] %v7053
      %7380 = vst [vmem:[%s7232] ss:$4 sm:$0xff] %v7055
      %7381 = vst [vmem:[%s7234] ss:$4 sm:$0xff] %v7057
      %7382 = vst [vmem:[%s7236] ss:$4 sm:$0xff] %v7058
      %7383 = vst [vmem:[%s7238] ss:$4 sm:$0xff] %v7060
      %v7384 = vld.sshfl [vmem:[#allocation1] sm:$0xff pattern:$0x73625140]
      %v7385 = vld.sshfl [vmem:[#allocation1 + $0x8] sm:$0xff pattern:$0x73625140]
      %v7386 = vld.sshfl [vmem:[#allocation1 + $0x20] sm:$0xff pattern:$0x73625140]
      %v7387 = vld.sshfl [vmem:[#allocation1 + $0x28] sm:$0xff pattern:$0x73625140]
      %v7448 = vsel %vm7201, %v7246, 0.0
      %v7449 = vsel %vm7201, %v7247, 0.0
      %v7450 = vsel %vm7202, %v7248, 0.0
      %v7451 = vsel %vm7202, %v7249, 0.0
      %v7452 = vsel %vm7203, %v7251, 0.0
      %v7453 = vsel %vm7203, %v7252, 0.0
      %v7454 = vsel %vm7204, %v7257, 0.0
      %v7455 = vsel %vm7204, %v7258, 0.0
      %v7456 = vsel %vm7205, %v7264, 0.0
      %v7457 = vsel %vm7205, %v7265, 0.0
      %v7458 = vsel %vm7206, %v7266, 0.0
      %v7459 = vsel %vm7206, %v7267, 0.0
      %v7460 = vsel %vm7207, %v7276, 0.0
      %v7461 = vsel %vm7207, %v7277, 0.0
      %v7462 = vsel %vm7208, %v7278, 0.0
      %v7463 = vsel %vm7208, %v7279, 0.0
      %v7464 = vsel %vm7209, %v7281, 0.0
      %v7465 = vsel %vm7209, %v7282, 0.0
      %v7466 = vsel %vm7210, %v7287, 0.0
      %v7467 = vsel %vm7210, %v7288, 0.0
      %v7468 = vsel %vm7211, %v7294, 0.0
      %v7469 = vsel %vm7211, %v7295, 0.0
      %v7470 = vsel %vm7212, %v7296, 0.0
      %v7471 = vsel %vm7212, %v7297, 0.0
      %v7472 = vsel %vm7213, %v7306, 0.0
      %v7473 = vsel %vm7213, %v7307, 0.0
      %v7474 = vsel %vm7214, %v7308, 0.0
      %v7475 = vsel %vm7214, %v7309, 0.0
      %v7476 = vsel %vm7215, %v7311, 0.0
      %v7477 = vsel %vm7215, %v7312, 0.0
      %v7478 = vsel %vm7216, %v7317, 0.0
      %v7479 = vsel %vm7216, %v7318, 0.0
      %v7480 = vsel %vm7217, %v7324, 0.0
      %v7481 = vsel %vm7217, %v7325, 0.0
      %v7482 = vsel %vm7218, %v7326, 0.0
      %v7483 = vsel %vm7218, %v7327, 0.0
      %v7484 = vsel %vm7219, %v7336, 0.0
      %v7485 = vsel %vm7219, %v7337, 0.0
      %v7486 = vsel %vm7220, %v7338, 0.0
      %v7487 = vsel %vm7220, %v7339, 0.0
      %v7488 = vsel %vm7221, %v7341, 0.0
      %v7489 = vsel %vm7221, %v7342, 0.0
      %v7490 = vsel %vm7222, %v7347, 0.0
      %v7491 = vsel %vm7222, %v7348, 0.0
      %v7492 = vsel %vm7223, %v7354, 0.0
      %v7493 = vsel %vm7223, %v7355, 0.0
      %v7494 = vsel %vm7224, %v7356, 0.0
      %v7495 = vsel %vm7224, %v7357, 0.0
      %v7496 = vsel %vm7225, %v7366, 0.0
      %v7497 = vsel %vm7225, %v7367, 0.0
      %v7498 = vsel %vm7226, %v7368, 0.0
      %v7499 = vsel %vm7226, %v7369, 0.0
      %v7500 = vsel %vm7227, %v7371, 0.0
      %v7501 = vsel %vm7227, %v7372, 0.0
      %v7502 = vsel %vm7228, %v7377, 0.0
      %v7503 = vsel %vm7228, %v7378, 0.0
      %v7504 = vsel %vm7229, %v7384, 0.0
      %v7505 = vsel %vm7229, %v7385, 0.0
      %v7506 = vsel %vm7230, %v7386, 0.0
      %v7507 = vsel %vm7230, %v7387, 0.0
      %v7508 = vpack.c.bf16 %v7449, %v7448
      %v7509 = vpack.c.bf16 %v7451, %v7450
      %v7510 = vpack.c.bf16 %v7453, %v7452
      %v7511 = vpack.c.bf16 %v7455, %v7454
      %v7512 = vpack.c.bf16 %v7457, %v7456
      %v7513 = vpack.c.bf16 %v7459, %v7458
      %v7514 = vpack.c.bf16 %v7461, %v7460
      %v7515 = vpack.c.bf16 %v7463, %v7462
      %v7516 = vpack.c.bf16 %v7465, %v7464
      %v7517 = vpack.c.bf16 %v7467, %v7466
      %v7518 = vpack.c.bf16 %v7469, %v7468
      %v7519 = vpack.c.bf16 %v7471, %v7470
      %v7520 = vpack.c.bf16 %v7473, %v7472
      %v7521 = vpack.c.bf16 %v7475, %v7474
      %v7522 = vpack.c.bf16 %v7477, %v7476
      %v7523 = vpack.c.bf16 %v7479, %v7478
      %v7524 = vpack.c.bf16 %v7481, %v7480
      %v7525 = vpack.c.bf16 %v7483, %v7482
      %v7526 = vpack.c.bf16 %v7485, %v7484
      %v7527 = vpack.c.bf16 %v7487, %v7486
      %v7528 = vpack.c.bf16 %v7489, %v7488
      %v7529 = vpack.c.bf16 %v7491, %v7490
      %v7530 = vpack.c.bf16 %v7493, %v7492
      %v7531 = vpack.c.bf16 %v7495, %v7494
      %v7532 = vpack.c.bf16 %v7497, %v7496
      %v7533 = vpack.c.bf16 %v7499, %v7498
      %v7534 = vpack.c.bf16 %v7501, %v7500
      %v7535 = vpack.c.bf16 %v7503, %v7502
      %v7536 = vpack.c.bf16 %v7505, %v7504
      %v7537 = vpack.c.bf16 %v7507, %v7506
      %v7538 = vld [vmem:[%s5] sm:$0xf]
      %v7539 = vld [vmem:[%s5 + $0x4] sm:$0xf]
      %v7540 = vld [vmem:[%s5 + $0x8] sm:$0xf]
      %v7541 = vld [vmem:[%s5 + $0xc] sm:$0xf]
      %v7542 = vld [vmem:[%s5 + $0x10] sm:$0xf]
      %v7543 = vld [vmem:[%s5 + $0x14] sm:$0xf]
      %v7544 = vld [vmem:[%s5 + $0x18] sm:$0xf]
      %v7545 = vld [vmem:[%s5 + $0x1c] sm:$0xf]
      %v7546 = vld [vmem:[%s5 + $0x20] sm:$0xf]
      %v7547 = vld [vmem:[%s5 + $0x24] sm:$0xf]
      %v7548 = vld [vmem:[%s5 + $0x28] sm:$0xf]
      %v7549 = vld [vmem:[%s5 + $0x2c] sm:$0xf]
      %v7550 = vld [vmem:[%s5 + $0x30] sm:$0xf]
      %v7551 = vld [vmem:[%s5 + $0x34] sm:$0xf]
      %v7552 = vld [vmem:[%s5 + $0x38] sm:$0xf]
      %v7553 = vld [vmem:[%s5 + $0x3c] sm:$0xf]
      %v7554 = vld [vmem:[%s5 + $0x40] sm:$0xf]
      %v7555 = vld [vmem:[%s5 + $0x44] sm:$0xf]
      %v7556 = vld [vmem:[%s5 + $0x48] sm:$0xf]
      %v7557 = vld [vmem:[%s5 + $0x4c] sm:$0xf]
      %v7558 = vld [vmem:[%s5 + $0x50] sm:$0xf]
      %v7559 = vld [vmem:[%s5 + $0x54] sm:$0xf]
      %v7560 = vld [vmem:[%s5 + $0x58] sm:$0xf]
      %v7561 = vld [vmem:[%s5 + $0x5c] sm:$0xf]
      %v7562 = vld [vmem:[%s5 + $0x60] sm:$0xf]
      %v7563 = vld [vmem:[%s5 + $0x64] sm:$0xf]
      %v7564 = vld [vmem:[%s5 + $0x68] sm:$0xf]
      %v7565 = vld [vmem:[%s5 + $0x6c] sm:$0xf]
      %v7566 = vld [vmem:[%s5 + $0x70] sm:$0xf]
      %v7567 = vld [vmem:[%s5 + $0x74] sm:$0xf]
      %v7568 = vld [vmem:[%s5 + $0x78] sm:$0xf]
      %v7569 = vld [vmem:[%s5 + $0x7c] sm:$0xf]
      %vm7570 = vsmask.f32 3328
      %vm7571 = vsmask.f32 7440
      %vm7572 = vmor %vm7570, %vm7571
      %v7574 = vshrl.u32 %v7508, 16
      %v7576 = vrot.slane %v7574, 4
      %v7577 = vshll.u32 %v7508, 16
      %v7579 = vrot.slane %v7577, 5
      %v7580 = vor.u32 %v7576, %v7579
      %v7581 = vrot.slane %v7580, 4
      %v7583 = vshll.u32 %v7509, 16
      %v7585 = vrot.slane %v7583, 5
      %v7586 = vsel %vm7572, %v7581, %v7585
      %v7587 = vshrl.u32 %v7509, 16
      %v7589 = vrot.slane %v7587, 4
      %v7590 = vor.u32 %v7589, %v7585
      %v7591 = vrot.slane %v7590, 4
      %v7593 = vshll.u32 %v7510, 16
      %v7595 = vrot.slane %v7593, 5
      %v7596 = vsel %vm7572, %v7591, %v7595
      %v7598 = vshrl.u32 %v7511, 16
      %v7600 = vrot.slane %v7598, 4
      %v7601 = vshll.u32 %v7511, 16
      %v7603 = vrot.slane %v7601, 5
      %v7604 = vor.u32 %v7600, %v7603
      %v7605 = vrot.slane %v7604, 4
      %v7607 = vshll.u32 %v7512, 16
      %v7609 = vrot.slane %v7607, 5
      %v7610 = vsel %vm7572, %v7605, %v7609
      %v7611 = vshrl.u32 %v7512, 16
      %v7613 = vrot.slane %v7611, 4
      %v7614 = vor.u32 %v7613, %v7609
      %v7615 = vrot.slane %v7614, 4
      %v7617 = vshll.u32 %v7513, 16
      %v7619 = vrot.slane %v7617, 5
      %v7620 = vsel %vm7572, %v7615, %v7619
      %v7622 = vshrl.u32 %v7514, 16
      %v7624 = vrot.slane %v7622, 4
      %v7625 = vshll.u32 %v7514, 16
      %v7627 = vrot.slane %v7625, 5
      %v7628 = vor.u32 %v7624, %v7627
      %v7629 = vrot.slane %v7628, 4
      %v7631 = vshll.u32 %v7515, 16
      %v7633 = vrot.slane %v7631, 5
      %v7634 = vsel %vm7572, %v7629, %v7633
      %v7635 = vshrl.u32 %v7515, 16
      %v7637 = vrot.slane %v7635, 4
      %v7638 = vor.u32 %v7637, %v7633
      %v7639 = vrot.slane %v7638, 4
      %v7641 = vshll.u32 %v7516, 16
      %v7643 = vrot.slane %v7641, 5
      %v7644 = vsel %vm7572, %v7639, %v7643
      %v7646 = vshrl.u32 %v7517, 16
      %v7648 = vrot.slane %v7646, 4
      %v7649 = vshll.u32 %v7517, 16
      %v7651 = vrot.slane %v7649, 5
      %v7652 = vor.u32 %v7648, %v7651
      %v7653 = vrot.slane %v7652, 4
      %v7655 = vshll.u32 %v7518, 16
      %v7657 = vrot.slane %v7655, 5
      %v7658 = vsel %vm7572, %v7653, %v7657
      %v7659 = vshrl.u32 %v7518, 16
      %v7661 = vrot.slane %v7659, 4
      %v7662 = vor.u32 %v7661, %v7657
      %v7663 = vrot.slane %v7662, 4
      %v7665 = vshll.u32 %v7519, 16
      %v7667 = vrot.slane %v7665, 5
      %v7668 = vsel %vm7572, %v7663, %v7667
      %v7670 = vshrl.u32 %v7520, 16
      %v7672 = vrot.slane %v7670, 4
      %v7673 = vshll.u32 %v7520, 16
      %v7675 = vrot.slane %v7673, 5
      %v7676 = vor.u32 %v7672, %v7675
      %v7677 = vrot.slane %v7676, 4
      %v7679 = vshll.u32 %v7521, 16
      %v7681 = vrot.slane %v7679, 5
      %v7682 = vsel %vm7572, %v7677, %v7681
      %v7683 = vshrl.u32 %v7521, 16
      %v7685 = vrot.slane %v7683, 4
      %v7686 = vor.u32 %v7685, %v7681
      %v7687 = vrot.slane %v7686, 4
      %v7689 = vshll.u32 %v7522, 16
      %v7691 = vrot.slane %v7689, 5
      %v7692 = vsel %vm7572, %v7687, %v7691
      %v7694 = vshrl.u32 %v7523, 16
      %v7696 = vrot.slane %v7694, 4
      %v7697 = vshll.u32 %v7523, 16
      %v7699 = vrot.slane %v7697, 5
      %v7700 = vor.u32 %v7696, %v7699
      %v7701 = vrot.slane %v7700, 4
      %v7703 = vshll.u32 %v7524, 16
      %v7705 = vrot.slane %v7703, 5
      %v7706 = vsel %vm7572, %v7701, %v7705
      %v7707 = vshrl.u32 %v7524, 16
      %v7709 = vrot.slane %v7707, 4
      %v7710 = vor.u32 %v7709, %v7705
      %v7711 = vrot.slane %v7710, 4
      %v7713 = vshll.u32 %v7525, 16
      %v7715 = vrot.slane %v7713, 5
      %v7716 = vsel %vm7572, %v7711, %v7715
      %v7718 = vshrl.u32 %v7526, 16
      %v7720 = vrot.slane %v7718, 4
      %v7721 = vshll.u32 %v7526, 16
      %v7723 = vrot.slane %v7721, 5
      %v7724 = vor.u32 %v7720, %v7723
      %v7725 = vrot.slane %v7724, 4
      %v7727 = vshll.u32 %v7527, 16
      %v7729 = vrot.slane %v7727, 5
      %v7730 = vsel %vm7572, %v7725, %v7729
      %v7731 = vshrl.u32 %v7527, 16
      %v7733 = vrot.slane %v7731, 4
      %v7734 = vor.u32 %v7733, %v7729
      %v7735 = vrot.slane %v7734, 4
      %v7737 = vshll.u32 %v7528, 16
      %v7739 = vrot.slane %v7737, 5
      %v7740 = vsel %vm7572, %v7735, %v7739
      %v7742 = vshrl.u32 %v7529, 16
      %v7744 = vrot.slane %v7742, 4
      %v7745 = vshll.u32 %v7529, 16
      %v7747 = vrot.slane %v7745, 5
      %v7748 = vor.u32 %v7744, %v7747
      %v7749 = vrot.slane %v7748, 4
      %v7751 = vshll.u32 %v7530, 16
      %v7753 = vrot.slane %v7751, 5
      %v7754 = vsel %vm7572, %v7749, %v7753
      %v7755 = vshrl.u32 %v7530, 16
      %v7757 = vrot.slane %v7755, 4
      %v7758 = vor.u32 %v7757, %v7753
      %v7759 = vrot.slane %v7758, 4
      %v7761 = vshll.u32 %v7531, 16
      %v7763 = vrot.slane %v7761, 5
      %v7764 = vsel %vm7572, %v7759, %v7763
      %s7765 = scalar_lea.vmem %s5, 128
      %v7766 = vld [vmem:[%s7765] sm:$0xf]
      %v7767 = vld [vmem:[%s7765 + $0x4] sm:$0xf]
      %v7768 = vld [vmem:[%s7765 + $0x8] sm:$0xf]
      %v7769 = vld [vmem:[%s7765 + $0xc] sm:$0xf]
      %v7770 = vld [vmem:[%s7765 + $0x10] sm:$0xf]
      %v7771 = vld [vmem:[%s7765 + $0x14] sm:$0xf]
      %v7772 = vld [vmem:[%s7765 + $0x18] sm:$0xf]
      %v7773 = vld [vmem:[%s7765 + $0x1c] sm:$0xf]
      %v7774 = vld [vmem:[%s7765 + $0x20] sm:$0xf]
      %v7775 = vld [vmem:[%s7765 + $0x24] sm:$0xf]
      %v7776 = vld [vmem:[%s7765 + $0x28] sm:$0xf]
      %v7777 = vld [vmem:[%s7765 + $0x2c] sm:$0xf]
      %v7778 = vld [vmem:[%s7765 + $0x30] sm:$0xf]
      %v7779 = vld [vmem:[%s7765 + $0x34] sm:$0xf]
      %v7780 = vld [vmem:[%s7765 + $0x38] sm:$0xf]
      %v7781 = vld [vmem:[%s7765 + $0x3c] sm:$0xf]
      %v7782 = vld [vmem:[%s7765 + $0x40] sm:$0xf]
      %v7783 = vld [vmem:[%s7765 + $0x44] sm:$0xf]
      %v7784 = vld [vmem:[%s7765 + $0x48] sm:$0xf]
      %v7785 = vld [vmem:[%s7765 + $0x4c] sm:$0xf]
      %v7786 = vld [vmem:[%s7765 + $0x50] sm:$0xf]
      %v7787 = vld [vmem:[%s7765 + $0x54] sm:$0xf]
      %v7788 = vld [vmem:[%s7765 + $0x58] sm:$0xf]
      %v7789 = vld [vmem:[%s7765 + $0x5c] sm:$0xf]
      %v7790 = vld [vmem:[%s7765 + $0x60] sm:$0xf]
      %v7791 = vld [vmem:[%s7765 + $0x64] sm:$0xf]
      %v7792 = vld [vmem:[%s7765 + $0x68] sm:$0xf]
      %v7793 = vld [vmem:[%s7765 + $0x6c] sm:$0xf]
      %v7794 = vld [vmem:[%s7765 + $0x70] sm:$0xf]
      %v7795 = vld [vmem:[%s7765 + $0x74] sm:$0xf]
      %v7796 = vld [vmem:[%s7765 + $0x78] sm:$0xf]
      %v7797 = vld [vmem:[%s7765 + $0x7c] sm:$0xf]
      %v7798 = vunpack.c.l.b16 %v7586
      %v7799 = vunpack.c.h.b16 %v7586
      %v7800 = vunpack.c.l.b16 %v7596
      %v7801 = vunpack.c.h.b16 %v7596
      %v7802 = vunpack.c.l.b16 %v7610
      %v7803 = vunpack.c.h.b16 %v7610
      %v7804 = vunpack.c.l.b16 %v7620
      %v7805 = vunpack.c.h.b16 %v7620
      %v7806 = vunpack.c.l.b16 %v7634
      %v7807 = vunpack.c.h.b16 %v7634
      %v7808 = vunpack.c.l.b16 %v7644
      %v7809 = vunpack.c.h.b16 %v7644
      %v7810 = vunpack.c.l.b16 %v7658
      %v7811 = vunpack.c.h.b16 %v7658
      %v7812 = vunpack.c.l.b16 %v7668
      %v7813 = vunpack.c.h.b16 %v7668
      %v7814 = vunpack.c.l.b16 %v7682
      %v7815 = vunpack.c.h.b16 %v7682
      %v7816 = vunpack.c.l.b16 %v7692
      %v7817 = vunpack.c.h.b16 %v7692
      %v7818 = vunpack.c.l.b16 %v7706
      %v7819 = vunpack.c.h.b16 %v7706
      %v7820 = vunpack.c.l.b16 %v7716
      %v7821 = vunpack.c.h.b16 %v7716
      %v7822 = vunpack.c.l.b16 %v7730
      %v7823 = vunpack.c.h.b16 %v7730
      %v7824 = vunpack.c.l.b16 %v7740
      %v7825 = vunpack.c.h.b16 %v7740
      %v7826 = vunpack.c.l.b16 %v7754
      %v7827 = vunpack.c.h.b16 %v7754
      %v7828 = vunpack.c.l.b16 %v7764
      %v7829 = vunpack.c.h.b16 %v7764
      %v7830 = vpack.c.b16 %v7800, %v7798
      %v7831 = vpack.c.b16 %v7801, %v7799
      %v7832 = vpack.c.b16 %v7804, %v7802
      %v7833 = vpack.c.b16 %v7805, %v7803
      %v7834 = vpack.c.b16 %v7808, %v7806
      %v7835 = vpack.c.b16 %v7809, %v7807
      %v7836 = vpack.c.b16 %v7812, %v7810
      %v7837 = vpack.c.b16 %v7813, %v7811
      %v7838 = vpack.c.b16 %v7816, %v7814
      %v7839 = vpack.c.b16 %v7817, %v7815
      %v7840 = vpack.c.b16 %v7820, %v7818
      %v7841 = vpack.c.b16 %v7821, %v7819
      %v7842 = vpack.c.b16 %v7824, %v7822
      %v7843 = vpack.c.b16 %v7825, %v7823
      %v7844 = vpack.c.b16 %v7828, %v7826
      %v7845 = vpack.c.b16 %v7829, %v7827
      %v7894 = vunpack.c.l.b16 %v7766
      %v7895 = vunpack.c.l.b16 %v7767
      %v7896 = vunpack.c.l.b16 %v7768
      %v7897 = vunpack.c.l.b16 %v7769
      %v7898 = vunpack.c.l.b16 %v7770
      %v7899 = vunpack.c.l.b16 %v7771
      %v7900 = vunpack.c.l.b16 %v7772
      %v7901 = vunpack.c.l.b16 %v7773
      %v7902 = vunpack.c.l.b16 %v7774
      %v7903 = vunpack.c.l.b16 %v7775
      %v7904 = vunpack.c.l.b16 %v7776
      %v7905 = vunpack.c.l.b16 %v7777
      %v7906 = vunpack.c.l.b16 %v7778
      %v7907 = vunpack.c.l.b16 %v7779
      %v7908 = vunpack.c.l.b16 %v7780
      %v7909 = vunpack.c.l.b16 %v7781
      %v7910 = vunpack.c.l.b16 %v7782
      %v7911 = vunpack.c.l.b16 %v7783
      %v7912 = vunpack.c.l.b16 %v7784
      %v7913 = vunpack.c.l.b16 %v7785
      %v7914 = vunpack.c.l.b16 %v7786
      %v7915 = vunpack.c.l.b16 %v7787
      %v7916 = vunpack.c.l.b16 %v7788
      %v7917 = vunpack.c.l.b16 %v7789
      %v7918 = vunpack.c.l.b16 %v7790
      %v7919 = vunpack.c.l.b16 %v7791
      %v7920 = vunpack.c.l.b16 %v7792
      %v7921 = vunpack.c.l.b16 %v7793
      %v7922 = vunpack.c.l.b16 %v7794
      %v7923 = vunpack.c.l.b16 %v7795
      %v7924 = vunpack.c.l.b16 %v7796
      %v7925 = vunpack.c.l.b16 %v7797
      %v7926 = vpack.c.b16 %v7895, %v7894
      %v7927 = vpack.c.b16 %v7897, %v7896
      %v7928 = vpack.c.b16 %v7899, %v7898
      %v7929 = vpack.c.b16 %v7901, %v7900
      %v7930 = vpack.c.b16 %v7903, %v7902
      %v7931 = vpack.c.b16 %v7905, %v7904
      %v7932 = vpack.c.b16 %v7907, %v7906
      %v7933 = vpack.c.b16 %v7909, %v7908
      %v7934 = vpack.c.b16 %v7911, %v7910
      %v7935 = vpack.c.b16 %v7913, %v7912
      %v7936 = vpack.c.b16 %v7915, %v7914
      %v7937 = vpack.c.b16 %v7917, %v7916
      %v7938 = vpack.c.b16 %v7919, %v7918
      %v7939 = vpack.c.b16 %v7921, %v7920
      %v7940 = vpack.c.b16 %v7923, %v7922
      %v7941 = vpack.c.b16 %v7925, %v7924
      %7958 = vmatpush.bf16.msra.mxu0 %v7933
      %7959 = vmatpush.bf16.msra.mxu0 %v7932
      %7960 = vmatpush.bf16.msra.mxu0 %v7931
      %7961 = vmatpush.bf16.msra.mxu0 %v7930
      %7962 = vmatpush.bf16.msra.mxu0 %v7929
      %7963 = vmatpush.bf16.msra.mxu0 %v7928
      %7964 = vmatpush.bf16.msra.mxu0 %v7927
      %7965 = vmatpush.bf16.msra.mxu0 %v7926
      %7966 = vmatmul.bf16.gmra.mxu0 %v7830
      %v7967 = vpop.f32.mrf.mxu0
      %v7968 = vadd.f32 0.0, %v7967
      %v7969 = vpop.f32.mrf.mxu0
      %v7970 = vadd.f32 0.0, %v7969
      %7971 = vmatmul.bf16.gmra.mxu0 %v7832
      %v7972 = vpop.f32.mrf.mxu0
      %v7973 = vadd.f32 0.0, %v7972
      %v7974 = vpop.f32.mrf.mxu0
      %v7975 = vadd.f32 0.0, %v7974
      %7976 = vmatmul.bf16.gmra.mxu0 %v7834
      %v7977 = vpop.f32.mrf.mxu0
      %v7978 = vadd.f32 0.0, %v7977
      %v7979 = vpop.f32.mrf.mxu0
      %v7980 = vadd.f32 0.0, %v7979
      %7981 = vmatmul.bf16.gmra.mxu0 %v7836
      %v7982 = vpop.f32.mrf.mxu0
      %v7983 = vadd.f32 0.0, %v7982
      %v7984 = vpop.f32.mrf.mxu0
      %v7985 = vadd.f32 0.0, %v7984
      %7986 = vmatmul.bf16.gmra.mxu0 %v7838
      %v7987 = vpop.f32.mrf.mxu0
      %v7988 = vadd.f32 0.0, %v7987
      %v7989 = vpop.f32.mrf.mxu0
      %v7990 = vadd.f32 0.0, %v7989
      %7991 = vmatmul.bf16.gmra.mxu0 %v7840
      %v7992 = vpop.f32.mrf.mxu0
      %v7993 = vadd.f32 0.0, %v7992
      %v7994 = vpop.f32.mrf.mxu0
      %v7995 = vadd.f32 0.0, %v7994
      %7996 = vmatmul.bf16.gmra.mxu0 %v7842
      %v7997 = vpop.f32.mrf.mxu0
      %v7998 = vadd.f32 0.0, %v7997
      %v7999 = vpop.f32.mrf.mxu0
      %v8000 = vadd.f32 0.0, %v7999
      %8001 = vmatmul.bf16.gmra.mxu0 %v7844
      %v8002 = vpop.f32.mrf.mxu0
      %v8003 = vadd.f32 0.0, %v8002
      %v8004 = vpop.f32.mrf.mxu0
      %v8005 = vadd.f32 0.0, %v8004
      %8006 = vdwg.mxu0
      %8007 = vmatpush.bf16.msra.mxu0 %v7941
      %8008 = vmatpush.bf16.msra.mxu0 %v7940
      %8009 = vmatpush.bf16.msra.mxu0 %v7939
      %8010 = vmatpush.bf16.msra.mxu0 %v7938
      %8011 = vmatpush.bf16.msra.mxu0 %v7937
      %8012 = vmatpush.bf16.msra.mxu0 %v7936
      %8013 = vmatpush.bf16.msra.mxu0 %v7935
      %8014 = vmatpush.bf16.msra.mxu0 %v7934
      %8015 = vmatmul.bf16.gmra.mxu0 %v7831
      %v8016 = vpop.f32.mrf.mxu0
      %v8017 = vadd.f32 %v7968, %v8016
      %v8018 = vpop.f32.mrf.mxu0
      %v8019 = vadd.f32 %v7970, %v8018
      %8020 = vmatmul.bf16.gmra.mxu0 %v7833
      %v8021 = vpop.f32.mrf.mxu0
      %v8022 = vadd.f32 %v7973, %v8021
      %v8023 = vpop.f32.mrf.mxu0
      %v8024 = vadd.f32 %v7975, %v8023
      %8025 = vmatmul.bf16.gmra.mxu0 %v7835
      %v8026 = vpop.f32.mrf.mxu0
      %v8027 = vadd.f32 %v7978, %v8026
      %v8028 = vpop.f32.mrf.mxu0
      %v8029 = vadd.f32 %v7980, %v8028
      %8030 = vmatmul.bf16.gmra.mxu0 %v7837
      %v8031 = vpop.f32.mrf.mxu0
      %v8032 = vadd.f32 %v7983, %v8031
      %v8033 = vpop.f32.mrf.mxu0
      %v8034 = vadd.f32 %v7985, %v8033
      %8035 = vmatmul.bf16.gmra.mxu0 %v7839
      %v8036 = vpop.f32.mrf.mxu0
      %v8037 = vadd.f32 %v7988, %v8036
      %v8038 = vpop.f32.mrf.mxu0
      %v8039 = vadd.f32 %v7990, %v8038
      %8040 = vmatmul.bf16.gmra.mxu0 %v7841
      %v8041 = vpop.f32.mrf.mxu0
      %v8042 = vadd.f32 %v7993, %v8041
      %v8043 = vpop.f32.mrf.mxu0
      %v8044 = vadd.f32 %v7995, %v8043
      %8045 = vmatmul.bf16.gmra.mxu0 %v7843
      %v8046 = vpop.f32.mrf.mxu0
      %v8047 = vadd.f32 %v7998, %v8046
      %v8048 = vpop.f32.mrf.mxu0
      %v8049 = vadd.f32 %v8000, %v8048
      %8050 = vmatmul.bf16.gmra.mxu0 %v7845
      %v8051 = vpop.f32.mrf.mxu0
      %v8052 = vadd.f32 %v8003, %v8051
      %v8053 = vpop.f32.mrf.mxu0
      %v8054 = vadd.f32 %v8005, %v8053
      %8055 = vdwg.mxu0
      %v8072 = vunpack.c.l.b16 %v7508
      %v8073 = vunpack.c.h.b16 %v7508
      %v8074 = vunpack.c.l.b16 %v7509
      %v8075 = vunpack.c.h.b16 %v7509
      %v8076 = vunpack.c.l.b16 %v7511
      %v8077 = vunpack.c.h.b16 %v7511
      %v8078 = vunpack.c.l.b16 %v7512
      %v8079 = vunpack.c.h.b16 %v7512
      %v8080 = vunpack.c.l.b16 %v7514
      %v8081 = vunpack.c.h.b16 %v7514
      %v8082 = vunpack.c.l.b16 %v7515
      %v8083 = vunpack.c.h.b16 %v7515
      %v8084 = vunpack.c.l.b16 %v7517
      %v8085 = vunpack.c.h.b16 %v7517
      %v8086 = vunpack.c.l.b16 %v7518
      %v8087 = vunpack.c.h.b16 %v7518
      %v8088 = vunpack.c.l.b16 %v7520
      %v8089 = vunpack.c.h.b16 %v7520
      %v8090 = vunpack.c.l.b16 %v7521
      %v8091 = vunpack.c.h.b16 %v7521
      %v8092 = vunpack.c.l.b16 %v7523
      %v8093 = vunpack.c.h.b16 %v7523
      %v8094 = vunpack.c.l.b16 %v7524
      %v8095 = vunpack.c.h.b16 %v7524
      %v8096 = vunpack.c.l.b16 %v7526
      %v8097 = vunpack.c.h.b16 %v7526
      %v8098 = vunpack.c.l.b16 %v7527
      %v8099 = vunpack.c.h.b16 %v7527
      %v8100 = vunpack.c.l.b16 %v7529
      %v8101 = vunpack.c.h.b16 %v7529
      %v8102 = vunpack.c.l.b16 %v7530
      %v8103 = vunpack.c.h.b16 %v7530
      %v8104 = vpack.c.b16 %v8074, %v8072
      %v8105 = vpack.c.b16 %v8075, %v8073
      %v8106 = vpack.c.b16 %v8078, %v8076
      %v8107 = vpack.c.b16 %v8079, %v8077
      %v8108 = vpack.c.b16 %v8082, %v8080
      %v8109 = vpack.c.b16 %v8083, %v8081
      %v8110 = vpack.c.b16 %v8086, %v8084
      %v8111 = vpack.c.b16 %v8087, %v8085
      %v8112 = vpack.c.b16 %v8090, %v8088
      %v8113 = vpack.c.b16 %v8091, %v8089
      %v8114 = vpack.c.b16 %v8094, %v8092
      %v8115 = vpack.c.b16 %v8095, %v8093
      %v8116 = vpack.c.b16 %v8098, %v8096
      %v8117 = vpack.c.b16 %v8099, %v8097
      %v8118 = vpack.c.b16 %v8102, %v8100
      %v8119 = vpack.c.b16 %v8103, %v8101
      %v8168 = vunpack.c.l.b16 %v7538
      %v8169 = vunpack.c.l.b16 %v7539
      %v8170 = vunpack.c.l.b16 %v7540
      %v8171 = vunpack.c.l.b16 %v7541
      %v8172 = vunpack.c.l.b16 %v7542
      %v8173 = vunpack.c.l.b16 %v7543
      %v8174 = vunpack.c.l.b16 %v7544
      %v8175 = vunpack.c.l.b16 %v7545
      %v8176 = vunpack.c.l.b16 %v7546
      %v8177 = vunpack.c.l.b16 %v7547
      %v8178 = vunpack.c.l.b16 %v7548
      %v8179 = vunpack.c.l.b16 %v7549
      %v8180 = vunpack.c.l.b16 %v7550
      %v8181 = vunpack.c.l.b16 %v7551
      %v8182 = vunpack.c.l.b16 %v7552
      %v8183 = vunpack.c.l.b16 %v7553
      %v8184 = vunpack.c.l.b16 %v7554
      %v8185 = vunpack.c.l.b16 %v7555
      %v8186 = vunpack.c.l.b16 %v7556
      %v8187 = vunpack.c.l.b16 %v7557
      %v8188 = vunpack.c.l.b16 %v7558
      %v8189 = vunpack.c.l.b16 %v7559
      %v8190 = vunpack.c.l.b16 %v7560
      %v8191 = vunpack.c.l.b16 %v7561
      %v8192 = vunpack.c.l.b16 %v7562
      %v8193 = vunpack.c.l.b16 %v7563
      %v8194 = vunpack.c.l.b16 %v7564
      %v8195 = vunpack.c.l.b16 %v7565
      %v8196 = vunpack.c.l.b16 %v7566
      %v8197 = vunpack.c.l.b16 %v7567
      %v8198 = vunpack.c.l.b16 %v7568
      %v8199 = vunpack.c.l.b16 %v7569
      %v8200 = vpack.c.b16 %v8169, %v8168
      %v8201 = vpack.c.b16 %v8171, %v8170
      %v8202 = vpack.c.b16 %v8173, %v8172
      %v8203 = vpack.c.b16 %v8175, %v8174
      %v8204 = vpack.c.b16 %v8177, %v8176
      %v8205 = vpack.c.b16 %v8179, %v8178
      %v8206 = vpack.c.b16 %v8181, %v8180
      %v8207 = vpack.c.b16 %v8183, %v8182
      %v8208 = vpack.c.b16 %v8185, %v8184
      %v8209 = vpack.c.b16 %v8187, %v8186
      %v8210 = vpack.c.b16 %v8189, %v8188
      %v8211 = vpack.c.b16 %v8191, %v8190
      %v8212 = vpack.c.b16 %v8193, %v8192
      %v8213 = vpack.c.b16 %v8195, %v8194
      %v8214 = vpack.c.b16 %v8197, %v8196
      %v8215 = vpack.c.b16 %v8199, %v8198
      %8232 = vmatpush.bf16.msra.mxu0 %v8207
      %8233 = vmatpush.bf16.msra.mxu0 %v8206
      %8234 = vmatpush.bf16.msra.mxu0 %v8205
      %8235 = vmatpush.bf16.msra.mxu0 %v8204
      %8236 = vmatpush.bf16.msra.mxu0 %v8203
      %8237 = vmatpush.bf16.msra.mxu0 %v8202
      %8238 = vmatpush.bf16.msra.mxu0 %v8201
      %8239 = vmatpush.bf16.msra.mxu0 %v8200
      %8240 = vmatmul.bf16.gmra.mxu0 %v8104
      %v8241 = vpop.f32.mrf.mxu0
      %v8242 = vadd.f32 %v8017, %v8241
      %v8243 = vpop.f32.mrf.mxu0
      %v8244 = vadd.f32 %v8019, %v8243
      %8245 = vmatmul.bf16.gmra.mxu0 %v8106
      %v8246 = vpop.f32.mrf.mxu0
      %v8247 = vadd.f32 %v8022, %v8246
      %v8248 = vpop.f32.mrf.mxu0
      %v8249 = vadd.f32 %v8024, %v8248
      %8250 = vmatmul.bf16.gmra.mxu0 %v8108
      %v8251 = vpop.f32.mrf.mxu0
      %v8252 = vadd.f32 %v8027, %v8251
      %v8253 = vpop.f32.mrf.mxu0
      %v8254 = vadd.f32 %v8029, %v8253
      %8255 = vmatmul.bf16.gmra.mxu0 %v8110
      %v8256 = vpop.f32.mrf.mxu0
      %v8257 = vadd.f32 %v8032, %v8256
      %v8258 = vpop.f32.mrf.mxu0
      %v8259 = vadd.f32 %v8034, %v8258
      %8260 = vmatmul.bf16.gmra.mxu0 %v8112
      %v8261 = vpop.f32.mrf.mxu0
      %v8262 = vadd.f32 %v8037, %v8261
      %v8263 = vpop.f32.mrf.mxu0
      %v8264 = vadd.f32 %v8039, %v8263
      %8265 = vmatmul.bf16.gmra.mxu0 %v8114
      %v8266 = vpop.f32.mrf.mxu0
      %v8267 = vadd.f32 %v8042, %v8266
      %v8268 = vpop.f32.mrf.mxu0
      %v8269 = vadd.f32 %v8044, %v8268
      %8270 = vmatmul.bf16.gmra.mxu0 %v8116
      %v8271 = vpop.f32.mrf.mxu0
      %v8272 = vadd.f32 %v8047, %v8271
      %v8273 = vpop.f32.mrf.mxu0
      %v8274 = vadd.f32 %v8049, %v8273
      %8275 = vmatmul.bf16.gmra.mxu0 %v8118
      %v8276 = vpop.f32.mrf.mxu0
      %v8277 = vadd.f32 %v8052, %v8276
      %v8278 = vpop.f32.mrf.mxu0
      %v8279 = vadd.f32 %v8054, %v8278
      %8280 = vdwg.mxu0
      %8281 = vmatpush.bf16.msra.mxu0 %v8215
      %8282 = vmatpush.bf16.msra.mxu0 %v8214
      %8283 = vmatpush.bf16.msra.mxu0 %v8213
      %8284 = vmatpush.bf16.msra.mxu0 %v8212
      %8285 = vmatpush.bf16.msra.mxu0 %v8211
      %8286 = vmatpush.bf16.msra.mxu0 %v8210
      %8287 = vmatpush.bf16.msra.mxu0 %v8209
      %8288 = vmatpush.bf16.msra.mxu0 %v8208
      %8289 = vmatmul.bf16.gmra.mxu0 %v8105
      %v8290 = vpop.f32.mrf.mxu0
      %v8291 = vadd.f32 %v8242, %v8290
      %v8292 = vpop.f32.mrf.mxu0
      %v8293 = vadd.f32 %v8244, %v8292
      %8294 = vmatmul.bf16.gmra.mxu0 %v8107
      %v8295 = vpop.f32.mrf.mxu0
      %v8296 = vadd.f32 %v8247, %v8295
      %v8297 = vpop.f32.mrf.mxu0
      %v8298 = vadd.f32 %v8249, %v8297
      %8299 = vmatmul.bf16.gmra.mxu0 %v8109
      %v8300 = vpop.f32.mrf.mxu0
      %v8301 = vadd.f32 %v8252, %v8300
      %v8302 = vpop.f32.mrf.mxu0
      %v8303 = vadd.f32 %v8254, %v8302
      %8304 = vmatmul.bf16.gmra.mxu0 %v8111
      %v8305 = vpop.f32.mrf.mxu0
      %v8306 = vadd.f32 %v8257, %v8305
      %v8307 = vpop.f32.mrf.mxu0
      %v8308 = vadd.f32 %v8259, %v8307
      %8309 = vmatmul.bf16.gmra.mxu0 %v8113
      %v8310 = vpop.f32.mrf.mxu0
      %v8311 = vadd.f32 %v8262, %v8310
      %v8312 = vpop.f32.mrf.mxu0
      %v8313 = vadd.f32 %v8264, %v8312
      %8314 = vmatmul.bf16.gmra.mxu0 %v8115
      %v8315 = vpop.f32.mrf.mxu0
      %v8316 = vadd.f32 %v8267, %v8315
      %v8317 = vpop.f32.mrf.mxu0
      %v8318 = vadd.f32 %v8269, %v8317
      %8319 = vmatmul.bf16.gmra.mxu0 %v8117
      %v8320 = vpop.f32.mrf.mxu0
      %v8321 = vadd.f32 %v8272, %v8320
      %v8322 = vpop.f32.mrf.mxu0
      %v8323 = vadd.f32 %v8274, %v8322
      %8324 = vmatmul.bf16.gmra.mxu0 %v8119
      %v8325 = vpop.f32.mrf.mxu0
      %v8326 = vadd.f32 %v8277, %v8325
      %v8327 = vpop.f32.mrf.mxu0
      %v8328 = vadd.f32 %v8279, %v8327
      %8329 = vdwg.mxu0
      %vm8338 = vcmask 1042432
      %vm8339 = vcmask 1046532
      %vm8340 = vmor %vm8338, %vm8339
      %v8341 = vrot.slane %v7508, 5
      %v8342 = vrot.slane %v8341, 4
      %v8343 = vrot.slane %v7509, 5
      %v8344 = vsel %vm8340, %v8342, %v8343
      %v8345 = vrot.slane %v8343, 4
      %v8346 = vrot.slane %v7510, 5
      %v8347 = vsel %vm8340, %v8345, %v8346
      %v8348 = vrot.slane %v7511, 5
      %v8349 = vrot.slane %v8348, 4
      %v8350 = vrot.slane %v7512, 5
      %v8351 = vsel %vm8340, %v8349, %v8350
      %v8352 = vrot.slane %v8350, 4
      %v8353 = vrot.slane %v7513, 5
      %v8354 = vsel %vm8340, %v8352, %v8353
      %v8355 = vrot.slane %v7514, 5
      %v8356 = vrot.slane %v8355, 4
      %v8357 = vrot.slane %v7515, 5
      %v8358 = vsel %vm8340, %v8356, %v8357
      %v8359 = vrot.slane %v8357, 4
      %v8360 = vrot.slane %v7516, 5
      %v8361 = vsel %vm8340, %v8359, %v8360
      %v8362 = vrot.slane %v7517, 5
      %v8363 = vrot.slane %v8362, 4
      %v8364 = vrot.slane %v7518, 5
      %v8365 = vsel %vm8340, %v8363, %v8364
      %v8366 = vrot.slane %v8364, 4
      %v8367 = vrot.slane %v7519, 5
      %v8368 = vsel %vm8340, %v8366, %v8367
      %v8369 = vrot.slane %v7520, 5
      %v8370 = vrot.slane %v8369, 4
      %v8371 = vrot.slane %v7521, 5
      %v8372 = vsel %vm8340, %v8370, %v8371
      %v8373 = vrot.slane %v8371, 4
      %v8374 = vrot.slane %v7522, 5
      %v8375 = vsel %vm8340, %v8373, %v8374
      %v8376 = vrot.slane %v7523, 5
      %v8377 = vrot.slane %v8376, 4
      %v8378 = vrot.slane %v7524, 5
      %v8379 = vsel %vm8340, %v8377, %v8378
      %v8380 = vrot.slane %v8378, 4
      %v8381 = vrot.slane %v7525, 5
      %v8382 = vsel %vm8340, %v8380, %v8381
      %v8383 = vrot.slane %v7526, 5
      %v8384 = vrot.slane %v8383, 4
      %v8385 = vrot.slane %v7527, 5
      %v8386 = vsel %vm8340, %v8384, %v8385
      %v8387 = vrot.slane %v8385, 4
      %v8388 = vrot.slane %v7528, 5
      %v8389 = vsel %vm8340, %v8387, %v8388
      %v8390 = vrot.slane %v7529, 5
      %v8391 = vrot.slane %v8390, 4
      %v8392 = vrot.slane %v7530, 5
      %v8393 = vsel %vm8340, %v8391, %v8392
      %v8394 = vrot.slane %v8392, 4
      %v8395 = vrot.slane %v7531, 5
      %v8396 = vsel %vm8340, %v8394, %v8395
      %s8397 = scalar_lea.vmem %s5, 256
      %v8398 = vld [vmem:[%s8397] sm:$0xf]
      %v8399 = vld [vmem:[%s8397 + $0x4] sm:$0xf]
      %v8400 = vld [vmem:[%s8397 + $0x8] sm:$0xf]
      %v8401 = vld [vmem:[%s8397 + $0xc] sm:$0xf]
      %v8402 = vld [vmem:[%s8397 + $0x10] sm:$0xf]
      %v8403 = vld [vmem:[%s8397 + $0x14] sm:$0xf]
      %v8404 = vld [vmem:[%s8397 + $0x18] sm:$0xf]
      %v8405 = vld [vmem:[%s8397 + $0x1c] sm:$0xf]
      %v8406 = vld [vmem:[%s8397 + $0x20] sm:$0xf]
      %v8407 = vld [vmem:[%s8397 + $0x24] sm:$0xf]
      %v8408 = vld [vmem:[%s8397 + $0x28] sm:$0xf]
      %v8409 = vld [vmem:[%s8397 + $0x2c] sm:$0xf]
      %v8410 = vld [vmem:[%s8397 + $0x30] sm:$0xf]
      %v8411 = vld [vmem:[%s8397 + $0x34] sm:$0xf]
      %v8412 = vld [vmem:[%s8397 + $0x38] sm:$0xf]
      %v8413 = vld [vmem:[%s8397 + $0x3c] sm:$0xf]
      %v8414 = vld [vmem:[%s8397 + $0x40] sm:$0xf]
      %v8415 = vld [vmem:[%s8397 + $0x44] sm:$0xf]
      %v8416 = vld [vmem:[%s8397 + $0x48] sm:$0xf]
      %v8417 = vld [vmem:[%s8397 + $0x4c] sm:$0xf]
      %v8418 = vld [vmem:[%s8397 + $0x50] sm:$0xf]
      %v8419 = vld [vmem:[%s8397 + $0x54] sm:$0xf]
      %v8420 = vld [vmem:[%s8397 + $0x58] sm:$0xf]
      %v8421 = vld [vmem:[%s8397 + $0x5c] sm:$0xf]
      %v8422 = vld [vmem:[%s8397 + $0x60] sm:$0xf]
      %v8423 = vld [vmem:[%s8397 + $0x64] sm:$0xf]
      %v8424 = vld [vmem:[%s8397 + $0x68] sm:$0xf]
      %v8425 = vld [vmem:[%s8397 + $0x6c] sm:$0xf]
      %v8426 = vld [vmem:[%s8397 + $0x70] sm:$0xf]
      %v8427 = vld [vmem:[%s8397 + $0x74] sm:$0xf]
      %v8428 = vld [vmem:[%s8397 + $0x78] sm:$0xf]
      %v8429 = vld [vmem:[%s8397 + $0x7c] sm:$0xf]
      %v8430 = vunpack.c.l.b16 %v8344
      %v8431 = vunpack.c.h.b16 %v8344
      %v8432 = vunpack.c.l.b16 %v8347
      %v8433 = vunpack.c.h.b16 %v8347
      %v8434 = vunpack.c.l.b16 %v8351
      %v8435 = vunpack.c.h.b16 %v8351
      %v8436 = vunpack.c.l.b16 %v8354
      %v8437 = vunpack.c.h.b16 %v8354
      %v8438 = vunpack.c.l.b16 %v8358
      %v8439 = vunpack.c.h.b16 %v8358
      %v8440 = vunpack.c.l.b16 %v8361
      %v8441 = vunpack.c.h.b16 %v8361
      %v8442 = vunpack.c.l.b16 %v8365
      %v8443 = vunpack.c.h.b16 %v8365
      %v8444 = vunpack.c.l.b16 %v8368
      %v8445 = vunpack.c.h.b16 %v8368
      %v8446 = vunpack.c.l.b16 %v8372
      %v8447 = vunpack.c.h.b16 %v8372
      %v8448 = vunpack.c.l.b16 %v8375
      %v8449 = vunpack.c.h.b16 %v8375
      %v8450 = vunpack.c.l.b16 %v8379
      %v8451 = vunpack.c.h.b16 %v8379
      %v8452 = vunpack.c.l.b16 %v8382
      %v8453 = vunpack.c.h.b16 %v8382
      %v8454 = vunpack.c.l.b16 %v8386
      %v8455 = vunpack.c.h.b16 %v8386
      %v8456 = vunpack.c.l.b16 %v8389
      %v8457 = vunpack.c.h.b16 %v8389
      %v8458 = vunpack.c.l.b16 %v8393
      %v8459 = vunpack.c.h.b16 %v8393
      %v8460 = vunpack.c.l.b16 %v8396
      %v8461 = vunpack.c.h.b16 %v8396
      %v8462 = vpack.c.b16 %v8432, %v8430
      %v8463 = vpack.c.b16 %v8433, %v8431
      %v8464 = vpack.c.b16 %v8436, %v8434
      %v8465 = vpack.c.b16 %v8437, %v8435
      %v8466 = vpack.c.b16 %v8440, %v8438
      %v8467 = vpack.c.b16 %v8441, %v8439
      %v8468 = vpack.c.b16 %v8444, %v8442
      %v8469 = vpack.c.b16 %v8445, %v8443
      %v8470 = vpack.c.b16 %v8448, %v8446
      %v8471 = vpack.c.b16 %v8449, %v8447
      %v8472 = vpack.c.b16 %v8452, %v8450
      %v8473 = vpack.c.b16 %v8453, %v8451
      %v8474 = vpack.c.b16 %v8456, %v8454
      %v8475 = vpack.c.b16 %v8457, %v8455
      %v8476 = vpack.c.b16 %v8460, %v8458
      %v8477 = vpack.c.b16 %v8461, %v8459
      %v8526 = vunpack.c.l.b16 %v8398
      %v8527 = vunpack.c.l.b16 %v8399
      %v8528 = vunpack.c.l.b16 %v8400
      %v8529 = vunpack.c.l.b16 %v8401
      %v8530 = vunpack.c.l.b16 %v8402
      %v8531 = vunpack.c.l.b16 %v8403
      %v8532 = vunpack.c.l.b16 %v8404
      %v8533 = vunpack.c.l.b16 %v8405
      %v8534 = vunpack.c.l.b16 %v8406
      %v8535 = vunpack.c.l.b16 %v8407
      %v8536 = vunpack.c.l.b16 %v8408
      %v8537 = vunpack.c.l.b16 %v8409
      %v8538 = vunpack.c.l.b16 %v8410
      %v8539 = vunpack.c.l.b16 %v8411
      %v8540 = vunpack.c.l.b16 %v8412
      %v8541 = vunpack.c.l.b16 %v8413
      %v8542 = vunpack.c.l.b16 %v8414
      %v8543 = vunpack.c.l.b16 %v8415
      %v8544 = vunpack.c.l.b16 %v8416
      %v8545 = vunpack.c.l.b16 %v8417
      %v8546 = vunpack.c.l.b16 %v8418
      %v8547 = vunpack.c.l.b16 %v8419
      %v8548 = vunpack.c.l.b16 %v8420
      %v8549 = vunpack.c.l.b16 %v8421
      %v8550 = vunpack.c.l.b16 %v8422
      %v8551 = vunpack.c.l.b16 %v8423
      %v8552 = vunpack.c.l.b16 %v8424
      %v8553 = vunpack.c.l.b16 %v8425
      %v8554 = vunpack.c.l.b16 %v8426
      %v8555 = vunpack.c.l.b16 %v8427
      %v8556 = vunpack.c.l.b16 %v8428
      %v8557 = vunpack.c.l.b16 %v8429
      %v8558 = vpack.c.b16 %v8527, %v8526
      %v8559 = vpack.c.b16 %v8529, %v8528
      %v8560 = vpack.c.b16 %v8531, %v8530
      %v8561 = vpack.c.b16 %v8533, %v8532
      %v8562 = vpack.c.b16 %v8535, %v8534
      %v8563 = vpack.c.b16 %v8537, %v8536
      %v8564 = vpack.c.b16 %v8539, %v8538
      %v8565 = vpack.c.b16 %v8541, %v8540
      %v8566 = vpack.c.b16 %v8543, %v8542
      %v8567 = vpack.c.b16 %v8545, %v8544
      %v8568 = vpack.c.b16 %v8547, %v8546
      %v8569 = vpack.c.b16 %v8549, %v8548
      %v8570 = vpack.c.b16 %v8551, %v8550
      %v8571 = vpack.c.b16 %v8553, %v8552
      %v8572 = vpack.c.b16 %v8555, %v8554
      %v8573 = vpack.c.b16 %v8557, %v8556
      %8590 = vmatpush.bf16.msra.mxu0 %v8565
      %8591 = vmatpush.bf16.msra.mxu0 %v8564
      %8592 = vmatpush.bf16.msra.mxu0 %v8563
      %8593 = vmatpush.bf16.msra.mxu0 %v8562
      %8594 = vmatpush.bf16.msra.mxu0 %v8561
      %8595 = vmatpush.bf16.msra.mxu0 %v8560
      %8596 = vmatpush.bf16.msra.mxu0 %v8559
      %8597 = vmatpush.bf16.msra.mxu0 %v8558
      %8598 = vmatmul.bf16.gmra.mxu0 %v8462
      %v8599 = vpop.f32.mrf.mxu0
      %v8600 = vadd.f32 0.0, %v8599
      %v8601 = vpop.f32.mrf.mxu0
      %v8602 = vadd.f32 0.0, %v8601
      %8603 = vmatmul.bf16.gmra.mxu0 %v8464
      %v8604 = vpop.f32.mrf.mxu0
      %v8605 = vadd.f32 0.0, %v8604
      %v8606 = vpop.f32.mrf.mxu0
      %v8607 = vadd.f32 0.0, %v8606
      %8608 = vmatmul.bf16.gmra.mxu0 %v8466
      %v8609 = vpop.f32.mrf.mxu0
      %v8610 = vadd.f32 0.0, %v8609
      %v8611 = vpop.f32.mrf.mxu0
      %v8612 = vadd.f32 0.0, %v8611
      %8613 = vmatmul.bf16.gmra.mxu0 %v8468
      %v8614 = vpop.f32.mrf.mxu0
      %v8615 = vadd.f32 0.0, %v8614
      %v8616 = vpop.f32.mrf.mxu0
      %v8617 = vadd.f32 0.0, %v8616
      %8618 = vmatmul.bf16.gmra.mxu0 %v8470
      %v8619 = vpop.f32.mrf.mxu0
      %v8620 = vadd.f32 0.0, %v8619
      %v8621 = vpop.f32.mrf.mxu0
      %v8622 = vadd.f32 0.0, %v8621
      %8623 = vmatmul.bf16.gmra.mxu0 %v8472
      %v8624 = vpop.f32.mrf.mxu0
      %v8625 = vadd.f32 0.0, %v8624
      %v8626 = vpop.f32.mrf.mxu0
      %v8627 = vadd.f32 0.0, %v8626
      %8628 = vmatmul.bf16.gmra.mxu0 %v8474
      %v8629 = vpop.f32.mrf.mxu0
      %v8630 = vadd.f32 0.0, %v8629
      %v8631 = vpop.f32.mrf.mxu0
      %v8632 = vadd.f32 0.0, %v8631
      %8633 = vmatmul.bf16.gmra.mxu0 %v8476
      %v8634 = vpop.f32.mrf.mxu0
      %v8635 = vadd.f32 0.0, %v8634
      %v8636 = vpop.f32.mrf.mxu0
      %v8637 = vadd.f32 0.0, %v8636
      %8638 = vdwg.mxu0
      %8639 = vmatpush.bf16.msra.mxu0 %v8573
      %8640 = vmatpush.bf16.msra.mxu0 %v8572
      %8641 = vmatpush.bf16.msra.mxu0 %v8571
      %8642 = vmatpush.bf16.msra.mxu0 %v8570
      %8643 = vmatpush.bf16.msra.mxu0 %v8569
      %8644 = vmatpush.bf16.msra.mxu0 %v8568
      %8645 = vmatpush.bf16.msra.mxu0 %v8567
      %8646 = vmatpush.bf16.msra.mxu0 %v8566
      %8647 = vmatmul.bf16.gmra.mxu0 %v8463
      %v8648 = vpop.f32.mrf.mxu0
      %v8649 = vadd.f32 %v8600, %v8648
      %v8650 = vpop.f32.mrf.mxu0
      %v8651 = vadd.f32 %v8602, %v8650
      %8652 = vmatmul.bf16.gmra.mxu0 %v8465
      %v8653 = vpop.f32.mrf.mxu0
      %v8654 = vadd.f32 %v8605, %v8653
      %v8655 = vpop.f32.mrf.mxu0
      %v8656 = vadd.f32 %v8607, %v8655
      %8657 = vmatmul.bf16.gmra.mxu0 %v8467
      %v8658 = vpop.f32.mrf.mxu0
      %v8659 = vadd.f32 %v8610, %v8658
      %v8660 = vpop.f32.mrf.mxu0
      %v8661 = vadd.f32 %v8612, %v8660
      %8662 = vmatmul.bf16.gmra.mxu0 %v8469
      %v8663 = vpop.f32.mrf.mxu0
      %v8664 = vadd.f32 %v8615, %v8663
      %v8665 = vpop.f32.mrf.mxu0
      %v8666 = vadd.f32 %v8617, %v8665
      %8667 = vmatmul.bf16.gmra.mxu0 %v8471
      %v8668 = vpop.f32.mrf.mxu0
      %v8669 = vadd.f32 %v8620, %v8668
      %v8670 = vpop.f32.mrf.mxu0
      %v8671 = vadd.f32 %v8622, %v8670
      %8672 = vmatmul.bf16.gmra.mxu0 %v8473
      %v8673 = vpop.f32.mrf.mxu0
      %v8674 = vadd.f32 %v8625, %v8673
      %v8675 = vpop.f32.mrf.mxu0
      %v8676 = vadd.f32 %v8627, %v8675
      %8677 = vmatmul.bf16.gmra.mxu0 %v8475
      %v8678 = vpop.f32.mrf.mxu0
      %v8679 = vadd.f32 %v8630, %v8678
      %v8680 = vpop.f32.mrf.mxu0
      %v8681 = vadd.f32 %v8632, %v8680
      %8682 = vmatmul.bf16.gmra.mxu0 %v8477
      %v8683 = vpop.f32.mrf.mxu0
      %v8684 = vadd.f32 %v8635, %v8683
      %v8685 = vpop.f32.mrf.mxu0
      %v8686 = vadd.f32 %v8637, %v8685
      %8687 = vdwg.mxu0
      %v8688 = vadd.f32 %v8291, %v8649
      %v8689 = vadd.f32 %v8293, %v8651
      %v8690 = vadd.f32 %v8296, %v8654
      %v8691 = vadd.f32 %v8298, %v8656
      %v8692 = vadd.f32 %v8301, %v8659
      %v8693 = vadd.f32 %v8303, %v8661
      %v8694 = vadd.f32 %v8306, %v8664
      %v8695 = vadd.f32 %v8308, %v8666
      %v8696 = vadd.f32 %v8311, %v8669
      %v8697 = vadd.f32 %v8313, %v8671
      %v8698 = vadd.f32 %v8316, %v8674
      %v8699 = vadd.f32 %v8318, %v8676
      %v8700 = vadd.f32 %v8321, %v8679
      %v8701 = vadd.f32 %v8323, %v8681
      %v8702 = vadd.f32 %v8326, %v8684
      %v8703 = vadd.f32 %v8328, %v8686
      %s8704 = scalar_lea.vmem %s5, 384
      %v8705 = vld [vmem:[%s8704] sm:$0xf]
      %v8706 = vld [vmem:[%s8704 + $0x4] sm:$0xf]
      %v8707 = vld [vmem:[%s8704 + $0x8] sm:$0xf]
      %v8708 = vld [vmem:[%s8704 + $0xc] sm:$0xf]
      %v8709 = vld [vmem:[%s8704 + $0x10] sm:$0xf]
      %v8710 = vld [vmem:[%s8704 + $0x14] sm:$0xf]
      %v8711 = vld [vmem:[%s8704 + $0x18] sm:$0xf]
      %v8712 = vld [vmem:[%s8704 + $0x1c] sm:$0xf]
      %v8713 = vld [vmem:[%s8704 + $0x20] sm:$0xf]
      %v8714 = vld [vmem:[%s8704 + $0x24] sm:$0xf]
      %v8715 = vld [vmem:[%s8704 + $0x28] sm:$0xf]
      %v8716 = vld [vmem:[%s8704 + $0x2c] sm:$0xf]
      %v8717 = vld [vmem:[%s8704 + $0x30] sm:$0xf]
      %v8718 = vld [vmem:[%s8704 + $0x34] sm:$0xf]
      %v8719 = vld [vmem:[%s8704 + $0x38] sm:$0xf]
      %v8720 = vld [vmem:[%s8704 + $0x3c] sm:$0xf]
      %v8721 = vld [vmem:[%s8704 + $0x40] sm:$0xf]
      %v8722 = vld [vmem:[%s8704 + $0x44] sm:$0xf]
      %v8723 = vld [vmem:[%s8704 + $0x48] sm:$0xf]
      %v8724 = vld [vmem:[%s8704 + $0x4c] sm:$0xf]
      %v8725 = vld [vmem:[%s8704 + $0x50] sm:$0xf]
      %v8726 = vld [vmem:[%s8704 + $0x54] sm:$0xf]
      %v8727 = vld [vmem:[%s8704 + $0x58] sm:$0xf]
      %v8728 = vld [vmem:[%s8704 + $0x5c] sm:$0xf]
      %v8729 = vld [vmem:[%s8704 + $0x60] sm:$0xf]
      %v8730 = vld [vmem:[%s8704 + $0x64] sm:$0xf]
      %v8731 = vld [vmem:[%s8704 + $0x68] sm:$0xf]
      %v8732 = vld [vmem:[%s8704 + $0x6c] sm:$0xf]
      %v8733 = vld [vmem:[%s8704 + $0x70] sm:$0xf]
      %v8734 = vld [vmem:[%s8704 + $0x74] sm:$0xf]
      %v8735 = vld [vmem:[%s8704 + $0x78] sm:$0xf]
      %v8736 = vld [vmem:[%s8704 + $0x7c] sm:$0xf]
      %v8739 = vunpack.c.l.b16 %v7532
      %v8740 = vunpack.c.h.b16 %v7532
      %v8741 = vunpack.c.l.b16 %v7533
      %v8742 = vunpack.c.h.b16 %v7533
      %v8743 = vpack.c.b16 %v8741, %v8739
      %v8744 = vpack.c.b16 %v8742, %v8740
      %v8779 = vunpack.c.l.b16 %v8705
      %v8780 = vunpack.c.l.b16 %v8706
      %v8781 = vunpack.c.l.b16 %v8707
      %v8782 = vunpack.c.l.b16 %v8708
      %v8783 = vunpack.c.l.b16 %v8709
      %v8784 = vunpack.c.l.b16 %v8710
      %v8785 = vunpack.c.l.b16 %v8711
      %v8786 = vunpack.c.l.b16 %v8712
      %v8787 = vunpack.c.l.b16 %v8713
      %v8788 = vunpack.c.l.b16 %v8714
      %v8789 = vunpack.c.l.b16 %v8715
      %v8790 = vunpack.c.l.b16 %v8716
      %v8791 = vunpack.c.l.b16 %v8717
      %v8792 = vunpack.c.l.b16 %v8718
      %v8793 = vunpack.c.l.b16 %v8719
      %v8794 = vunpack.c.l.b16 %v8720
      %v8795 = vunpack.c.l.b16 %v8721
      %v8796 = vunpack.c.l.b16 %v8722
      %v8797 = vunpack.c.l.b16 %v8723
      %v8798 = vunpack.c.l.b16 %v8724
      %v8799 = vunpack.c.l.b16 %v8725
      %v8800 = vunpack.c.l.b16 %v8726
      %v8801 = vunpack.c.l.b16 %v8727
      %v8802 = vunpack.c.l.b16 %v8728
      %v8803 = vunpack.c.l.b16 %v8729
      %v8804 = vunpack.c.l.b16 %v8730
      %v8805 = vunpack.c.l.b16 %v8731
      %v8806 = vunpack.c.l.b16 %v8732
      %v8807 = vunpack.c.l.b16 %v8733
      %v8808 = vunpack.c.l.b16 %v8734
      %v8809 = vunpack.c.l.b16 %v8735
      %v8810 = vunpack.c.l.b16 %v8736
      %v8811 = vpack.c.b16 %v8780, %v8779
      %v8812 = vpack.c.b16 %v8782, %v8781
      %v8813 = vpack.c.b16 %v8784, %v8783
      %v8814 = vpack.c.b16 %v8786, %v8785
      %v8815 = vpack.c.b16 %v8788, %v8787
      %v8816 = vpack.c.b16 %v8790, %v8789
      %v8817 = vpack.c.b16 %v8792, %v8791
      %v8818 = vpack.c.b16 %v8794, %v8793
      %v8819 = vpack.c.b16 %v8796, %v8795
      %v8820 = vpack.c.b16 %v8798, %v8797
      %v8821 = vpack.c.b16 %v8800, %v8799
      %v8822 = vpack.c.b16 %v8802, %v8801
      %v8823 = vpack.c.b16 %v8804, %v8803
      %v8824 = vpack.c.b16 %v8806, %v8805
      %v8825 = vpack.c.b16 %v8808, %v8807
      %v8826 = vpack.c.b16 %v8810, %v8809
      %8843 = vmatpush.bf16.msra.mxu0 %v8818
      %8844 = vmatpush.bf16.msra.mxu0 %v8817
      %8845 = vmatpush.bf16.msra.mxu0 %v8816
      %8846 = vmatpush.bf16.msra.mxu0 %v8815
      %8847 = vmatpush.bf16.msra.mxu0 %v8814
      %8848 = vmatpush.bf16.msra.mxu0 %v8813
      %8849 = vmatpush.bf16.msra.mxu0 %v8812
      %8850 = vmatpush.bf16.msra.mxu0 %v8811
      %8851 = vmatmul.bf16.gmra.mxu0 %v8106
      %v8852 = vpop.f32.mrf.mxu0
      %v8853 = vadd.f32 0.0, %v8852
      %v8854 = vpop.f32.mrf.mxu0
      %v8855 = vadd.f32 0.0, %v8854
      %8856 = vmatmul.bf16.gmra.mxu0 %v8108
      %v8857 = vpop.f32.mrf.mxu0
      %v8858 = vadd.f32 0.0, %v8857
      %v8859 = vpop.f32.mrf.mxu0
      %v8860 = vadd.f32 0.0, %v8859
      %8861 = vmatmul.bf16.gmra.mxu0 %v8110
      %v8862 = vpop.f32.mrf.mxu0
      %v8863 = vadd.f32 0.0, %v8862
      %v8864 = vpop.f32.mrf.mxu0
      %v8865 = vadd.f32 0.0, %v8864
      %8866 = vmatmul.bf16.gmra.mxu0 %v8112
      %v8867 = vpop.f32.mrf.mxu0
      %v8868 = vadd.f32 0.0, %v8867
      %v8869 = vpop.f32.mrf.mxu0
      %v8870 = vadd.f32 0.0, %v8869
      %8871 = vmatmul.bf16.gmra.mxu0 %v8114
      %v8872 = vpop.f32.mrf.mxu0
      %v8873 = vadd.f32 0.0, %v8872
      %v8874 = vpop.f32.mrf.mxu0
      %v8875 = vadd.f32 0.0, %v8874
      %8876 = vmatmul.bf16.gmra.mxu0 %v8116
      %v8877 = vpop.f32.mrf.mxu0
      %v8878 = vadd.f32 0.0, %v8877
      %v8879 = vpop.f32.mrf.mxu0
      %v8880 = vadd.f32 0.0, %v8879
      %8881 = vmatmul.bf16.gmra.mxu0 %v8118
      %v8882 = vpop.f32.mrf.mxu0
      %v8883 = vadd.f32 0.0, %v8882
      %v8884 = vpop.f32.mrf.mxu0
      %v8885 = vadd.f32 0.0, %v8884
      %8886 = vmatmul.bf16.gmra.mxu0 %v8743
      %v8887 = vpop.f32.mrf.mxu0
      %v8888 = vadd.f32 0.0, %v8887
      %v8889 = vpop.f32.mrf.mxu0
      %v8890 = vadd.f32 0.0, %v8889
      %8891 = vdwg.mxu0
      %8892 = vmatpush.bf16.msra.mxu0 %v8826
      %8893 = vmatpush.bf16.msra.mxu0 %v8825
      %8894 = vmatpush.bf16.msra.mxu0 %v8824
      %8895 = vmatpush.bf16.msra.mxu0 %v8823
      %8896 = vmatpush.bf16.msra.mxu0 %v8822
      %8897 = vmatpush.bf16.msra.mxu0 %v8821
      %8898 = vmatpush.bf16.msra.mxu0 %v8820
      %8899 = vmatpush.bf16.msra.mxu0 %v8819
      %8900 = vmatmul.bf16.gmra.mxu0 %v8107
      %v8901 = vpop.f32.mrf.mxu0
      %v8902 = vadd.f32 %v8853, %v8901
      %v8903 = vpop.f32.mrf.mxu0
      %v8904 = vadd.f32 %v8855, %v8903
      %8905 = vmatmul.bf16.gmra.mxu0 %v8109
      %v8906 = vpop.f32.mrf.mxu0
      %v8907 = vadd.f32 %v8858, %v8906
      %v8908 = vpop.f32.mrf.mxu0
      %v8909 = vadd.f32 %v8860, %v8908
      %8910 = vmatmul.bf16.gmra.mxu0 %v8111
      %v8911 = vpop.f32.mrf.mxu0
      %v8912 = vadd.f32 %v8863, %v8911
      %v8913 = vpop.f32.mrf.mxu0
      %v8914 = vadd.f32 %v8865, %v8913
      %8915 = vmatmul.bf16.gmra.mxu0 %v8113
      %v8916 = vpop.f32.mrf.mxu0
      %v8917 = vadd.f32 %v8868, %v8916
      %v8918 = vpop.f32.mrf.mxu0
      %v8919 = vadd.f32 %v8870, %v8918
      %8920 = vmatmul.bf16.gmra.mxu0 %v8115
      %v8921 = vpop.f32.mrf.mxu0
      %v8922 = vadd.f32 %v8873, %v8921
      %v8923 = vpop.f32.mrf.mxu0
      %v8924 = vadd.f32 %v8875, %v8923
      %8925 = vmatmul.bf16.gmra.mxu0 %v8117
      %v8926 = vpop.f32.mrf.mxu0
      %v8927 = vadd.f32 %v8878, %v8926
      %v8928 = vpop.f32.mrf.mxu0
      %v8929 = vadd.f32 %v8880, %v8928
      %8930 = vmatmul.bf16.gmra.mxu0 %v8119
      %v8931 = vpop.f32.mrf.mxu0
      %v8932 = vadd.f32 %v8883, %v8931
      %v8933 = vpop.f32.mrf.mxu0
      %v8934 = vadd.f32 %v8885, %v8933
      %8935 = vmatmul.bf16.gmra.mxu0 %v8744
      %v8936 = vpop.f32.mrf.mxu0
      %v8937 = vadd.f32 %v8888, %v8936
      %v8938 = vpop.f32.mrf.mxu0
      %v8939 = vadd.f32 %v8890, %v8938
      %8940 = vdwg.mxu0
      %v8941 = vadd.f32 %v8688, %v8902
      %v8942 = vadd.f32 %v8689, %v8904
      %v8943 = vadd.f32 %v8690, %v8907
      %v8944 = vadd.f32 %v8691, %v8909
      %v8945 = vadd.f32 %v8692, %v8912
      %v8946 = vadd.f32 %v8693, %v8914
      %v8947 = vadd.f32 %v8694, %v8917
      %v8948 = vadd.f32 %v8695, %v8919
      %v8949 = vadd.f32 %v8696, %v8922
      %v8950 = vadd.f32 %v8697, %v8924
      %v8951 = vadd.f32 %v8698, %v8927
      %v8952 = vadd.f32 %v8699, %v8929
      %v8953 = vadd.f32 %v8700, %v8932
      %v8954 = vadd.f32 %v8701, %v8934
      %v8955 = vadd.f32 %v8702, %v8937
      %v8956 = vadd.f32 %v8703, %v8939
      %v8958 = vshrl.u32 %v7532, 16
      %v8960 = vrot.slane %v8958, 4
      %v8961 = vshll.u32 %v7532, 16
      %v8963 = vrot.slane %v8961, 5
      %v8964 = vor.u32 %v8960, %v8963
      %v8965 = vrot.slane %v8964, 4
      %v8967 = vshll.u32 %v7533, 16
      %v8969 = vrot.slane %v8967, 5
      %v8970 = vsel %vm7572, %v8965, %v8969
      %v8971 = vshrl.u32 %v7533, 16
      %v8973 = vrot.slane %v8971, 4
      %v8974 = vor.u32 %v8973, %v8969
      %v8975 = vrot.slane %v8974, 4
      %v8977 = vshll.u32 %v7534, 16
      %v8979 = vrot.slane %v8977, 5
      %v8980 = vsel %vm7572, %v8975, %v8979
      %s8981 = scalar_lea.vmem %s5, 512
      %v8982 = vld [vmem:[%s8981] sm:$0xf]
      %v8983 = vld [vmem:[%s8981 + $0x4] sm:$0xf]
      %v8984 = vld [vmem:[%s8981 + $0x8] sm:$0xf]
      %v8985 = vld [vmem:[%s8981 + $0xc] sm:$0xf]
      %v8986 = vld [vmem:[%s8981 + $0x10] sm:$0xf]
      %v8987 = vld [vmem:[%s8981 + $0x14] sm:$0xf]
      %v8988 = vld [vmem:[%s8981 + $0x18] sm:$0xf]
      %v8989 = vld [vmem:[%s8981 + $0x1c] sm:$0xf]
      %v8990 = vld [vmem:[%s8981 + $0x20] sm:$0xf]
      %v8991 = vld [vmem:[%s8981 + $0x24] sm:$0xf]
      %v8992 = vld [vmem:[%s8981 + $0x28] sm:$0xf]
      %v8993 = vld [vmem:[%s8981 + $0x2c] sm:$0xf]
      %v8994 = vld [vmem:[%s8981 + $0x30] sm:$0xf]
      %v8995 = vld [vmem:[%s8981 + $0x34] sm:$0xf]
      %v8996 = vld [vmem:[%s8981 + $0x38] sm:$0xf]
      %v8997 = vld [vmem:[%s8981 + $0x3c] sm:$0xf]
      %v8998 = vld [vmem:[%s8981 + $0x40] sm:$0xf]
      %v8999 = vld [vmem:[%s8981 + $0x44] sm:$0xf]
      %v9000 = vld [vmem:[%s8981 + $0x48] sm:$0xf]
      %v9001 = vld [vmem:[%s8981 + $0x4c] sm:$0xf]
      %v9002 = vld [vmem:[%s8981 + $0x50] sm:$0xf]
      %v9003 = vld [vmem:[%s8981 + $0x54] sm:$0xf]
      %v9004 = vld [vmem:[%s8981 + $0x58] sm:$0xf]
      %v9005 = vld [vmem:[%s8981 + $0x5c] sm:$0xf]
      %v9006 = vld [vmem:[%s8981 + $0x60] sm:$0xf]
      %v9007 = vld [vmem:[%s8981 + $0x64] sm:$0xf]
      %v9008 = vld [vmem:[%s8981 + $0x68] sm:$0xf]
      %v9009 = vld [vmem:[%s8981 + $0x6c] sm:$0xf]
      %v9010 = vld [vmem:[%s8981 + $0x70] sm:$0xf]
      %v9011 = vld [vmem:[%s8981 + $0x74] sm:$0xf]
      %v9012 = vld [vmem:[%s8981 + $0x78] sm:$0xf]
      %v9013 = vld [vmem:[%s8981 + $0x7c] sm:$0xf]
      %v9014 = vunpack.c.l.b16 %v8970
      %v9015 = vunpack.c.h.b16 %v8970
      %v9016 = vunpack.c.l.b16 %v8980
      %v9017 = vunpack.c.h.b16 %v8980
      %v9018 = vpack.c.b16 %v9016, %v9014
      %v9019 = vpack.c.b16 %v9017, %v9015
      %v9054 = vunpack.c.l.b16 %v8982
      %v9055 = vunpack.c.l.b16 %v8983
      %v9056 = vunpack.c.l.b16 %v8984
      %v9057 = vunpack.c.l.b16 %v8985
      %v9058 = vunpack.c.l.b16 %v8986
      %v9059 = vunpack.c.l.b16 %v8987
      %v9060 = vunpack.c.l.b16 %v8988
      %v9061 = vunpack.c.l.b16 %v8989
      %v9062 = vunpack.c.l.b16 %v8990
      %v9063 = vunpack.c.l.b16 %v8991
      %v9064 = vunpack.c.l.b16 %v8992
      %v9065 = vunpack.c.l.b16 %v8993
      %v9066 = vunpack.c.l.b16 %v8994
      %v9067 = vunpack.c.l.b16 %v8995
      %v9068 = vunpack.c.l.b16 %v8996
      %v9069 = vunpack.c.l.b16 %v8997
      %v9070 = vunpack.c.l.b16 %v8998
      %v9071 = vunpack.c.l.b16 %v8999
      %v9072 = vunpack.c.l.b16 %v9000
      %v9073 = vunpack.c.l.b16 %v9001
      %v9074 = vunpack.c.l.b16 %v9002
      %v9075 = vunpack.c.l.b16 %v9003
      %v9076 = vunpack.c.l.b16 %v9004
      %v9077 = vunpack.c.l.b16 %v9005
      %v9078 = vunpack.c.l.b16 %v9006
      %v9079 = vunpack.c.l.b16 %v9007
      %v9080 = vunpack.c.l.b16 %v9008
      %v9081 = vunpack.c.l.b16 %v9009
      %v9082 = vunpack.c.l.b16 %v9010
      %v9083 = vunpack.c.l.b16 %v9011
      %v9084 = vunpack.c.l.b16 %v9012
      %v9085 = vunpack.c.l.b16 %v9013
      %v9086 = vpack.c.b16 %v9055, %v9054
      %v9087 = vpack.c.b16 %v9057, %v9056
      %v9088 = vpack.c.b16 %v9059, %v9058
      %v9089 = vpack.c.b16 %v9061, %v9060
      %v9090 = vpack.c.b16 %v9063, %v9062
      %v9091 = vpack.c.b16 %v9065, %v9064
      %v9092 = vpack.c.b16 %v9067, %v9066
      %v9093 = vpack.c.b16 %v9069, %v9068
      %v9094 = vpack.c.b16 %v9071, %v9070
      %v9095 = vpack.c.b16 %v9073, %v9072
      %v9096 = vpack.c.b16 %v9075, %v9074
      %v9097 = vpack.c.b16 %v9077, %v9076
      %v9098 = vpack.c.b16 %v9079, %v9078
      %v9099 = vpack.c.b16 %v9081, %v9080
      %v9100 = vpack.c.b16 %v9083, %v9082
      %v9101 = vpack.c.b16 %v9085, %v9084
      %9118 = vmatpush.bf16.msra.mxu0 %v9093
      %9119 = vmatpush.bf16.msra.mxu0 %v9092
      %9120 = vmatpush.bf16.msra.mxu0 %v9091
      %9121 = vmatpush.bf16.msra.mxu0 %v9090
      %9122 = vmatpush.bf16.msra.mxu0 %v9089
      %9123 = vmatpush.bf16.msra.mxu0 %v9088
      %9124 = vmatpush.bf16.msra.mxu0 %v9087
      %9125 = vmatpush.bf16.msra.mxu0 %v9086
      %9126 = vmatmul.bf16.gmra.mxu0 %v7832
      %v9127 = vpop.f32.mrf.mxu0
      %v9128 = vadd.f32 0.0, %v9127
      %v9129 = vpop.f32.mrf.mxu0
      %v9130 = vadd.f32 0.0, %v9129
      %9131 = vmatmul.bf16.gmra.mxu0 %v7834
      %v9132 = vpop.f32.mrf.mxu0
      %v9133 = vadd.f32 0.0, %v9132
      %v9134 = vpop.f32.mrf.mxu0
      %v9135 = vadd.f32 0.0, %v9134
      %9136 = vmatmul.bf16.gmra.mxu0 %v7836
      %v9137 = vpop.f32.mrf.mxu0
      %v9138 = vadd.f32 0.0, %v9137
      %v9139 = vpop.f32.mrf.mxu0
      %v9140 = vadd.f32 0.0, %v9139
      %9141 = vmatmul.bf16.gmra.mxu0 %v7838
      %v9142 = vpop.f32.mrf.mxu0
      %v9143 = vadd.f32 0.0, %v9142
      %v9144 = vpop.f32.mrf.mxu0
      %v9145 = vadd.f32 0.0, %v9144
      %9146 = vmatmul.bf16.gmra.mxu0 %v7840
      %v9147 = vpop.f32.mrf.mxu0
      %v9148 = vadd.f32 0.0, %v9147
      %v9149 = vpop.f32.mrf.mxu0
      %v9150 = vadd.f32 0.0, %v9149
      %9151 = vmatmul.bf16.gmra.mxu0 %v7842
      %v9152 = vpop.f32.mrf.mxu0
      %v9153 = vadd.f32 0.0, %v9152
      %v9154 = vpop.f32.mrf.mxu0
      %v9155 = vadd.f32 0.0, %v9154
      %9156 = vmatmul.bf16.gmra.mxu0 %v7844
      %v9157 = vpop.f32.mrf.mxu0
      %v9158 = vadd.f32 0.0, %v9157
      %v9159 = vpop.f32.mrf.mxu0
      %v9160 = vadd.f32 0.0, %v9159
      %9161 = vmatmul.bf16.gmra.mxu0 %v9018
      %v9162 = vpop.f32.mrf.mxu0
      %v9163 = vadd.f32 0.0, %v9162
      %v9164 = vpop.f32.mrf.mxu0
      %v9165 = vadd.f32 0.0, %v9164
      %9166 = vdwg.mxu0
      %9167 = vmatpush.bf16.msra.mxu0 %v9101
      %9168 = vmatpush.bf16.msra.mxu0 %v9100
      %9169 = vmatpush.bf16.msra.mxu0 %v9099
      %9170 = vmatpush.bf16.msra.mxu0 %v9098
      %9171 = vmatpush.bf16.msra.mxu0 %v9097
      %9172 = vmatpush.bf16.msra.mxu0 %v9096
      %9173 = vmatpush.bf16.msra.mxu0 %v9095
      %9174 = vmatpush.bf16.msra.mxu0 %v9094
      %9175 = vmatmul.bf16.gmra.mxu0 %v7833
      %v9176 = vpop.f32.mrf.mxu0
      %v9177 = vadd.f32 %v9128, %v9176
      %v9178 = vpop.f32.mrf.mxu0
      %v9179 = vadd.f32 %v9130, %v9178
      %9180 = vmatmul.bf16.gmra.mxu0 %v7835
      %v9181 = vpop.f32.mrf.mxu0
      %v9182 = vadd.f32 %v9133, %v9181
      %v9183 = vpop.f32.mrf.mxu0
      %v9184 = vadd.f32 %v9135, %v9183
      %9185 = vmatmul.bf16.gmra.mxu0 %v7837
      %v9186 = vpop.f32.mrf.mxu0
      %v9187 = vadd.f32 %v9138, %v9186
      %v9188 = vpop.f32.mrf.mxu0
      %v9189 = vadd.f32 %v9140, %v9188
      %9190 = vmatmul.bf16.gmra.mxu0 %v7839
      %v9191 = vpop.f32.mrf.mxu0
      %v9192 = vadd.f32 %v9143, %v9191
      %v9193 = vpop.f32.mrf.mxu0
      %v9194 = vadd.f32 %v9145, %v9193
      %9195 = vmatmul.bf16.gmra.mxu0 %v7841
      %v9196 = vpop.f32.mrf.mxu0
      %v9197 = vadd.f32 %v9148, %v9196
      %v9198 = vpop.f32.mrf.mxu0
      %v9199 = vadd.f32 %v9150, %v9198
      %9200 = vmatmul.bf16.gmra.mxu0 %v7843
      %v9201 = vpop.f32.mrf.mxu0
      %v9202 = vadd.f32 %v9153, %v9201
      %v9203 = vpop.f32.mrf.mxu0
      %v9204 = vadd.f32 %v9155, %v9203
      %9205 = vmatmul.bf16.gmra.mxu0 %v7845
      %v9206 = vpop.f32.mrf.mxu0
      %v9207 = vadd.f32 %v9158, %v9206
      %v9208 = vpop.f32.mrf.mxu0
      %v9209 = vadd.f32 %v9160, %v9208
      %9210 = vmatmul.bf16.gmra.mxu0 %v9019
      %v9211 = vpop.f32.mrf.mxu0
      %v9212 = vadd.f32 %v9163, %v9211
      %v9213 = vpop.f32.mrf.mxu0
      %v9214 = vadd.f32 %v9165, %v9213
      %9215 = vdwg.mxu0
      %v9216 = vadd.f32 %v8941, %v9177
      %v9217 = vadd.f32 %v8942, %v9179
      %v9218 = vadd.f32 %v8943, %v9182
      %v9219 = vadd.f32 %v8944, %v9184
      %v9220 = vadd.f32 %v8945, %v9187
      %v9221 = vadd.f32 %v8946, %v9189
      %v9222 = vadd.f32 %v8947, %v9192
      %v9223 = vadd.f32 %v8948, %v9194
      %v9224 = vadd.f32 %v8949, %v9197
      %v9225 = vadd.f32 %v8950, %v9199
      %v9226 = vadd.f32 %v8951, %v9202
      %v9227 = vadd.f32 %v8952, %v9204
      %v9228 = vadd.f32 %v8953, %v9207
      %v9229 = vadd.f32 %v8954, %v9209
      %v9230 = vadd.f32 %v8955, %v9212
      %v9231 = vadd.f32 %v8956, %v9214
      %v9233 = vrot.slane %v7532, 5
      %v9234 = vrot.slane %v9233, 4
      %v9235 = vrot.slane %v7533, 5
      %v9236 = vsel %vm8340, %v9234, %v9235
      %v9237 = vrot.slane %v9235, 4
      %v9238 = vrot.slane %v7534, 5
      %v9239 = vsel %vm8340, %v9237, %v9238
      %s9240 = scalar_lea.vmem %s5, 640
      %v9241 = vld [vmem:[%s9240] sm:$0xf]
      %v9242 = vld [vmem:[%s9240 + $0x4] sm:$0xf]
      %v9243 = vld [vmem:[%s9240 + $0x8] sm:$0xf]
      %v9244 = vld [vmem:[%s9240 + $0xc] sm:$0xf]
      %v9245 = vld [vmem:[%s9240 + $0x10] sm:$0xf]
      %v9246 = vld [vmem:[%s9240 + $0x14] sm:$0xf]
      %v9247 = vld [vmem:[%s9240 + $0x18] sm:$0xf]
      %v9248 = vld [vmem:[%s9240 + $0x1c] sm:$0xf]
      %v9249 = vld [vmem:[%s9240 + $0x20] sm:$0xf]
      %v9250 = vld [vmem:[%s9240 + $0x24] sm:$0xf]
      %v9251 = vld [vmem:[%s9240 + $0x28] sm:$0xf]
      %v9252 = vld [vmem:[%s9240 + $0x2c] sm:$0xf]
      %v9253 = vld [vmem:[%s9240 + $0x30] sm:$0xf]
      %v9254 = vld [vmem:[%s9240 + $0x34] sm:$0xf]
      %v9255 = vld [vmem:[%s9240 + $0x38] sm:$0xf]
      %v9256 = vld [vmem:[%s9240 + $0x3c] sm:$0xf]
      %v9257 = vld [vmem:[%s9240 + $0x40] sm:$0xf]
      %v9258 = vld [vmem:[%s9240 + $0x44] sm:$0xf]
      %v9259 = vld [vmem:[%s9240 + $0x48] sm:$0xf]
      %v9260 = vld [vmem:[%s9240 + $0x4c] sm:$0xf]
      %v9261 = vld [vmem:[%s9240 + $0x50] sm:$0xf]
      %v9262 = vld [vmem:[%s9240 + $0x54] sm:$0xf]
      %v9263 = vld [vmem:[%s9240 + $0x58] sm:$0xf]
      %v9264 = vld [vmem:[%s9240 + $0x5c] sm:$0xf]
      %v9265 = vld [vmem:[%s9240 + $0x60] sm:$0xf]
      %v9266 = vld [vmem:[%s9240 + $0x64] sm:$0xf]
      %v9267 = vld [vmem:[%s9240 + $0x68] sm:$0xf]
      %v9268 = vld [vmem:[%s9240 + $0x6c] sm:$0xf]
      %v9269 = vld [vmem:[%s9240 + $0x70] sm:$0xf]
      %v9270 = vld [vmem:[%s9240 + $0x74] sm:$0xf]
      %v9271 = vld [vmem:[%s9240 + $0x78] sm:$0xf]
      %v9272 = vld [vmem:[%s9240 + $0x7c] sm:$0xf]
      %v9273 = vunpack.c.l.b16 %v9236
      %v9274 = vunpack.c.h.b16 %v9236
      %v9275 = vunpack.c.l.b16 %v9239
      %v9276 = vunpack.c.h.b16 %v9239
      %v9277 = vpack.c.b16 %v9275, %v9273
      %v9278 = vpack.c.b16 %v9276, %v9274
      %v9313 = vunpack.c.l.b16 %v9241
      %v9314 = vunpack.c.l.b16 %v9242
      %v9315 = vunpack.c.l.b16 %v9243
      %v9316 = vunpack.c.l.b16 %v9244
      %v9317 = vunpack.c.l.b16 %v9245
      %v9318 = vunpack.c.l.b16 %v9246
      %v9319 = vunpack.c.l.b16 %v9247
      %v9320 = vunpack.c.l.b16 %v9248
      %v9321 = vunpack.c.l.b16 %v9249
      %v9322 = vunpack.c.l.b16 %v9250
      %v9323 = vunpack.c.l.b16 %v9251
      %v9324 = vunpack.c.l.b16 %v9252
      %v9325 = vunpack.c.l.b16 %v9253
      %v9326 = vunpack.c.l.b16 %v9254
      %v9327 = vunpack.c.l.b16 %v9255
      %v9328 = vunpack.c.l.b16 %v9256
      %v9329 = vunpack.c.l.b16 %v9257
      %v9330 = vunpack.c.l.b16 %v9258
      %v9331 = vunpack.c.l.b16 %v9259
      %v9332 = vunpack.c.l.b16 %v9260
      %v9333 = vunpack.c.l.b16 %v9261
      %v9334 = vunpack.c.l.b16 %v9262
      %v9335 = vunpack.c.l.b16 %v9263
      %v9336 = vunpack.c.l.b16 %v9264
      %v9337 = vunpack.c.l.b16 %v9265
      %v9338 = vunpack.c.l.b16 %v9266
      %v9339 = vunpack.c.l.b16 %v9267
      %v9340 = vunpack.c.l.b16 %v9268
      %v9341 = vunpack.c.l.b16 %v9269
      %v9342 = vunpack.c.l.b16 %v9270
      %v9343 = vunpack.c.l.b16 %v9271
      %v9344 = vunpack.c.l.b16 %v9272
      %v9345 = vpack.c.b16 %v9314, %v9313
      %v9346 = vpack.c.b16 %v9316, %v9315
      %v9347 = vpack.c.b16 %v9318, %v9317
      %v9348 = vpack.c.b16 %v9320, %v9319
      %v9349 = vpack.c.b16 %v9322, %v9321
      %v9350 = vpack.c.b16 %v9324, %v9323
      %v9351 = vpack.c.b16 %v9326, %v9325
      %v9352 = vpack.c.b16 %v9328, %v9327
      %v9353 = vpack.c.b16 %v9330, %v9329
      %v9354 = vpack.c.b16 %v9332, %v9331
      %v9355 = vpack.c.b16 %v9334, %v9333
      %v9356 = vpack.c.b16 %v9336, %v9335
      %v9357 = vpack.c.b16 %v9338, %v9337
      %v9358 = vpack.c.b16 %v9340, %v9339
      %v9359 = vpack.c.b16 %v9342, %v9341
      %v9360 = vpack.c.b16 %v9344, %v9343
      %9377 = vmatpush.bf16.msra.mxu0 %v9352
      %9378 = vmatpush.bf16.msra.mxu0 %v9351
      %9379 = vmatpush.bf16.msra.mxu0 %v9350
      %9380 = vmatpush.bf16.msra.mxu0 %v9349
      %9381 = vmatpush.bf16.msra.mxu0 %v9348
      %9382 = vmatpush.bf16.msra.mxu0 %v9347
      %9383 = vmatpush.bf16.msra.mxu0 %v9346
      %9384 = vmatpush.bf16.msra.mxu0 %v9345
      %9385 = vmatmul.bf16.gmra.mxu0 %v8464
      %v9386 = vpop.f32.mrf.mxu0
      %v9387 = vadd.f32 0.0, %v9386
      %v9388 = vpop.f32.mrf.mxu0
      %v9389 = vadd.f32 0.0, %v9388
      %9390 = vmatmul.bf16.gmra.mxu0 %v8466
      %v9391 = vpop.f32.mrf.mxu0
      %v9392 = vadd.f32 0.0, %v9391
      %v9393 = vpop.f32.mrf.mxu0
      %v9394 = vadd.f32 0.0, %v9393
      %9395 = vmatmul.bf16.gmra.mxu0 %v8468
      %v9396 = vpop.f32.mrf.mxu0
      %v9397 = vadd.f32 0.0, %v9396
      %v9398 = vpop.f32.mrf.mxu0
      %v9399 = vadd.f32 0.0, %v9398
      %9400 = vmatmul.bf16.gmra.mxu0 %v8470
      %v9401 = vpop.f32.mrf.mxu0
      %v9402 = vadd.f32 0.0, %v9401
      %v9403 = vpop.f32.mrf.mxu0
      %v9404 = vadd.f32 0.0, %v9403
      %9405 = vmatmul.bf16.gmra.mxu0 %v8472
      %v9406 = vpop.f32.mrf.mxu0
      %v9407 = vadd.f32 0.0, %v9406
      %v9408 = vpop.f32.mrf.mxu0
      %v9409 = vadd.f32 0.0, %v9408
      %9410 = vmatmul.bf16.gmra.mxu0 %v8474
      %v9411 = vpop.f32.mrf.mxu0
      %v9412 = vadd.f32 0.0, %v9411
      %v9413 = vpop.f32.mrf.mxu0
      %v9414 = vadd.f32 0.0, %v9413
      %9415 = vmatmul.bf16.gmra.mxu0 %v8476
      %v9416 = vpop.f32.mrf.mxu0
      %v9417 = vadd.f32 0.0, %v9416
      %v9418 = vpop.f32.mrf.mxu0
      %v9419 = vadd.f32 0.0, %v9418
      %9420 = vmatmul.bf16.gmra.mxu0 %v9277
      %v9421 = vpop.f32.mrf.mxu0
      %v9422 = vadd.f32 0.0, %v9421
      %v9423 = vpop.f32.mrf.mxu0
      %v9424 = vadd.f32 0.0, %v9423
      %9425 = vdwg.mxu0
      %9426 = vmatpush.bf16.msra.mxu0 %v9360
      %9427 = vmatpush.bf16.msra.mxu0 %v9359
      %9428 = vmatpush.bf16.msra.mxu0 %v9358
      %9429 = vmatpush.bf16.msra.mxu0 %v9357
      %9430 = vmatpush.bf16.msra.mxu0 %v9356
      %9431 = vmatpush.bf16.msra.mxu0 %v9355
      %9432 = vmatpush.bf16.msra.mxu0 %v9354
      %9433 = vmatpush.bf16.msra.mxu0 %v9353
      %9434 = vmatmul.bf16.gmra.mxu0 %v8465
      %v9435 = vpop.f32.mrf.mxu0
      %v9436 = vadd.f32 %v9387, %v9435
      %v9437 = vpop.f32.mrf.mxu0
      %v9438 = vadd.f32 %v9389, %v9437
      %9439 = vmatmul.bf16.gmra.mxu0 %v8467
      %v9440 = vpop.f32.mrf.mxu0
      %v9441 = vadd.f32 %v9392, %v9440
      %v9442 = vpop.f32.mrf.mxu0
      %v9443 = vadd.f32 %v9394, %v9442
      %9444 = vmatmul.bf16.gmra.mxu0 %v8469
      %v9445 = vpop.f32.mrf.mxu0
      %v9446 = vadd.f32 %v9397, %v9445
      %v9447 = vpop.f32.mrf.mxu0
      %v9448 = vadd.f32 %v9399, %v9447
      %9449 = vmatmul.bf16.gmra.mxu0 %v8471
      %v9450 = vpop.f32.mrf.mxu0
      %v9451 = vadd.f32 %v9402, %v9450
      %v9452 = vpop.f32.mrf.mxu0
      %v9453 = vadd.f32 %v9404, %v9452
      %9454 = vmatmul.bf16.gmra.mxu0 %v8473
      %v9455 = vpop.f32.mrf.mxu0
      %v9456 = vadd.f32 %v9407, %v9455
      %v9457 = vpop.f32.mrf.mxu0
      %v9458 = vadd.f32 %v9409, %v9457
      %9459 = vmatmul.bf16.gmra.mxu0 %v8475
      %v9460 = vpop.f32.mrf.mxu0
      %v9461 = vadd.f32 %v9412, %v9460
      %v9462 = vpop.f32.mrf.mxu0
      %v9463 = vadd.f32 %v9414, %v9462
      %9464 = vmatmul.bf16.gmra.mxu0 %v8477
      %v9465 = vpop.f32.mrf.mxu0
      %v9466 = vadd.f32 %v9417, %v9465
      %v9467 = vpop.f32.mrf.mxu0
      %v9468 = vadd.f32 %v9419, %v9467
      %9469 = vmatmul.bf16.gmra.mxu0 %v9278
      %v9470 = vpop.f32.mrf.mxu0
      %v9471 = vadd.f32 %v9422, %v9470
      %v9472 = vpop.f32.mrf.mxu0
      %v9473 = vadd.f32 %v9424, %v9472
      %9474 = vdwg.mxu0
      %v9475 = vadd.f32 %v9216, %v9436
      %v9476 = vadd.f32 %v9217, %v9438
      %v9477 = vadd.f32 %v9218, %v9441
      %v9478 = vadd.f32 %v9219, %v9443
      %v9479 = vadd.f32 %v9220, %v9446
      %v9480 = vadd.f32 %v9221, %v9448
      %v9481 = vadd.f32 %v9222, %v9451
      %v9482 = vadd.f32 %v9223, %v9453
      %v9483 = vadd.f32 %v9224, %v9456
      %v9484 = vadd.f32 %v9225, %v9458
      %v9485 = vadd.f32 %v9226, %v9461
      %v9486 = vadd.f32 %v9227, %v9463
      %v9487 = vadd.f32 %v9228, %v9466
      %v9488 = vadd.f32 %v9229, %v9468
      %v9489 = vadd.f32 %v9230, %v9471
      %v9490 = vadd.f32 %v9231, %v9473
      %s9491 = scalar_lea.vmem %s5, 768
      %v9492 = vld [vmem:[%s9491] sm:$0xf]
      %v9493 = vld [vmem:[%s9491 + $0x4] sm:$0xf]
      %v9494 = vld [vmem:[%s9491 + $0x8] sm:$0xf]
      %v9495 = vld [vmem:[%s9491 + $0xc] sm:$0xf]
      %v9496 = vld [vmem:[%s9491 + $0x10] sm:$0xf]
      %v9497 = vld [vmem:[%s9491 + $0x14] sm:$0xf]
      %v9498 = vld [vmem:[%s9491 + $0x18] sm:$0xf]
      %v9499 = vld [vmem:[%s9491 + $0x1c] sm:$0xf]
      %v9500 = vld [vmem:[%s9491 + $0x20] sm:$0xf]
      %v9501 = vld [vmem:[%s9491 + $0x24] sm:$0xf]
      %v9502 = vld [vmem:[%s9491 + $0x28] sm:$0xf]
      %v9503 = vld [vmem:[%s9491 + $0x2c] sm:$0xf]
      %v9504 = vld [vmem:[%s9491 + $0x30] sm:$0xf]
      %v9505 = vld [vmem:[%s9491 + $0x34] sm:$0xf]
      %v9506 = vld [vmem:[%s9491 + $0x38] sm:$0xf]
      %v9507 = vld [vmem:[%s9491 + $0x3c] sm:$0xf]
      %v9508 = vld [vmem:[%s9491 + $0x40] sm:$0xf]
      %v9509 = vld [vmem:[%s9491 + $0x44] sm:$0xf]
      %v9510 = vld [vmem:[%s9491 + $0x48] sm:$0xf]
      %v9511 = vld [vmem:[%s9491 + $0x4c] sm:$0xf]
      %v9512 = vld [vmem:[%s9491 + $0x50] sm:$0xf]
      %v9513 = vld [vmem:[%s9491 + $0x54] sm:$0xf]
      %v9514 = vld [vmem:[%s9491 + $0x58] sm:$0xf]
      %v9515 = vld [vmem:[%s9491 + $0x5c] sm:$0xf]
      %v9516 = vld [vmem:[%s9491 + $0x60] sm:$0xf]
      %v9517 = vld [vmem:[%s9491 + $0x64] sm:$0xf]
      %v9518 = vld [vmem:[%s9491 + $0x68] sm:$0xf]
      %v9519 = vld [vmem:[%s9491 + $0x6c] sm:$0xf]
      %v9520 = vld [vmem:[%s9491 + $0x70] sm:$0xf]
      %v9521 = vld [vmem:[%s9491 + $0x74] sm:$0xf]
      %v9522 = vld [vmem:[%s9491 + $0x78] sm:$0xf]
      %v9523 = vld [vmem:[%s9491 + $0x7c] sm:$0xf]
      %v9526 = vunpack.c.l.b16 %v7535
      %v9527 = vunpack.c.h.b16 %v7535
      %v9528 = vunpack.c.l.b16 %v7536
      %v9529 = vunpack.c.h.b16 %v7536
      %v9530 = vpack.c.b16 %v9528, %v9526
      %v9531 = vpack.c.b16 %v9529, %v9527
      %v9566 = vunpack.c.l.b16 %v9492
      %v9567 = vunpack.c.l.b16 %v9493
      %v9568 = vunpack.c.l.b16 %v9494
      %v9569 = vunpack.c.l.b16 %v9495
      %v9570 = vunpack.c.l.b16 %v9496
      %v9571 = vunpack.c.l.b16 %v9497
      %v9572 = vunpack.c.l.b16 %v9498
      %v9573 = vunpack.c.l.b16 %v9499
      %v9574 = vunpack.c.l.b16 %v9500
      %v9575 = vunpack.c.l.b16 %v9501
      %v9576 = vunpack.c.l.b16 %v9502
      %v9577 = vunpack.c.l.b16 %v9503
      %v9578 = vunpack.c.l.b16 %v9504
      %v9579 = vunpack.c.l.b16 %v9505
      %v9580 = vunpack.c.l.b16 %v9506
      %v9581 = vunpack.c.l.b16 %v9507
      %v9582 = vunpack.c.l.b16 %v9508
      %v9583 = vunpack.c.l.b16 %v9509
      %v9584 = vunpack.c.l.b16 %v9510
      %v9585 = vunpack.c.l.b16 %v9511
      %v9586 = vunpack.c.l.b16 %v9512
      %v9587 = vunpack.c.l.b16 %v9513
      %v9588 = vunpack.c.l.b16 %v9514
      %v9589 = vunpack.c.l.b16 %v9515
      %v9590 = vunpack.c.l.b16 %v9516
      %v9591 = vunpack.c.l.b16 %v9517
      %v9592 = vunpack.c.l.b16 %v9518
      %v9593 = vunpack.c.l.b16 %v9519
      %v9594 = vunpack.c.l.b16 %v9520
      %v9595 = vunpack.c.l.b16 %v9521
      %v9596 = vunpack.c.l.b16 %v9522
      %v9597 = vunpack.c.l.b16 %v9523
      %v9598 = vpack.c.b16 %v9567, %v9566
      %v9599 = vpack.c.b16 %v9569, %v9568
      %v9600 = vpack.c.b16 %v9571, %v9570
      %v9601 = vpack.c.b16 %v9573, %v9572
      %v9602 = vpack.c.b16 %v9575, %v9574
      %v9603 = vpack.c.b16 %v9577, %v9576
      %v9604 = vpack.c.b16 %v9579, %v9578
      %v9605 = vpack.c.b16 %v9581, %v9580
      %v9606 = vpack.c.b16 %v9583, %v9582
      %v9607 = vpack.c.b16 %v9585, %v9584
      %v9608 = vpack.c.b16 %v9587, %v9586
      %v9609 = vpack.c.b16 %v9589, %v9588
      %v9610 = vpack.c.b16 %v9591, %v9590
      %v9611 = vpack.c.b16 %v9593, %v9592
      %v9612 = vpack.c.b16 %v9595, %v9594
      %v9613 = vpack.c.b16 %v9597, %v9596
      %9630 = vmatpush.bf16.msra.mxu0 %v9605
      %9631 = vmatpush.bf16.msra.mxu0 %v9604
      %9632 = vmatpush.bf16.msra.mxu0 %v9603
      %9633 = vmatpush.bf16.msra.mxu0 %v9602
      %9634 = vmatpush.bf16.msra.mxu0 %v9601
      %9635 = vmatpush.bf16.msra.mxu0 %v9600
      %9636 = vmatpush.bf16.msra.mxu0 %v9599
      %9637 = vmatpush.bf16.msra.mxu0 %v9598
      %9638 = vmatmul.bf16.gmra.mxu0 %v8108
      %v9639 = vpop.f32.mrf.mxu0
      %v9640 = vadd.f32 0.0, %v9639
      %v9641 = vpop.f32.mrf.mxu0
      %v9642 = vadd.f32 0.0, %v9641
      %9643 = vmatmul.bf16.gmra.mxu0 %v8110
      %v9644 = vpop.f32.mrf.mxu0
      %v9645 = vadd.f32 0.0, %v9644
      %v9646 = vpop.f32.mrf.mxu0
      %v9647 = vadd.f32 0.0, %v9646
      %9648 = vmatmul.bf16.gmra.mxu0 %v8112
      %v9649 = vpop.f32.mrf.mxu0
      %v9650 = vadd.f32 0.0, %v9649
      %v9651 = vpop.f32.mrf.mxu0
      %v9652 = vadd.f32 0.0, %v9651
      %9653 = vmatmul.bf16.gmra.mxu0 %v8114
      %v9654 = vpop.f32.mrf.mxu0
      %v9655 = vadd.f32 0.0, %v9654
      %v9656 = vpop.f32.mrf.mxu0
      %v9657 = vadd.f32 0.0, %v9656
      %9658 = vmatmul.bf16.gmra.mxu0 %v8116
      %v9659 = vpop.f32.mrf.mxu0
      %v9660 = vadd.f32 0.0, %v9659
      %v9661 = vpop.f32.mrf.mxu0
      %v9662 = vadd.f32 0.0, %v9661
      %9663 = vmatmul.bf16.gmra.mxu0 %v8118
      %v9664 = vpop.f32.mrf.mxu0
      %v9665 = vadd.f32 0.0, %v9664
      %v9666 = vpop.f32.mrf.mxu0
      %v9667 = vadd.f32 0.0, %v9666
      %9668 = vmatmul.bf16.gmra.mxu0 %v8743
      %v9669 = vpop.f32.mrf.mxu0
      %v9670 = vadd.f32 0.0, %v9669
      %v9671 = vpop.f32.mrf.mxu0
      %v9672 = vadd.f32 0.0, %v9671
      %9673 = vmatmul.bf16.gmra.mxu0 %v9530
      %v9674 = vpop.f32.mrf.mxu0
      %v9675 = vadd.f32 0.0, %v9674
      %v9676 = vpop.f32.mrf.mxu0
      %v9677 = vadd.f32 0.0, %v9676
      %9678 = vdwg.mxu0
      %9679 = vmatpush.bf16.msra.mxu0 %v9613
      %9680 = vmatpush.bf16.msra.mxu0 %v9612
      %9681 = vmatpush.bf16.msra.mxu0 %v9611
      %9682 = vmatpush.bf16.msra.mxu0 %v9610
      %9683 = vmatpush.bf16.msra.mxu0 %v9609
      %9684 = vmatpush.bf16.msra.mxu0 %v9608
      %9685 = vmatpush.bf16.msra.mxu0 %v9607
      %9686 = vmatpush.bf16.msra.mxu0 %v9606
      %9687 = vmatmul.bf16.gmra.mxu0 %v8109
      %v9688 = vpop.f32.mrf.mxu0
      %v9689 = vadd.f32 %v9640, %v9688
      %v9690 = vpop.f32.mrf.mxu0
      %v9691 = vadd.f32 %v9642, %v9690
      %9692 = vmatmul.bf16.gmra.mxu0 %v8111
      %v9693 = vpop.f32.mrf.mxu0
      %v9694 = vadd.f32 %v9645, %v9693
      %v9695 = vpop.f32.mrf.mxu0
      %v9696 = vadd.f32 %v9647, %v9695
      %9697 = vmatmul.bf16.gmra.mxu0 %v8113
      %v9698 = vpop.f32.mrf.mxu0
      %v9699 = vadd.f32 %v9650, %v9698
      %v9700 = vpop.f32.mrf.mxu0
      %v9701 = vadd.f32 %v9652, %v9700
      %9702 = vmatmul.bf16.gmra.mxu0 %v8115
      %v9703 = vpop.f32.mrf.mxu0
      %v9704 = vadd.f32 %v9655, %v9703
      %v9705 = vpop.f32.mrf.mxu0
      %v9706 = vadd.f32 %v9657, %v9705
      %9707 = vmatmul.bf16.gmra.mxu0 %v8117
      %v9708 = vpop.f32.mrf.mxu0
      %v9709 = vadd.f32 %v9660, %v9708
      %v9710 = vpop.f32.mrf.mxu0
      %v9711 = vadd.f32 %v9662, %v9710
      %9712 = vmatmul.bf16.gmra.mxu0 %v8119
      %v9713 = vpop.f32.mrf.mxu0
      %v9714 = vadd.f32 %v9665, %v9713
      %v9715 = vpop.f32.mrf.mxu0
      %v9716 = vadd.f32 %v9667, %v9715
      %9717 = vmatmul.bf16.gmra.mxu0 %v8744
      %v9718 = vpop.f32.mrf.mxu0
      %v9719 = vadd.f32 %v9670, %v9718
      %v9720 = vpop.f32.mrf.mxu0
      %v9721 = vadd.f32 %v9672, %v9720
      %9722 = vmatmul.bf16.gmra.mxu0 %v9531
      %v9723 = vpop.f32.mrf.mxu0
      %v9724 = vadd.f32 %v9675, %v9723
      %v9725 = vpop.f32.mrf.mxu0
      %v9726 = vadd.f32 %v9677, %v9725
      %9727 = vdwg.mxu0
      %v9728 = vadd.f32 %v9475, %v9689
      %v9729 = vadd.f32 %v9476, %v9691
      %v9730 = vadd.f32 %v9477, %v9694
      %v9731 = vadd.f32 %v9478, %v9696
      %v9732 = vadd.f32 %v9479, %v9699
      %v9733 = vadd.f32 %v9480, %v9701
      %v9734 = vadd.f32 %v9481, %v9704
      %v9735 = vadd.f32 %v9482, %v9706
      %v9736 = vadd.f32 %v9483, %v9709
      %v9737 = vadd.f32 %v9484, %v9711
      %v9738 = vadd.f32 %v9485, %v9714
      %v9739 = vadd.f32 %v9486, %v9716
      %v9740 = vadd.f32 %v9487, %v9719
      %v9741 = vadd.f32 %v9488, %v9721
      %v9742 = vadd.f32 %v9489, %v9724
      %v9743 = vadd.f32 %v9490, %v9726
      %v9745 = vshrl.u32 %v7535, 16
      %v9747 = vrot.slane %v9745, 4
      %v9748 = vshll.u32 %v7535, 16
      %v9750 = vrot.slane %v9748, 5
      %v9751 = vor.u32 %v9747, %v9750
      %v9752 = vrot.slane %v9751, 4
      %v9754 = vshll.u32 %v7536, 16
      %v9756 = vrot.slane %v9754, 5
      %v9757 = vsel %vm7572, %v9752, %v9756
      %v9758 = vshrl.u32 %v7536, 16
      %v9760 = vrot.slane %v9758, 4
      %v9761 = vor.u32 %v9760, %v9756
      %v9762 = vrot.slane %v9761, 4
      %v9764 = vshll.u32 %v7537, 16
      %v9766 = vrot.slane %v9764, 5
      %v9767 = vsel %vm7572, %v9762, %v9766
      %s9768 = scalar_lea.vmem %s5, 896
      %v9769 = vld [vmem:[%s9768] sm:$0xf]
      %v9770 = vld [vmem:[%s9768 + $0x4] sm:$0xf]
      %v9771 = vld [vmem:[%s9768 + $0x8] sm:$0xf]
      %v9772 = vld [vmem:[%s9768 + $0xc] sm:$0xf]
      %v9773 = vld [vmem:[%s9768 + $0x10] sm:$0xf]
      %v9774 = vld [vmem:[%s9768 + $0x14] sm:$0xf]
      %v9775 = vld [vmem:[%s9768 + $0x18] sm:$0xf]
      %v9776 = vld [vmem:[%s9768 + $0x1c] sm:$0xf]
      %v9777 = vld [vmem:[%s9768 + $0x20] sm:$0xf]
      %v9778 = vld [vmem:[%s9768 + $0x24] sm:$0xf]
      %v9779 = vld [vmem:[%s9768 + $0x28] sm:$0xf]
      %v9780 = vld [vmem:[%s9768 + $0x2c] sm:$0xf]
      %v9781 = vld [vmem:[%s9768 + $0x30] sm:$0xf]
      %v9782 = vld [vmem:[%s9768 + $0x34] sm:$0xf]
      %v9783 = vld [vmem:[%s9768 + $0x38] sm:$0xf]
      %v9784 = vld [vmem:[%s9768 + $0x3c] sm:$0xf]
      %v9785 = vld [vmem:[%s9768 + $0x40] sm:$0xf]
      %v9786 = vld [vmem:[%s9768 + $0x44] sm:$0xf]
      %v9787 = vld [vmem:[%s9768 + $0x48] sm:$0xf]
      %v9788 = vld [vmem:[%s9768 + $0x4c] sm:$0xf]
      %v9789 = vld [vmem:[%s9768 + $0x50] sm:$0xf]
      %v9790 = vld [vmem:[%s9768 + $0x54] sm:$0xf]
      %v9791 = vld [vmem:[%s9768 + $0x58] sm:$0xf]
      %v9792 = vld [vmem:[%s9768 + $0x5c] sm:$0xf]
      %v9793 = vld [vmem:[%s9768 + $0x60] sm:$0xf]
      %v9794 = vld [vmem:[%s9768 + $0x64] sm:$0xf]
      %v9795 = vld [vmem:[%s9768 + $0x68] sm:$0xf]
      %v9796 = vld [vmem:[%s9768 + $0x6c] sm:$0xf]
      %v9797 = vld [vmem:[%s9768 + $0x70] sm:$0xf]
      %v9798 = vld [vmem:[%s9768 + $0x74] sm:$0xf]
      %v9799 = vld [vmem:[%s9768 + $0x78] sm:$0xf]
      %v9800 = vld [vmem:[%s9768 + $0x7c] sm:$0xf]
      %v9801 = vunpack.c.l.b16 %v9757
      %v9802 = vunpack.c.h.b16 %v9757
      %v9803 = vunpack.c.l.b16 %v9767
      %v9804 = vunpack.c.h.b16 %v9767
      %v9805 = vpack.c.b16 %v9803, %v9801
      %v9806 = vpack.c.b16 %v9804, %v9802
      %v9841 = vunpack.c.l.b16 %v9769
      %v9842 = vunpack.c.l.b16 %v9770
      %v9843 = vunpack.c.l.b16 %v9771
      %v9844 = vunpack.c.l.b16 %v9772
      %v9845 = vunpack.c.l.b16 %v9773
      %v9846 = vunpack.c.l.b16 %v9774
      %v9847 = vunpack.c.l.b16 %v9775
      %v9848 = vunpack.c.l.b16 %v9776
      %v9849 = vunpack.c.l.b16 %v9777
      %v9850 = vunpack.c.l.b16 %v9778
      %v9851 = vunpack.c.l.b16 %v9779
      %v9852 = vunpack.c.l.b16 %v9780
      %v9853 = vunpack.c.l.b16 %v9781
      %v9854 = vunpack.c.l.b16 %v9782
      %v9855 = vunpack.c.l.b16 %v9783
      %v9856 = vunpack.c.l.b16 %v9784
      %v9857 = vunpack.c.l.b16 %v9785
      %v9858 = vunpack.c.l.b16 %v9786
      %v9859 = vunpack.c.l.b16 %v9787
      %v9860 = vunpack.c.l.b16 %v9788
      %v9861 = vunpack.c.l.b16 %v9789
      %v9862 = vunpack.c.l.b16 %v9790
      %v9863 = vunpack.c.l.b16 %v9791
      %v9864 = vunpack.c.l.b16 %v9792
      %v9865 = vunpack.c.l.b16 %v9793
      %v9866 = vunpack.c.l.b16 %v9794
      %v9867 = vunpack.c.l.b16 %v9795
      %v9868 = vunpack.c.l.b16 %v9796
      %v9869 = vunpack.c.l.b16 %v9797
      %v9870 = vunpack.c.l.b16 %v9798
      %v9871 = vunpack.c.l.b16 %v9799
      %v9872 = vunpack.c.l.b16 %v9800
      %v9873 = vpack.c.b16 %v9842, %v9841
      %v9874 = vpack.c.b16 %v9844, %v9843
      %v9875 = vpack.c.b16 %v9846, %v9845
      %v9876 = vpack.c.b16 %v9848, %v9847
      %v9877 = vpack.c.b16 %v9850, %v9849
      %v9878 = vpack.c.b16 %v9852, %v9851
      %v9879 = vpack.c.b16 %v9854, %v9853
      %v9880 = vpack.c.b16 %v9856, %v9855
      %v9881 = vpack.c.b16 %v9858, %v9857
      %v9882 = vpack.c.b16 %v9860, %v9859
      %v9883 = vpack.c.b16 %v9862, %v9861
      %v9884 = vpack.c.b16 %v9864, %v9863
      %v9885 = vpack.c.b16 %v9866, %v9865
      %v9886 = vpack.c.b16 %v9868, %v9867
      %v9887 = vpack.c.b16 %v9870, %v9869
      %v9888 = vpack.c.b16 %v9872, %v9871
      %9905 = vmatpush.bf16.msra.mxu0 %v9880
      %9906 = vmatpush.bf16.msra.mxu0 %v9879
      %9907 = vmatpush.bf16.msra.mxu0 %v9878
      %9908 = vmatpush.bf16.msra.mxu0 %v9877
      %9909 = vmatpush.bf16.msra.mxu0 %v9876
      %9910 = vmatpush.bf16.msra.mxu0 %v9875
      %9911 = vmatpush.bf16.msra.mxu0 %v9874
      %9912 = vmatpush.bf16.msra.mxu0 %v9873
      %9913 = vmatmul.bf16.gmra.mxu0 %v7834
      %v9914 = vpop.f32.mrf.mxu0
      %v9915 = vadd.f32 0.0, %v9914
      %v9916 = vpop.f32.mrf.mxu0
      %v9917 = vadd.f32 0.0, %v9916
      %9918 = vmatmul.bf16.gmra.mxu0 %v7836
      %v9919 = vpop.f32.mrf.mxu0
      %v9920 = vadd.f32 0.0, %v9919
      %v9921 = vpop.f32.mrf.mxu0
      %v9922 = vadd.f32 0.0, %v9921
      %9923 = vmatmul.bf16.gmra.mxu0 %v7838
      %v9924 = vpop.f32.mrf.mxu0
      %v9925 = vadd.f32 0.0, %v9924
      %v9926 = vpop.f32.mrf.mxu0
      %v9927 = vadd.f32 0.0, %v9926
      %9928 = vmatmul.bf16.gmra.mxu0 %v7840
      %v9929 = vpop.f32.mrf.mxu0
      %v9930 = vadd.f32 0.0, %v9929
      %v9931 = vpop.f32.mrf.mxu0
      %v9932 = vadd.f32 0.0, %v9931
      %9933 = vmatmul.bf16.gmra.mxu0 %v7842
      %v9934 = vpop.f32.mrf.mxu0
      %v9935 = vadd.f32 0.0, %v9934
      %v9936 = vpop.f32.mrf.mxu0
      %v9937 = vadd.f32 0.0, %v9936
      %9938 = vmatmul.bf16.gmra.mxu0 %v7844
      %v9939 = vpop.f32.mrf.mxu0
      %v9940 = vadd.f32 0.0, %v9939
      %v9941 = vpop.f32.mrf.mxu0
      %v9942 = vadd.f32 0.0, %v9941
      %9943 = vmatmul.bf16.gmra.mxu0 %v9018
      %v9944 = vpop.f32.mrf.mxu0
      %v9945 = vadd.f32 0.0, %v9944
      %v9946 = vpop.f32.mrf.mxu0
      %v9947 = vadd.f32 0.0, %v9946
      %9948 = vmatmul.bf16.gmra.mxu0 %v9805
      %v9949 = vpop.f32.mrf.mxu0
      %v9950 = vadd.f32 0.0, %v9949
      %v9951 = vpop.f32.mrf.mxu0
      %v9952 = vadd.f32 0.0, %v9951
      %9953 = vdwg.mxu0
      %9954 = vmatpush.bf16.msra.mxu0 %v9888
      %9955 = vmatpush.bf16.msra.mxu0 %v9887
      %9956 = vmatpush.bf16.msra.mxu0 %v9886
      %9957 = vmatpush.bf16.msra.mxu0 %v9885
      %9958 = vmatpush.bf16.msra.mxu0 %v9884
      %9959 = vmatpush.bf16.msra.mxu0 %v9883
      %9960 = vmatpush.bf16.msra.mxu0 %v9882
      %9961 = vmatpush.bf16.msra.mxu0 %v9881
      %9962 = vmatmul.bf16.gmra.mxu0 %v7835
      %v9963 = vpop.f32.mrf.mxu0
      %v9964 = vadd.f32 %v9915, %v9963
      %v9965 = vpop.f32.mrf.mxu0
      %v9966 = vadd.f32 %v9917, %v9965
      %9967 = vmatmul.bf16.gmra.mxu0 %v7837
      %v9968 = vpop.f32.mrf.mxu0
      %v9969 = vadd.f32 %v9920, %v9968
      %v9970 = vpop.f32.mrf.mxu0
      %v9971 = vadd.f32 %v9922, %v9970
      %9972 = vmatmul.bf16.gmra.mxu0 %v7839
      %v9973 = vpop.f32.mrf.mxu0
      %v9974 = vadd.f32 %v9925, %v9973
      %v9975 = vpop.f32.mrf.mxu0
      %v9976 = vadd.f32 %v9927, %v9975
      %9977 = vmatmul.bf16.gmra.mxu0 %v7841
      %v9978 = vpop.f32.mrf.mxu0
      %v9979 = vadd.f32 %v9930, %v9978
      %v9980 = vpop.f32.mrf.mxu0
      %v9981 = vadd.f32 %v9932, %v9980
      %9982 = vmatmul.bf16.gmra.mxu0 %v7843
      %v9983 = vpop.f32.mrf.mxu0
      %v9984 = vadd.f32 %v9935, %v9983
      %v9985 = vpop.f32.mrf.mxu0
      %v9986 = vadd.f32 %v9937, %v9985
      %9987 = vmatmul.bf16.gmra.mxu0 %v7845
      %v9988 = vpop.f32.mrf.mxu0
      %v9989 = vadd.f32 %v9940, %v9988
      %v9990 = vpop.f32.mrf.mxu0
      %v9991 = vadd.f32 %v9942, %v9990
      %9992 = vmatmul.bf16.gmra.mxu0 %v9019
      %v9993 = vpop.f32.mrf.mxu0
      %v9994 = vadd.f32 %v9945, %v9993
      %v9995 = vpop.f32.mrf.mxu0
      %v9996 = vadd.f32 %v9947, %v9995
      %9997 = vmatmul.bf16.gmra.mxu0 %v9806
      %v9998 = vpop.f32.mrf.mxu0
      %v9999 = vadd.f32 %v9950, %v9998
      %v10000 = vpop.f32.mrf.mxu0
      %v10001 = vadd.f32 %v9952, %v10000
      %10002 = vdwg.mxu0
      %v10003 = vadd.f32 %v9728, %v9964
      %v10004 = vadd.f32 %v9729, %v9966
      %v10005 = vadd.f32 %v9730, %v9969
      %v10006 = vadd.f32 %v9731, %v9971
      %v10007 = vadd.f32 %v9732, %v9974
      %v10008 = vadd.f32 %v9733, %v9976
      %v10009 = vadd.f32 %v9734, %v9979
      %v10010 = vadd.f32 %v9735, %v9981
      %v10011 = vadd.f32 %v9736, %v9984
      %v10012 = vadd.f32 %v9737, %v9986
      %v10013 = vadd.f32 %v9738, %v9989
      %v10014 = vadd.f32 %v9739, %v9991
      %v10015 = vadd.f32 %v9740, %v9994
      %v10016 = vadd.f32 %v9741, %v9996
      %v10017 = vadd.f32 %v9742, %v9999
      %v10018 = vadd.f32 %v9743, %v10001
      %v10020 = vrot.slane %v7535, 5
      %v10021 = vrot.slane %v10020, 4
      %v10022 = vrot.slane %v7536, 5
      %v10023 = vsel %vm8340, %v10021, %v10022
      %v10024 = vrot.slane %v10022, 4
      %v10025 = vrot.slane %v7537, 5
      %v10026 = vsel %vm8340, %v10024, %v10025
      %s10027 = scalar_lea.vmem %s5, 1024
      %v10028 = vld [vmem:[%s10027] sm:$0xf]
      %v10029 = vld [vmem:[%s10027 + $0x4] sm:$0xf]
      %v10030 = vld [vmem:[%s10027 + $0x8] sm:$0xf]
      %v10031 = vld [vmem:[%s10027 + $0xc] sm:$0xf]
      %v10032 = vld [vmem:[%s10027 + $0x10] sm:$0xf]
      %v10033 = vld [vmem:[%s10027 + $0x14] sm:$0xf]
      %v10034 = vld [vmem:[%s10027 + $0x18] sm:$0xf]
      %v10035 = vld [vmem:[%s10027 + $0x1c] sm:$0xf]
      %v10036 = vld [vmem:[%s10027 + $0x20] sm:$0xf]
      %v10037 = vld [vmem:[%s10027 + $0x24] sm:$0xf]
      %v10038 = vld [vmem:[%s10027 + $0x28] sm:$0xf]
      %v10039 = vld [vmem:[%s10027 + $0x2c] sm:$0xf]
      %v10040 = vld [vmem:[%s10027 + $0x30] sm:$0xf]
      %v10041 = vld [vmem:[%s10027 + $0x34] sm:$0xf]
      %v10042 = vld [vmem:[%s10027 + $0x38] sm:$0xf]
      %v10043 = vld [vmem:[%s10027 + $0x3c] sm:$0xf]
      %v10044 = vld [vmem:[%s10027 + $0x40] sm:$0xf]
      %v10045 = vld [vmem:[%s10027 + $0x44] sm:$0xf]
      %v10046 = vld [vmem:[%s10027 + $0x48] sm:$0xf]
      %v10047 = vld [vmem:[%s10027 + $0x4c] sm:$0xf]
      %v10048 = vld [vmem:[%s10027 + $0x50] sm:$0xf]
      %v10049 = vld [vmem:[%s10027 + $0x54] sm:$0xf]
      %v10050 = vld [vmem:[%s10027 + $0x58] sm:$0xf]
      %v10051 = vld [vmem:[%s10027 + $0x5c] sm:$0xf]
      %v10052 = vld [vmem:[%s10027 + $0x60] sm:$0xf]
      %v10053 = vld [vmem:[%s10027 + $0x64] sm:$0xf]
      %v10054 = vld [vmem:[%s10027 + $0x68] sm:$0xf]
      %v10055 = vld [vmem:[%s10027 + $0x6c] sm:$0xf]
      %v10056 = vld [vmem:[%s10027 + $0x70] sm:$0xf]
      %v10057 = vld [vmem:[%s10027 + $0x74] sm:$0xf]
      %v10058 = vld [vmem:[%s10027 + $0x78] sm:$0xf]
      %v10059 = vld [vmem:[%s10027 + $0x7c] sm:$0xf]
      %v10060 = vunpack.c.l.b16 %v10023
      %v10061 = vunpack.c.h.b16 %v10023
      %v10062 = vunpack.c.l.b16 %v10026
      %v10063 = vunpack.c.h.b16 %v10026
      %v10064 = vpack.c.b16 %v10062, %v10060
      %v10065 = vpack.c.b16 %v10063, %v10061
      %v10100 = vunpack.c.l.b16 %v10028
      %v10101 = vunpack.c.l.b16 %v10029
      %v10102 = vunpack.c.l.b16 %v10030
      %v10103 = vunpack.c.l.b16 %v10031
      %v10104 = vunpack.c.l.b16 %v10032
      %v10105 = vunpack.c.l.b16 %v10033
      %v10106 = vunpack.c.l.b16 %v10034
      %v10107 = vunpack.c.l.b16 %v10035
      %v10108 = vunpack.c.l.b16 %v10036
      %v10109 = vunpack.c.l.b16 %v10037
      %v10110 = vunpack.c.l.b16 %v10038
      %v10111 = vunpack.c.l.b16 %v10039
      %v10112 = vunpack.c.l.b16 %v10040
      %v10113 = vunpack.c.l.b16 %v10041
      %v10114 = vunpack.c.l.b16 %v10042
      %v10115 = vunpack.c.l.b16 %v10043
      %v10116 = vunpack.c.l.b16 %v10044
      %v10117 = vunpack.c.l.b16 %v10045
      %v10118 = vunpack.c.l.b16 %v10046
      %v10119 = vunpack.c.l.b16 %v10047
      %v10120 = vunpack.c.l.b16 %v10048
      %v10121 = vunpack.c.l.b16 %v10049
      %v10122 = vunpack.c.l.b16 %v10050
      %v10123 = vunpack.c.l.b16 %v10051
      %v10124 = vunpack.c.l.b16 %v10052
      %v10125 = vunpack.c.l.b16 %v10053
      %v10126 = vunpack.c.l.b16 %v10054
      %v10127 = vunpack.c.l.b16 %v10055
      %v10128 = vunpack.c.l.b16 %v10056
      %v10129 = vunpack.c.l.b16 %v10057
      %v10130 = vunpack.c.l.b16 %v10058
      %v10131 = vunpack.c.l.b16 %v10059
      %v10132 = vpack.c.b16 %v10101, %v10100
      %v10133 = vpack.c.b16 %v10103, %v10102
      %v10134 = vpack.c.b16 %v10105, %v10104
      %v10135 = vpack.c.b16 %v10107, %v10106
      %v10136 = vpack.c.b16 %v10109, %v10108
      %v10137 = vpack.c.b16 %v10111, %v10110
      %v10138 = vpack.c.b16 %v10113, %v10112
      %v10139 = vpack.c.b16 %v10115, %v10114
      %v10140 = vpack.c.b16 %v10117, %v10116
      %v10141 = vpack.c.b16 %v10119, %v10118
      %v10142 = vpack.c.b16 %v10121, %v10120
      %v10143 = vpack.c.b16 %v10123, %v10122
      %v10144 = vpack.c.b16 %v10125, %v10124
      %v10145 = vpack.c.b16 %v10127, %v10126
      %v10146 = vpack.c.b16 %v10129, %v10128
      %v10147 = vpack.c.b16 %v10131, %v10130
      %10164 = vmatpush.bf16.msra.mxu0 %v10139
      %10165 = vmatpush.bf16.msra.mxu0 %v10138
      %10166 = vmatpush.bf16.msra.mxu0 %v10137
      %10167 = vmatpush.bf16.msra.mxu0 %v10136
      %10168 = vmatpush.bf16.msra.mxu0 %v10135
      %10169 = vmatpush.bf16.msra.mxu0 %v10134
      %10170 = vmatpush.bf16.msra.mxu0 %v10133
      %10171 = vmatpush.bf16.msra.mxu0 %v10132
      %10172 = vmatmul.bf16.gmra.mxu0 %v8466
      %v10173 = vpop.f32.mrf.mxu0
      %v10174 = vadd.f32 0.0, %v10173
      %v10175 = vpop.f32.mrf.mxu0
      %v10176 = vadd.f32 0.0, %v10175
      %10177 = vmatmul.bf16.gmra.mxu0 %v8468
      %v10178 = vpop.f32.mrf.mxu0
      %v10179 = vadd.f32 0.0, %v10178
      %v10180 = vpop.f32.mrf.mxu0
      %v10181 = vadd.f32 0.0, %v10180
      %10182 = vmatmul.bf16.gmra.mxu0 %v8470
      %v10183 = vpop.f32.mrf.mxu0
      %v10184 = vadd.f32 0.0, %v10183
      %v10185 = vpop.f32.mrf.mxu0
      %v10186 = vadd.f32 0.0, %v10185
      %10187 = vmatmul.bf16.gmra.mxu0 %v8472
      %v10188 = vpop.f32.mrf.mxu0
      %v10189 = vadd.f32 0.0, %v10188
      %v10190 = vpop.f32.mrf.mxu0
      %v10191 = vadd.f32 0.0, %v10190
      %10192 = vmatmul.bf16.gmra.mxu0 %v8474
      %v10193 = vpop.f32.mrf.mxu0
      %v10194 = vadd.f32 0.0, %v10193
      %v10195 = vpop.f32.mrf.mxu0
      %v10196 = vadd.f32 0.0, %v10195
      %10197 = vmatmul.bf16.gmra.mxu0 %v8476
      %v10198 = vpop.f32.mrf.mxu0
      %v10199 = vadd.f32 0.0, %v10198
      %v10200 = vpop.f32.mrf.mxu0
      %v10201 = vadd.f32 0.0, %v10200
      %10202 = vmatmul.bf16.gmra.mxu0 %v9277
      %v10203 = vpop.f32.mrf.mxu0
      %v10204 = vadd.f32 0.0, %v10203
      %v10205 = vpop.f32.mrf.mxu0
      %v10206 = vadd.f32 0.0, %v10205
      %10207 = vmatmul.bf16.gmra.mxu0 %v10064
      %v10208 = vpop.f32.mrf.mxu0
      %v10209 = vadd.f32 0.0, %v10208
      %v10210 = vpop.f32.mrf.mxu0
      %v10211 = vadd.f32 0.0, %v10210
      %10212 = vdwg.mxu0
      %10213 = vmatpush.bf16.msra.mxu0 %v10147
      %10214 = vmatpush.bf16.msra.mxu0 %v10146
      %10215 = vmatpush.bf16.msra.mxu0 %v10145
      %10216 = vmatpush.bf16.msra.mxu0 %v10144
      %10217 = vmatpush.bf16.msra.mxu0 %v10143
      %10218 = vmatpush.bf16.msra.mxu0 %v10142
      %10219 = vmatpush.bf16.msra.mxu0 %v10141
      %10220 = vmatpush.bf16.msra.mxu0 %v10140
      %10221 = vmatmul.bf16.gmra.mxu0 %v8467
      %v10222 = vpop.f32.mrf.mxu0
      %v10223 = vadd.f32 %v10174, %v10222
      %v10224 = vpop.f32.mrf.mxu0
      %v10225 = vadd.f32 %v10176, %v10224
      %10226 = vmatmul.bf16.gmra.mxu0 %v8469
      %v10227 = vpop.f32.mrf.mxu0
      %v10228 = vadd.f32 %v10179, %v10227
      %v10229 = vpop.f32.mrf.mxu0
      %v10230 = vadd.f32 %v10181, %v10229
      %10231 = vmatmul.bf16.gmra.mxu0 %v8471
      %v10232 = vpop.f32.mrf.mxu0
      %v10233 = vadd.f32 %v10184, %v10232
      %v10234 = vpop.f32.mrf.mxu0
      %v10235 = vadd.f32 %v10186, %v10234
      %10236 = vmatmul.bf16.gmra.mxu0 %v8473
      %v10237 = vpop.f32.mrf.mxu0
      %v10238 = vadd.f32 %v10189, %v10237
      %v10239 = vpop.f32.mrf.mxu0
      %v10240 = vadd.f32 %v10191, %v10239
      %10241 = vmatmul.bf16.gmra.mxu0 %v8475
      %v10242 = vpop.f32.mrf.mxu0
      %v10243 = vadd.f32 %v10194, %v10242
      %v10244 = vpop.f32.mrf.mxu0
      %v10245 = vadd.f32 %v10196, %v10244
      %10246 = vmatmul.bf16.gmra.mxu0 %v8477
      %v10247 = vpop.f32.mrf.mxu0
      %v10248 = vadd.f32 %v10199, %v10247
      %v10249 = vpop.f32.mrf.mxu0
      %v10250 = vadd.f32 %v10201, %v10249
      %10251 = vmatmul.bf16.gmra.mxu0 %v9278
      %v10252 = vpop.f32.mrf.mxu0
      %v10253 = vadd.f32 %v10204, %v10252
      %v10254 = vpop.f32.mrf.mxu0
      %v10255 = vadd.f32 %v10206, %v10254
      %10256 = vmatmul.bf16.gmra.mxu0 %v10065
      %v10257 = vpop.f32.mrf.mxu0
      %v10258 = vadd.f32 %v10209, %v10257
      %v10259 = vpop.f32.mrf.mxu0
      %v10260 = vadd.f32 %v10211, %v10259
      %10261 = vdwg.mxu0
      %v10262 = vadd.f32 %v10003, %v10223
      %v10263 = vadd.f32 %v10004, %v10225
      %v10264 = vadd.f32 %v10005, %v10228
      %v10265 = vadd.f32 %v10006, %v10230
      %v10266 = vadd.f32 %v10007, %v10233
      %v10267 = vadd.f32 %v10008, %v10235
      %v10268 = vadd.f32 %v10009, %v10238
      %v10269 = vadd.f32 %v10010, %v10240
      %v10270 = vadd.f32 %v10011, %v10243
      %v10271 = vadd.f32 %v10012, %v10245
      %v10272 = vadd.f32 %v10013, %v10248
      %v10273 = vadd.f32 %v10014, %v10250
      %v10274 = vadd.f32 %v10015, %v10253
      %v10275 = vadd.f32 %v10016, %v10255
      %v10276 = vadd.f32 %v10017, %v10258
      %v10277 = vadd.f32 %v10018, %v10260
      %v10278 = vld [vmem:[%s6] sm:$0x1]
      %v10280 = vperm.slane %v10278, 0
      %v10282 = vadd.f32 %v10262, %v10280
      %v10283 = vadd.f32 %v10263, %v10280
      %v10284 = vadd.f32 %v10264, %v10280
      %v10285 = vadd.f32 %v10265, %v10280
      %v10286 = vadd.f32 %v10266, %v10280
      %v10287 = vadd.f32 %v10267, %v10280
      %v10288 = vadd.f32 %v10268, %v10280
      %v10289 = vadd.f32 %v10269, %v10280
      %v10290 = vadd.f32 %v10270, %v10280
      %v10291 = vadd.f32 %v10271, %v10280
      %v10292 = vadd.f32 %v10272, %v10280
      %v10293 = vadd.f32 %v10273, %v10280
      %v10294 = vadd.f32 %v10274, %v10280
      %v10295 = vadd.f32 %v10275, %v10280
      %v10296 = vadd.f32 %v10276, %v10280
      %v10297 = vadd.f32 %v10277, %v10280
      %v10298 = vmax.f32 %v10282, 0.0
      %v10299 = vmax.f32 %v10283, 0.0
      %v10300 = vmax.f32 %v10284, 0.0
      %v10301 = vmax.f32 %v10285, 0.0
      %v10302 = vmax.f32 %v10286, 0.0
      %v10303 = vmax.f32 %v10287, 0.0
      %v10304 = vmax.f32 %v10288, 0.0
      %v10305 = vmax.f32 %v10289, 0.0
      %v10306 = vmax.f32 %v10290, 0.0
      %v10307 = vmax.f32 %v10291, 0.0
      %v10308 = vmax.f32 %v10292, 0.0
      %v10309 = vmax.f32 %v10293, 0.0
      %v10310 = vmax.f32 %v10294, 0.0
      %v10311 = vmax.f32 %v10295, 0.0
      %v10312 = vmax.f32 %v10296, 0.0
      %v10313 = vmax.f32 %v10297, 0.0
      %v10314 = vpack.c.bf16 %v10299, %v10298
      %v10315 = vpack.c.bf16 %v10301, %v10300
      %v10316 = vpack.c.bf16 %v10303, %v10302
      %v10317 = vpack.c.bf16 %v10305, %v10304
      %v10318 = vpack.c.bf16 %v10307, %v10306
      %v10319 = vpack.c.bf16 %v10309, %v10308
      %v10320 = vpack.c.bf16 %v10311, %v10310
      %v10321 = vpack.c.bf16 %v10313, %v10312
      %v10322 = vld [vmem:[%s7] sm:$0xf]
      %v10323 = vld [vmem:[%s7 + $0x4] sm:$0xf]
      %v10324 = vld [vmem:[%s7 + $0x8] sm:$0xf]
      %v10325 = vld [vmem:[%s7 + $0xc] sm:$0xf]
      %v10326 = vld [vmem:[%s7 + $0x10] sm:$0xf]
      %v10327 = vld [vmem:[%s7 + $0x14] sm:$0xf]
      %v10328 = vld [vmem:[%s7 + $0x18] sm:$0xf]
      %v10329 = vld [vmem:[%s7 + $0x1c] sm:$0xf]
      %v10330 = vld [vmem:[%s7 + $0x20] sm:$0xf]
      %v10331 = vld [vmem:[%s7 + $0x24] sm:$0xf]
      %v10332 = vld [vmem:[%s7 + $0x28] sm:$0xf]
      %v10333 = vld [vmem:[%s7 + $0x2c] sm:$0xf]
      %v10334 = vld [vmem:[%s7 + $0x30] sm:$0xf]
      %v10335 = vld [vmem:[%s7 + $0x34] sm:$0xf]
      %v10336 = vld [vmem:[%s7 + $0x38] sm:$0xf]
      %v10337 = vld [vmem:[%s7 + $0x3c] sm:$0xf]
      %v10338 = vld [vmem:[%s8] sm:$0x1]
      %v10340 = vperm.slane %v10338, 0
      %v10358 = vunpack.c.l.b16 %v10322
      %v10359 = vunpack.c.l.b16 %v10323
      %v10360 = vunpack.c.l.b16 %v10324
      %v10361 = vunpack.c.l.b16 %v10325
      %v10362 = vunpack.c.l.b16 %v10326
      %v10363 = vunpack.c.l.b16 %v10327
      %v10364 = vunpack.c.l.b16 %v10328
      %v10365 = vunpack.c.l.b16 %v10329
      %v10366 = vunpack.c.l.b16 %v10330
      %v10367 = vunpack.c.l.b16 %v10331
      %v10368 = vunpack.c.l.b16 %v10332
      %v10369 = vunpack.c.l.b16 %v10333
      %v10370 = vunpack.c.l.b16 %v10334
      %v10371 = vunpack.c.l.b16 %v10335
      %v10372 = vunpack.c.l.b16 %v10336
      %v10373 = vunpack.c.l.b16 %v10337
      %v10374 = vpack.c.b16 %v10359, %v10358
      %v10375 = vpack.c.b16 %v10361, %v10360
      %v10376 = vpack.c.b16 %v10363, %v10362
      %v10377 = vpack.c.b16 %v10365, %v10364
      %v10378 = vpack.c.b16 %v10367, %v10366
      %v10379 = vpack.c.b16 %v10369, %v10368
      %v10380 = vpack.c.b16 %v10371, %v10370
      %v10381 = vpack.c.b16 %v10373, %v10372
      %10390 = vmatpush.bf16.msra.mxu0 %v10381
      %10391 = vmatpush.bf16.msra.mxu0 %v10380
      %10392 = vmatpush.bf16.msra.mxu0 %v10379
      %10393 = vmatpush.bf16.msra.mxu0 %v10378
      %10394 = vmatpush.bf16.msra.mxu0 %v10377
      %10395 = vmatpush.bf16.msra.mxu0 %v10376
      %10396 = vmatpush.bf16.msra.mxu0 %v10375
      %10397 = vmatpush.bf16.msra.mxu0 %v10374
      %10398 = vmatmul.bf16.gmra.mxu0 %v10314
      %v10399 = vpop.f32.mrf.mxu0
      %v10400 = vadd.f32 %v10340, %v10399
      %v10401 = vpop.f32.mrf.mxu0
      %v10402 = vadd.f32 %v10340, %v10401
      %10403 = vmatmul.bf16.gmra.mxu0 %v10315
      %v10404 = vpop.f32.mrf.mxu0
      %v10405 = vadd.f32 %v10340, %v10404
      %v10406 = vpop.f32.mrf.mxu0
      %v10407 = vadd.f32 %v10340, %v10406
      %10408 = vmatmul.bf16.gmra.mxu0 %v10316
      %v10409 = vpop.f32.mrf.mxu0
      %v10410 = vadd.f32 %v10340, %v10409
      %v10411 = vpop.f32.mrf.mxu0
      %v10412 = vadd.f32 %v10340, %v10411
      %10413 = vmatmul.bf16.gmra.mxu0 %v10317
      %v10414 = vpop.f32.mrf.mxu0
      %v10415 = vadd.f32 %v10340, %v10414
      %v10416 = vpop.f32.mrf.mxu0
      %v10417 = vadd.f32 %v10340, %v10416
      %10418 = vmatmul.bf16.gmra.mxu0 %v10318
      %v10419 = vpop.f32.mrf.mxu0
      %v10420 = vadd.f32 %v10340, %v10419
      %v10421 = vpop.f32.mrf.mxu0
      %v10422 = vadd.f32 %v10340, %v10421
      %10423 = vmatmul.bf16.gmra.mxu0 %v10319
      %v10424 = vpop.f32.mrf.mxu0
      %v10425 = vadd.f32 %v10340, %v10424
      %v10426 = vpop.f32.mrf.mxu0
      %v10427 = vadd.f32 %v10340, %v10426
      %10428 = vmatmul.bf16.gmra.mxu0 %v10320
      %v10429 = vpop.f32.mrf.mxu0
      %v10430 = vadd.f32 %v10340, %v10429
      %v10431 = vpop.f32.mrf.mxu0
      %v10432 = vadd.f32 %v10340, %v10431
      %10433 = vmatmul.bf16.gmra.mxu0 %v10321
      %v10434 = vpop.f32.mrf.mxu0
      %v10435 = vadd.f32 %v10340, %v10434
      %v10436 = vpop.f32.mrf.mxu0
      %v10437 = vadd.f32 %v10340, %v10436
      %10438 = vdwg.mxu0
      %v10439 = vxor.u32 %v10400, 2147483648
      %v10440 = vxor.u32 %v10402, 2147483648
      %v10441 = vxor.u32 %v10405, 2147483648
      %v10442 = vxor.u32 %v10407, 2147483648
      %v10443 = vxor.u32 %v10410, 2147483648
      %v10444 = vxor.u32 %v10412, 2147483648
      %v10445 = vxor.u32 %v10415, 2147483648
      %v10446 = vxor.u32 %v10417, 2147483648
      %v10447 = vxor.u32 %v10420, 2147483648
      %v10448 = vxor.u32 %v10422, 2147483648
      %v10449 = vxor.u32 %v10425, 2147483648
      %v10450 = vxor.u32 %v10427, 2147483648
      %v10451 = vxor.u32 %v10430, 2147483648
      %v10452 = vxor.u32 %v10432, 2147483648
      %v10453 = vxor.u32 %v10435, 2147483648
      %v10454 = vxor.u32 %v10437, 2147483648
      %v10455 = vmul.f32 %v10439, 1.442695
      %v10456 = vpow.pop %v10455
      %v10457 = vmul.f32 %v10440, 1.442695
      %v10458 = vpow.pop %v10457
      %v10459 = vmul.f32 %v10441, 1.442695
      %v10460 = vpow.pop %v10459
      %v10461 = vmul.f32 %v10442, 1.442695
      %v10462 = vpow.pop %v10461
      %v10463 = vmul.f32 %v10443, 1.442695
      %v10464 = vpow.pop %v10463
      %v10465 = vmul.f32 %v10444, 1.442695
      %v10466 = vpow.pop %v10465
      %v10467 = vmul.f32 %v10445, 1.442695
      %v10468 = vpow.pop %v10467
      %v10469 = vmul.f32 %v10446, 1.442695
      %v10470 = vpow.pop %v10469
      %v10471 = vmul.f32 %v10447, 1.442695
      %v10472 = vpow.pop %v10471
      %v10473 = vmul.f32 %v10448, 1.442695
      %v10474 = vpow.pop %v10473
      %v10475 = vmul.f32 %v10449, 1.442695
      %v10476 = vpow.pop %v10475
      %v10477 = vmul.f32 %v10450, 1.442695
      %v10478 = vpow.pop %v10477
      %v10479 = vmul.f32 %v10451, 1.442695
      %v10480 = vpow.pop %v10479
      %v10481 = vmul.f32 %v10452, 1.442695
      %v10482 = vpow.pop %v10481
      %v10483 = vmul.f32 %v10453, 1.442695
      %v10484 = vpow.pop %v10483
      %v10485 = vmul.f32 %v10454, 1.442695
      %v10486 = vpow.pop %v10485
      %v10487 = vadd.f32 %v10456, 1.0
      %v10488 = vadd.f32 %v10458, 1.0
      %v10489 = vadd.f32 %v10460, 1.0
      %v10490 = vadd.f32 %v10462, 1.0
      %v10491 = vadd.f32 %v10464, 1.0
      %v10492 = vadd.f32 %v10466, 1.0
      %v10493 = vadd.f32 %v10468, 1.0
      %v10494 = vadd.f32 %v10470, 1.0
      %v10495 = vadd.f32 %v10472, 1.0
      %v10496 = vadd.f32 %v10474, 1.0
      %v10497 = vadd.f32 %v10476, 1.0
      %v10498 = vadd.f32 %v10478, 1.0
      %v10499 = vadd.f32 %v10480, 1.0
      %v10500 = vadd.f32 %v10482, 1.0
      %v10501 = vadd.f32 %v10484, 1.0
      %v10502 = vadd.f32 %v10486, 1.0
      %v10503 = vrcp.pop %v10487
      %v10504 = vmul.f32 %v10487, %v10503
      %v10505 = vsub.f32 1.0, %v10504
      %v10506 = vmul.f32 %v10503, %v10505
      %v10507 = vadd.f32 %v10503, %v10506
      %vm10508 = vweird.f32 %v10487
      %vm10509 = vweird.f32 %v10503
      %vm10510 = vmor %vm10508, %vm10509
      %v10511 = vsel %vm10510, %v10503, %v10507
      %v10512 = vand.u32 2147483647, %v10487
      %vm10513 = vcmp.eq.f32.partialorder %v10512, 8.507059e+37
      %v10514 = vand.u32 %v10487, 2147483648
      %v10515 = vor.u32 1.1754944e-38, %v10514
      %v10516 = vsel %vm10513, %v10515, %v10511
      %v10517 = vmul.f32 1.0, %v10516
      %v10518 = vrcp.pop %v10488
      %v10519 = vmul.f32 %v10488, %v10518
      %v10520 = vsub.f32 1.0, %v10519
      %v10521 = vmul.f32 %v10518, %v10520
      %v10522 = vadd.f32 %v10518, %v10521
      %vm10523 = vweird.f32 %v10488
      %vm10524 = vweird.f32 %v10518
      %vm10525 = vmor %vm10523, %vm10524
      %v10526 = vsel %vm10525, %v10518, %v10522
      %v10527 = vand.u32 2147483647, %v10488
      %vm10528 = vcmp.eq.f32.partialorder %v10527, 8.507059e+37
      %v10529 = vand.u32 %v10488, 2147483648
      %v10530 = vor.u32 1.1754944e-38, %v10529
      %v10531 = vsel %vm10528, %v10530, %v10526
      %v10532 = vmul.f32 1.0, %v10531
      %v10533 = vrcp.pop %v10489
      %v10534 = vmul.f32 %v10489, %v10533
      %v10535 = vsub.f32 1.0, %v10534
      %v10536 = vmul.f32 %v10533, %v10535
      %v10537 = vadd.f32 %v10533, %v10536
      %vm10538 = vweird.f32 %v10489
      %vm10539 = vweird.f32 %v10533
      %vm10540 = vmor %vm10538, %vm10539
      %v10541 = vsel %vm10540, %v10533, %v10537
      %v10542 = vand.u32 2147483647, %v10489
      %vm10543 = vcmp.eq.f32.partialorder %v10542, 8.507059e+37
      %v10544 = vand.u32 %v10489, 2147483648
      %v10545 = vor.u32 1.1754944e-38, %v10544
      %v10546 = vsel %vm10543, %v10545, %v10541
      %v10547 = vmul.f32 1.0, %v10546
      %v10548 = vrcp.pop %v10490
      %v10549 = vmul.f32 %v10490, %v10548
      %v10550 = vsub.f32 1.0, %v10549
      %v10551 = vmul.f32 %v10548, %v10550
      %v10552 = vadd.f32 %v10548, %v10551
      %vm10553 = vweird.f32 %v10490
      %vm10554 = vweird.f32 %v10548
      %vm10555 = vmor %vm10553, %vm10554
      %v10556 = vsel %vm10555, %v10548, %v10552
      %v10557 = vand.u32 2147483647, %v10490
      %vm10558 = vcmp.eq.f32.partialorder %v10557, 8.507059e+37
      %v10559 = vand.u32 %v10490, 2147483648
      %v10560 = vor.u32 1.1754944e-38, %v10559
      %v10561 = vsel %vm10558, %v10560, %v10556
      %v10562 = vmul.f32 1.0, %v10561
      %v10563 = vrcp.pop %v10491
      %v10564 = vmul.f32 %v10491, %v10563
      %v10565 = vsub.f32 1.0, %v10564
      %v10566 = vmul.f32 %v10563, %v10565
      %v10567 = vadd.f32 %v10563, %v10566
      %vm10568 = vweird.f32 %v10491
      %vm10569 = vweird.f32 %v10563
      %vm10570 = vmor %vm10568, %vm10569
      %v10571 = vsel %vm10570, %v10563, %v10567
      %v10572 = vand.u32 2147483647, %v10491
      %vm10573 = vcmp.eq.f32.partialorder %v10572, 8.507059e+37
      %v10574 = vand.u32 %v10491, 2147483648
      %v10575 = vor.u32 1.1754944e-38, %v10574
      %v10576 = vsel %vm10573, %v10575, %v10571
      %v10577 = vmul.f32 1.0, %v10576
      %v10578 = vrcp.pop %v10492
      %v10579 = vmul.f32 %v10492, %v10578
      %v10580 = vsub.f32 1.0, %v10579
      %v10581 = vmul.f32 %v10578, %v10580
      %v10582 = vadd.f32 %v10578, %v10581
      %vm10583 = vweird.f32 %v10492
      %vm10584 = vweird.f32 %v10578
      %vm10585 = vmor %vm10583, %vm10584
      %v10586 = vsel %vm10585, %v10578, %v10582
      %v10587 = vand.u32 2147483647, %v10492
      %vm10588 = vcmp.eq.f32.partialorder %v10587, 8.507059e+37
      %v10589 = vand.u32 %v10492, 2147483648
      %v10590 = vor.u32 1.1754944e-38, %v10589
      %v10591 = vsel %vm10588, %v10590, %v10586
      %v10592 = vmul.f32 1.0, %v10591
      %v10593 = vrcp.pop %v10493
      %v10594 = vmul.f32 %v10493, %v10593
      %v10595 = vsub.f32 1.0, %v10594
      %v10596 = vmul.f32 %v10593, %v10595
      %v10597 = vadd.f32 %v10593, %v10596
      %vm10598 = vweird.f32 %v10493
      %vm10599 = vweird.f32 %v10593
      %vm10600 = vmor %vm10598, %vm10599
      %v10601 = vsel %vm10600, %v10593, %v10597
      %v10602 = vand.u32 2147483647, %v10493
      %vm10603 = vcmp.eq.f32.partialorder %v10602, 8.507059e+37
      %v10604 = vand.u32 %v10493, 2147483648
      %v10605 = vor.u32 1.1754944e-38, %v10604
      %v10606 = vsel %vm10603, %v10605, %v10601
      %v10607 = vmul.f32 1.0, %v10606
      %v10608 = vrcp.pop %v10494
      %v10609 = vmul.f32 %v10494, %v10608
      %v10610 = vsub.f32 1.0, %v10609
      %v10611 = vmul.f32 %v10608, %v10610
      %v10612 = vadd.f32 %v10608, %v10611
      %vm10613 = vweird.f32 %v10494
      %vm10614 = vweird.f32 %v10608
      %vm10615 = vmor %vm10613, %vm10614
      %v10616 = vsel %vm10615, %v10608, %v10612
      %v10617 = vand.u32 2147483647, %v10494
      %vm10618 = vcmp.eq.f32.partialorder %v10617, 8.507059e+37
      %v10619 = vand.u32 %v10494, 2147483648
      %v10620 = vor.u32 1.1754944e-38, %v10619
      %v10621 = vsel %vm10618, %v10620, %v10616
      %v10622 = vmul.f32 1.0, %v10621
      %v10623 = vrcp.pop %v10495
      %v10624 = vmul.f32 %v10495, %v10623
      %v10625 = vsub.f32 1.0, %v10624
      %v10626 = vmul.f32 %v10623, %v10625
      %v10627 = vadd.f32 %v10623, %v10626
      %vm10628 = vweird.f32 %v10495
      %vm10629 = vweird.f32 %v10623
      %vm10630 = vmor %vm10628, %vm10629
      %v10631 = vsel %vm10630, %v10623, %v10627
      %v10632 = vand.u32 2147483647, %v10495
      %vm10633 = vcmp.eq.f32.partialorder %v10632, 8.507059e+37
      %v10634 = vand.u32 %v10495, 2147483648
      %v10635 = vor.u32 1.1754944e-38, %v10634
      %v10636 = vsel %vm10633, %v10635, %v10631
      %v10637 = vmul.f32 1.0, %v10636
      %v10638 = vrcp.pop %v10496
      %v10639 = vmul.f32 %v10496, %v10638
      %v10640 = vsub.f32 1.0, %v10639
      %v10641 = vmul.f32 %v10638, %v10640
      %v10642 = vadd.f32 %v10638, %v10641
      %vm10643 = vweird.f32 %v10496
      %vm10644 = vweird.f32 %v10638
      %vm10645 = vmor %vm10643, %vm10644
      %v10646 = vsel %vm10645, %v10638, %v10642
      %v10647 = vand.u32 2147483647, %v10496
      %vm10648 = vcmp.eq.f32.partialorder %v10647, 8.507059e+37
      %v10649 = vand.u32 %v10496, 2147483648
      %v10650 = vor.u32 1.1754944e-38, %v10649
      %v10651 = vsel %vm10648, %v10650, %v10646
      %v10652 = vmul.f32 1.0, %v10651
      %v10653 = vrcp.pop %v10497
      %v10654 = vmul.f32 %v10497, %v10653
      %v10655 = vsub.f32 1.0, %v10654
      %v10656 = vmul.f32 %v10653, %v10655
      %v10657 = vadd.f32 %v10653, %v10656
      %vm10658 = vweird.f32 %v10497
      %vm10659 = vweird.f32 %v10653
      %vm10660 = vmor %vm10658, %vm10659
      %v10661 = vsel %vm10660, %v10653, %v10657
      %v10662 = vand.u32 2147483647, %v10497
      %vm10663 = vcmp.eq.f32.partialorder %v10662, 8.507059e+37
      %v10664 = vand.u32 %v10497, 2147483648
      %v10665 = vor.u32 1.1754944e-38, %v10664
      %v10666 = vsel %vm10663, %v10665, %v10661
      %v10667 = vmul.f32 1.0, %v10666
      %v10668 = vrcp.pop %v10498
      %v10669 = vmul.f32 %v10498, %v10668
      %v10670 = vsub.f32 1.0, %v10669
      %v10671 = vmul.f32 %v10668, %v10670
      %v10672 = vadd.f32 %v10668, %v10671
      %vm10673 = vweird.f32 %v10498
      %vm10674 = vweird.f32 %v10668
      %vm10675 = vmor %vm10673, %vm10674
      %v10676 = vsel %vm10675, %v10668, %v10672
      %v10677 = vand.u32 2147483647, %v10498
      %vm10678 = vcmp.eq.f32.partialorder %v10677, 8.507059e+37
      %v10679 = vand.u32 %v10498, 2147483648
      %v10680 = vor.u32 1.1754944e-38, %v10679
      %v10681 = vsel %vm10678, %v10680, %v10676
      %v10682 = vmul.f32 1.0, %v10681
      %v10683 = vrcp.pop %v10499
      %v10684 = vmul.f32 %v10499, %v10683
      %v10685 = vsub.f32 1.0, %v10684
      %v10686 = vmul.f32 %v10683, %v10685
      %v10687 = vadd.f32 %v10683, %v10686
      %vm10688 = vweird.f32 %v10499
      %vm10689 = vweird.f32 %v10683
      %vm10690 = vmor %vm10688, %vm10689
      %v10691 = vsel %vm10690, %v10683, %v10687
      %v10692 = vand.u32 2147483647, %v10499
      %vm10693 = vcmp.eq.f32.partialorder %v10692, 8.507059e+37
      %v10694 = vand.u32 %v10499, 2147483648
      %v10695 = vor.u32 1.1754944e-38, %v10694
      %v10696 = vsel %vm10693, %v10695, %v10691
      %v10697 = vmul.f32 1.0, %v10696
      %v10698 = vrcp.pop %v10500
      %v10699 = vmul.f32 %v10500, %v10698
      %v10700 = vsub.f32 1.0, %v10699
      %v10701 = vmul.f32 %v10698, %v10700
      %v10702 = vadd.f32 %v10698, %v10701
      %vm10703 = vweird.f32 %v10500
      %vm10704 = vweird.f32 %v10698
      %vm10705 = vmor %vm10703, %vm10704
      %v10706 = vsel %vm10705, %v10698, %v10702
      %v10707 = vand.u32 2147483647, %v10500
      %vm10708 = vcmp.eq.f32.partialorder %v10707, 8.507059e+37
      %v10709 = vand.u32 %v10500, 2147483648
      %v10710 = vor.u32 1.1754944e-38, %v10709
      %v10711 = vsel %vm10708, %v10710, %v10706
      %v10712 = vmul.f32 1.0, %v10711
      %v10713 = vrcp.pop %v10501
      %v10714 = vmul.f32 %v10501, %v10713
      %v10715 = vsub.f32 1.0, %v10714
      %v10716 = vmul.f32 %v10713, %v10715
      %v10717 = vadd.f32 %v10713, %v10716
      %vm10718 = vweird.f32 %v10501
      %vm10719 = vweird.f32 %v10713
      %vm10720 = vmor %vm10718, %vm10719
      %v10721 = vsel %vm10720, %v10713, %v10717
      %v10722 = vand.u32 2147483647, %v10501
      %vm10723 = vcmp.eq.f32.partialorder %v10722, 8.507059e+37
      %v10724 = vand.u32 %v10501, 2147483648
      %v10725 = vor.u32 1.1754944e-38, %v10724
      %v10726 = vsel %vm10723, %v10725, %v10721
      %v10727 = vmul.f32 1.0, %v10726
      %v10728 = vrcp.pop %v10502
      %v10729 = vmul.f32 %v10502, %v10728
      %v10730 = vsub.f32 1.0, %v10729
      %v10731 = vmul.f32 %v10728, %v10730
      %v10732 = vadd.f32 %v10728, %v10731
      %vm10733 = vweird.f32 %v10502
      %vm10734 = vweird.f32 %v10728
      %vm10735 = vmor %vm10733, %vm10734
      %v10736 = vsel %vm10735, %v10728, %v10732
      %v10737 = vand.u32 2147483647, %v10502
      %vm10738 = vcmp.eq.f32.partialorder %v10737, 8.507059e+37
      %v10739 = vand.u32 %v10502, 2147483648
      %v10740 = vor.u32 1.1754944e-38, %v10739
      %v10741 = vsel %vm10738, %v10740, %v10736
      %v10742 = vmul.f32 1.0, %v10741
      %v10743 = vlaneseq
      %v10744 = vand.u32 %v10743, 127
      %vm10745 = vcmp.lt.s32.totalorder %v10744, 64
      %v10746 = vsel %vm10745, 1, 0
      %vm10747 = vcmp.eq.s32.totalorder %v10746, 1
      %10749 = vset.pattern.permute.xlu0 0
      %10750 = vperm.xlu0 %10749, %v10517
      %v10751 = vpop.permute.xlu0 %10750
      %10754 = vset.pattern.permute.xlu0 0
      %10755 = vperm.xlu0 %10754, %v10532
      %v10756 = vpop.permute.xlu0 %10755
      %10759 = vset.pattern.permute.xlu0 0
      %10760 = vperm.xlu0 %10759, %v10547
      %v10761 = vpop.permute.xlu0 %10760
      %10764 = vset.pattern.permute.xlu0 0
      %10765 = vperm.xlu0 %10764, %v10562
      %v10766 = vpop.permute.xlu0 %10765
      %10769 = vset.pattern.permute.xlu0 0
      %10770 = vperm.xlu0 %10769, %v10577
      %v10771 = vpop.permute.xlu0 %10770
      %10774 = vset.pattern.permute.xlu0 0
      %10775 = vperm.xlu0 %10774, %v10592
      %v10776 = vpop.permute.xlu0 %10775
      %10779 = vset.pattern.permute.xlu0 0
      %10780 = vperm.xlu0 %10779, %v10607
      %v10781 = vpop.permute.xlu0 %10780
      %10784 = vset.pattern.permute.xlu0 0
      %10785 = vperm.xlu0 %10784, %v10622
      %v10786 = vpop.permute.xlu0 %10785
      %10789 = vset.pattern.permute.xlu0 0
      %10790 = vperm.xlu0 %10789, %v10637
      %v10791 = vpop.permute.xlu0 %10790
      %10794 = vset.pattern.permute.xlu0 0
      %10795 = vperm.xlu0 %10794, %v10652
      %v10796 = vpop.permute.xlu0 %10795
      %10799 = vset.pattern.permute.xlu0 0
      %10800 = vperm.xlu0 %10799, %v10667
      %v10801 = vpop.permute.xlu0 %10800
      %10804 = vset.pattern.permute.xlu0 0
      %10805 = vperm.xlu0 %10804, %v10682
      %v10806 = vpop.permute.xlu0 %10805
      %10809 = vset.pattern.permute.xlu0 0
      %10810 = vperm.xlu0 %10809, %v10697
      %v10811 = vpop.permute.xlu0 %10810
      %10814 = vset.pattern.permute.xlu0 0
      %10815 = vperm.xlu0 %10814, %v10712
      %v10816 = vpop.permute.xlu0 %10815
      %10819 = vset.pattern.permute.xlu0 0
      %10820 = vperm.xlu0 %10819, %v10727
      %v10821 = vpop.permute.xlu0 %10820
      %10824 = vset.pattern.permute.xlu0 0
      %10825 = vperm.xlu0 %10824, %v10742
      %v10826 = vpop.permute.xlu0 %10825
      %10828 = vset.pattern.permute.xlu0 1
      %10829 = vperm.xlu0 %10828, %v10517
      %v10830 = vpop.permute.xlu0 %10829
      %10832 = vset.pattern.permute.xlu0 1
      %10833 = vperm.xlu0 %10832, %v10532
      %v10834 = vpop.permute.xlu0 %10833
      %10836 = vset.pattern.permute.xlu0 1
      %10837 = vperm.xlu0 %10836, %v10547
      %v10838 = vpop.permute.xlu0 %10837
      %10840 = vset.pattern.permute.xlu0 1
      %10841 = vperm.xlu0 %10840, %v10562
      %v10842 = vpop.permute.xlu0 %10841
      %10844 = vset.pattern.permute.xlu0 1
      %10845 = vperm.xlu0 %10844, %v10577
      %v10846 = vpop.permute.xlu0 %10845
      %10848 = vset.pattern.permute.xlu0 1
      %10849 = vperm.xlu0 %10848, %v10592
      %v10850 = vpop.permute.xlu0 %10849
      %10852 = vset.pattern.permute.xlu0 1
      %10853 = vperm.xlu0 %10852, %v10607
      %v10854 = vpop.permute.xlu0 %10853
      %10856 = vset.pattern.permute.xlu0 1
      %10857 = vperm.xlu0 %10856, %v10622
      %v10858 = vpop.permute.xlu0 %10857
      %10860 = vset.pattern.permute.xlu0 1
      %10861 = vperm.xlu0 %10860, %v10637
      %v10862 = vpop.permute.xlu0 %10861
      %10864 = vset.pattern.permute.xlu0 1
      %10865 = vperm.xlu0 %10864, %v10652
      %v10866 = vpop.permute.xlu0 %10865
      %10868 = vset.pattern.permute.xlu0 1
      %10869 = vperm.xlu0 %10868, %v10667
      %v10870 = vpop.permute.xlu0 %10869
      %10872 = vset.pattern.permute.xlu0 1
      %10873 = vperm.xlu0 %10872, %v10682
      %v10874 = vpop.permute.xlu0 %10873
      %10876 = vset.pattern.permute.xlu0 1
      %10877 = vperm.xlu0 %10876, %v10697
      %v10878 = vpop.permute.xlu0 %10877
      %10880 = vset.pattern.permute.xlu0 1
      %10881 = vperm.xlu0 %10880, %v10712
      %v10882 = vpop.permute.xlu0 %10881
      %10884 = vset.pattern.permute.xlu0 1
      %10885 = vperm.xlu0 %10884, %v10727
      %v10886 = vpop.permute.xlu0 %10885
      %10888 = vset.pattern.permute.xlu0 1
      %10889 = vperm.xlu0 %10888, %v10742
      %v10890 = vpop.permute.xlu0 %10889
      %v10892 = vsel %vm10747, %v10751, %v10830
      %v10893 = vsel %vm10747, %v10756, %v10834
      %v10894 = vsel %vm10747, %v10761, %v10838
      %v10895 = vsel %vm10747, %v10766, %v10842
      %v10896 = vsel %vm10747, %v10771, %v10846
      %v10897 = vsel %vm10747, %v10776, %v10850
      %v10898 = vsel %vm10747, %v10781, %v10854
      %v10899 = vsel %vm10747, %v10786, %v10858
      %v10900 = vsel %vm10747, %v10791, %v10862
      %v10901 = vsel %vm10747, %v10796, %v10866
      %v10902 = vsel %vm10747, %v10801, %v10870
      %v10903 = vsel %vm10747, %v10806, %v10874
      %v10904 = vsel %vm10747, %v10811, %v10878
      %v10905 = vsel %vm10747, %v10816, %v10882
      %v10906 = vsel %vm10747, %v10821, %v10886
      %v10907 = vsel %vm10747, %v10826, %v10890
      %v10908 = vmul.f32 %v10298, %v10892
      %v10909 = vmul.f32 %v10299, %v10893
      %v10910 = vmul.f32 %v10300, %v10894
      %v10911 = vmul.f32 %v10301, %v10895
      %v10912 = vmul.f32 %v10302, %v10896
      %v10913 = vmul.f32 %v10303, %v10897
      %v10914 = vmul.f32 %v10304, %v10898
      %v10915 = vmul.f32 %v10305, %v10899
      %v10916 = vmul.f32 %v10306, %v10900
      %v10917 = vmul.f32 %v10307, %v10901
      %v10918 = vmul.f32 %v10308, %v10902
      %v10919 = vmul.f32 %v10309, %v10903
      %v10920 = vmul.f32 %v10310, %v10904
      %v10921 = vmul.f32 %v10311, %v10905
      %v10922 = vmul.f32 %v10312, %v10906
      %v10923 = vmul.f32 %v10313, %v10907
      %10924 = vst [vmem:[%s370] sm:$0xff] %v10908
      %10925 = vst [vmem:[%s370 + $0x8] sm:$0xff] %v10909
      %10926 = vst [vmem:[%s370 + $0x10] sm:$0xff] %v10910
      %10927 = vst [vmem:[%s370 + $0x18] sm:$0xff] %v10911
      %10928 = vst [vmem:[%s370 + $0x20] sm:$0xff] %v10912
      %10929 = vst [vmem:[%s370 + $0x28] sm:$0xff] %v10913
      %10930 = vst [vmem:[%s370 + $0x30] sm:$0xff] %v10914
      %10931 = vst [vmem:[%s370 + $0x38] sm:$0xff] %v10915
      %10932 = vst [vmem:[%s370 + $0x40] sm:$0xff] %v10916
      %10933 = vst [vmem:[%s370 + $0x48] sm:$0xff] %v10917
      %10934 = vst [vmem:[%s370 + $0x50] sm:$0xff] %v10918
      %10935 = vst [vmem:[%s370 + $0x58] sm:$0xff] %v10919
      %10936 = vst [vmem:[%s370 + $0x60] sm:$0xff] %v10920
      %10937 = vst [vmem:[%s370 + $0x68] sm:$0xff] %v10921
      %10938 = vst [vmem:[%s370 + $0x70] sm:$0xff] %v10922
      %10939 = vst [vmem:[%s370 + $0x78] sm:$0xff] %v10923
      %s10940 = smul.u32 8, %s25
      %p10941 = scmp.lt.s32.totalorder %s24, 1
      %s10942 = scalar_select %p10941, %s24, 1
      %p10943 = scmp.lt.s32.totalorder %s10940, 15
      %s10944 = scalar_select %p10943, %s10940, 15
      %s10945 = smul.addr %s10944, 2
      %s10946 = smul.addr %s10942, 32
      %s10947 = sadd.s32 %s10945, %s10946
      %s10948 = smul.addr %s10947, 8
      %s10949 = scalar_lea.vmem %s9, %s10948
      // Predicated region
      $region57: #{tsdm_forward.1} parent=55 // pred_check
        %p10950 = pneg %p248
      $region58: #{tsdm_forward.1} parent=55 // pred_check_branch
        %10952 = sbr.rel (%p10950) target = $region60
      $region59: #{tsdm_forward.1} parent=55 // pred_region
        %s10953 = smul.u32 8, %s25
      $region60: #{tsdm_forward.1} parent=55 // pred_fallthru
        _
    $region56: #{tsdm_forward.1} parent=5 // pred_fallthru
      _
    %p10954 = scmp.le.s32.totalorder 2, %s15
    // Predicated region
    $region61: #{tsdm_forward.1} parent=5 // pred_check
      %p10955 = pneg %p10954
    $region62: #{tsdm_forward.1} parent=5 // pred_check_branch
      %10957 = sbr.rel (%p10955) target = $region64
    $region63: #{tsdm_forward.1} parent=5 // pred_region
      %s10958 = ssub.s32 %s15, 2
      // Predicated region
      $region65: #{tsdm_forward.1} parent=63 // pred_check
        %p10959 = pneg %p254
      $region66: #{tsdm_forward.1} parent=63 // pred_check_branch
        %10961 = sbr.rel (%p10959) target = $region68
      $region67: #{tsdm_forward.1} parent=63 // pred_region
        %s10962 = smul.u32 8, %s27
        %p10963 = scmp.lt.s32.totalorder %s26, 1
        %s10964 = scalar_select %p10963, %s26, 1
        %p10965 = scmp.lt.s32.totalorder %s10962, 15
        %s10966 = scalar_select %p10965, %s10962, 15
        %s10967 = smul.addr %s10966, 2
        %s10968 = smul.addr %s10964, 32
        %s10969 = sadd.s32 %s10967, %s10968
        %s10970 = smul.addr %s10969, 8
        %s10971 = scalar_lea.vmem %s9, %s10970
      $region68: #{tsdm_forward.1} parent=63 // pred_fallthru
        _
    $region64: #{tsdm_forward.1} parent=5 // pred_fallthru
      _
  $region6: #{tsdm_forward.1} parent=0 // loop_footer
    %s19 = sadd.s32 1, %s15
  $region7: #{tsdm_forward.1} parent=0 // loop_footer_branch
    %14 = sbr.rel target = $region3
  $region8: #{tsdm_forward.1} parent=0 // loop_exit
    _

</llo_original>
